<compile_context>
chip_gen: v7x
topology: tpu7x:2x2x1
jax: 0.10.0
libtpu: 0.0.40
codegen_flags: <defaults>
</compile_context>

<pallas_src>
import functools

import jax
import jax.numpy as jnp
from jax.experimental import pallas as pl
from jax.experimental.pallas import tpu as pltpu


GAUSS_TAPS = (0.0625, 0.25, 0.375, 0.25, 0.0625)   # cv2.getGaussianKernel(5, 0): [1,4,6,4,1]/16
UP_TAPS = tuple(2.0 * t for t in GAUSS_TAPS)        # 4*outer(g,g) == outer(2g,2g)


def _round_up(x, m):
    return (x + m - 1) // m * m


# --------------------------------------------------------------------------
# Kernel 1: transposed conv-GEMM  W(Cout,K) @ A(K, M_tile)  with fused epilogue
# --------------------------------------------------------------------------
def _convmm_kernel(w_ref, a_ref, bias_ref, *rest, leaky, relu, has_res):
    if has_res:
        res_ref, o_ref = rest
    else:
        (o_ref,) = rest
    acc = jnp.dot(w_ref[...], a_ref[...], preferred_element_type=jnp.float32)
    acc = acc + bias_ref[...]                      # (Cout,1) broadcasts over lanes
    if leaky:                                      # LeakyReLU(0.2) (applied before residual)
        acc = jnp.where(acc >= 0.0, acc, 0.2 * acc)
    if has_res:
        acc = acc + res_ref[...]
    if relu:
        acc = jnp.maximum(acc, 0.0)
    o_ref[...] = acc


def conv2d(x, w, b, padding, leaky=False, relu=False, residual=None):
    """Dense conv, stride 1.  x:(Cin,N,H,W) channels-first-flat, w:(Cout,Cin,kh,kw),
    optional fused residual (Cout,N,Ho,Wo) added after the (optional) LeakyReLU."""
    Cin, N, H, W = x.shape
    Cout, _, kh, kw = w.shape
    Ho = H + 2 * padding - kh + 1
    Wo = W + 2 * padding - kw + 1

    xq = jnp.pad(x, ((0, 0), (0, 0), (padding,) * 2, (padding,) * 2)) if padding else x
    if kh == 1 and kw == 1 and padding == 0:
        A = xq.reshape(Cin, N * Ho * Wo)
    else:
        # TODO(synk): im2col patch extraction stays XLA glue; could move in-kernel with a
        # halo-tile DMA.  The (C,N,H,W) layout keeps it transpose-free either way.
        patches = [xq[:, :, dy:dy + Ho, dx:dx + Wo]
                   for dy in range(kh) for dx in range(kw)]
        A = jnp.stack(patches, axis=1).reshape(Cin * kh * kw, N * Ho * Wo)
    K, M = A.shape

    tm = min(512, _round_up(M, 128))               # lane-dense tile, multiple of 128
    Mp = _round_up(M, tm)
    if Mp != M:
        A = jnp.pad(A, ((0, 0), (0, Mp - M)))
    A = A.astype(jnp.bfloat16)                     # bf16 MXU inputs, f32 accumulate
    Wm = w.reshape(Cout, K).astype(jnp.bfloat16)
    bias2 = b.reshape(Cout, 1).astype(jnp.float32)

    args = [Wm, A, bias2]
    in_specs = [
        pl.BlockSpec((Cout, K), lambda i: (0, 0)),
        pl.BlockSpec((K, tm), lambda i: (0, i)),
        pl.BlockSpec((Cout, 1), lambda i: (0, 0)),
    ]
    has_res = residual is not None
    if has_res:
        R = residual.reshape(Cout, M).astype(jnp.float32)
        if Mp != M:
            R = jnp.pad(R, ((0, 0), (0, Mp - M)))
        args.append(R)
        in_specs.append(pl.BlockSpec((Cout, tm), lambda i: (0, i)))

    out = pl.pallas_call(
        functools.partial(_convmm_kernel, leaky=leaky, relu=relu, has_res=has_res),
        out_shape=jax.ShapeDtypeStruct((Cout, Mp), jnp.float32),
        grid=(Mp // tm,),
        in_specs=in_specs,
        out_specs=pl.BlockSpec((Cout, tm), lambda i: (0, i)),
        compiler_params=pltpu.CompilerParams(dimension_semantics=("parallel",)),
    )(*args)
    if Mp != M:
        out = out[:, :M]
    return out.reshape(Cout, N, Ho, Wo)


# --------------------------------------------------------------------------
# Kernel 2: separable 5-tap Gaussian stencil (VPU), fused  alpha*blur + beta*other (+ReLU)
# --------------------------------------------------------------------------
def _gauss_stencil_kernel(xp_ref, *rest, taps, alpha, beta, relu, has_other, ho, wo):
    if has_other:
        other_ref, o_ref = rest
    else:
        (o_ref,) = rest
    x = xp_ref[0]                                    # (ho+4, wo+4)
    # vertical 5-tap pass
    v = (taps[0] * x[0:ho, :] + taps[1] * x[1:ho + 1, :] + taps[2] * x[2:ho + 2, :]
         + taps[3] * x[3:ho + 3, :] + taps[4] * x[4:ho + 4, :])
    # horizontal 5-tap pass
    h = (taps[0] * v[:, 0:wo] + taps[1] * v[:, 1:wo + 1] + taps[2] * v[:, 2:wo + 2]
         + taps[3] * v[:, 3:wo + 3] + taps[4] * v[:, 4:wo + 4])
    res = h if alpha == 1.0 else alpha * h
    if has_other:
        res = res + beta * other_ref[0]
    if relu:
        res = jnp.maximum(res, 0.0)
    o_ref[0] = res


def gauss_stencil(xp, taps, ho, wo, other=None, alpha=1.0, beta=1.0, relu=False):
    """xp:(C,N,ho+4,wo+4) pre-padded input; other:(C,N,ho,wo) or None.
    Returns alpha*depthwise5x5(xp) + beta*other, optionally ReLU'd."""
    C, N, Hp, Wp = xp.shape
    CN = C * N
    xp2 = xp.reshape(CN, Hp, Wp).astype(jnp.float32)
    args = [xp2]
    in_specs = [pl.BlockSpec((1, Hp, Wp), lambda i: (i, 0, 0))]
    has_other = other is not None
    if has_other:
        args.append(other.reshape(CN, ho, wo).astype(jnp.float32))
        in_specs.append(pl.BlockSpec((1, ho, wo), lambda i: (i, 0, 0)))

    out = pl.pallas_call(
        functools.partial(_gauss_stencil_kernel, taps=tuple(float(t) for t in taps),
                          alpha=float(alpha), beta=float(beta), relu=relu,
                          has_other=has_other, ho=ho, wo=wo),
        out_shape=jax.ShapeDtypeStruct((CN, ho, wo), jnp.float32),
        grid=(CN,),
        in_specs=in_specs,
        out_specs=pl.BlockSpec((1, ho, wo), lambda i: (i, 0, 0)),
        compiler_params=pltpu.CompilerParams(dimension_semantics=("parallel",)),
    )(*args)
    return out.reshape(C, N, ho, wo)


def conv_gauss(x):
    # TODO(synk): replicate ('edge') padding assumed for mmderain's conv_gauss.
    C, N, H, W = x.shape
    xp = jnp.pad(x, ((0, 0), (0, 0), (2, 2), (2, 2)), mode="edge")
    return gauss_stencil(xp, GAUSS_TAPS, H, W)


def pyr_upsample(x, ho, wo, other=None, alpha=1.0, beta=1.0, relu=False):
    """conv_transpose2d(x, 4*gauss, stride=2, padding=2, output_padding, groups=C),
    expressed as zero-dilate + zero-pad + separable depthwise 5x5 stencil."""
    # TODO(synk): polyphase sub-filters would avoid multiplying the dilation zeros.
    C, N, H, W = x.shape
    oph = ho - (2 * H - 1)
    opw = wo - (2 * W - 1)
    xd = jnp.zeros((C, N, 2 * H - 1, 2 * W - 1), x.dtype).at[:, :, ::2, ::2].set(x)
    xp = jnp.pad(xd, ((0, 0), (0, 0), (2, 2 + oph), (2, 2 + opw)))
    return gauss_stencil(xp, UP_TAPS, ho, wo, other=other, alpha=alpha, beta=beta, relu=relu)


def laplacian_pyramid(x, n_levels):
    """Returns (diffs ordered coarse->fine, last coarse Gaussian level)."""
    current = x
    pyr = []
    for _ in range(n_levels):
        filtered = conv_gauss(current)
        down = filtered[:, :, ::2, ::2]
        # diff = current - upsample(down), fused in the stencil epilogue
        diff = pyr_upsample(down, current.shape[2], current.shape[3],
                            other=current, alpha=-1.0, beta=1.0)
        pyr.insert(0, diff)
        current = down
    return pyr, current


# --------------------------------------------------------------------------
# LPNet modules (channels-first-flat internal layout (C, N, H, W))
# --------------------------------------------------------------------------
def subnet_forward(x, p, n_recursion, final_relu):
    feat = conv2d(x, p["conv0_w"], p["conv0_b"], padding=1, leaky=True)
    out = feat
    for _ in range(n_recursion):
        r = conv2d(out, p["rec0_w"], p["rec0_b"], padding=1, leaky=True)
        r = conv2d(r, p["rec1_w"], p["rec1_b"], padding=0, leaky=True)
        out = conv2d(r, p["rec2_w"], p["rec2_b"], padding=1, leaky=True, residual=feat)
    # last 1x1 conv with fused input residual (x + out); ReLU fused only for coarsest level
    out = conv2d(out, p["last_w"], p["last_b"], padding=0, residual=x, relu=final_relu)
    return out


def lpnet_forward(x_nchw, subnet_params, max_level, n_recursion):
    x = jnp.transpose(x_nchw, (1, 0, 2, 3)).astype(jnp.float32)   # (C, N, H, W)
    pyr, last = laplacian_pyramid(x, max_level - 1)
    pyramid = [last] + pyr                                        # coarse -> fine
    outputs = []
    prev = None
    for xi, p in zip(pyramid, subnet_params):
        out = subnet_forward(xi, p, n_recursion, final_relu=(prev is None))
        if prev is not None:
            # out = relu(out + upsample(prev)), fully fused into the upsample stencil
            out = pyr_upsample(prev, out.shape[2], out.shape[3],
                               other=out, alpha=1.0, beta=1.0, relu=True)
        outputs.append(out)
        prev = out
    return [jnp.transpose(o, (1, 0, 2, 3)) for o in outputs]      # back to NCHW


def init_subnet_params(key, in_ch, out_ch, mid):
    ks = jax.random.split(key, 10)

    def conv(kk, co, ci, k):
        fan = float(ci * k * k)
        return jax.random.normal(kk, (co, ci, k, k), jnp.float32) / (fan ** 0.5)

    return {
        "conv0_w": conv(ks[0], mid, in_ch, 3),
        "conv0_b": 0.01 * jax.random.normal(ks[1], (mid,), jnp.float32),
        "rec0_w": conv(ks[2], mid, mid, 3),
        "rec0_b": 0.01 * jax.random.normal(ks[3], (mid,), jnp.float32),
        "rec1_w": conv(ks[4], mid, mid, 1),
        "rec1_b": 0.01 * jax.random.normal(ks[5], (mid,), jnp.float32),
        "rec2_w": conv(ks[6], mid, mid, 3),
        "rec2_b": 0.01 * jax.random.normal(ks[7], (mid,), jnp.float32),
        "last_w": conv(ks[8], out_ch, mid, 1),
        "last_b": 0.01 * jax.random.normal(ks[9], (out_ch,), jnp.float32),
    }


if __name__ == "__main__":
    key = jax.random.PRNGKey(0)
    kx, kp = jax.random.split(key)

    N, in_ch, H, W = 2, 3, 32, 32
    out_ch, mid_ch, max_level, n_recursion = 3, 8, 3, 2

    x = jax.random.uniform(kx, (N, in_ch, H, W), jnp.float32)

    # Subnets ordered coarse -> fine: mid = mid_ch // 2**i, i in reversed(range(max_level))
    pkeys = jax.random.split(kp, max_level)
    subnet_params = [
        init_subnet_params(pkeys[j], in_ch, out_ch, mid_ch // (2 ** i))
        for j, i in enumerate(reversed(range(max_level)))
    ]

    fwd = jax.jit(functools.partial(lpnet_forward, max_level=max_level,
                                    n_recursion=n_recursion))
    outputs = fwd(x, subnet_params)
    for o in outputs:
        jax.block_until_ready(o)
    print("KERNEL_OK")
</pallas_src>

<mosaic_0001>
module attributes {stable_mosaic.version = 11 : i64} {
  func.func @_gauss_stencil_kernel(%arg0: i32, %arg1: memref<1x36x36xf32, #tpu.memory_space<vmem>>, %arg2: memref<1x32x32xf32, #tpu.memory_space<vmem>>) attributes {dimension_semantics = [#tpu.dimension_semantics<parallel>], iteration_bounds = array<i64: 6>, scalar_prefetch = 0 : i64, scratch_operands = 0 : i64, tpu.core_type = #tpu.core_type<tc>, window_params = [{transform_indices = @transform_0, window_bounds = array<i64: 1, 36, 36>}, {transform_indices = @transform_1, window_bounds = array<i64: 1, 32, 32>}]} {
    %c0 = arith.constant 0 : index
    %c0_0 = arith.constant 0 : index
    %c0_1 = arith.constant 0 : index
    %0 = vector.load %arg1[%c0, %c0_0, %c0_1] : memref<1x36x36xf32, #tpu.memory_space<vmem>>, vector<1x36x36xf32>
    %1 = vector.shape_cast %0 : vector<1x36x36xf32> to vector<36x36xf32>
    %2 = vector.extract_strided_slice %1 {offsets = [0, 0], sizes = [32, 36], strides = [1, 1]} : vector<36x36xf32> to vector<32x36xf32>
    %cst = arith.constant 6.250000e-02 : f32
    %3 = vector.broadcast %cst : f32 to vector<32x36xf32>
    %4 = arith.mulf %3, %2 : vector<32x36xf32>
    %5 = vector.extract_strided_slice %1 {offsets = [1, 0], sizes = [32, 36], strides = [1, 1]} : vector<36x36xf32> to vector<32x36xf32>
    %cst_2 = arith.constant 2.500000e-01 : f32
    %6 = vector.broadcast %cst_2 : f32 to vector<32x36xf32>
    %7 = arith.mulf %6, %5 : vector<32x36xf32>
    %8 = arith.addf %4, %7 : vector<32x36xf32>
    %9 = vector.extract_strided_slice %1 {offsets = [2, 0], sizes = [32, 36], strides = [1, 1]} : vector<36x36xf32> to vector<32x36xf32>
    %cst_3 = arith.constant 3.750000e-01 : f32
    %10 = vector.broadcast %cst_3 : f32 to vector<32x36xf32>
    %11 = arith.mulf %10, %9 : vector<32x36xf32>
    %12 = arith.addf %8, %11 : vector<32x36xf32>
    %13 = vector.extract_strided_slice %1 {offsets = [3, 0], sizes = [32, 36], strides = [1, 1]} : vector<36x36xf32> to vector<32x36xf32>
    %cst_4 = arith.constant 2.500000e-01 : f32
    %14 = vector.broadcast %cst_4 : f32 to vector<32x36xf32>
    %15 = arith.mulf %14, %13 : vector<32x36xf32>
    %16 = arith.addf %12, %15 : vector<32x36xf32>
    %17 = vector.extract_strided_slice %1 {offsets = [4, 0], sizes = [32, 36], strides = [1, 1]} : vector<36x36xf32> to vector<32x36xf32>
    %cst_5 = arith.constant 6.250000e-02 : f32
    %18 = vector.broadcast %cst_5 : f32 to vector<32x36xf32>
    %19 = arith.mulf %18, %17 : vector<32x36xf32>
    %20 = arith.addf %16, %19 : vector<32x36xf32>
    %21 = vector.extract_strided_slice %20 {offsets = [0, 0], sizes = [32, 32], strides = [1, 1]} : vector<32x36xf32> to vector<32x32xf32>
    %cst_6 = arith.constant 6.250000e-02 : f32
    %22 = vector.broadcast %cst_6 : f32 to vector<32x32xf32>
    %23 = arith.mulf %22, %21 : vector<32x32xf32>
    %24 = vector.extract_strided_slice %20 {offsets = [0, 1], sizes = [32, 32], strides = [1, 1]} : vector<32x36xf32> to vector<32x32xf32>
    %cst_7 = arith.constant 2.500000e-01 : f32
    %25 = vector.broadcast %cst_7 : f32 to vector<32x32xf32>
    %26 = arith.mulf %25, %24 : vector<32x32xf32>
    %27 = arith.addf %23, %26 : vector<32x32xf32>
    %28 = vector.extract_strided_slice %20 {offsets = [0, 2], sizes = [32, 32], strides = [1, 1]} : vector<32x36xf32> to vector<32x32xf32>
    %cst_8 = arith.constant 3.750000e-01 : f32
    %29 = vector.broadcast %cst_8 : f32 to vector<32x32xf32>
    %30 = arith.mulf %29, %28 : vector<32x32xf32>
    %31 = arith.addf %27, %30 : vector<32x32xf32>
    %32 = vector.extract_strided_slice %20 {offsets = [0, 3], sizes = [32, 32], strides = [1, 1]} : vector<32x36xf32> to vector<32x32xf32>
    %cst_9 = arith.constant 2.500000e-01 : f32
    %33 = vector.broadcast %cst_9 : f32 to vector<32x32xf32>
    %34 = arith.mulf %33, %32 : vector<32x32xf32>
    %35 = arith.addf %31, %34 : vector<32x32xf32>
    %36 = vector.extract_strided_slice %20 {offsets = [0, 4], sizes = [32, 32], strides = [1, 1]} : vector<32x36xf32> to vector<32x32xf32>
    %cst_10 = arith.constant 6.250000e-02 : f32
    %37 = vector.broadcast %cst_10 : f32 to vector<32x32xf32>
    %38 = arith.mulf %37, %36 : vector<32x32xf32>
    %39 = arith.addf %35, %38 : vector<32x32xf32>
    %c0_11 = arith.constant 0 : index
    %c0_12 = arith.constant 0 : index
    %c0_13 = arith.constant 0 : index
    %40 = vector.load %arg2[%c0_11, %c0_12, %c0_13] : memref<1x32x32xf32, #tpu.memory_space<vmem>>, vector<1x32x32xf32>
    %41 = vector.shape_cast %40 : vector<1x32x32xf32> to vector<32x32xf32>
    %42 = vector.shape_cast %39 : vector<32x32xf32> to vector<1x32x32xf32>
    tpu.vector_store %arg2[%c0_11, %c0_12, %c0_13], %42 {strides = array<i32>} : memref<1x32x32xf32, #tpu.memory_space<vmem>>, vector<1x32x32xf32>,
    return
  }
  func.func @transform_0(%arg0: i32) -> (i32, i32, i32) {
    %c0_i32 = arith.constant 0 : i32
    %c0_i32_0 = arith.constant 0 : i32
    %c0_i32_1 = arith.constant 0 : i32
    return %arg0, %c0_i32, %c0_i32_0 : i32, i32, i32
  }
  func.func @transform_1(%arg0: i32) -> (i32, i32, i32) {
    %c0_i32 = arith.constant 0 : i32
    %c0_i32_0 = arith.constant 0 : i32
    %c0_i32_1 = arith.constant 0 : i32
    return %arg0, %c0_i32, %c0_i32_0 : i32, i32, i32
  }
}

module attributes {stable_mosaic.version = 11 : i64} {
  func.func @_gauss_stencil_kernel(%arg0: i32, %arg1: memref<1x36x36xf32, #tpu.memory_space<vmem>>, %arg2: memref<1x32x32xf32, #tpu.memory_space<vmem>>, %arg3: memref<1x32x32xf32, #tpu.memory_space<vmem>>) attributes {dimension_semantics = [#tpu.dimension_semantics<parallel>], iteration_bounds = array<i64: 6>, scalar_prefetch = 0 : i64, scratch_operands = 0 : i64, tpu.core_type = #tpu.core_type<tc>, window_params = [{transform_indices = @transform_0, window_bounds = array<i64: 1, 36, 36>}, {transform_indices = @transform_1, window_bounds = array<i64: 1, 32, 32>}, {transform_indices = @transform_2, window_bounds = array<i64: 1, 32, 32>}]} {
    %c0 = arith.constant 0 : index
    %c0_0 = arith.constant 0 : index
    %c0_1 = arith.constant 0 : index
    %0 = vector.load %arg1[%c0, %c0_0, %c0_1] : memref<1x36x36xf32, #tpu.memory_space<vmem>>, vector<1x36x36xf32>
    %1 = vector.shape_cast %0 : vector<1x36x36xf32> to vector<36x36xf32>
    %2 = vector.extract_strided_slice %1 {offsets = [0, 0], sizes = [32, 36], strides = [1, 1]} : vector<36x36xf32> to vector<32x36xf32>
    %cst = arith.constant 1.250000e-01 : f32
    %3 = vector.broadcast %cst : f32 to vector<32x36xf32>
    %4 = arith.mulf %3, %2 : vector<32x36xf32>
    %5 = vector.extract_strided_slice %1 {offsets = [1, 0], sizes = [32, 36], strides = [1, 1]} : vector<36x36xf32> to vector<32x36xf32>
    %cst_2 = arith.constant 5.000000e-01 : f32
    %6 = vector.broadcast %cst_2 : f32 to vector<32x36xf32>
    %7 = arith.mulf %6, %5 : vector<32x36xf32>
    %8 = arith.addf %4, %7 : vector<32x36xf32>
    %9 = vector.extract_strided_slice %1 {offsets = [2, 0], sizes = [32, 36], strides = [1, 1]} : vector<36x36xf32> to vector<32x36xf32>
    %cst_3 = arith.constant 7.500000e-01 : f32
    %10 = vector.broadcast %cst_3 : f32 to vector<32x36xf32>
    %11 = arith.mulf %10, %9 : vector<32x36xf32>
    %12 = arith.addf %8, %11 : vector<32x36xf32>
    %13 = vector.extract_strided_slice %1 {offsets = [3, 0], sizes = [32, 36], strides = [1, 1]} : vector<36x36xf32> to vector<32x36xf32>
    %cst_4 = arith.constant 5.000000e-01 : f32
    %14 = vector.broadcast %cst_4 : f32 to vector<32x36xf32>
    %15 = arith.mulf %14, %13 : vector<32x36xf32>
    %16 = arith.addf %12, %15 : vector<32x36xf32>
    %17 = vector.extract_strided_slice %1 {offsets = [4, 0], sizes = [32, 36], strides = [1, 1]} : vector<36x36xf32> to vector<32x36xf32>
    %cst_5 = arith.constant 1.250000e-01 : f32
    %18 = vector.broadcast %cst_5 : f32 to vector<32x36xf32>
    %19 = arith.mulf %18, %17 : vector<32x36xf32>
    %20 = arith.addf %16, %19 : vector<32x36xf32>
    %21 = vector.extract_strided_slice %20 {offsets = [0, 0], sizes = [32, 32], strides = [1, 1]} : vector<32x36xf32> to vector<32x32xf32>
    %cst_6 = arith.constant 1.250000e-01 : f32
    %22 = vector.broadcast %cst_6 : f32 to vector<32x32xf32>
    %23 = arith.mulf %22, %21 : vector<32x32xf32>
    %24 = vector.extract_strided_slice %20 {offsets = [0, 1], sizes = [32, 32], strides = [1, 1]} : vector<32x36xf32> to vector<32x32xf32>
    %cst_7 = arith.constant 5.000000e-01 : f32
    %25 = vector.broadcast %cst_7 : f32 to vector<32x32xf32>
    %26 = arith.mulf %25, %24 : vector<32x32xf32>
    %27 = arith.addf %23, %26 : vector<32x32xf32>
    %28 = vector.extract_strided_slice %20 {offsets = [0, 2], sizes = [32, 32], strides = [1, 1]} : vector<32x36xf32> to vector<32x32xf32>
    %cst_8 = arith.constant 7.500000e-01 : f32
    %29 = vector.broadcast %cst_8 : f32 to vector<32x32xf32>
    %30 = arith.mulf %29, %28 : vector<32x32xf32>
    %31 = arith.addf %27, %30 : vector<32x32xf32>
    %32 = vector.extract_strided_slice %20 {offsets = [0, 3], sizes = [32, 32], strides = [1, 1]} : vector<32x36xf32> to vector<32x32xf32>
    %cst_9 = arith.constant 5.000000e-01 : f32
    %33 = vector.broadcast %cst_9 : f32 to vector<32x32xf32>
    %34 = arith.mulf %33, %32 : vector<32x32xf32>
    %35 = arith.addf %31, %34 : vector<32x32xf32>
    %36 = vector.extract_strided_slice %20 {offsets = [0, 4], sizes = [32, 32], strides = [1, 1]} : vector<32x36xf32> to vector<32x32xf32>
    %cst_10 = arith.constant 1.250000e-01 : f32
    %37 = vector.broadcast %cst_10 : f32 to vector<32x32xf32>
    %38 = arith.mulf %37, %36 : vector<32x32xf32>
    %39 = arith.addf %35, %38 : vector<32x32xf32>
    %cst_11 = arith.constant -1.000000e+00 : f32
    %40 = vector.broadcast %cst_11 : f32 to vector<32x32xf32>
    %41 = arith.mulf %40, %39 : vector<32x32xf32>
    %c0_12 = arith.constant 0 : index
    %c0_13 = arith.constant 0 : index
    %c0_14 = arith.constant 0 : index
    %42 = vector.load %arg2[%c0_12, %c0_13, %c0_14] : memref<1x32x32xf32, #tpu.memory_space<vmem>>, vector<1x32x32xf32>
    %43 = vector.shape_cast %42 : vector<1x32x32xf32> to vector<32x32xf32>
    %cst_15 = arith.constant 1.000000e+00 : f32
    %44 = vector.broadcast %cst_15 : f32 to vector<32x32xf32>
    %45 = arith.mulf %44, %43 : vector<32x32xf32>
    %46 = arith.addf %41, %45 : vector<32x32xf32>
    %c0_16 = arith.constant 0 : index
    %c0_17 = arith.constant 0 : index
    %c0_18 = arith.constant 0 : index
    %47 = vector.load %arg3[%c0_16, %c0_17, %c0_18] : memref<1x32x32xf32, #tpu.memory_space<vmem>>, vector<1x32x32xf32>
    %48 = vector.shape_cast %47 : vector<1x32x32xf32> to vector<32x32xf32>
    %49 = vector.shape_cast %46 : vector<32x32xf32> to vector<1x32x32xf32>
    tpu.vector_store %arg3[%c0_16, %c0_17, %c0_18], %49 {strides = array<i32>} : memref<1x32x32xf32, #tpu.memory_space<vmem>>, vector<1x32x32xf32>,
    return
  }
  func.func @transform_0(%arg0: i32) -> (i32, i32, i32) {
    %c0_i32 = arith.constant 0 : i32
    %c0_i32_0 = arith.constant 0 : i32
    %c0_i32_1 = arith.constant 0 : i32
    return %arg0, %c0_i32, %c0_i32_0 : i32, i32, i32
  }
  func.func @transform_1(%arg0: i32) -> (i32, i32, i32) {
    %c0_i32 = arith.constant 0 : i32
    %c0_i32_0 = arith.constant 0 : i32
    %c0_i32_1 = arith.constant 0 : i32
    return %arg0, %c0_i32, %c0_i32_0 : i32, i32, i32
  }
  func.func @transform_2(%arg0: i32) -> (i32, i32, i32) {
    %c0_i32 = arith.constant 0 : i32
    %c0_i32_0 = arith.constant 0 : i32
    %c0_i32_1 = arith.constant 0 : i32
    return %arg0, %c0_i32, %c0_i32_0 : i32, i32, i32
  }
}

module attributes {stable_mosaic.version = 11 : i64} {
  func.func @_convmm_kernel(%arg0: i32, %arg1: memref<8x27xbf16, #tpu.memory_space<vmem>>, %arg2: memref<27x512xbf16, #tpu.memory_space<vmem>>, %arg3: memref<8x1xf32, #tpu.memory_space<vmem>>, %arg4: memref<8x512xf32, #tpu.memory_space<vmem>>) attributes {dimension_semantics = [#tpu.dimension_semantics<parallel>], iteration_bounds = array<i64: 4>, scalar_prefetch = 0 : i64, scratch_operands = 0 : i64, tpu.core_type = #tpu.core_type<tc>, window_params = [{pipeline_mode = #tpu.pipeline_mode<synchronous>, transform_indices = @transform_0, window_bounds = array<i64: 8, 27>}, {transform_indices = @transform_1, window_bounds = array<i64: 27, 512>}, {pipeline_mode = #tpu.pipeline_mode<synchronous>, transform_indices = @transform_2, window_bounds = array<i64: 8, 1>}, {transform_indices = @transform_3, window_bounds = array<i64: 8, 512>}]} {
    %c0 = arith.constant 0 : index
    %c0_0 = arith.constant 0 : index
    %0 = vector.load %arg1[%c0, %c0_0] : memref<8x27xbf16, #tpu.memory_space<vmem>>, vector<8x27xbf16>
    %c0_1 = arith.constant 0 : index
    %c0_2 = arith.constant 0 : index
    %1 = vector.load %arg2[%c0_1, %c0_2] : memref<27x512xbf16, #tpu.memory_space<vmem>>, vector<27x512xbf16>
    %cst = arith.constant dense<0.000000e+00> : vector<8x512xf32>
    %2 = tpu.matmul %0, %1, %cst {dimension_numbers = #tpu.dot_dimension_numbers<[1], [0], [0], [1], [0, 0, 1, 1], [], []>} : vector<8x27xbf16>, vector<27x512xbf16>, vector<8x512xf32> -> vector<8x512xf32>
    %c0_3 = arith.constant 0 : index
    %c0_4 = arith.constant 0 : index
    %3 = vector.load %arg3[%c0_3, %c0_4] : memref<8x1xf32, #tpu.memory_space<vmem>>, vector<8x1xf32>
    %4 = vector.broadcast %3 : vector<8x1xf32> to vector<8x512xf32>
    %5 = arith.addf %2, %4 : vector<8x512xf32>
    %cst_5 = arith.constant 0.000000e+00 : f32
    %6 = vector.broadcast %cst_5 : f32 to vector<8x512xf32>
    %7 = arith.cmpf oge, %5, %6 : vector<8x512xf32>
    %cst_6 = arith.constant 2.000000e-01 : f32
    %8 = vector.broadcast %cst_6 : f32 to vector<8x512xf32>
    %9 = arith.mulf %8, %5 : vector<8x512xf32>
    %10 = arith.select %7, %5, %9 : vector<8x512xi1>, vector<8x512xf32>
    %c0_7 = arith.constant 0 : index
    %c0_8 = arith.constant 0 : index
    %11 = vector.load %arg4[%c0_7, %c0_8] : memref<8x512xf32, #tpu.memory_space<vmem>>, vector<8x512xf32>
    tpu.vector_store %arg4[%c0_7, %c0_8], %10 {strides = array<i32>} : memref<8x512xf32, #tpu.memory_space<vmem>>, vector<8x512xf32>,
    return
  }
  func.func @transform_0(%arg0: i32) -> (i32, i32) {
    %c0_i32 = arith.constant 0 : i32
    %c0_i32_0 = arith.constant 0 : i32
    %c0_i32_1 = arith.constant 0 : i32
    return %c0_i32, %c0_i32_0 : i32, i32
  }
  func.func @transform_1(%arg0: i32) -> (i32, i32) {
    %c0_i32 = arith.constant 0 : i32
    %c0_i32_0 = arith.constant 0 : i32
    return %c0_i32, %arg0 : i32, i32
  }
  func.func @transform_2(%arg0: i32) -> (i32, i32) {
    %c0_i32 = arith.constant 0 : i32
    %c0_i32_0 = arith.constant 0 : i32
    %c0_i32_1 = arith.constant 0 : i32
    return %c0_i32, %c0_i32_0 : i32, i32
  }
  func.func @transform_3(%arg0: i32) -> (i32, i32) {
    %c0_i32 = arith.constant 0 : i32
    %c0_i32_0 = arith.constant 0 : i32
    return %c0_i32, %arg0 : i32, i32
  }
}

module attributes {stable_mosaic.version = 11 : i64} {
  func.func @_convmm_kernel(%arg0: i32, %arg1: memref<8x72xbf16, #tpu.memory_space<vmem>>, %arg2: memref<72x512xbf16, #tpu.memory_space<vmem>>, %arg3: memref<8x1xf32, #tpu.memory_space<vmem>>, %arg4: memref<8x512xf32, #tpu.memory_space<vmem>>) attributes {dimension_semantics = [#tpu.dimension_semantics<parallel>], iteration_bounds = array<i64: 4>, scalar_prefetch = 0 : i64, scratch_operands = 0 : i64, tpu.core_type = #tpu.core_type<tc>, window_params = [{pipeline_mode = #tpu.pipeline_mode<synchronous>, transform_indices = @transform_0, window_bounds = array<i64: 8, 72>}, {transform_indices = @transform_1, window_bounds = array<i64: 72, 512>}, {pipeline_mode = #tpu.pipeline_mode<synchronous>, transform_indices = @transform_2, window_bounds = array<i64: 8, 1>}, {transform_indices = @transform_3, window_bounds = array<i64: 8, 512>}]} {
    %c0 = arith.constant 0 : index
    %c0_0 = arith.constant 0 : index
    %0 = vector.load %arg1[%c0, %c0_0] : memref<8x72xbf16, #tpu.memory_space<vmem>>, vector<8x72xbf16>
    %c0_1 = arith.constant 0 : index
    %c0_2 = arith.constant 0 : index
    %1 = vector.load %arg2[%c0_1, %c0_2] : memref<72x512xbf16, #tpu.memory_space<vmem>>, vector<72x512xbf16>
    %cst = arith.constant dense<0.000000e+00> : vector<8x512xf32>
    %2 = tpu.matmul %0, %1, %cst {dimension_numbers = #tpu.dot_dimension_numbers<[1], [0], [0], [1], [0, 0, 1, 1], [], []>} : vector<8x72xbf16>, vector<72x512xbf16>, vector<8x512xf32> -> vector<8x512xf32>
    %c0_3 = arith.constant 0 : index
    %c0_4 = arith.constant 0 : index
    %3 = vector.load %arg3[%c0_3, %c0_4] : memref<8x1xf32, #tpu.memory_space<vmem>>, vector<8x1xf32>
    %4 = vector.broadcast %3 : vector<8x1xf32> to vector<8x512xf32>
    %5 = arith.addf %2, %4 : vector<8x512xf32>
    %cst_5 = arith.constant 0.000000e+00 : f32
    %6 = vector.broadcast %cst_5 : f32 to vector<8x512xf32>
    %7 = arith.cmpf oge, %5, %6 : vector<8x512xf32>
    %cst_6 = arith.constant 2.000000e-01 : f32
    %8 = vector.broadcast %cst_6 : f32 to vector<8x512xf32>
    %9 = arith.mulf %8, %5 : vector<8x512xf32>
    %10 = arith.select %7, %5, %9 : vector<8x512xi1>, vector<8x512xf32>
    %c0_7 = arith.constant 0 : index
    %c0_8 = arith.constant 0 : index
    %11 = vector.load %arg4[%c0_7, %c0_8] : memref<8x512xf32, #tpu.memory_space<vmem>>, vector<8x512xf32>
    tpu.vector_store %arg4[%c0_7, %c0_8], %10 {strides = array<i32>} : memref<8x512xf32, #tpu.memory_space<vmem>>, vector<8x512xf32>,
    return
  }
  func.func @transform_0(%arg0: i32) -> (i32, i32) {
    %c0_i32 = arith.constant 0 : i32
    %c0_i32_0 = arith.constant 0 : i32
    %c0_i32_1 = arith.constant 0 : i32
    return %c0_i32, %c0_i32_0 : i32, i32
  }
  func.func @transform_1(%arg0: i32) -> (i32, i32) {
    %c0_i32 = arith.constant 0 : i32
    %c0_i32_0 = arith.constant 0 : i32
    return %c0_i32, %arg0 : i32, i32
  }
  func.func @transform_2(%arg0: i32) -> (i32, i32) {
    %c0_i32 = arith.constant 0 : i32
    %c0_i32_0 = arith.constant 0 : i32
    %c0_i32_1 = arith.constant 0 : i32
    return %c0_i32, %c0_i32_0 : i32, i32
  }
  func.func @transform_3(%arg0: i32) -> (i32, i32) {
    %c0_i32 = arith.constant 0 : i32
    %c0_i32_0 = arith.constant 0 : i32
    return %c0_i32, %arg0 : i32, i32
  }
}

module attributes {stable_mosaic.version = 11 : i64} {
  func.func @_convmm_kernel(%arg0: i32, %arg1: memref<8x8xbf16, #tpu.memory_space<vmem>>, %arg2: memref<8x512xbf16, #tpu.memory_space<vmem>>, %arg3: memref<8x1xf32, #tpu.memory_space<vmem>>, %arg4: memref<8x512xf32, #tpu.memory_space<vmem>>) attributes {dimension_semantics = [#tpu.dimension_semantics<parallel>], iteration_bounds = array<i64: 4>, scalar_prefetch = 0 : i64, scratch_operands = 0 : i64, tpu.core_type = #tpu.core_type<tc>, window_params = [{pipeline_mode = #tpu.pipeline_mode<synchronous>, transform_indices = @transform_0, window_bounds = array<i64: 8, 8>}, {transform_indices = @transform_1, window_bounds = array<i64: 8, 512>}, {pipeline_mode = #tpu.pipeline_mode<synchronous>, transform_indices = @transform_2, window_bounds = array<i64: 8, 1>}, {transform_indices = @transform_3, window_bounds = array<i64: 8, 512>}]} {
    %c0 = arith.constant 0 : index
    %c0_0 = arith.constant 0 : index
    %0 = vector.load %arg1[%c0, %c0_0] : memref<8x8xbf16, #tpu.memory_space<vmem>>, vector<8x8xbf16>
    %c0_1 = arith.constant 0 : index
    %c0_2 = arith.constant 0 : index
    %1 = vector.load %arg2[%c0_1, %c0_2] : memref<8x512xbf16, #tpu.memory_space<vmem>>, vector<8x512xbf16>
    %cst = arith.constant dense<0.000000e+00> : vector<8x512xf32>
    %2 = tpu.matmul %0, %1, %cst {dimension_numbers = #tpu.dot_dimension_numbers<[1], [0], [0], [1], [0, 0, 1, 1], [], []>} : vector<8x8xbf16>, vector<8x512xbf16>, vector<8x512xf32> -> vector<8x512xf32>
    %c0_3 = arith.constant 0 : index
    %c0_4 = arith.constant 0 : index
    %3 = vector.load %arg3[%c0_3, %c0_4] : memref<8x1xf32, #tpu.memory_space<vmem>>, vector<8x1xf32>
    %4 = vector.broadcast %3 : vector<8x1xf32> to vector<8x512xf32>
    %5 = arith.addf %2, %4 : vector<8x512xf32>
    %cst_5 = arith.constant 0.000000e+00 : f32
    %6 = vector.broadcast %cst_5 : f32 to vector<8x512xf32>
    %7 = arith.cmpf oge, %5, %6 : vector<8x512xf32>
    %cst_6 = arith.constant 2.000000e-01 : f32
    %8 = vector.broadcast %cst_6 : f32 to vector<8x512xf32>
    %9 = arith.mulf %8, %5 : vector<8x512xf32>
    %10 = arith.select %7, %5, %9 : vector<8x512xi1>, vector<8x512xf32>
    %c0_7 = arith.constant 0 : index
    %c0_8 = arith.constant 0 : index
    %11 = vector.load %arg4[%c0_7, %c0_8] : memref<8x512xf32, #tpu.memory_space<vmem>>, vector<8x512xf32>
    tpu.vector_store %arg4[%c0_7, %c0_8], %10 {strides = array<i32>} : memref<8x512xf32, #tpu.memory_space<vmem>>, vector<8x512xf32>,
    return
  }
  func.func @transform_0(%arg0: i32) -> (i32, i32) {
    %c0_i32 = arith.constant 0 : i32
    %c0_i32_0 = arith.constant 0 : i32
    %c0_i32_1 = arith.constant 0 : i32
    return %c0_i32, %c0_i32_0 : i32, i32
  }
  func.func @transform_1(%arg0: i32) -> (i32, i32) {
    %c0_i32 = arith.constant 0 : i32
    %c0_i32_0 = arith.constant 0 : i32
    return %c0_i32, %arg0 : i32, i32
  }
  func.func @transform_2(%arg0: i32) -> (i32, i32) {
    %c0_i32 = arith.constant 0 : i32
    %c0_i32_0 = arith.constant 0 : i32
    %c0_i32_1 = arith.constant 0 : i32
    return %c0_i32, %c0_i32_0 : i32, i32
  }
  func.func @transform_3(%arg0: i32) -> (i32, i32) {
    %c0_i32 = arith.constant 0 : i32
    %c0_i32_0 = arith.constant 0 : i32
    return %c0_i32, %arg0 : i32, i32
  }
}

module attributes {stable_mosaic.version = 11 : i64} {
  func.func @_convmm_kernel(%arg0: i32, %arg1: memref<8x72xbf16, #tpu.memory_space<vmem>>, %arg2: memref<72x512xbf16, #tpu.memory_space<vmem>>, %arg3: memref<8x1xf32, #tpu.memory_space<vmem>>, %arg4: memref<8x512xf32, #tpu.memory_space<vmem>>, %arg5: memref<8x512xf32, #tpu.memory_space<vmem>>) attributes {dimension_semantics = [#tpu.dimension_semantics<parallel>], iteration_bounds = array<i64: 4>, scalar_prefetch = 0 : i64, scratch_operands = 0 : i64, tpu.core_type = #tpu.core_type<tc>, window_params = [{pipeline_mode = #tpu.pipeline_mode<synchronous>, transform_indices = @transform_0, window_bounds = array<i64: 8, 72>}, {transform_indices = @transform_1, window_bounds = array<i64: 72, 512>}, {pipeline_mode = #tpu.pipeline_mode<synchronous>, transform_indices = @transform_2, window_bounds = array<i64: 8, 1>}, {transform_indices = @transform_3, window_bounds = array<i64: 8, 512>}, {transform_indices = @transform_4, window_bounds = array<i64: 8, 512>}]} {
    %c0 = arith.constant 0 : index
    %c0_0 = arith.constant 0 : index
    %0 = vector.load %arg1[%c0, %c0_0] : memref<8x72xbf16, #tpu.memory_space<vmem>>, vector<8x72xbf16>
    %c0_1 = arith.constant 0 : index
    %c0_2 = arith.constant 0 : index
    %1 = vector.load %arg2[%c0_1, %c0_2] : memref<72x512xbf16, #tpu.memory_space<vmem>>, vector<72x512xbf16>
    %cst = arith.constant dense<0.000000e+00> : vector<8x512xf32>
    %2 = tpu.matmul %0, %1, %cst {dimension_numbers = #tpu.dot_dimension_numbers<[1], [0], [0], [1], [0, 0, 1, 1], [], []>} : vector<8x72xbf16>, vector<72x512xbf16>, vector<8x512xf32> -> vector<8x512xf32>
    %c0_3 = arith.constant 0 : index
    %c0_4 = arith.constant 0 : index
    %3 = vector.load %arg3[%c0_3, %c0_4] : memref<8x1xf32, #tpu.memory_space<vmem>>, vector<8x1xf32>
    %4 = vector.broadcast %3 : vector<8x1xf32> to vector<8x512xf32>
    %5 = arith.addf %2, %4 : vector<8x512xf32>
    %cst_5 = arith.constant 0.000000e+00 : f32
    %6 = vector.broadcast %cst_5 : f32 to vector<8x512xf32>
    %7 = arith.cmpf oge, %5, %6 : vector<8x512xf32>
    %cst_6 = arith.constant 2.000000e-01 : f32
    %8 = vector.broadcast %cst_6 : f32 to vector<8x512xf32>
    %9 = arith.mulf %8, %5 : vector<8x512xf32>
    %10 = arith.select %7, %5, %9 : vector<8x512xi1>, vector<8x512xf32>
    %c0_7 = arith.constant 0 : index
    %c0_8 = arith.constant 0 : index
    %11 = vector.load %arg4[%c0_7, %c0_8] : memref<8x512xf32, #tpu.memory_space<vmem>>, vector<8x512xf32>
    %12 = arith.addf %10, %11 : vector<8x512xf32>
    %c0_9 = arith.constant 0 : index
    %c0_10 = arith.constant 0 : index
    %13 = vector.load %arg5[%c0_9, %c0_10] : memref<8x512xf32, #tpu.memory_space<vmem>>, vector<8x512xf32>
    tpu.vector_store %arg5[%c0_9, %c0_10], %12 {strides = array<i32>} : memref<8x512xf32, #tpu.memory_space<vmem>>, vector<8x512xf32>,
    return
  }
  func.func @transform_0(%arg0: i32) -> (i32, i32) {
    %c0_i32 = arith.constant 0 : i32
    %c0_i32_0 = arith.constant 0 : i32
    %c0_i32_1 = arith.constant 0 : i32
    return %c0_i32, %c0_i32_0 : i32, i32
  }
  func.func @transform_1(%arg0: i32) -> (i32, i32) {
    %c0_i32 = arith.constant 0 : i32
    %c0_i32_0 = arith.constant 0 : i32
    return %c0_i32, %arg0 : i32, i32
  }
  func.func @transform_2(%arg0: i32) -> (i32, i32) {
    %c0_i32 = arith.constant 0 : i32
    %c0_i32_0 = arith.constant 0 : i32
    %c0_i32_1 = arith.constant 0 : i32
    return %c0_i32, %c0_i32_0 : i32, i32
  }
  func.func @transform_3(%arg0: i32) -> (i32, i32) {
    %c0_i32 = arith.constant 0 : i32
    %c0_i32_0 = arith.constant 0 : i32
    return %c0_i32, %arg0 : i32, i32
  }
  func.func @transform_4(%arg0: i32) -> (i32, i32) {
    %c0_i32 = arith.constant 0 : i32
    %c0_i32_0 = arith.constant 0 : i32
    return %c0_i32, %arg0 : i32, i32
  }
}

module attributes {stable_mosaic.version = 11 : i64} {
  func.func @_convmm_kernel(%arg0: i32, %arg1: memref<3x8xbf16, #tpu.memory_space<vmem>>, %arg2: memref<8x512xbf16, #tpu.memory_space<vmem>>, %arg3: memref<3x1xf32, #tpu.memory_space<vmem>>, %arg4: memref<3x512xf32, #tpu.memory_space<vmem>>, %arg5: memref<3x512xf32, #tpu.memory_space<vmem>>) attributes {dimension_semantics = [#tpu.dimension_semantics<parallel>], iteration_bounds = array<i64: 4>, scalar_prefetch = 0 : i64, scratch_operands = 0 : i64, tpu.core_type = #tpu.core_type<tc>, window_params = [{pipeline_mode = #tpu.pipeline_mode<synchronous>, transform_indices = @transform_0, window_bounds = array<i64: 3, 8>}, {transform_indices = @transform_1, window_bounds = array<i64: 8, 512>}, {pipeline_mode = #tpu.pipeline_mode<synchronous>, transform_indices = @transform_2, window_bounds = array<i64: 3, 1>}, {transform_indices = @transform_3, window_bounds = array<i64: 3, 512>}, {transform_indices = @transform_4, window_bounds = array<i64: 3, 512>}]} {
    %c0 = arith.constant 0 : index
    %c0_0 = arith.constant 0 : index
    %0 = vector.load %arg1[%c0, %c0_0] : memref<3x8xbf16, #tpu.memory_space<vmem>>, vector<3x8xbf16>
    %c0_1 = arith.constant 0 : index
    %c0_2 = arith.constant 0 : index
    %1 = vector.load %arg2[%c0_1, %c0_2] : memref<8x512xbf16, #tpu.memory_space<vmem>>, vector<8x512xbf16>
    %cst = arith.constant dense<0.000000e+00> : vector<3x512xf32>
    %2 = tpu.matmul %0, %1, %cst {dimension_numbers = #tpu.dot_dimension_numbers<[1], [0], [0], [1], [0, 0, 1, 1], [], []>} : vector<3x8xbf16>, vector<8x512xbf16>, vector<3x512xf32> -> vector<3x512xf32>
    %c0_3 = arith.constant 0 : index
    %c0_4 = arith.constant 0 : index
    %3 = vector.load %arg3[%c0_3, %c0_4] : memref<3x1xf32, #tpu.memory_space<vmem>>, vector<3x1xf32>
    %4 = vector.broadcast %3 : vector<3x1xf32> to vector<3x512xf32>
    %5 = arith.addf %2, %4 : vector<3x512xf32>
    %c0_5 = arith.constant 0 : index
    %c0_6 = arith.constant 0 : index
    %6 = vector.load %arg4[%c0_5, %c0_6] : memref<3x512xf32, #tpu.memory_space<vmem>>, vector<3x512xf32>
    %7 = arith.addf %5, %6 : vector<3x512xf32>
    %c0_7 = arith.constant 0 : index
    %c0_8 = arith.constant 0 : index
    %8 = vector.load %arg5[%c0_7, %c0_8] : memref<3x512xf32, #tpu.memory_space<vmem>>, vector<3x512xf32>
    tpu.vector_store %arg5[%c0_7, %c0_8], %7 {strides = array<i32>} : memref<3x512xf32, #tpu.memory_space<vmem>>, vector<3x512xf32>,
    return
  }
  func.func @transform_0(%arg0: i32) -> (i32, i32) {
    %c0_i32 = arith.constant 0 : i32
    %c0_i32_0 = arith.constant 0 : i32
    %c0_i32_1 = arith.constant 0 : i32
    return %c0_i32, %c0_i32_0 : i32, i32
  }
  func.func @transform_1(%arg0: i32) -> (i32, i32) {
    %c0_i32 = arith.constant 0 : i32
    %c0_i32_0 = arith.constant 0 : i32
    return %c0_i32, %arg0 : i32, i32
  }
  func.func @transform_2(%arg0: i32) -> (i32, i32) {
    %c0_i32 = arith.constant 0 : i32
    %c0_i32_0 = arith.constant 0 : i32
    %c0_i32_1 = arith.constant 0 : i32
    return %c0_i32, %c0_i32_0 : i32, i32
  }
  func.func @transform_3(%arg0: i32) -> (i32, i32) {
    %c0_i32 = arith.constant 0 : i32
    %c0_i32_0 = arith.constant 0 : i32
    return %c0_i32, %arg0 : i32, i32
  }
  func.func @transform_4(%arg0: i32) -> (i32, i32) {
    %c0_i32 = arith.constant 0 : i32
    %c0_i32_0 = arith.constant 0 : i32
    return %c0_i32, %arg0 : i32, i32
  }
}

module attributes {stable_mosaic.version = 11 : i64} {
  func.func @_gauss_stencil_kernel(%arg0: i32, %arg1: memref<1x20x20xf32, #tpu.memory_space<vmem>>, %arg2: memref<1x16x16xf32, #tpu.memory_space<vmem>>) attributes {dimension_semantics = [#tpu.dimension_semantics<parallel>], iteration_bounds = array<i64: 6>, scalar_prefetch = 0 : i64, scratch_operands = 0 : i64, tpu.core_type = #tpu.core_type<tc>, window_params = [{transform_indices = @transform_0, window_bounds = array<i64: 1, 20, 20>}, {transform_indices = @transform_1, window_bounds = array<i64: 1, 16, 16>}]} {
    %c0 = arith.constant 0 : index
    %c0_0 = arith.constant 0 : index
    %c0_1 = arith.constant 0 : index
    %0 = vector.load %arg1[%c0, %c0_0, %c0_1] : memref<1x20x20xf32, #tpu.memory_space<vmem>>, vector<1x20x20xf32>
    %1 = vector.shape_cast %0 : vector<1x20x20xf32> to vector<20x20xf32>
    %2 = vector.extract_strided_slice %1 {offsets = [0, 0], sizes = [16, 20], strides = [1, 1]} : vector<20x20xf32> to vector<16x20xf32>
    %cst = arith.constant 6.250000e-02 : f32
    %3 = vector.broadcast %cst : f32 to vector<16x20xf32>
    %4 = arith.mulf %3, %2 : vector<16x20xf32>
    %5 = vector.extract_strided_slice %1 {offsets = [1, 0], sizes = [16, 20], strides = [1, 1]} : vector<20x20xf32> to vector<16x20xf32>
    %cst_2 = arith.constant 2.500000e-01 : f32
    %6 = vector.broadcast %cst_2 : f32 to vector<16x20xf32>
    %7 = arith.mulf %6, %5 : vector<16x20xf32>
    %8 = arith.addf %4, %7 : vector<16x20xf32>
    %9 = vector.extract_strided_slice %1 {offsets = [2, 0], sizes = [16, 20], strides = [1, 1]} : vector<20x20xf32> to vector<16x20xf32>
    %cst_3 = arith.constant 3.750000e-01 : f32
    %10 = vector.broadcast %cst_3 : f32 to vector<16x20xf32>
    %11 = arith.mulf %10, %9 : vector<16x20xf32>
    %12 = arith.addf %8, %11 : vector<16x20xf32>
    %13 = vector.extract_strided_slice %1 {offsets = [3, 0], sizes = [16, 20], strides = [1, 1]} : vector<20x20xf32> to vector<16x20xf32>
    %cst_4 = arith.constant 2.500000e-01 : f32
    %14 = vector.broadcast %cst_4 : f32 to vector<16x20xf32>
    %15 = arith.mulf %14, %13 : vector<16x20xf32>
    %16 = arith.addf %12, %15 : vector<16x20xf32>
    %17 = vector.extract_strided_slice %1 {offsets = [4, 0], sizes = [16, 20], strides = [1, 1]} : vector<20x20xf32> to vector<16x20xf32>
    %cst_5 = arith.constant 6.250000e-02 : f32
    %18 = vector.broadcast %cst_5 : f32 to vector<16x20xf32>
    %19 = arith.mulf %18, %17 : vector<16x20xf32>
    %20 = arith.addf %16, %19 : vector<16x20xf32>
    %21 = vector.extract_strided_slice %20 {offsets = [0, 0], sizes = [16, 16], strides = [1, 1]} : vector<16x20xf32> to vector<16x16xf32>
    %cst_6 = arith.constant 6.250000e-02 : f32
    %22 = vector.broadcast %cst_6 : f32 to vector<16x16xf32>
    %23 = arith.mulf %22, %21 : vector<16x16xf32>
    %24 = vector.extract_strided_slice %20 {offsets = [0, 1], sizes = [16, 16], strides = [1, 1]} : vector<16x20xf32> to vector<16x16xf32>
    %cst_7 = arith.constant 2.500000e-01 : f32
    %25 = vector.broadcast %cst_7 : f32 to vector<16x16xf32>
    %26 = arith.mulf %25, %24 : vector<16x16xf32>
    %27 = arith.addf %23, %26 : vector<16x16xf32>
    %28 = vector.extract_strided_slice %20 {offsets = [0, 2], sizes = [16, 16], strides = [1, 1]} : vector<16x20xf32> to vector<16x16xf32>
    %cst_8 = arith.constant 3.750000e-01 : f32
    %29 = vector.broadcast %cst_8 : f32 to vector<16x16xf32>
    %30 = arith.mulf %29, %28 : vector<16x16xf32>
    %31 = arith.addf %27, %30 : vector<16x16xf32>
    %32 = vector.extract_strided_slice %20 {offsets = [0, 3], sizes = [16, 16], strides = [1, 1]} : vector<16x20xf32> to vector<16x16xf32>
    %cst_9 = arith.constant 2.500000e-01 : f32
    %33 = vector.broadcast %cst_9 : f32 to vector<16x16xf32>
    %34 = arith.mulf %33, %32 : vector<16x16xf32>
    %35 = arith.addf %31, %34 : vector<16x16xf32>
    %36 = vector.extract_strided_slice %20 {offsets = [0, 4], sizes = [16, 16], strides = [1, 1]} : vector<16x20xf32> to vector<16x16xf32>
    %cst_10 = arith.constant 6.250000e-02 : f32
    %37 = vector.broadcast %cst_10 : f32 to vector<16x16xf32>
    %38 = arith.mulf %37, %36 : vector<16x16xf32>
    %39 = arith.addf %35, %38 : vector<16x16xf32>
    %c0_11 = arith.constant 0 : index
    %c0_12 = arith.constant 0 : index
    %c0_13 = arith.constant 0 : index
    %40 = vector.load %arg2[%c0_11, %c0_12, %c0_13] : memref<1x16x16xf32, #tpu.memory_space<vmem>>, vector<1x16x16xf32>
    %41 = vector.shape_cast %40 : vector<1x16x16xf32> to vector<16x16xf32>
    %42 = vector.shape_cast %39 : vector<16x16xf32> to vector<1x16x16xf32>
    tpu.vector_store %arg2[%c0_11, %c0_12, %c0_13], %42 {strides = array<i32>} : memref<1x16x16xf32, #tpu.memory_space<vmem>>, vector<1x16x16xf32>,
    return
  }
  func.func @transform_0(%arg0: i32) -> (i32, i32, i32) {
    %c0_i32 = arith.constant 0 : i32
    %c0_i32_0 = arith.constant 0 : i32
    %c0_i32_1 = arith.constant 0 : i32
    return %arg0, %c0_i32, %c0_i32_0 : i32, i32, i32
  }
  func.func @transform_1(%arg0: i32) -> (i32, i32, i32) {
    %c0_i32 = arith.constant 0 : i32
    %c0_i32_0 = arith.constant 0 : i32
    %c0_i32_1 = arith.constant 0 : i32
    return %arg0, %c0_i32, %c0_i32_0 : i32, i32, i32
  }
}

module attributes {stable_mosaic.version = 11 : i64} {
  func.func @_gauss_stencil_kernel(%arg0: i32, %arg1: memref<1x20x20xf32, #tpu.memory_space<vmem>>, %arg2: memref<1x16x16xf32, #tpu.memory_space<vmem>>, %arg3: memref<1x16x16xf32, #tpu.memory_space<vmem>>) attributes {dimension_semantics = [#tpu.dimension_semantics<parallel>], iteration_bounds = array<i64: 6>, scalar_prefetch = 0 : i64, scratch_operands = 0 : i64, tpu.core_type = #tpu.core_type<tc>, window_params = [{transform_indices = @transform_0, window_bounds = array<i64: 1, 20, 20>}, {transform_indices = @transform_1, window_bounds = array<i64: 1, 16, 16>}, {transform_indices = @transform_2, window_bounds = array<i64: 1, 16, 16>}]} {
    %c0 = arith.constant 0 : index
    %c0_0 = arith.constant 0 : index
    %c0_1 = arith.constant 0 : index
    %0 = vector.load %arg1[%c0, %c0_0, %c0_1] : memref<1x20x20xf32, #tpu.memory_space<vmem>>, vector<1x20x20xf32>
    %1 = vector.shape_cast %0 : vector<1x20x20xf32> to vector<20x20xf32>
    %2 = vector.extract_strided_slice %1 {offsets = [0, 0], sizes = [16, 20], strides = [1, 1]} : vector<20x20xf32> to vector<16x20xf32>
    %cst = arith.constant 1.250000e-01 : f32
    %3 = vector.broadcast %cst : f32 to vector<16x20xf32>
    %4 = arith.mulf %3, %2 : vector<16x20xf32>
    %5 = vector.extract_strided_slice %1 {offsets = [1, 0], sizes = [16, 20], strides = [1, 1]} : vector<20x20xf32> to vector<16x20xf32>
    %cst_2 = arith.constant 5.000000e-01 : f32
    %6 = vector.broadcast %cst_2 : f32 to vector<16x20xf32>
    %7 = arith.mulf %6, %5 : vector<16x20xf32>
    %8 = arith.addf %4, %7 : vector<16x20xf32>
    %9 = vector.extract_strided_slice %1 {offsets = [2, 0], sizes = [16, 20], strides = [1, 1]} : vector<20x20xf32> to vector<16x20xf32>
    %cst_3 = arith.constant 7.500000e-01 : f32
    %10 = vector.broadcast %cst_3 : f32 to vector<16x20xf32>
    %11 = arith.mulf %10, %9 : vector<16x20xf32>
    %12 = arith.addf %8, %11 : vector<16x20xf32>
    %13 = vector.extract_strided_slice %1 {offsets = [3, 0], sizes = [16, 20], strides = [1, 1]} : vector<20x20xf32> to vector<16x20xf32>
    %cst_4 = arith.constant 5.000000e-01 : f32
    %14 = vector.broadcast %cst_4 : f32 to vector<16x20xf32>
    %15 = arith.mulf %14, %13 : vector<16x20xf32>
    %16 = arith.addf %12, %15 : vector<16x20xf32>
    %17 = vector.extract_strided_slice %1 {offsets = [4, 0], sizes = [16, 20], strides = [1, 1]} : vector<20x20xf32> to vector<16x20xf32>
    %cst_5 = arith.constant 1.250000e-01 : f32
    %18 = vector.broadcast %cst_5 : f32 to vector<16x20xf32>
    %19 = arith.mulf %18, %17 : vector<16x20xf32>
    %20 = arith.addf %16, %19 : vector<16x20xf32>
    %21 = vector.extract_strided_slice %20 {offsets = [0, 0], sizes = [16, 16], strides = [1, 1]} : vector<16x20xf32> to vector<16x16xf32>
    %cst_6 = arith.constant 1.250000e-01 : f32
    %22 = vector.broadcast %cst_6 : f32 to vector<16x16xf32>
    %23 = arith.mulf %22, %21 : vector<16x16xf32>
    %24 = vector.extract_strided_slice %20 {offsets = [0, 1], sizes = [16, 16], strides = [1, 1]} : vector<16x20xf32> to vector<16x16xf32>
    %cst_7 = arith.constant 5.000000e-01 : f32
    %25 = vector.broadcast %cst_7 : f32 to vector<16x16xf32>
    %26 = arith.mulf %25, %24 : vector<16x16xf32>
    %27 = arith.addf %23, %26 : vector<16x16xf32>
    %28 = vector.extract_strided_slice %20 {offsets = [0, 2], sizes = [16, 16], strides = [1, 1]} : vector<16x20xf32> to vector<16x16xf32>
    %cst_8 = arith.constant 7.500000e-01 : f32
    %29 = vector.broadcast %cst_8 : f32 to vector<16x16xf32>
    %30 = arith.mulf %29, %28 : vector<16x16xf32>
    %31 = arith.addf %27, %30 : vector<16x16xf32>
    %32 = vector.extract_strided_slice %20 {offsets = [0, 3], sizes = [16, 16], strides = [1, 1]} : vector<16x20xf32> to vector<16x16xf32>
    %cst_9 = arith.constant 5.000000e-01 : f32
    %33 = vector.broadcast %cst_9 : f32 to vector<16x16xf32>
    %34 = arith.mulf %33, %32 : vector<16x16xf32>
    %35 = arith.addf %31, %34 : vector<16x16xf32>
    %36 = vector.extract_strided_slice %20 {offsets = [0, 4], sizes = [16, 16], strides = [1, 1]} : vector<16x20xf32> to vector<16x16xf32>
    %cst_10 = arith.constant 1.250000e-01 : f32
    %37 = vector.broadcast %cst_10 : f32 to vector<16x16xf32>
    %38 = arith.mulf %37, %36 : vector<16x16xf32>
    %39 = arith.addf %35, %38 : vector<16x16xf32>
    %cst_11 = arith.constant -1.000000e+00 : f32
    %40 = vector.broadcast %cst_11 : f32 to vector<16x16xf32>
    %41 = arith.mulf %40, %39 : vector<16x16xf32>
    %c0_12 = arith.constant 0 : index
    %c0_13 = arith.constant 0 : index
    %c0_14 = arith.constant 0 : index
    %42 = vector.load %arg2[%c0_12, %c0_13, %c0_14] : memref<1x16x16xf32, #tpu.memory_space<vmem>>, vector<1x16x16xf32>
    %43 = vector.shape_cast %42 : vector<1x16x16xf32> to vector<16x16xf32>
    %cst_15 = arith.constant 1.000000e+00 : f32
    %44 = vector.broadcast %cst_15 : f32 to vector<16x16xf32>
    %45 = arith.mulf %44, %43 : vector<16x16xf32>
    %46 = arith.addf %41, %45 : vector<16x16xf32>
    %c0_16 = arith.constant 0 : index
    %c0_17 = arith.constant 0 : index
    %c0_18 = arith.constant 0 : index
    %47 = vector.load %arg3[%c0_16, %c0_17, %c0_18] : memref<1x16x16xf32, #tpu.memory_space<vmem>>, vector<1x16x16xf32>
    %48 = vector.shape_cast %47 : vector<1x16x16xf32> to vector<16x16xf32>
    %49 = vector.shape_cast %46 : vector<16x16xf32> to vector<1x16x16xf32>
    tpu.vector_store %arg3[%c0_16, %c0_17, %c0_18], %49 {strides = array<i32>} : memref<1x16x16xf32, #tpu.memory_space<vmem>>, vector<1x16x16xf32>,
    return
  }
  func.func @transform_0(%arg0: i32) -> (i32, i32, i32) {
    %c0_i32 = arith.constant 0 : i32
    %c0_i32_0 = arith.constant 0 : i32
    %c0_i32_1 = arith.constant 0 : i32
    return %arg0, %c0_i32, %c0_i32_0 : i32, i32, i32
  }
  func.func @transform_1(%arg0: i32) -> (i32, i32, i32) {
    %c0_i32 = arith.constant 0 : i32
    %c0_i32_0 = arith.constant 0 : i32
    %c0_i32_1 = arith.constant 0 : i32
    return %arg0, %c0_i32, %c0_i32_0 : i32, i32, i32
  }
  func.func @transform_2(%arg0: i32) -> (i32, i32, i32) {
    %c0_i32 = arith.constant 0 : i32
    %c0_i32_0 = arith.constant 0 : i32
    %c0_i32_1 = arith.constant 0 : i32
    return %arg0, %c0_i32, %c0_i32_0 : i32, i32, i32
  }
}

module attributes {stable_mosaic.version = 11 : i64} {
  func.func @_convmm_kernel(%arg0: i32, %arg1: memref<4x27xbf16, #tpu.memory_space<vmem>>, %arg2: memref<27x512xbf16, #tpu.memory_space<vmem>>, %arg3: memref<4x1xf32, #tpu.memory_space<vmem>>, %arg4: memref<4x512xf32, #tpu.memory_space<vmem>>) attributes {dimension_semantics = [#tpu.dimension_semantics<parallel>], iteration_bounds = array<i64: 1>, scalar_prefetch = 0 : i64, scratch_operands = 0 : i64, tpu.core_type = #tpu.core_type<tc>, window_params = [{pipeline_mode = #tpu.pipeline_mode<synchronous>, transform_indices = @transform_0, window_bounds = array<i64: 4, 27>}, {transform_indices = @transform_1, window_bounds = array<i64: 27, 512>}, {pipeline_mode = #tpu.pipeline_mode<synchronous>, transform_indices = @transform_2, window_bounds = array<i64: 4, 1>}, {transform_indices = @transform_3, window_bounds = array<i64: 4, 512>}]} {
    %c0 = arith.constant 0 : index
    %c0_0 = arith.constant 0 : index
    %0 = vector.load %arg1[%c0, %c0_0] : memref<4x27xbf16, #tpu.memory_space<vmem>>, vector<4x27xbf16>
    %c0_1 = arith.constant 0 : index
    %c0_2 = arith.constant 0 : index
    %1 = vector.load %arg2[%c0_1, %c0_2] : memref<27x512xbf16, #tpu.memory_space<vmem>>, vector<27x512xbf16>
    %cst = arith.constant dense<0.000000e+00> : vector<4x512xf32>
    %2 = tpu.matmul %0, %1, %cst {dimension_numbers = #tpu.dot_dimension_numbers<[1], [0], [0], [1], [0, 0, 1, 1], [], []>} : vector<4x27xbf16>, vector<27x512xbf16>, vector<4x512xf32> -> vector<4x512xf32>
    %c0_3 = arith.constant 0 : index
    %c0_4 = arith.constant 0 : index
    %3 = vector.load %arg3[%c0_3, %c0_4] : memref<4x1xf32, #tpu.memory_space<vmem>>, vector<4x1xf32>
    %4 = vector.broadcast %3 : vector<4x1xf32> to vector<4x512xf32>
    %5 = arith.addf %2, %4 : vector<4x512xf32>
    %cst_5 = arith.constant 0.000000e+00 : f32
    %6 = vector.broadcast %cst_5 : f32 to vector<4x512xf32>
    %7 = arith.cmpf oge, %5, %6 : vector<4x512xf32>
    %cst_6 = arith.constant 2.000000e-01 : f32
    %8 = vector.broadcast %cst_6 : f32 to vector<4x512xf32>
    %9 = arith.mulf %8, %5 : vector<4x512xf32>
    %10 = arith.select %7, %5, %9 : vector<4x512xi1>, vector<4x512xf32>
    %c0_7 = arith.constant 0 : index
    %c0_8 = arith.constant 0 : index
    %11 = vector.load %arg4[%c0_7, %c0_8] : memref<4x512xf32, #tpu.memory_space<vmem>>, vector<4x512xf32>
    tpu.vector_store %arg4[%c0_7, %c0_8], %10 {strides = array<i32>} : memref<4x512xf32, #tpu.memory_space<vmem>>, vector<4x512xf32>,
    return
  }
  func.func @transform_0(%arg0: i32) -> (i32, i32) {
    %c0_i32 = arith.constant 0 : i32
    %c0_i32_0 = arith.constant 0 : i32
    %c0_i32_1 = arith.constant 0 : i32
    return %c0_i32, %c0_i32_0 : i32, i32
  }
  func.func @transform_1(%arg0: i32) -> (i32, i32) {
    %c0_i32 = arith.constant 0 : i32
    %c0_i32_0 = arith.constant 0 : i32
    return %c0_i32, %arg0 : i32, i32
  }
  func.func @transform_2(%arg0: i32) -> (i32, i32) {
    %c0_i32 = arith.constant 0 : i32
    %c0_i32_0 = arith.constant 0 : i32
    %c0_i32_1 = arith.constant 0 : i32
    return %c0_i32, %c0_i32_0 : i32, i32
  }
  func.func @transform_3(%arg0: i32) -> (i32, i32) {
    %c0_i32 = arith.constant 0 : i32
    %c0_i32_0 = arith.constant 0 : i32
    return %c0_i32, %arg0 : i32, i32
  }
}

module attributes {stable_mosaic.version = 11 : i64} {
  func.func @_convmm_kernel(%arg0: i32, %arg1: memref<4x36xbf16, #tpu.memory_space<vmem>>, %arg2: memref<36x512xbf16, #tpu.memory_space<vmem>>, %arg3: memref<4x1xf32, #tpu.memory_space<vmem>>, %arg4: memref<4x512xf32, #tpu.memory_space<vmem>>) attributes {dimension_semantics = [#tpu.dimension_semantics<parallel>], iteration_bounds = array<i64: 1>, scalar_prefetch = 0 : i64, scratch_operands = 0 : i64, tpu.core_type = #tpu.core_type<tc>, window_params = [{pipeline_mode = #tpu.pipeline_mode<synchronous>, transform_indices = @transform_0, window_bounds = array<i64: 4, 36>}, {transform_indices = @transform_1, window_bounds = array<i64: 36, 512>}, {pipeline_mode = #tpu.pipeline_mode<synchronous>, transform_indices = @transform_2, window_bounds = array<i64: 4, 1>}, {transform_indices = @transform_3, window_bounds = array<i64: 4, 512>}]} {
    %c0 = arith.constant 0 : index
    %c0_0 = arith.constant 0 : index
    %0 = vector.load %arg1[%c0, %c0_0] : memref<4x36xbf16, #tpu.memory_space<vmem>>, vector<4x36xbf16>
    %c0_1 = arith.constant 0 : index
    %c0_2 = arith.constant 0 : index
    %1 = vector.load %arg2[%c0_1, %c0_2] : memref<36x512xbf16, #tpu.memory_space<vmem>>, vector<36x512xbf16>
    %cst = arith.constant dense<0.000000e+00> : vector<4x512xf32>
    %2 = tpu.matmul %0, %1, %cst {dimension_numbers = #tpu.dot_dimension_numbers<[1], [0], [0], [1], [0, 0, 1, 1], [], []>} : vector<4x36xbf16>, vector<36x512xbf16>, vector<4x512xf32> -> vector<4x512xf32>
    %c0_3 = arith.constant 0 : index
    %c0_4 = arith.constant 0 : index
    %3 = vector.load %arg3[%c0_3, %c0_4] : memref<4x1xf32, #tpu.memory_space<vmem>>, vector<4x1xf32>
    %4 = vector.broadcast %3 : vector<4x1xf32> to vector<4x512xf32>
    %5 = arith.addf %2, %4 : vector<4x512xf32>
    %cst_5 = arith.constant 0.000000e+00 : f32
    %6 = vector.broadcast %cst_5 : f32 to vector<4x512xf32>
    %7 = arith.cmpf oge, %5, %6 : vector<4x512xf32>
    %cst_6 = arith.constant 2.000000e-01 : f32
    %8 = vector.broadcast %cst_6 : f32 to vector<4x512xf32>
    %9 = arith.mulf %8, %5 : vector<4x512xf32>
    %10 = arith.select %7, %5, %9 : vector<4x512xi1>, vector<4x512xf32>
    %c0_7 = arith.constant 0 : index
    %c0_8 = arith.constant 0 : index
    %11 = vector.load %arg4[%c0_7, %c0_8] : memref<4x512xf32, #tpu.memory_space<vmem>>, vector<4x512xf32>
    tpu.vector_store %arg4[%c0_7, %c0_8], %10 {strides = array<i32>} : memref<4x512xf32, #tpu.memory_space<vmem>>, vector<4x512xf32>,
    return
  }
  func.func @transform_0(%arg0: i32) -> (i32, i32) {
    %c0_i32 = arith.constant 0 : i32
    %c0_i32_0 = arith.constant 0 : i32
    %c0_i32_1 = arith.constant 0 : i32
    return %c0_i32, %c0_i32_0 : i32, i32
  }
  func.func @transform_1(%arg0: i32) -> (i32, i32) {
    %c0_i32 = arith.constant 0 : i32
    %c0_i32_0 = arith.constant 0 : i32
    return %c0_i32, %arg0 : i32, i32
  }
  func.func @transform_2(%arg0: i32) -> (i32, i32) {
    %c0_i32 = arith.constant 0 : i32
    %c0_i32_0 = arith.constant 0 : i32
    %c0_i32_1 = arith.constant 0 : i32
    return %c0_i32, %c0_i32_0 : i32, i32
  }
  func.func @transform_3(%arg0: i32) -> (i32, i32) {
    %c0_i32 = arith.constant 0 : i32
    %c0_i32_0 = arith.constant 0 : i32
    return %c0_i32, %arg0 : i32, i32
  }
}

module attributes {stable_mosaic.version = 11 : i64} {
  func.func @_convmm_kernel(%arg0: i32, %arg1: memref<4x4xbf16, #tpu.memory_space<vmem>>, %arg2: memref<4x512xbf16, #tpu.memory_space<vmem>>, %arg3: memref<4x1xf32, #tpu.memory_space<vmem>>, %arg4: memref<4x512xf32, #tpu.memory_space<vmem>>) attributes {dimension_semantics = [#tpu.dimension_semantics<parallel>], iteration_bounds = array<i64: 1>, scalar_prefetch = 0 : i64, scratch_operands = 0 : i64, tpu.core_type = #tpu.core_type<tc>, window_params = [{pipeline_mode = #tpu.pipeline_mode<synchronous>, transform_indices = @transform_0, window_bounds = array<i64: 4, 4>}, {transform_indices = @transform_1, window_bounds = array<i64: 4, 512>}, {pipeline_mode = #tpu.pipeline_mode<synchronous>, transform_indices = @transform_2, window_bounds = array<i64: 4, 1>}, {transform_indices = @transform_3, window_bounds = array<i64: 4, 512>}]} {
    %c0 = arith.constant 0 : index
    %c0_0 = arith.constant 0 : index
    %0 = vector.load %arg1[%c0, %c0_0] : memref<4x4xbf16, #tpu.memory_space<vmem>>, vector<4x4xbf16>
    %c0_1 = arith.constant 0 : index
    %c0_2 = arith.constant 0 : index
    %1 = vector.load %arg2[%c0_1, %c0_2] : memref<4x512xbf16, #tpu.memory_space<vmem>>, vector<4x512xbf16>
    %cst = arith.constant dense<0.000000e+00> : vector<4x512xf32>
    %2 = tpu.matmul %0, %1, %cst {dimension_numbers = #tpu.dot_dimension_numbers<[1], [0], [0], [1], [0, 0, 1, 1], [], []>} : vector<4x4xbf16>, vector<4x512xbf16>, vector<4x512xf32> -> vector<4x512xf32>
    %c0_3 = arith.constant 0 : index
    %c0_4 = arith.constant 0 : index
    %3 = vector.load %arg3[%c0_3, %c0_4] : memref<4x1xf32, #tpu.memory_space<vmem>>, vector<4x1xf32>
    %4 = vector.broadcast %3 : vector<4x1xf32> to vector<4x512xf32>
    %5 = arith.addf %2, %4 : vector<4x512xf32>
    %cst_5 = arith.constant 0.000000e+00 : f32
    %6 = vector.broadcast %cst_5 : f32 to vector<4x512xf32>
    %7 = arith.cmpf oge, %5, %6 : vector<4x512xf32>
    %cst_6 = arith.constant 2.000000e-01 : f32
    %8 = vector.broadcast %cst_6 : f32 to vector<4x512xf32>
    %9 = arith.mulf %8, %5 : vector<4x512xf32>
    %10 = arith.select %7, %5, %9 : vector<4x512xi1>, vector<4x512xf32>
    %c0_7 = arith.constant 0 : index
    %c0_8 = arith.constant 0 : index
    %11 = vector.load %arg4[%c0_7, %c0_8] : memref<4x512xf32, #tpu.memory_space<vmem>>, vector<4x512xf32>
    tpu.vector_store %arg4[%c0_7, %c0_8], %10 {strides = array<i32>} : memref<4x512xf32, #tpu.memory_space<vmem>>, vector<4x512xf32>,
    return
  }
  func.func @transform_0(%arg0: i32) -> (i32, i32) {
    %c0_i32 = arith.constant 0 : i32
    %c0_i32_0 = arith.constant 0 : i32
    %c0_i32_1 = arith.constant 0 : i32
    return %c0_i32, %c0_i32_0 : i32, i32
  }
  func.func @transform_1(%arg0: i32) -> (i32, i32) {
    %c0_i32 = arith.constant 0 : i32
    %c0_i32_0 = arith.constant 0 : i32
    return %c0_i32, %arg0 : i32, i32
  }
  func.func @transform_2(%arg0: i32) -> (i32, i32) {
    %c0_i32 = arith.constant 0 : i32
    %c0_i32_0 = arith.constant 0 : i32
    %c0_i32_1 = arith.constant 0 : i32
    return %c0_i32, %c0_i32_0 : i32, i32
  }
  func.func @transform_3(%arg0: i32) -> (i32, i32) {
    %c0_i32 = arith.constant 0 : i32
    %c0_i32_0 = arith.constant 0 : i32
    return %c0_i32, %arg0 : i32, i32
  }
}

module attributes {stable_mosaic.version = 11 : i64} {
  func.func @_convmm_kernel(%arg0: i32, %arg1: memref<4x36xbf16, #tpu.memory_space<vmem>>, %arg2: memref<36x512xbf16, #tpu.memory_space<vmem>>, %arg3: memref<4x1xf32, #tpu.memory_space<vmem>>, %arg4: memref<4x512xf32, #tpu.memory_space<vmem>>, %arg5: memref<4x512xf32, #tpu.memory_space<vmem>>) attributes {dimension_semantics = [#tpu.dimension_semantics<parallel>], iteration_bounds = array<i64: 1>, scalar_prefetch = 0 : i64, scratch_operands = 0 : i64, tpu.core_type = #tpu.core_type<tc>, window_params = [{pipeline_mode = #tpu.pipeline_mode<synchronous>, transform_indices = @transform_0, window_bounds = array<i64: 4, 36>}, {transform_indices = @transform_1, window_bounds = array<i64: 36, 512>}, {pipeline_mode = #tpu.pipeline_mode<synchronous>, transform_indices = @transform_2, window_bounds = array<i64: 4, 1>}, {transform_indices = @transform_3, window_bounds = array<i64: 4, 512>}, {transform_indices = @transform_4, window_bounds = array<i64: 4, 512>}]} {
    %c0 = arith.constant 0 : index
    %c0_0 = arith.constant 0 : index
    %0 = vector.load %arg1[%c0, %c0_0] : memref<4x36xbf16, #tpu.memory_space<vmem>>, vector<4x36xbf16>
    %c0_1 = arith.constant 0 : index
    %c0_2 = arith.constant 0 : index
    %1 = vector.load %arg2[%c0_1, %c0_2] : memref<36x512xbf16, #tpu.memory_space<vmem>>, vector<36x512xbf16>
    %cst = arith.constant dense<0.000000e+00> : vector<4x512xf32>
    %2 = tpu.matmul %0, %1, %cst {dimension_numbers = #tpu.dot_dimension_numbers<[1], [0], [0], [1], [0, 0, 1, 1], [], []>} : vector<4x36xbf16>, vector<36x512xbf16>, vector<4x512xf32> -> vector<4x512xf32>
    %c0_3 = arith.constant 0 : index
    %c0_4 = arith.constant 0 : index
    %3 = vector.load %arg3[%c0_3, %c0_4] : memref<4x1xf32, #tpu.memory_space<vmem>>, vector<4x1xf32>
    %4 = vector.broadcast %3 : vector<4x1xf32> to vector<4x512xf32>
    %5 = arith.addf %2, %4 : vector<4x512xf32>
    %cst_5 = arith.constant 0.000000e+00 : f32
    %6 = vector.broadcast %cst_5 : f32 to vector<4x512xf32>
    %7 = arith.cmpf oge, %5, %6 : vector<4x512xf32>
    %cst_6 = arith.constant 2.000000e-01 : f32
    %8 = vector.broadcast %cst_6 : f32 to vector<4x512xf32>
    %9 = arith.mulf %8, %5 : vector<4x512xf32>
    %10 = arith.select %7, %5, %9 : vector<4x512xi1>, vector<4x512xf32>
    %c0_7 = arith.constant 0 : index
    %c0_8 = arith.constant 0 : index
    %11 = vector.load %arg4[%c0_7, %c0_8] : memref<4x512xf32, #tpu.memory_space<vmem>>, vector<4x512xf32>
    %12 = arith.addf %10, %11 : vector<4x512xf32>
    %c0_9 = arith.constant 0 : index
    %c0_10 = arith.constant 0 : index
    %13 = vector.load %arg5[%c0_9, %c0_10] : memref<4x512xf32, #tpu.memory_space<vmem>>, vector<4x512xf32>
    tpu.vector_store %arg5[%c0_9, %c0_10], %12 {strides = array<i32>} : memref<4x512xf32, #tpu.memory_space<vmem>>, vector<4x512xf32>,
    return
  }
  func.func @transform_0(%arg0: i32) -> (i32, i32) {
    %c0_i32 = arith.constant 0 : i32
    %c0_i32_0 = arith.constant 0 : i32
    %c0_i32_1 = arith.constant 0 : i32
    return %c0_i32, %c0_i32_0 : i32, i32
  }
  func.func @transform_1(%arg0: i32) -> (i32, i32) {
    %c0_i32 = arith.constant 0 : i32
    %c0_i32_0 = arith.constant 0 : i32
    return %c0_i32, %arg0 : i32, i32
  }
  func.func @transform_2(%arg0: i32) -> (i32, i32) {
    %c0_i32 = arith.constant 0 : i32
    %c0_i32_0 = arith.constant 0 : i32
    %c0_i32_1 = arith.constant 0 : i32
    return %c0_i32, %c0_i32_0 : i32, i32
  }
  func.func @transform_3(%arg0: i32) -> (i32, i32) {
    %c0_i32 = arith.constant 0 : i32
    %c0_i32_0 = arith.constant 0 : i32
    return %c0_i32, %arg0 : i32, i32
  }
  func.func @transform_4(%arg0: i32) -> (i32, i32) {
    %c0_i32 = arith.constant 0 : i32
    %c0_i32_0 = arith.constant 0 : i32
    return %c0_i32, %arg0 : i32, i32
  }
}

module attributes {stable_mosaic.version = 11 : i64} {
  func.func @_convmm_kernel(%arg0: i32, %arg1: memref<3x4xbf16, #tpu.memory_space<vmem>>, %arg2: memref<4x512xbf16, #tpu.memory_space<vmem>>, %arg3: memref<3x1xf32, #tpu.memory_space<vmem>>, %arg4: memref<3x512xf32, #tpu.memory_space<vmem>>, %arg5: memref<3x512xf32, #tpu.memory_space<vmem>>) attributes {dimension_semantics = [#tpu.dimension_semantics<parallel>], iteration_bounds = array<i64: 1>, scalar_prefetch = 0 : i64, scratch_operands = 0 : i64, tpu.core_type = #tpu.core_type<tc>, window_params = [{pipeline_mode = #tpu.pipeline_mode<synchronous>, transform_indices = @transform_0, window_bounds = array<i64: 3, 4>}, {transform_indices = @transform_1, window_bounds = array<i64: 4, 512>}, {pipeline_mode = #tpu.pipeline_mode<synchronous>, transform_indices = @transform_2, window_bounds = array<i64: 3, 1>}, {transform_indices = @transform_3, window_bounds = array<i64: 3, 512>}, {transform_indices = @transform_4, window_bounds = array<i64: 3, 512>}]} {
    %c0 = arith.constant 0 : index
    %c0_0 = arith.constant 0 : index
    %0 = vector.load %arg1[%c0, %c0_0] : memref<3x4xbf16, #tpu.memory_space<vmem>>, vector<3x4xbf16>
    %c0_1 = arith.constant 0 : index
    %c0_2 = arith.constant 0 : index
    %1 = vector.load %arg2[%c0_1, %c0_2] : memref<4x512xbf16, #tpu.memory_space<vmem>>, vector<4x512xbf16>
    %cst = arith.constant dense<0.000000e+00> : vector<3x512xf32>
    %2 = tpu.matmul %0, %1, %cst {dimension_numbers = #tpu.dot_dimension_numbers<[1], [0], [0], [1], [0, 0, 1, 1], [], []>} : vector<3x4xbf16>, vector<4x512xbf16>, vector<3x512xf32> -> vector<3x512xf32>
    %c0_3 = arith.constant 0 : index
    %c0_4 = arith.constant 0 : index
    %3 = vector.load %arg3[%c0_3, %c0_4] : memref<3x1xf32, #tpu.memory_space<vmem>>, vector<3x1xf32>
    %4 = vector.broadcast %3 : vector<3x1xf32> to vector<3x512xf32>
    %5 = arith.addf %2, %4 : vector<3x512xf32>
    %c0_5 = arith.constant 0 : index
    %c0_6 = arith.constant 0 : index
    %6 = vector.load %arg4[%c0_5, %c0_6] : memref<3x512xf32, #tpu.memory_space<vmem>>, vector<3x512xf32>
    %7 = arith.addf %5, %6 : vector<3x512xf32>
    %c0_7 = arith.constant 0 : index
    %c0_8 = arith.constant 0 : index
    %8 = vector.load %arg5[%c0_7, %c0_8] : memref<3x512xf32, #tpu.memory_space<vmem>>, vector<3x512xf32>
    tpu.vector_store %arg5[%c0_7, %c0_8], %7 {strides = array<i32>} : memref<3x512xf32, #tpu.memory_space<vmem>>, vector<3x512xf32>,
    return
  }
  func.func @transform_0(%arg0: i32) -> (i32, i32) {
    %c0_i32 = arith.constant 0 : i32
    %c0_i32_0 = arith.constant 0 : i32
    %c0_i32_1 = arith.constant 0 : i32
    return %c0_i32, %c0_i32_0 : i32, i32
  }
  func.func @transform_1(%arg0: i32) -> (i32, i32) {
    %c0_i32 = arith.constant 0 : i32
    %c0_i32_0 = arith.constant 0 : i32
    return %c0_i32, %arg0 : i32, i32
  }
  func.func @transform_2(%arg0: i32) -> (i32, i32) {
    %c0_i32 = arith.constant 0 : i32
    %c0_i32_0 = arith.constant 0 : i32
    %c0_i32_1 = arith.constant 0 : i32
    return %c0_i32, %c0_i32_0 : i32, i32
  }
  func.func @transform_3(%arg0: i32) -> (i32, i32) {
    %c0_i32 = arith.constant 0 : i32
    %c0_i32_0 = arith.constant 0 : i32
    return %c0_i32, %arg0 : i32, i32
  }
  func.func @transform_4(%arg0: i32) -> (i32, i32) {
    %c0_i32 = arith.constant 0 : i32
    %c0_i32_0 = arith.constant 0 : i32
    return %c0_i32, %arg0 : i32, i32
  }
}

module attributes {stable_mosaic.version = 11 : i64} {
  func.func @_convmm_kernel(%arg0: i32, %arg1: memref<2x27xbf16, #tpu.memory_space<vmem>>, %arg2: memref<27x128xbf16, #tpu.memory_space<vmem>>, %arg3: memref<2x1xf32, #tpu.memory_space<vmem>>, %arg4: memref<2x128xf32, #tpu.memory_space<vmem>>) attributes {dimension_semantics = [#tpu.dimension_semantics<parallel>], iteration_bounds = array<i64: 1>, scalar_prefetch = 0 : i64, scratch_operands = 0 : i64, tpu.core_type = #tpu.core_type<tc>, window_params = [{pipeline_mode = #tpu.pipeline_mode<synchronous>, transform_indices = @transform_0, window_bounds = array<i64: 2, 27>}, {transform_indices = @transform_1, window_bounds = array<i64: 27, 128>}, {pipeline_mode = #tpu.pipeline_mode<synchronous>, transform_indices = @transform_2, window_bounds = array<i64: 2, 1>}, {transform_indices = @transform_3, window_bounds = array<i64: 2, 128>}]} {
    %c0 = arith.constant 0 : index
    %c0_0 = arith.constant 0 : index
    %0 = vector.load %arg1[%c0, %c0_0] : memref<2x27xbf16, #tpu.memory_space<vmem>>, vector<2x27xbf16>
    %c0_1 = arith.constant 0 : index
    %c0_2 = arith.constant 0 : index
    %1 = vector.load %arg2[%c0_1, %c0_2] : memref<27x128xbf16, #tpu.memory_space<vmem>>, vector<27x128xbf16>
    %cst = arith.constant dense<0.000000e+00> : vector<2x128xf32>
    %2 = tpu.matmul %0, %1, %cst {dimension_numbers = #tpu.dot_dimension_numbers<[1], [0], [0], [1], [0, 0, 1, 1], [], []>} : vector<2x27xbf16>, vector<27x128xbf16>, vector<2x128xf32> -> vector<2x128xf32>
    %c0_3 = arith.constant 0 : index
    %c0_4 = arith.constant 0 : index
    %3 = vector.load %arg3[%c0_3, %c0_4] : memref<2x1xf32, #tpu.memory_space<vmem>>, vector<2x1xf32>
    %4 = vector.broadcast %3 : vector<2x1xf32> to vector<2x128xf32>
    %5 = arith.addf %2, %4 : vector<2x128xf32>
    %cst_5 = arith.constant 0.000000e+00 : f32
    %6 = vector.broadcast %cst_5 : f32 to vector<2x128xf32>
    %7 = arith.cmpf oge, %5, %6 : vector<2x128xf32>
    %cst_6 = arith.constant 2.000000e-01 : f32
    %8 = vector.broadcast %cst_6 : f32 to vector<2x128xf32>
    %9 = arith.mulf %8, %5 : vector<2x128xf32>
    %10 = arith.select %7, %5, %9 : vector<2x128xi1>, vector<2x128xf32>
    %c0_7 = arith.constant 0 : index
    %c0_8 = arith.constant 0 : index
    %11 = vector.load %arg4[%c0_7, %c0_8] : memref<2x128xf32, #tpu.memory_space<vmem>>, vector<2x128xf32>
    tpu.vector_store %arg4[%c0_7, %c0_8], %10 {strides = array<i32>} : memref<2x128xf32, #tpu.memory_space<vmem>>, vector<2x128xf32>,
    return
  }
  func.func @transform_0(%arg0: i32) -> (i32, i32) {
    %c0_i32 = arith.constant 0 : i32
    %c0_i32_0 = arith.constant 0 : i32
    %c0_i32_1 = arith.constant 0 : i32
    return %c0_i32, %c0_i32_0 : i32, i32
  }
  func.func @transform_1(%arg0: i32) -> (i32, i32) {
    %c0_i32 = arith.constant 0 : i32
    %c0_i32_0 = arith.constant 0 : i32
    return %c0_i32, %arg0 : i32, i32
  }
  func.func @transform_2(%arg0: i32) -> (i32, i32) {
    %c0_i32 = arith.constant 0 : i32
    %c0_i32_0 = arith.constant 0 : i32
    %c0_i32_1 = arith.constant 0 : i32
    return %c0_i32, %c0_i32_0 : i32, i32
  }
  func.func @transform_3(%arg0: i32) -> (i32, i32) {
    %c0_i32 = arith.constant 0 : i32
    %c0_i32_0 = arith.constant 0 : i32
    return %c0_i32, %arg0 : i32, i32
  }
}

module attributes {stable_mosaic.version = 11 : i64} {
  func.func @_convmm_kernel(%arg0: i32, %arg1: memref<2x18xbf16, #tpu.memory_space<vmem>>, %arg2: memref<18x128xbf16, #tpu.memory_space<vmem>>, %arg3: memref<2x1xf32, #tpu.memory_space<vmem>>, %arg4: memref<2x128xf32, #tpu.memory_space<vmem>>) attributes {dimension_semantics = [#tpu.dimension_semantics<parallel>], iteration_bounds = array<i64: 1>, scalar_prefetch = 0 : i64, scratch_operands = 0 : i64, tpu.core_type = #tpu.core_type<tc>, window_params = [{pipeline_mode = #tpu.pipeline_mode<synchronous>, transform_indices = @transform_0, window_bounds = array<i64: 2, 18>}, {transform_indices = @transform_1, window_bounds = array<i64: 18, 128>}, {pipeline_mode = #tpu.pipeline_mode<synchronous>, transform_indices = @transform_2, window_bounds = array<i64: 2, 1>}, {transform_indices = @transform_3, window_bounds = array<i64: 2, 128>}]} {
    %c0 = arith.constant 0 : index
    %c0_0 = arith.constant 0 : index
    %0 = vector.load %arg1[%c0, %c0_0] : memref<2x18xbf16, #tpu.memory_space<vmem>>, vector<2x18xbf16>
    %c0_1 = arith.constant 0 : index
    %c0_2 = arith.constant 0 : index
    %1 = vector.load %arg2[%c0_1, %c0_2] : memref<18x128xbf16, #tpu.memory_space<vmem>>, vector<18x128xbf16>
    %cst = arith.constant dense<0.000000e+00> : vector<2x128xf32>
    %2 = tpu.matmul %0, %1, %cst {dimension_numbers = #tpu.dot_dimension_numbers<[1], [0], [0], [1], [0, 0, 1, 1], [], []>} : vector<2x18xbf16>, vector<18x128xbf16>, vector<2x128xf32> -> vector<2x128xf32>
    %c0_3 = arith.constant 0 : index
    %c0_4 = arith.constant 0 : index
    %3 = vector.load %arg3[%c0_3, %c0_4] : memref<2x1xf32, #tpu.memory_space<vmem>>, vector<2x1xf32>
    %4 = vector.broadcast %3 : vector<2x1xf32> to vector<2x128xf32>
    %5 = arith.addf %2, %4 : vector<2x128xf32>
    %cst_5 = arith.constant 0.000000e+00 : f32
    %6 = vector.broadcast %cst_5 : f32 to vector<2x128xf32>
    %7 = arith.cmpf oge, %5, %6 : vector<2x128xf32>
    %cst_6 = arith.constant 2.000000e-01 : f32
    %8 = vector.broadcast %cst_6 : f32 to vector<2x128xf32>
    %9 = arith.mulf %8, %5 : vector<2x128xf32>
    %10 = arith.select %7, %5, %9 : vector<2x128xi1>, vector<2x128xf32>
    %c0_7 = arith.constant 0 : index
    %c0_8 = arith.constant 0 : index
    %11 = vector.load %arg4[%c0_7, %c0_8] : memref<2x128xf32, #tpu.memory_space<vmem>>, vector<2x128xf32>
    tpu.vector_store %arg4[%c0_7, %c0_8], %10 {strides = array<i32>} : memref<2x128xf32, #tpu.memory_space<vmem>>, vector<2x128xf32>,
    return
  }
  func.func @transform_0(%arg0: i32) -> (i32, i32) {
    %c0_i32 = arith.constant 0 : i32
    %c0_i32_0 = arith.constant 0 : i32
    %c0_i32_1 = arith.constant 0 : i32
    return %c0_i32, %c0_i32_0 : i32, i32
  }
  func.func @transform_1(%arg0: i32) -> (i32, i32) {
    %c0_i32 = arith.constant 0 : i32
    %c0_i32_0 = arith.constant 0 : i32
    return %c0_i32, %arg0 : i32, i32
  }
  func.func @transform_2(%arg0: i32) -> (i32, i32) {
    %c0_i32 = arith.constant 0 : i32
    %c0_i32_0 = arith.constant 0 : i32
    %c0_i32_1 = arith.constant 0 : i32
    return %c0_i32, %c0_i32_0 : i32, i32
  }
  func.func @transform_3(%arg0: i32) -> (i32, i32) {
    %c0_i32 = arith.constant 0 : i32
    %c0_i32_0 = arith.constant 0 : i32
    return %c0_i32, %arg0 : i32, i32
  }
}

module attributes {stable_mosaic.version = 11 : i64} {
  func.func @_convmm_kernel(%arg0: i32, %arg1: memref<2x2xbf16, #tpu.memory_space<vmem>>, %arg2: memref<2x128xbf16, #tpu.memory_space<vmem>>, %arg3: memref<2x1xf32, #tpu.memory_space<vmem>>, %arg4: memref<2x128xf32, #tpu.memory_space<vmem>>) attributes {dimension_semantics = [#tpu.dimension_semantics<parallel>], iteration_bounds = array<i64: 1>, scalar_prefetch = 0 : i64, scratch_operands = 0 : i64, tpu.core_type = #tpu.core_type<tc>, window_params = [{pipeline_mode = #tpu.pipeline_mode<synchronous>, transform_indices = @transform_0, window_bounds = array<i64: 2, 2>}, {transform_indices = @transform_1, window_bounds = array<i64: 2, 128>}, {pipeline_mode = #tpu.pipeline_mode<synchronous>, transform_indices = @transform_2, window_bounds = array<i64: 2, 1>}, {transform_indices = @transform_3, window_bounds = array<i64: 2, 128>}]} {
    %c0 = arith.constant 0 : index
    %c0_0 = arith.constant 0 : index
    %0 = vector.load %arg1[%c0, %c0_0] : memref<2x2xbf16, #tpu.memory_space<vmem>>, vector<2x2xbf16>
    %c0_1 = arith.constant 0 : index
    %c0_2 = arith.constant 0 : index
    %1 = vector.load %arg2[%c0_1, %c0_2] : memref<2x128xbf16, #tpu.memory_space<vmem>>, vector<2x128xbf16>
    %cst = arith.constant dense<0.000000e+00> : vector<2x128xf32>
    %2 = tpu.matmul %0, %1, %cst {dimension_numbers = #tpu.dot_dimension_numbers<[1], [0], [0], [1], [0, 0, 1, 1], [], []>} : vector<2x2xbf16>, vector<2x128xbf16>, vector<2x128xf32> -> vector<2x128xf32>
    %c0_3 = arith.constant 0 : index
    %c0_4 = arith.constant 0 : index
    %3 = vector.load %arg3[%c0_3, %c0_4] : memref<2x1xf32, #tpu.memory_space<vmem>>, vector<2x1xf32>
    %4 = vector.broadcast %3 : vector<2x1xf32> to vector<2x128xf32>
    %5 = arith.addf %2, %4 : vector<2x128xf32>
    %cst_5 = arith.constant 0.000000e+00 : f32
    %6 = vector.broadcast %cst_5 : f32 to vector<2x128xf32>
    %7 = arith.cmpf oge, %5, %6 : vector<2x128xf32>
    %cst_6 = arith.constant 2.000000e-01 : f32
    %8 = vector.broadcast %cst_6 : f32 to vector<2x128xf32>
    %9 = arith.mulf %8, %5 : vector<2x128xf32>
    %10 = arith.select %7, %5, %9 : vector<2x128xi1>, vector<2x128xf32>
    %c0_7 = arith.constant 0 : index
    %c0_8 = arith.constant 0 : index
    %11 = vector.load %arg4[%c0_7, %c0_8] : memref<2x128xf32, #tpu.memory_space<vmem>>, vector<2x128xf32>
    tpu.vector_store %arg4[%c0_7, %c0_8], %10 {strides = array<i32>} : memref<2x128xf32, #tpu.memory_space<vmem>>, vector<2x128xf32>,
    return
  }
  func.func @transform_0(%arg0: i32) -> (i32, i32) {
    %c0_i32 = arith.constant 0 : i32
    %c0_i32_0 = arith.constant 0 : i32
    %c0_i32_1 = arith.constant 0 : i32
    return %c0_i32, %c0_i32_0 : i32, i32
  }
  func.func @transform_1(%arg0: i32) -> (i32, i32) {
    %c0_i32 = arith.constant 0 : i32
    %c0_i32_0 = arith.constant 0 : i32
    return %c0_i32, %arg0 : i32, i32
  }
  func.func @transform_2(%arg0: i32) -> (i32, i32) {
    %c0_i32 = arith.constant 0 : i32
    %c0_i32_0 = arith.constant 0 : i32
    %c0_i32_1 = arith.constant 0 : i32
    return %c0_i32, %c0_i32_0 : i32, i32
  }
  func.func @transform_3(%arg0: i32) -> (i32, i32) {
    %c0_i32 = arith.constant 0 : i32
    %c0_i32_0 = arith.constant 0 : i32
    return %c0_i32, %arg0 : i32, i32
  }
}

module attributes {stable_mosaic.version = 11 : i64} {
  func.func @_convmm_kernel(%arg0: i32, %arg1: memref<2x18xbf16, #tpu.memory_space<vmem>>, %arg2: memref<18x128xbf16, #tpu.memory_space<vmem>>, %arg3: memref<2x1xf32, #tpu.memory_space<vmem>>, %arg4: memref<2x128xf32, #tpu.memory_space<vmem>>, %arg5: memref<2x128xf32, #tpu.memory_space<vmem>>) attributes {dimension_semantics = [#tpu.dimension_semantics<parallel>], iteration_bounds = array<i64: 1>, scalar_prefetch = 0 : i64, scratch_operands = 0 : i64, tpu.core_type = #tpu.core_type<tc>, window_params = [{pipeline_mode = #tpu.pipeline_mode<synchronous>, transform_indices = @transform_0, window_bounds = array<i64: 2, 18>}, {transform_indices = @transform_1, window_bounds = array<i64: 18, 128>}, {pipeline_mode = #tpu.pipeline_mode<synchronous>, transform_indices = @transform_2, window_bounds = array<i64: 2, 1>}, {transform_indices = @transform_3, window_bounds = array<i64: 2, 128>}, {transform_indices = @transform_4, window_bounds = array<i64: 2, 128>}]} {
    %c0 = arith.constant 0 : index
    %c0_0 = arith.constant 0 : index
    %0 = vector.load %arg1[%c0, %c0_0] : memref<2x18xbf16, #tpu.memory_space<vmem>>, vector<2x18xbf16>
    %c0_1 = arith.constant 0 : index
    %c0_2 = arith.constant 0 : index
    %1 = vector.load %arg2[%c0_1, %c0_2] : memref<18x128xbf16, #tpu.memory_space<vmem>>, vector<18x128xbf16>
    %cst = arith.constant dense<0.000000e+00> : vector<2x128xf32>
    %2 = tpu.matmul %0, %1, %cst {dimension_numbers = #tpu.dot_dimension_numbers<[1], [0], [0], [1], [0, 0, 1, 1], [], []>} : vector<2x18xbf16>, vector<18x128xbf16>, vector<2x128xf32> -> vector<2x128xf32>
    %c0_3 = arith.constant 0 : index
    %c0_4 = arith.constant 0 : index
    %3 = vector.load %arg3[%c0_3, %c0_4] : memref<2x1xf32, #tpu.memory_space<vmem>>, vector<2x1xf32>
    %4 = vector.broadcast %3 : vector<2x1xf32> to vector<2x128xf32>
    %5 = arith.addf %2, %4 : vector<2x128xf32>
    %cst_5 = arith.constant 0.000000e+00 : f32
    %6 = vector.broadcast %cst_5 : f32 to vector<2x128xf32>
    %7 = arith.cmpf oge, %5, %6 : vector<2x128xf32>
    %cst_6 = arith.constant 2.000000e-01 : f32
    %8 = vector.broadcast %cst_6 : f32 to vector<2x128xf32>
    %9 = arith.mulf %8, %5 : vector<2x128xf32>
    %10 = arith.select %7, %5, %9 : vector<2x128xi1>, vector<2x128xf32>
    %c0_7 = arith.constant 0 : index
    %c0_8 = arith.constant 0 : index
    %11 = vector.load %arg4[%c0_7, %c0_8] : memref<2x128xf32, #tpu.memory_space<vmem>>, vector<2x128xf32>
    %12 = arith.addf %10, %11 : vector<2x128xf32>
    %c0_9 = arith.constant 0 : index
    %c0_10 = arith.constant 0 : index
    %13 = vector.load %arg5[%c0_9, %c0_10] : memref<2x128xf32, #tpu.memory_space<vmem>>, vector<2x128xf32>
    tpu.vector_store %arg5[%c0_9, %c0_10], %12 {strides = array<i32>} : memref<2x128xf32, #tpu.memory_space<vmem>>, vector<2x128xf32>,
    return
  }
  func.func @transform_0(%arg0: i32) -> (i32, i32) {
    %c0_i32 = arith.constant 0 : i32
    %c0_i32_0 = arith.constant 0 : i32
    %c0_i32_1 = arith.constant 0 : i32
    return %c0_i32, %c0_i32_0 : i32, i32
  }
  func.func @transform_1(%arg0: i32) -> (i32, i32) {
    %c0_i32 = arith.constant 0 : i32
    %c0_i32_0 = arith.constant 0 : i32
    return %c0_i32, %arg0 : i32, i32
  }
  func.func @transform_2(%arg0: i32) -> (i32, i32) {
    %c0_i32 = arith.constant 0 : i32
    %c0_i32_0 = arith.constant 0 : i32
    %c0_i32_1 = arith.constant 0 : i32
    return %c0_i32, %c0_i32_0 : i32, i32
  }
  func.func @transform_3(%arg0: i32) -> (i32, i32) {
    %c0_i32 = arith.constant 0 : i32
    %c0_i32_0 = arith.constant 0 : i32
    return %c0_i32, %arg0 : i32, i32
  }
  func.func @transform_4(%arg0: i32) -> (i32, i32) {
    %c0_i32 = arith.constant 0 : i32
    %c0_i32_0 = arith.constant 0 : i32
    return %c0_i32, %arg0 : i32, i32
  }
}

module attributes {stable_mosaic.version = 11 : i64} {
  func.func @_convmm_kernel(%arg0: i32, %arg1: memref<3x2xbf16, #tpu.memory_space<vmem>>, %arg2: memref<2x128xbf16, #tpu.memory_space<vmem>>, %arg3: memref<3x1xf32, #tpu.memory_space<vmem>>, %arg4: memref<3x128xf32, #tpu.memory_space<vmem>>, %arg5: memref<3x128xf32, #tpu.memory_space<vmem>>) attributes {dimension_semantics = [#tpu.dimension_semantics<parallel>], iteration_bounds = array<i64: 1>, scalar_prefetch = 0 : i64, scratch_operands = 0 : i64, tpu.core_type = #tpu.core_type<tc>, window_params = [{pipeline_mode = #tpu.pipeline_mode<synchronous>, transform_indices = @transform_0, window_bounds = array<i64: 3, 2>}, {transform_indices = @transform_1, window_bounds = array<i64: 2, 128>}, {pipeline_mode = #tpu.pipeline_mode<synchronous>, transform_indices = @transform_2, window_bounds = array<i64: 3, 1>}, {transform_indices = @transform_3, window_bounds = array<i64: 3, 128>}, {transform_indices = @transform_4, window_bounds = array<i64: 3, 128>}]} {
    %c0 = arith.constant 0 : index
    %c0_0 = arith.constant 0 : index
    %0 = vector.load %arg1[%c0, %c0_0] : memref<3x2xbf16, #tpu.memory_space<vmem>>, vector<3x2xbf16>
    %c0_1 = arith.constant 0 : index
    %c0_2 = arith.constant 0 : index
    %1 = vector.load %arg2[%c0_1, %c0_2] : memref<2x128xbf16, #tpu.memory_space<vmem>>, vector<2x128xbf16>
    %cst = arith.constant dense<0.000000e+00> : vector<3x128xf32>
    %2 = tpu.matmul %0, %1, %cst {dimension_numbers = #tpu.dot_dimension_numbers<[1], [0], [0], [1], [0, 0, 1, 1], [], []>} : vector<3x2xbf16>, vector<2x128xbf16>, vector<3x128xf32> -> vector<3x128xf32>
    %c0_3 = arith.constant 0 : index
    %c0_4 = arith.constant 0 : index
    %3 = vector.load %arg3[%c0_3, %c0_4] : memref<3x1xf32, #tpu.memory_space<vmem>>, vector<3x1xf32>
    %4 = vector.broadcast %3 : vector<3x1xf32> to vector<3x128xf32>
    %5 = arith.addf %2, %4 : vector<3x128xf32>
    %c0_5 = arith.constant 0 : index
    %c0_6 = arith.constant 0 : index
    %6 = vector.load %arg4[%c0_5, %c0_6] : memref<3x128xf32, #tpu.memory_space<vmem>>, vector<3x128xf32>
    %7 = arith.addf %5, %6 : vector<3x128xf32>
    %cst_7 = arith.constant 0.000000e+00 : f32
    %8 = vector.broadcast %cst_7 : f32 to vector<3x128xf32>
    %9 = arith.maximumf %7, %8 : vector<3x128xf32>
    %c0_8 = arith.constant 0 : index
    %c0_9 = arith.constant 0 : index
    %10 = vector.load %arg5[%c0_8, %c0_9] : memref<3x128xf32, #tpu.memory_space<vmem>>, vector<3x128xf32>
    tpu.vector_store %arg5[%c0_8, %c0_9], %9 {strides = array<i32>} : memref<3x128xf32, #tpu.memory_space<vmem>>, vector<3x128xf32>,
    return
  }
  func.func @transform_0(%arg0: i32) -> (i32, i32) {
    %c0_i32 = arith.constant 0 : i32
    %c0_i32_0 = arith.constant 0 : i32
    %c0_i32_1 = arith.constant 0 : i32
    return %c0_i32, %c0_i32_0 : i32, i32
  }
  func.func @transform_1(%arg0: i32) -> (i32, i32) {
    %c0_i32 = arith.constant 0 : i32
    %c0_i32_0 = arith.constant 0 : i32
    return %c0_i32, %arg0 : i32, i32
  }
  func.func @transform_2(%arg0: i32) -> (i32, i32) {
    %c0_i32 = arith.constant 0 : i32
    %c0_i32_0 = arith.constant 0 : i32
    %c0_i32_1 = arith.constant 0 : i32
    return %c0_i32, %c0_i32_0 : i32, i32
  }
  func.func @transform_3(%arg0: i32) -> (i32, i32) {
    %c0_i32 = arith.constant 0 : i32
    %c0_i32_0 = arith.constant 0 : i32
    return %c0_i32, %arg0 : i32, i32
  }
  func.func @transform_4(%arg0: i32) -> (i32, i32) {
    %c0_i32 = arith.constant 0 : i32
    %c0_i32_0 = arith.constant 0 : i32
    return %c0_i32, %arg0 : i32, i32
  }
}

module attributes {stable_mosaic.version = 11 : i64} {
  func.func @_gauss_stencil_kernel(%arg0: i32, %arg1: memref<1x20x20xf32, #tpu.memory_space<vmem>>, %arg2: memref<1x16x16xf32, #tpu.memory_space<vmem>>, %arg3: memref<1x16x16xf32, #tpu.memory_space<vmem>>) attributes {dimension_semantics = [#tpu.dimension_semantics<parallel>], iteration_bounds = array<i64: 6>, scalar_prefetch = 0 : i64, scratch_operands = 0 : i64, tpu.core_type = #tpu.core_type<tc>, window_params = [{transform_indices = @transform_0, window_bounds = array<i64: 1, 20, 20>}, {transform_indices = @transform_1, window_bounds = array<i64: 1, 16, 16>}, {transform_indices = @transform_2, window_bounds = array<i64: 1, 16, 16>}]} {
    %c0 = arith.constant 0 : index
    %c0_0 = arith.constant 0 : index
    %c0_1 = arith.constant 0 : index
    %0 = vector.load %arg1[%c0, %c0_0, %c0_1] : memref<1x20x20xf32, #tpu.memory_space<vmem>>, vector<1x20x20xf32>
    %1 = vector.shape_cast %0 : vector<1x20x20xf32> to vector<20x20xf32>
    %2 = vector.extract_strided_slice %1 {offsets = [0, 0], sizes = [16, 20], strides = [1, 1]} : vector<20x20xf32> to vector<16x20xf32>
    %cst = arith.constant 1.250000e-01 : f32
    %3 = vector.broadcast %cst : f32 to vector<16x20xf32>
    %4 = arith.mulf %3, %2 : vector<16x20xf32>
    %5 = vector.extract_strided_slice %1 {offsets = [1, 0], sizes = [16, 20], strides = [1, 1]} : vector<20x20xf32> to vector<16x20xf32>
    %cst_2 = arith.constant 5.000000e-01 : f32
    %6 = vector.broadcast %cst_2 : f32 to vector<16x20xf32>
    %7 = arith.mulf %6, %5 : vector<16x20xf32>
    %8 = arith.addf %4, %7 : vector<16x20xf32>
    %9 = vector.extract_strided_slice %1 {offsets = [2, 0], sizes = [16, 20], strides = [1, 1]} : vector<20x20xf32> to vector<16x20xf32>
    %cst_3 = arith.constant 7.500000e-01 : f32
    %10 = vector.broadcast %cst_3 : f32 to vector<16x20xf32>
    %11 = arith.mulf %10, %9 : vector<16x20xf32>
    %12 = arith.addf %8, %11 : vector<16x20xf32>
    %13 = vector.extract_strided_slice %1 {offsets = [3, 0], sizes = [16, 20], strides = [1, 1]} : vector<20x20xf32> to vector<16x20xf32>
    %cst_4 = arith.constant 5.000000e-01 : f32
    %14 = vector.broadcast %cst_4 : f32 to vector<16x20xf32>
    %15 = arith.mulf %14, %13 : vector<16x20xf32>
    %16 = arith.addf %12, %15 : vector<16x20xf32>
    %17 = vector.extract_strided_slice %1 {offsets = [4, 0], sizes = [16, 20], strides = [1, 1]} : vector<20x20xf32> to vector<16x20xf32>
    %cst_5 = arith.constant 1.250000e-01 : f32
    %18 = vector.broadcast %cst_5 : f32 to vector<16x20xf32>
    %19 = arith.mulf %18, %17 : vector<16x20xf32>
    %20 = arith.addf %16, %19 : vector<16x20xf32>
    %21 = vector.extract_strided_slice %20 {offsets = [0, 0], sizes = [16, 16], strides = [1, 1]} : vector<16x20xf32> to vector<16x16xf32>
    %cst_6 = arith.constant 1.250000e-01 : f32
    %22 = vector.broadcast %cst_6 : f32 to vector<16x16xf32>
    %23 = arith.mulf %22, %21 : vector<16x16xf32>
    %24 = vector.extract_strided_slice %20 {offsets = [0, 1], sizes = [16, 16], strides = [1, 1]} : vector<16x20xf32> to vector<16x16xf32>
    %cst_7 = arith.constant 5.000000e-01 : f32
    %25 = vector.broadcast %cst_7 : f32 to vector<16x16xf32>
    %26 = arith.mulf %25, %24 : vector<16x16xf32>
    %27 = arith.addf %23, %26 : vector<16x16xf32>
    %28 = vector.extract_strided_slice %20 {offsets = [0, 2], sizes = [16, 16], strides = [1, 1]} : vector<16x20xf32> to vector<16x16xf32>
    %cst_8 = arith.constant 7.500000e-01 : f32
    %29 = vector.broadcast %cst_8 : f32 to vector<16x16xf32>
    %30 = arith.mulf %29, %28 : vector<16x16xf32>
    %31 = arith.addf %27, %30 : vector<16x16xf32>
    %32 = vector.extract_strided_slice %20 {offsets = [0, 3], sizes = [16, 16], strides = [1, 1]} : vector<16x20xf32> to vector<16x16xf32>
    %cst_9 = arith.constant 5.000000e-01 : f32
    %33 = vector.broadcast %cst_9 : f32 to vector<16x16xf32>
    %34 = arith.mulf %33, %32 : vector<16x16xf32>
    %35 = arith.addf %31, %34 : vector<16x16xf32>
    %36 = vector.extract_strided_slice %20 {offsets = [0, 4], sizes = [16, 16], strides = [1, 1]} : vector<16x20xf32> to vector<16x16xf32>
    %cst_10 = arith.constant 1.250000e-01 : f32
    %37 = vector.broadcast %cst_10 : f32 to vector<16x16xf32>
    %38 = arith.mulf %37, %36 : vector<16x16xf32>
    %39 = arith.addf %35, %38 : vector<16x16xf32>
    %c0_11 = arith.constant 0 : index
    %c0_12 = arith.constant 0 : index
    %c0_13 = arith.constant 0 : index
    %40 = vector.load %arg2[%c0_11, %c0_12, %c0_13] : memref<1x16x16xf32, #tpu.memory_space<vmem>>, vector<1x16x16xf32>
    %41 = vector.shape_cast %40 : vector<1x16x16xf32> to vector<16x16xf32>
    %cst_14 = arith.constant 1.000000e+00 : f32
    %42 = vector.broadcast %cst_14 : f32 to vector<16x16xf32>
    %43 = arith.mulf %42, %41 : vector<16x16xf32>
    %44 = arith.addf %39, %43 : vector<16x16xf32>
    %cst_15 = arith.constant 0.000000e+00 : f32
    %45 = vector.broadcast %cst_15 : f32 to vector<16x16xf32>
    %46 = arith.maximumf %44, %45 : vector<16x16xf32>
    %c0_16 = arith.constant 0 : index
    %c0_17 = arith.constant 0 : index
    %c0_18 = arith.constant 0 : index
    %47 = vector.load %arg3[%c0_16, %c0_17, %c0_18] : memref<1x16x16xf32, #tpu.memory_space<vmem>>, vector<1x16x16xf32>
    %48 = vector.shape_cast %47 : vector<1x16x16xf32> to vector<16x16xf32>
    %49 = vector.shape_cast %46 : vector<16x16xf32> to vector<1x16x16xf32>
    tpu.vector_store %arg3[%c0_16, %c0_17, %c0_18], %49 {strides = array<i32>} : memref<1x16x16xf32, #tpu.memory_space<vmem>>, vector<1x16x16xf32>,
    return
  }
  func.func @transform_0(%arg0: i32) -> (i32, i32, i32) {
    %c0_i32 = arith.constant 0 : i32
    %c0_i32_0 = arith.constant 0 : i32
    %c0_i32_1 = arith.constant 0 : i32
    return %arg0, %c0_i32, %c0_i32_0 : i32, i32, i32
  }
  func.func @transform_1(%arg0: i32) -> (i32, i32, i32) {
    %c0_i32 = arith.constant 0 : i32
    %c0_i32_0 = arith.constant 0 : i32
    %c0_i32_1 = arith.constant 0 : i32
    return %arg0, %c0_i32, %c0_i32_0 : i32, i32, i32
  }
  func.func @transform_2(%arg0: i32) -> (i32, i32, i32) {
    %c0_i32 = arith.constant 0 : i32
    %c0_i32_0 = arith.constant 0 : i32
    %c0_i32_1 = arith.constant 0 : i32
    return %arg0, %c0_i32, %c0_i32_0 : i32, i32, i32
  }
}

module attributes {stable_mosaic.version = 11 : i64} {
  func.func @_gauss_stencil_kernel(%arg0: i32, %arg1: memref<1x36x36xf32, #tpu.memory_space<vmem>>, %arg2: memref<1x32x32xf32, #tpu.memory_space<vmem>>, %arg3: memref<1x32x32xf32, #tpu.memory_space<vmem>>) attributes {dimension_semantics = [#tpu.dimension_semantics<parallel>], iteration_bounds = array<i64: 6>, scalar_prefetch = 0 : i64, scratch_operands = 0 : i64, tpu.core_type = #tpu.core_type<tc>, window_params = [{transform_indices = @transform_0, window_bounds = array<i64: 1, 36, 36>}, {transform_indices = @transform_1, window_bounds = array<i64: 1, 32, 32>}, {transform_indices = @transform_2, window_bounds = array<i64: 1, 32, 32>}]} {
    %c0 = arith.constant 0 : index
    %c0_0 = arith.constant 0 : index
    %c0_1 = arith.constant 0 : index
    %0 = vector.load %arg1[%c0, %c0_0, %c0_1] : memref<1x36x36xf32, #tpu.memory_space<vmem>>, vector<1x36x36xf32>
    %1 = vector.shape_cast %0 : vector<1x36x36xf32> to vector<36x36xf32>
    %2 = vector.extract_strided_slice %1 {offsets = [0, 0], sizes = [32, 36], strides = [1, 1]} : vector<36x36xf32> to vector<32x36xf32>
    %cst = arith.constant 1.250000e-01 : f32
    %3 = vector.broadcast %cst : f32 to vector<32x36xf32>
    %4 = arith.mulf %3, %2 : vector<32x36xf32>
    %5 = vector.extract_strided_slice %1 {offsets = [1, 0], sizes = [32, 36], strides = [1, 1]} : vector<36x36xf32> to vector<32x36xf32>
    %cst_2 = arith.constant 5.000000e-01 : f32
    %6 = vector.broadcast %cst_2 : f32 to vector<32x36xf32>
    %7 = arith.mulf %6, %5 : vector<32x36xf32>
    %8 = arith.addf %4, %7 : vector<32x36xf32>
    %9 = vector.extract_strided_slice %1 {offsets = [2, 0], sizes = [32, 36], strides = [1, 1]} : vector<36x36xf32> to vector<32x36xf32>
    %cst_3 = arith.constant 7.500000e-01 : f32
    %10 = vector.broadcast %cst_3 : f32 to vector<32x36xf32>
    %11 = arith.mulf %10, %9 : vector<32x36xf32>
    %12 = arith.addf %8, %11 : vector<32x36xf32>
    %13 = vector.extract_strided_slice %1 {offsets = [3, 0], sizes = [32, 36], strides = [1, 1]} : vector<36x36xf32> to vector<32x36xf32>
    %cst_4 = arith.constant 5.000000e-01 : f32
    %14 = vector.broadcast %cst_4 : f32 to vector<32x36xf32>
    %15 = arith.mulf %14, %13 : vector<32x36xf32>
    %16 = arith.addf %12, %15 : vector<32x36xf32>
    %17 = vector.extract_strided_slice %1 {offsets = [4, 0], sizes = [32, 36], strides = [1, 1]} : vector<36x36xf32> to vector<32x36xf32>
    %cst_5 = arith.constant 1.250000e-01 : f32
    %18 = vector.broadcast %cst_5 : f32 to vector<32x36xf32>
    %19 = arith.mulf %18, %17 : vector<32x36xf32>
    %20 = arith.addf %16, %19 : vector<32x36xf32>
    %21 = vector.extract_strided_slice %20 {offsets = [0, 0], sizes = [32, 32], strides = [1, 1]} : vector<32x36xf32> to vector<32x32xf32>
    %cst_6 = arith.constant 1.250000e-01 : f32
    %22 = vector.broadcast %cst_6 : f32 to vector<32x32xf32>
    %23 = arith.mulf %22, %21 : vector<32x32xf32>
    %24 = vector.extract_strided_slice %20 {offsets = [0, 1], sizes = [32, 32], strides = [1, 1]} : vector<32x36xf32> to vector<32x32xf32>
    %cst_7 = arith.constant 5.000000e-01 : f32
    %25 = vector.broadcast %cst_7 : f32 to vector<32x32xf32>
    %26 = arith.mulf %25, %24 : vector<32x32xf32>
    %27 = arith.addf %23, %26 : vector<32x32xf32>
    %28 = vector.extract_strided_slice %20 {offsets = [0, 2], sizes = [32, 32], strides = [1, 1]} : vector<32x36xf32> to vector<32x32xf32>
    %cst_8 = arith.constant 7.500000e-01 : f32
    %29 = vector.broadcast %cst_8 : f32 to vector<32x32xf32>
    %30 = arith.mulf %29, %28 : vector<32x32xf32>
    %31 = arith.addf %27, %30 : vector<32x32xf32>
    %32 = vector.extract_strided_slice %20 {offsets = [0, 3], sizes = [32, 32], strides = [1, 1]} : vector<32x36xf32> to vector<32x32xf32>
    %cst_9 = arith.constant 5.000000e-01 : f32
    %33 = vector.broadcast %cst_9 : f32 to vector<32x32xf32>
    %34 = arith.mulf %33, %32 : vector<32x32xf32>
    %35 = arith.addf %31, %34 : vector<32x32xf32>
    %36 = vector.extract_strided_slice %20 {offsets = [0, 4], sizes = [32, 32], strides = [1, 1]} : vector<32x36xf32> to vector<32x32xf32>
    %cst_10 = arith.constant 1.250000e-01 : f32
    %37 = vector.broadcast %cst_10 : f32 to vector<32x32xf32>
    %38 = arith.mulf %37, %36 : vector<32x32xf32>
    %39 = arith.addf %35, %38 : vector<32x32xf32>
    %c0_11 = arith.constant 0 : index
    %c0_12 = arith.constant 0 : index
    %c0_13 = arith.constant 0 : index
    %40 = vector.load %arg2[%c0_11, %c0_12, %c0_13] : memref<1x32x32xf32, #tpu.memory_space<vmem>>, vector<1x32x32xf32>
    %41 = vector.shape_cast %40 : vector<1x32x32xf32> to vector<32x32xf32>
    %cst_14 = arith.constant 1.000000e+00 : f32
    %42 = vector.broadcast %cst_14 : f32 to vector<32x32xf32>
    %43 = arith.mulf %42, %41 : vector<32x32xf32>
    %44 = arith.addf %39, %43 : vector<32x32xf32>
    %cst_15 = arith.constant 0.000000e+00 : f32
    %45 = vector.broadcast %cst_15 : f32 to vector<32x32xf32>
    %46 = arith.maximumf %44, %45 : vector<32x32xf32>
    %c0_16 = arith.constant 0 : index
    %c0_17 = arith.constant 0 : index
    %c0_18 = arith.constant 0 : index
    %47 = vector.load %arg3[%c0_16, %c0_17, %c0_18] : memref<1x32x32xf32, #tpu.memory_space<vmem>>, vector<1x32x32xf32>
    %48 = vector.shape_cast %47 : vector<1x32x32xf32> to vector<32x32xf32>
    %49 = vector.shape_cast %46 : vector<32x32xf32> to vector<1x32x32xf32>
    tpu.vector_store %arg3[%c0_16, %c0_17, %c0_18], %49 {strides = array<i32>} : memref<1x32x32xf32, #tpu.memory_space<vmem>>, vector<1x32x32xf32>,
    return
  }
  func.func @transform_0(%arg0: i32) -> (i32, i32, i32) {
    %c0_i32 = arith.constant 0 : i32
    %c0_i32_0 = arith.constant 0 : i32
    %c0_i32_1 = arith.constant 0 : i32
    return %arg0, %c0_i32, %c0_i32_0 : i32, i32, i32
  }
  func.func @transform_1(%arg0: i32) -> (i32, i32, i32) {
    %c0_i32 = arith.constant 0 : i32
    %c0_i32_0 = arith.constant 0 : i32
    %c0_i32_1 = arith.constant 0 : i32
    return %arg0, %c0_i32, %c0_i32_0 : i32, i32, i32
  }
  func.func @transform_2(%arg0: i32) -> (i32, i32, i32) {
    %c0_i32 = arith.constant 0 : i32
    %c0_i32_0 = arith.constant 0 : i32
    %c0_i32_1 = arith.constant 0 : i32
    return %arg0, %c0_i32, %c0_i32_0 : i32, i32, i32
  }
}

</mosaic_0001>

<llo_original>
// kernel: lpnet_forward.30
$region0: #{lpnet_forward.30}
  #allocation0 [shape = 'u32[]', space=smem, size = 0x4, offset = 0x4, fixed_abs, tag = 'smem constant byte address 0x4 - core index']
  #allocation1 [shape = 'u32[144,128]{1,0:T(1,128)}', space=vmem, size = 0x12000, scoped, tag = 'internal scratch']
  %s0 = inlined_call_operand.vmem [shape: f32[6,36,36], index: 0, kind: input, shape index: {}]
  %s1 = inlined_call_operand.vmem [shape: f32[6,32,32], index: 1, kind: output, shape index: {}]
  %s2 = sld [smem:[#allocation0]]
  $region37: #{lpnet_forward.30} parent=0
    _
  %s4 = ssub.s32 1, %s2
  %s5 = scalar_select 0, %s4, %s2
  loop: start=0, step=1, limit=8
  $region2: #{lpnet_forward.30} parent=0 // loop_pre_header
    _
  $region3: #{lpnet_forward.30} parent=0 // loop_header
    %s7 = sphi 0, %s11
    %p8 = scmp.ge.s32.totalorder %s7, 8
    %s17 = sphi 0, %s19
    %s20 = sphi 0, %s17
    %s21 = sphi 0, %s20
    %s37 = sphi 0, %s21
    %s43 = sphi 0, %s45
    %s46 = sphi 0, %s43
    %s47 = sphi 0, %s46
    %s63 = sphi 0, %s47
  $region4: #{lpnet_forward.30} parent=0 // loop_header_branch
    %10 = sbr.rel (%p8) target = $region8
  $region5: #{lpnet_forward.30} parent=0 // loop_body
    %s12 = ssub.s32 %s7, 1
    %s13 = ssub.s32 %s7, 2
    %s14 = sadd.s32 %s7, 1
    %s15 = ssub.s32 %s7, %s14
    %p16 = scmp.eq.s32.totalorder %s15, 0
    %s18 = sadd.s32 %s17, 1
    %s19 = scalar_select %p16, %s17, %s18
    %p22 = pneg %p16
    %p23 = scmp.eq.s32.totalorder %s7, 5
    %p24 = por %p22, %p23
    %p25 = scmp.ne.s32.totalorder %s17, %s20
    %p26 = scmp.eq.s32.totalorder %s7, 0
    %p27 = por %p25, %p26
    %p28 = scmp.ne.s32.totalorder %s17, %s20
    %p29 = scmp.eq.s32.totalorder %s12, 5
    %p30 = por %p28, %p29
    %p31 = scmp.ne.s32.totalorder %s20, %s21
    %p32 = scmp.eq.s32.totalorder %s12, 0
    %p33 = por %p31, %p32
    %p34 = scmp.ne.s32.totalorder %s20, %s21
    %p35 = scmp.eq.s32.totalorder %s13, 5
    %p36 = por %p34, %p35
    %p38 = scmp.ne.s32.totalorder %s21, %s37
    %p39 = scmp.eq.s32.totalorder %s13, 0
    %p40 = por %p38, %p39
    %s41 = ssub.s32 %s7, %s14
    %p42 = scmp.eq.s32.totalorder %s41, 0
    %s44 = sadd.s32 %s43, 1
    %s45 = scalar_select %p42, %s43, %s44
    %p48 = pneg %p42
    %p49 = scmp.eq.s32.totalorder %s7, 5
    %p50 = por %p48, %p49
    %p51 = scmp.ne.s32.totalorder %s43, %s46
    %p52 = scmp.eq.s32.totalorder %s7, 0
    %p53 = por %p51, %p52
    %p54 = scmp.ne.s32.totalorder %s43, %s46
    %p55 = scmp.eq.s32.totalorder %s12, 5
    %p56 = por %p54, %p55
    %p57 = scmp.ne.s32.totalorder %s46, %s47
    %p58 = scmp.eq.s32.totalorder %s12, 0
    %p59 = por %p57, %p58
    %p60 = scmp.ne.s32.totalorder %s46, %s47
    %p61 = scmp.eq.s32.totalorder %s13, 5
    %p62 = por %p60, %p61
    %p64 = scmp.ne.s32.totalorder %s47, %s63
    %p65 = scmp.eq.s32.totalorder %s13, 0
    %p66 = por %p64, %p65
    %p67 = scmp.le.s32.totalorder 1, %s7
    %p68 = scmp.lt.s32.totalorder %s7, 7
    %p69 = pnand %p67, %p68
    %p70 = pneg %p69
    // Predicated region
    $region9: #{lpnet_forward.30} parent=5 // pred_check
      _
    $region10: #{lpnet_forward.30} parent=5 // pred_check_branch
      %72 = sbr.rel (%p69) target = $region12
    $region11: #{lpnet_forward.30} parent=5 // pred_region
      %s73 = ssub.s32 %s7, 1
    $region12: #{lpnet_forward.30} parent=5 // pred_fallthru
      _
    %p74 = scmp.lt.s32.totalorder %s7, 6
    // Predicated region
    $region13: #{lpnet_forward.30} parent=5 // pred_check
      %p75 = pneg %p74
    $region14: #{lpnet_forward.30} parent=5 // pred_check_branch
      %77 = sbr.rel (%p75) target = $region16
    $region15: #{lpnet_forward.30} parent=5 // pred_region
      // Predicated region
      $region17: #{lpnet_forward.30} parent=15 // pred_check
        %p78 = pneg %p27
      $region18: #{lpnet_forward.30} parent=15 // pred_check_branch
        %80 = sbr.rel (%p78) target = $region20
      $region19: #{lpnet_forward.30} parent=15 // pred_region
        %p81 = scmp.lt.s32.totalorder %s7, 5
        %s82 = scalar_select %p81, %s7, 5
        %s83 = smul.addr %s82, 5
        %s84 = smul.addr %s83, 8
        %s85 = scalar_lea.vmem %s0, %s84
      $region20: #{lpnet_forward.30} parent=15 // pred_fallthru
        _
    $region16: #{lpnet_forward.30} parent=5 // pred_fallthru
      _
    %p86 = scmp.le.s32.totalorder 1, %s7
    %p87 = scmp.lt.s32.totalorder %s7, 7
    %p88 = pnand %p86, %p87
    %p89 = pneg %p88
    // Predicated region
    $region21: #{lpnet_forward.30} parent=5 // pred_check
      _
    $region22: #{lpnet_forward.30} parent=5 // pred_check_branch
      %91 = sbr.rel (%p88) target = $region24
    $region23: #{lpnet_forward.30} parent=5 // pred_region
      %s92 = ssub.s32 %s7, 1
      %p93 = scmp.lt.s32.totalorder %s12, 5
      %s94 = scalar_select %p93, %s12, 5
      %s95 = smul.addr %s94, 5
      %s96 = smul.addr %s95, 8
      %s97 = scalar_lea.vmem %s0, %s96
      %p98 = pneg %p33
      %p99 = pneg %p30
      %p100 = pneg %p59
      %p101 = pneg %p56
      %p102 = scmp.lt.s32.totalorder %s12, 5
      %s103 = scalar_select %p102, %s12, 5
      %s104 = smul.addr %s103, 4
      %s105 = smul.addr %s104, 8
      %s106 = scalar_lea.vmem %s1, %s105
      %p107 = scmp.lt.s32.totalorder %s12, 5
      %s108 = scalar_select %p107, %s12, 5
      %s109 = smul.addr %s108, 5
      %s110 = smul.addr %s109, 8
      %s111 = scalar_lea.vmem %s0, %s110
      %p112 = scmp.lt.s32.totalorder %s12, 5
      %s113 = scalar_select %p112, %s12, 5
      %s114 = smul.addr %s113, 4
      %s115 = smul.addr %s114, 8
      %s116 = scalar_lea.vmem %s1, %s115
      %v117 = vld [vmem:[%s111] sm:$0xff]
      %v118 = vld [vmem:[%s111 + $0x8] sm:$0xff]
      %v119 = vld [vmem:[%s111 + $0x10] sm:$0xff]
      %v120 = vld [vmem:[%s111 + $0x18] sm:$0xff]
      %v121 = vld [vmem:[%s111 + $0x20] sm:$0xf]
      %v122 = vmul.f32 %v117, 0.0625
      %v123 = vmul.f32 %v118, 0.0625
      %v124 = vmul.f32 %v119, 0.0625
      %v125 = vmul.f32 %v120, 0.0625
      %v126 = vmul.f32 %v117, 0.25
      %v127 = vmul.f32 %v118, 0.25
      %v128 = vmul.f32 %v119, 0.25
      %v129 = vmul.f32 %v120, 0.25
      %v130 = vmul.f32 %v121, 0.25
      %vm136 = vcmask 1046528
      %v137 = vrot.slane %v126, 1
      %v138 = vrot.slane %v127, 1
      %v139 = vsel %vm136, %v137, %v138
      %v140 = vrot.slane %v128, 1
      %v141 = vsel %vm136, %v138, %v140
      %v142 = vrot.slane %v129, 1
      %v143 = vsel %vm136, %v140, %v142
      %v144 = vrot.slane %v130, 1
      %v145 = vsel %vm136, %v142, %v144
      %v150 = vadd.f32 %v122, %v139
      %v151 = vadd.f32 %v123, %v141
      %v152 = vadd.f32 %v124, %v143
      %v153 = vadd.f32 %v125, %v145
      %v154 = vmul.f32 %v117, 0.375
      %v155 = vmul.f32 %v118, 0.375
      %v156 = vmul.f32 %v119, 0.375
      %v157 = vmul.f32 %v120, 0.375
      %v158 = vmul.f32 %v121, 0.375
      %vm164 = vcmask 1045504
      %v165 = vrot.slane %v154, 2
      %v166 = vrot.slane %v155, 2
      %v167 = vsel %vm164, %v165, %v166
      %v168 = vrot.slane %v156, 2
      %v169 = vsel %vm164, %v166, %v168
      %v170 = vrot.slane %v157, 2
      %v171 = vsel %vm164, %v168, %v170
      %v172 = vrot.slane %v158, 2
      %v173 = vsel %vm164, %v170, %v172
      %v178 = vadd.f32 %v150, %v167
      %v179 = vadd.f32 %v151, %v169
      %v180 = vadd.f32 %v152, %v171
      %v181 = vadd.f32 %v153, %v173
      %vm182 = vcmask 1044480
      %v183 = vrot.slane %v126, 3
      %v184 = vrot.slane %v127, 3
      %v185 = vsel %vm182, %v183, %v184
      %v186 = vrot.slane %v128, 3
      %v187 = vsel %vm182, %v184, %v186
      %v188 = vrot.slane %v129, 3
      %v189 = vsel %vm182, %v186, %v188
      %v190 = vrot.slane %v130, 3
      %v191 = vsel %vm182, %v188, %v190
      %v196 = vadd.f32 %v178, %v185
      %v197 = vadd.f32 %v179, %v187
      %v198 = vadd.f32 %v180, %v189
      %v199 = vadd.f32 %v181, %v191
      %v200 = vmul.f32 %v121, 0.0625
      %vm206 = vcmask 1043456
      %v207 = vrot.slane %v122, 4
      %v208 = vrot.slane %v123, 4
      %v209 = vsel %vm206, %v207, %v208
      %v210 = vrot.slane %v124, 4
      %v211 = vsel %vm206, %v208, %v210
      %v212 = vrot.slane %v125, 4
      %v213 = vsel %vm206, %v210, %v212
      %v214 = vrot.slane %v200, 4
      %v215 = vsel %vm206, %v212, %v214
      %v220 = vadd.f32 %v196, %v209
      %v221 = vadd.f32 %v197, %v211
      %v222 = vadd.f32 %v198, %v213
      %v223 = vadd.f32 %v199, %v215
      %v224 = vmul.f32 %v220, 0.0625
      %v225 = vmul.f32 %v221, 0.0625
      %v226 = vmul.f32 %v222, 0.0625
      %v227 = vmul.f32 %v223, 0.0625
      %v228 = vmul.f32 %v220, 0.25
      %v229 = vmul.f32 %v221, 0.25
      %v230 = vmul.f32 %v222, 0.25
      %v231 = vmul.f32 %v223, 0.25
      %236 = vrot.lane.b32.xlu0 %v228, 127
      %v237 = vpop.permute.xlu0 %236
      %238 = vrot.lane.b32.xlu0 %v229, 127
      %v239 = vpop.permute.xlu0 %238
      %240 = vrot.lane.b32.xlu0 %v230, 127
      %v241 = vpop.permute.xlu0 %240
      %242 = vrot.lane.b32.xlu0 %v231, 127
      %v243 = vpop.permute.xlu0 %242
      %v248 = vadd.f32 %v224, %v237
      %v249 = vadd.f32 %v225, %v239
      %v250 = vadd.f32 %v226, %v241
      %v251 = vadd.f32 %v227, %v243
      %v252 = vmul.f32 %v220, 0.375
      %v253 = vmul.f32 %v221, 0.375
      %v254 = vmul.f32 %v222, 0.375
      %v255 = vmul.f32 %v223, 0.375
      %260 = vrot.lane.b32.xlu0 %v252, 126
      %v261 = vpop.permute.xlu0 %260
      %262 = vrot.lane.b32.xlu0 %v253, 126
      %v263 = vpop.permute.xlu0 %262
      %264 = vrot.lane.b32.xlu0 %v254, 126
      %v265 = vpop.permute.xlu0 %264
      %266 = vrot.lane.b32.xlu0 %v255, 126
      %v267 = vpop.permute.xlu0 %266
      %v272 = vadd.f32 %v248, %v261
      %v273 = vadd.f32 %v249, %v263
      %v274 = vadd.f32 %v250, %v265
      %v275 = vadd.f32 %v251, %v267
      %276 = vrot.lane.b32.xlu0 %v228, 125
      %v277 = vpop.permute.xlu0 %276
      %278 = vrot.lane.b32.xlu0 %v229, 125
      %v279 = vpop.permute.xlu0 %278
      %280 = vrot.lane.b32.xlu0 %v230, 125
      %v281 = vpop.permute.xlu0 %280
      %282 = vrot.lane.b32.xlu0 %v231, 125
      %v283 = vpop.permute.xlu0 %282
      %v288 = vadd.f32 %v272, %v277
      %v289 = vadd.f32 %v273, %v279
      %v290 = vadd.f32 %v274, %v281
      %v291 = vadd.f32 %v275, %v283
      %296 = vrot.lane.b32.xlu0 %v224, 124
      %v297 = vpop.permute.xlu0 %296
      %298 = vrot.lane.b32.xlu0 %v225, 124
      %v299 = vpop.permute.xlu0 %298
      %300 = vrot.lane.b32.xlu0 %v226, 124
      %v301 = vpop.permute.xlu0 %300
      %302 = vrot.lane.b32.xlu0 %v227, 124
      %v303 = vpop.permute.xlu0 %302
      %v308 = vadd.f32 %v288, %v297
      %v309 = vadd.f32 %v289, %v299
      %v310 = vadd.f32 %v290, %v301
      %v311 = vadd.f32 %v291, %v303
      %vm312 = vcmask 261120
      %313 = vst.msk [vmem:[%s116] sm:$0xff] %vm312, %v308
      %314 = vst.msk [vmem:[%s116 + $0x8] sm:$0xff] %vm312, %v309
      %315 = vst.msk [vmem:[%s116 + $0x10] sm:$0xff] %vm312, %v310
      %316 = vst.msk [vmem:[%s116 + $0x18] sm:$0xff] %vm312, %v311
      %p317 = scmp.lt.s32.totalorder %s12, 5
      %s318 = scalar_select %p317, %s12, 5
      %s319 = smul.addr %s318, 4
      %s320 = smul.addr %s319, 8
      %s321 = scalar_lea.vmem %s1, %s320
      // Predicated region
      $region25: #{lpnet_forward.30} parent=23 // pred_check
        %p322 = pneg %p56
      $region26: #{lpnet_forward.30} parent=23 // pred_check_branch
        %324 = sbr.rel (%p322) target = $region28
      $region27: #{lpnet_forward.30} parent=23 // pred_region
        _
      $region28: #{lpnet_forward.30} parent=23 // pred_fallthru
        _
    $region24: #{lpnet_forward.30} parent=5 // pred_fallthru
      _
    %p325 = scmp.le.s32.totalorder 2, %s7
    // Predicated region
    $region29: #{lpnet_forward.30} parent=5 // pred_check
      %p326 = pneg %p325
    $region30: #{lpnet_forward.30} parent=5 // pred_check_branch
      %328 = sbr.rel (%p326) target = $region32
    $region31: #{lpnet_forward.30} parent=5 // pred_region
      %s329 = ssub.s32 %s7, 2
      // Predicated region
      $region33: #{lpnet_forward.30} parent=31 // pred_check
        %p330 = pneg %p62
      $region34: #{lpnet_forward.30} parent=31 // pred_check_branch
        %332 = sbr.rel (%p330) target = $region36
      $region35: #{lpnet_forward.30} parent=31 // pred_region
        %p333 = scmp.lt.s32.totalorder %s13, 5
        %s334 = scalar_select %p333, %s13, 5
        %s335 = smul.addr %s334, 4
        %s336 = smul.addr %s335, 8
        %s337 = scalar_lea.vmem %s1, %s336
      $region36: #{lpnet_forward.30} parent=31 // pred_fallthru
        _
    $region32: #{lpnet_forward.30} parent=5 // pred_fallthru
      _
  $region6: #{lpnet_forward.30} parent=0 // loop_footer
    %s11 = sadd.s32 1, %s7
  $region7: #{lpnet_forward.30} parent=0 // loop_footer_branch
    %6 = sbr.rel target = $region3
  $region8: #{lpnet_forward.30} parent=0 // loop_exit
    _

// kernel: lpnet_forward.31
$region0: #{lpnet_forward.31}
  #allocation0 [shape = 'u32[]', space=smem, size = 0x4, offset = 0x4, fixed_abs, tag = 'smem constant byte address 0x4 - core index']
  #allocation1 [shape = 'u32[144,128]{1,0:T(1,128)}', space=vmem, size = 0x12000, scoped, tag = 'internal scratch']
  %s0 = inlined_call_operand.vmem [shape: f32[6,36,36], index: 0, kind: input, shape index: {}]
  %s1 = inlined_call_operand.vmem [shape: f32[6,32,32], index: 1, kind: input, shape index: {}]
  %s2 = inlined_call_operand.vmem [shape: f32[6,32,32], index: 2, kind: output, shape index: {}]
  %s3 = sld [smem:[#allocation0]]
  $region41: #{lpnet_forward.31} parent=0
    _
  %s5 = ssub.s32 1, %s3
  %s6 = scalar_select 0, %s5, %s3
  loop: start=0, step=1, limit=8
  $region2: #{lpnet_forward.31} parent=0 // loop_pre_header
    _
  $region3: #{lpnet_forward.31} parent=0 // loop_header
    %s8 = sphi 0, %s12
    %p9 = scmp.ge.s32.totalorder %s8, 8
    %s18 = sphi 0, %s20
    %s21 = sphi 0, %s18
    %s22 = sphi 0, %s21
    %s38 = sphi 0, %s22
    %s44 = sphi 0, %s46
    %s47 = sphi 0, %s44
    %s48 = sphi 0, %s47
    %s64 = sphi 0, %s48
    %s70 = sphi 0, %s72
    %s73 = sphi 0, %s70
    %s74 = sphi 0, %s73
    %s90 = sphi 0, %s74
  $region4: #{lpnet_forward.31} parent=0 // loop_header_branch
    %11 = sbr.rel (%p9) target = $region8
  $region5: #{lpnet_forward.31} parent=0 // loop_body
    %s13 = ssub.s32 %s8, 1
    %s14 = ssub.s32 %s8, 2
    %s15 = sadd.s32 %s8, 1
    %s16 = ssub.s32 %s8, %s15
    %p17 = scmp.eq.s32.totalorder %s16, 0
    %s19 = sadd.s32 %s18, 1
    %s20 = scalar_select %p17, %s18, %s19
    %p23 = pneg %p17
    %p24 = scmp.eq.s32.totalorder %s8, 5
    %p25 = por %p23, %p24
    %p26 = scmp.ne.s32.totalorder %s18, %s21
    %p27 = scmp.eq.s32.totalorder %s8, 0
    %p28 = por %p26, %p27
    %p29 = scmp.ne.s32.totalorder %s18, %s21
    %p30 = scmp.eq.s32.totalorder %s13, 5
    %p31 = por %p29, %p30
    %p32 = scmp.ne.s32.totalorder %s21, %s22
    %p33 = scmp.eq.s32.totalorder %s13, 0
    %p34 = por %p32, %p33
    %p35 = scmp.ne.s32.totalorder %s21, %s22
    %p36 = scmp.eq.s32.totalorder %s14, 5
    %p37 = por %p35, %p36
    %p39 = scmp.ne.s32.totalorder %s22, %s38
    %p40 = scmp.eq.s32.totalorder %s14, 0
    %p41 = por %p39, %p40
    %s42 = ssub.s32 %s8, %s15
    %p43 = scmp.eq.s32.totalorder %s42, 0
    %s45 = sadd.s32 %s44, 1
    %s46 = scalar_select %p43, %s44, %s45
    %p49 = pneg %p43
    %p50 = scmp.eq.s32.totalorder %s8, 5
    %p51 = por %p49, %p50
    %p52 = scmp.ne.s32.totalorder %s44, %s47
    %p53 = scmp.eq.s32.totalorder %s8, 0
    %p54 = por %p52, %p53
    %p55 = scmp.ne.s32.totalorder %s44, %s47
    %p56 = scmp.eq.s32.totalorder %s13, 5
    %p57 = por %p55, %p56
    %p58 = scmp.ne.s32.totalorder %s47, %s48
    %p59 = scmp.eq.s32.totalorder %s13, 0
    %p60 = por %p58, %p59
    %p61 = scmp.ne.s32.totalorder %s47, %s48
    %p62 = scmp.eq.s32.totalorder %s14, 5
    %p63 = por %p61, %p62
    %p65 = scmp.ne.s32.totalorder %s48, %s64
    %p66 = scmp.eq.s32.totalorder %s14, 0
    %p67 = por %p65, %p66
    %s68 = ssub.s32 %s8, %s15
    %p69 = scmp.eq.s32.totalorder %s68, 0
    %s71 = sadd.s32 %s70, 1
    %s72 = scalar_select %p69, %s70, %s71
    %p75 = pneg %p69
    %p76 = scmp.eq.s32.totalorder %s8, 5
    %p77 = por %p75, %p76
    %p78 = scmp.ne.s32.totalorder %s70, %s73
    %p79 = scmp.eq.s32.totalorder %s8, 0
    %p80 = por %p78, %p79
    %p81 = scmp.ne.s32.totalorder %s70, %s73
    %p82 = scmp.eq.s32.totalorder %s13, 5
    %p83 = por %p81, %p82
    %p84 = scmp.ne.s32.totalorder %s73, %s74
    %p85 = scmp.eq.s32.totalorder %s13, 0
    %p86 = por %p84, %p85
    %p87 = scmp.ne.s32.totalorder %s73, %s74
    %p88 = scmp.eq.s32.totalorder %s14, 5
    %p89 = por %p87, %p88
    %p91 = scmp.ne.s32.totalorder %s74, %s90
    %p92 = scmp.eq.s32.totalorder %s14, 0
    %p93 = por %p91, %p92
    %p94 = scmp.le.s32.totalorder 1, %s8
    %p95 = scmp.lt.s32.totalorder %s8, 7
    %p96 = pnand %p94, %p95
    %p97 = pneg %p96
    // Predicated region
    $region9: #{lpnet_forward.31} parent=5 // pred_check
      _
    $region10: #{lpnet_forward.31} parent=5 // pred_check_branch
      %99 = sbr.rel (%p96) target = $region12
    $region11: #{lpnet_forward.31} parent=5 // pred_region
      %s100 = ssub.s32 %s8, 1
    $region12: #{lpnet_forward.31} parent=5 // pred_fallthru
      _
    %p101 = scmp.lt.s32.totalorder %s8, 6
    // Predicated region
    $region13: #{lpnet_forward.31} parent=5 // pred_check
      %p102 = pneg %p101
    $region14: #{lpnet_forward.31} parent=5 // pred_check_branch
      %104 = sbr.rel (%p102) target = $region16
    $region15: #{lpnet_forward.31} parent=5 // pred_region
      // Predicated region
      $region17: #{lpnet_forward.31} parent=15 // pred_check
        %p105 = pneg %p28
      $region18: #{lpnet_forward.31} parent=15 // pred_check_branch
        %107 = sbr.rel (%p105) target = $region20
      $region19: #{lpnet_forward.31} parent=15 // pred_region
        %p108 = scmp.lt.s32.totalorder %s8, 5
        %s109 = scalar_select %p108, %s8, 5
        %s110 = smul.addr %s109, 5
        %s111 = smul.addr %s110, 8
        %s112 = scalar_lea.vmem %s0, %s111
      $region20: #{lpnet_forward.31} parent=15 // pred_fallthru
        _
      // Predicated region
      $region21: #{lpnet_forward.31} parent=15 // pred_check
        %p113 = pneg %p54
      $region22: #{lpnet_forward.31} parent=15 // pred_check_branch
        %115 = sbr.rel (%p113) target = $region24
      $region23: #{lpnet_forward.31} parent=15 // pred_region
        %p116 = scmp.lt.s32.totalorder %s8, 5
        %s117 = scalar_select %p116, %s8, 5
        %s118 = smul.addr %s117, 4
        %s119 = smul.addr %s118, 8
        %s120 = scalar_lea.vmem %s1, %s119
      $region24: #{lpnet_forward.31} parent=15 // pred_fallthru
        _
    $region16: #{lpnet_forward.31} parent=5 // pred_fallthru
      _
    %p121 = scmp.le.s32.totalorder 1, %s8
    %p122 = scmp.lt.s32.totalorder %s8, 7
    %p123 = pnand %p121, %p122
    %p124 = pneg %p123
    // Predicated region
    $region25: #{lpnet_forward.31} parent=5 // pred_check
      _
    $region26: #{lpnet_forward.31} parent=5 // pred_check_branch
      %126 = sbr.rel (%p123) target = $region28
    $region27: #{lpnet_forward.31} parent=5 // pred_region
      %s127 = ssub.s32 %s8, 1
      %p128 = scmp.lt.s32.totalorder %s13, 5
      %s129 = scalar_select %p128, %s13, 5
      %s130 = smul.addr %s129, 5
      %s131 = smul.addr %s130, 8
      %s132 = scalar_lea.vmem %s0, %s131
      %p133 = pneg %p34
      %p134 = pneg %p31
      %p135 = scmp.lt.s32.totalorder %s13, 5
      %s136 = scalar_select %p135, %s13, 5
      %s137 = smul.addr %s136, 4
      %s138 = smul.addr %s137, 8
      %s139 = scalar_lea.vmem %s1, %s138
      %p140 = pneg %p60
      %p141 = pneg %p57
      %p142 = pneg %p86
      %p143 = pneg %p83
      %p144 = scmp.lt.s32.totalorder %s13, 5
      %s145 = scalar_select %p144, %s13, 5
      %s146 = smul.addr %s145, 4
      %s147 = smul.addr %s146, 8
      %s148 = scalar_lea.vmem %s2, %s147
      %p149 = scmp.lt.s32.totalorder %s13, 5
      %s150 = scalar_select %p149, %s13, 5
      %s151 = smul.addr %s150, 5
      %s152 = smul.addr %s151, 8
      %s153 = scalar_lea.vmem %s0, %s152
      %p154 = scmp.lt.s32.totalorder %s13, 5
      %s155 = scalar_select %p154, %s13, 5
      %s156 = smul.addr %s155, 4
      %s157 = smul.addr %s156, 8
      %s158 = scalar_lea.vmem %s1, %s157
      %p159 = scmp.lt.s32.totalorder %s13, 5
      %s160 = scalar_select %p159, %s13, 5
      %s161 = smul.addr %s160, 4
      %s162 = smul.addr %s161, 8
      %s163 = scalar_lea.vmem %s2, %s162
      %v164 = vld [vmem:[%s153] sm:$0xff]
      %v165 = vld [vmem:[%s153 + $0x8] sm:$0xff]
      %v166 = vld [vmem:[%s153 + $0x10] sm:$0xff]
      %v167 = vld [vmem:[%s153 + $0x18] sm:$0xff]
      %v168 = vld [vmem:[%s153 + $0x20] sm:$0xf]
      %v169 = vmul.f32 %v164, 0.125
      %v170 = vmul.f32 %v165, 0.125
      %v171 = vmul.f32 %v166, 0.125
      %v172 = vmul.f32 %v167, 0.125
      %v173 = vmul.f32 %v164, 0.5
      %v174 = vmul.f32 %v165, 0.5
      %v175 = vmul.f32 %v166, 0.5
      %v176 = vmul.f32 %v167, 0.5
      %v177 = vmul.f32 %v168, 0.5
      %vm183 = vcmask 1046528
      %v184 = vrot.slane %v173, 1
      %v185 = vrot.slane %v174, 1
      %v186 = vsel %vm183, %v184, %v185
      %v187 = vrot.slane %v175, 1
      %v188 = vsel %vm183, %v185, %v187
      %v189 = vrot.slane %v176, 1
      %v190 = vsel %vm183, %v187, %v189
      %v191 = vrot.slane %v177, 1
      %v192 = vsel %vm183, %v189, %v191
      %v197 = vadd.f32 %v169, %v186
      %v198 = vadd.f32 %v170, %v188
      %v199 = vadd.f32 %v171, %v190
      %v200 = vadd.f32 %v172, %v192
      %v201 = vmul.f32 %v164, 0.75
      %v202 = vmul.f32 %v165, 0.75
      %v203 = vmul.f32 %v166, 0.75
      %v204 = vmul.f32 %v167, 0.75
      %v205 = vmul.f32 %v168, 0.75
      %vm211 = vcmask 1045504
      %v212 = vrot.slane %v201, 2
      %v213 = vrot.slane %v202, 2
      %v214 = vsel %vm211, %v212, %v213
      %v215 = vrot.slane %v203, 2
      %v216 = vsel %vm211, %v213, %v215
      %v217 = vrot.slane %v204, 2
      %v218 = vsel %vm211, %v215, %v217
      %v219 = vrot.slane %v205, 2
      %v220 = vsel %vm211, %v217, %v219
      %v225 = vadd.f32 %v197, %v214
      %v226 = vadd.f32 %v198, %v216
      %v227 = vadd.f32 %v199, %v218
      %v228 = vadd.f32 %v200, %v220
      %vm229 = vcmask 1044480
      %v230 = vrot.slane %v173, 3
      %v231 = vrot.slane %v174, 3
      %v232 = vsel %vm229, %v230, %v231
      %v233 = vrot.slane %v175, 3
      %v234 = vsel %vm229, %v231, %v233
      %v235 = vrot.slane %v176, 3
      %v236 = vsel %vm229, %v233, %v235
      %v237 = vrot.slane %v177, 3
      %v238 = vsel %vm229, %v235, %v237
      %v243 = vadd.f32 %v225, %v232
      %v244 = vadd.f32 %v226, %v234
      %v245 = vadd.f32 %v227, %v236
      %v246 = vadd.f32 %v228, %v238
      %v247 = vmul.f32 %v168, 0.125
      %vm253 = vcmask 1043456
      %v254 = vrot.slane %v169, 4
      %v255 = vrot.slane %v170, 4
      %v256 = vsel %vm253, %v254, %v255
      %v257 = vrot.slane %v171, 4
      %v258 = vsel %vm253, %v255, %v257
      %v259 = vrot.slane %v172, 4
      %v260 = vsel %vm253, %v257, %v259
      %v261 = vrot.slane %v247, 4
      %v262 = vsel %vm253, %v259, %v261
      %v267 = vadd.f32 %v243, %v256
      %v268 = vadd.f32 %v244, %v258
      %v269 = vadd.f32 %v245, %v260
      %v270 = vadd.f32 %v246, %v262
      %v271 = vmul.f32 %v267, 0.125
      %v272 = vmul.f32 %v268, 0.125
      %v273 = vmul.f32 %v269, 0.125
      %v274 = vmul.f32 %v270, 0.125
      %v275 = vmul.f32 %v267, 0.5
      %v276 = vmul.f32 %v268, 0.5
      %v277 = vmul.f32 %v269, 0.5
      %v278 = vmul.f32 %v270, 0.5
      %283 = vrot.lane.b32.xlu0 %v275, 127
      %v284 = vpop.permute.xlu0 %283
      %285 = vrot.lane.b32.xlu0 %v276, 127
      %v286 = vpop.permute.xlu0 %285
      %287 = vrot.lane.b32.xlu0 %v277, 127
      %v288 = vpop.permute.xlu0 %287
      %289 = vrot.lane.b32.xlu0 %v278, 127
      %v290 = vpop.permute.xlu0 %289
      %v295 = vadd.f32 %v271, %v284
      %v296 = vadd.f32 %v272, %v286
      %v297 = vadd.f32 %v273, %v288
      %v298 = vadd.f32 %v274, %v290
      %v299 = vmul.f32 %v267, 0.75
      %v300 = vmul.f32 %v268, 0.75
      %v301 = vmul.f32 %v269, 0.75
      %v302 = vmul.f32 %v270, 0.75
      %307 = vrot.lane.b32.xlu0 %v299, 126
      %v308 = vpop.permute.xlu0 %307
      %309 = vrot.lane.b32.xlu0 %v300, 126
      %v310 = vpop.permute.xlu0 %309
      %311 = vrot.lane.b32.xlu0 %v301, 126
      %v312 = vpop.permute.xlu0 %311
      %313 = vrot.lane.b32.xlu0 %v302, 126
      %v314 = vpop.permute.xlu0 %313
      %v319 = vadd.f32 %v295, %v308
      %v320 = vadd.f32 %v296, %v310
      %v321 = vadd.f32 %v297, %v312
      %v322 = vadd.f32 %v298, %v314
      %323 = vrot.lane.b32.xlu0 %v275, 125
      %v324 = vpop.permute.xlu0 %323
      %325 = vrot.lane.b32.xlu0 %v276, 125
      %v326 = vpop.permute.xlu0 %325
      %327 = vrot.lane.b32.xlu0 %v277, 125
      %v328 = vpop.permute.xlu0 %327
      %329 = vrot.lane.b32.xlu0 %v278, 125
      %v330 = vpop.permute.xlu0 %329
      %v335 = vadd.f32 %v319, %v324
      %v336 = vadd.f32 %v320, %v326
      %v337 = vadd.f32 %v321, %v328
      %v338 = vadd.f32 %v322, %v330
      %343 = vrot.lane.b32.xlu0 %v271, 124
      %v344 = vpop.permute.xlu0 %343
      %345 = vrot.lane.b32.xlu0 %v272, 124
      %v346 = vpop.permute.xlu0 %345
      %347 = vrot.lane.b32.xlu0 %v273, 124
      %v348 = vpop.permute.xlu0 %347
      %349 = vrot.lane.b32.xlu0 %v274, 124
      %v350 = vpop.permute.xlu0 %349
      %v355 = vadd.f32 %v335, %v344
      %v356 = vadd.f32 %v336, %v346
      %v357 = vadd.f32 %v337, %v348
      %v358 = vadd.f32 %v338, %v350
      %v359 = vmul.f32 %v355, -1.0
      %v360 = vmul.f32 %v356, -1.0
      %v361 = vmul.f32 %v357, -1.0
      %v362 = vmul.f32 %v358, -1.0
      %v363 = vld [vmem:[%s158] sm:$0xff]
      %v364 = vld [vmem:[%s158 + $0x8] sm:$0xff]
      %v365 = vld [vmem:[%s158 + $0x10] sm:$0xff]
      %v366 = vld [vmem:[%s158 + $0x18] sm:$0xff]
      %v367 = vadd.f32 %v359, %v363
      %v368 = vadd.f32 %v360, %v364
      %v369 = vadd.f32 %v361, %v365
      %v370 = vadd.f32 %v362, %v366
      %vm371 = vcmask 261120
      %372 = vst.msk [vmem:[%s163] sm:$0xff] %vm371, %v367
      %373 = vst.msk [vmem:[%s163 + $0x8] sm:$0xff] %vm371, %v368
      %374 = vst.msk [vmem:[%s163 + $0x10] sm:$0xff] %vm371, %v369
      %375 = vst.msk [vmem:[%s163 + $0x18] sm:$0xff] %vm371, %v370
      %p376 = scmp.lt.s32.totalorder %s13, 5
      %s377 = scalar_select %p376, %s13, 5
      %s378 = smul.addr %s377, 4
      %s379 = smul.addr %s378, 8
      %s380 = scalar_lea.vmem %s2, %s379
      // Predicated region
      $region29: #{lpnet_forward.31} parent=27 // pred_check
        %p381 = pneg %p83
      $region30: #{lpnet_forward.31} parent=27 // pred_check_branch
        %383 = sbr.rel (%p381) target = $region32
      $region31: #{lpnet_forward.31} parent=27 // pred_region
        _
      $region32: #{lpnet_forward.31} parent=27 // pred_fallthru
        _
    $region28: #{lpnet_forward.31} parent=5 // pred_fallthru
      _
    %p384 = scmp.le.s32.totalorder 2, %s8
    // Predicated region
    $region33: #{lpnet_forward.31} parent=5 // pred_check
      %p385 = pneg %p384
    $region34: #{lpnet_forward.31} parent=5 // pred_check_branch
      %387 = sbr.rel (%p385) target = $region36
    $region35: #{lpnet_forward.31} parent=5 // pred_region
      %s388 = ssub.s32 %s8, 2
      // Predicated region
      $region37: #{lpnet_forward.31} parent=35 // pred_check
        %p389 = pneg %p89
      $region38: #{lpnet_forward.31} parent=35 // pred_check_branch
        %391 = sbr.rel (%p389) target = $region40
      $region39: #{lpnet_forward.31} parent=35 // pred_region
        %p392 = scmp.lt.s32.totalorder %s14, 5
        %s393 = scalar_select %p392, %s14, 5
        %s394 = smul.addr %s393, 4
        %s395 = smul.addr %s394, 8
        %s396 = scalar_lea.vmem %s2, %s395
      $region40: #{lpnet_forward.31} parent=35 // pred_fallthru
        _
    $region36: #{lpnet_forward.31} parent=5 // pred_fallthru
      _
  $region6: #{lpnet_forward.31} parent=0 // loop_footer
    %s12 = sadd.s32 1, %s8
  $region7: #{lpnet_forward.31} parent=0 // loop_footer_branch
    %7 = sbr.rel target = $region3
  $region8: #{lpnet_forward.31} parent=0 // loop_exit
    _

// kernel: lpnet_forward.51
$region0: #{lpnet_forward.51}
  #allocation0 [shape = 'u32[]', space=smem, size = 0x4, offset = 0x4, fixed_abs, tag = 'smem constant byte address 0x4 - core index']
  #allocation1 [shape = 'u32[144,128]{1,0:T(1,128)}', space=vmem, size = 0x12000, scoped, tag = 'internal scratch']
  %s0 = inlined_call_operand.vmem [shape: bf16[8,27], index: 0, kind: input, shape index: {}]
  %s1 = inlined_call_operand.vmem [shape: bf16[27,2048], index: 1, kind: input, shape index: {}]
  %s2 = inlined_call_operand.vmem [shape: f32[8,1], index: 2, kind: input, shape index: {}]
  %s3 = inlined_call_operand.vmem [shape: f32[8,2048], index: 3, kind: output, shape index: {}]
  %s4 = sld [smem:[#allocation0]]
  $region68: #{lpnet_forward.51} parent=0
    _
  %s6 = ssub.s32 1, %s4
  %s7 = scalar_select 0, %s6, %s4
  $region1: #{lpnet_forward.51} parent=0
    #allocation2 [shape = 'u8[65536]{0}', space=vmem, size = 0x10000, scoped, tag = 'input window, operand 1']
    loop: start=0, step=1, limit=6
    $region2: #{lpnet_forward.51} parent=1 // loop_pre_header
      _
    $region3: #{lpnet_forward.51} parent=1 // loop_header
      %s9 = sphi 0, %s13
      %p10 = scmp.ge.s32.totalorder %s9, 6
      %s17 = sphi 0, %s17
      %s19 = sphi 0, %s17
      %s20 = sphi 0, %s19
      %s34 = sphi 0, %s20
      %s40 = sphi 0, %s42
      %s43 = sphi 0, %s40
      %s44 = sphi 0, %s43
      %s60 = sphi 0, %s44
      %s64 = sphi 0, %s64
      %s66 = sphi 0, %s64
      %s67 = sphi 0, %s66
      %s81 = sphi 0, %s67
      %s87 = sphi 0, %s89
      %s90 = sphi 0, %s87
      %s91 = sphi 0, %s90
      %s107 = sphi 0, %s91
    $region4: #{lpnet_forward.51} parent=1 // loop_header_branch
      %12 = sbr.rel (%p10) target = $region8
    $region5: #{lpnet_forward.51} parent=1 // loop_body
      %s14 = ssub.s32 %s9, 1
      %s15 = ssub.s32 %s9, 2
      %s16 = sadd.s32 %s9, 1
      %s18 = sadd.s32 %s17, 1
      %p21 = scmp.eq.s32.totalorder %s9, 3
      %p22 = scmp.ne.s32.totalorder %s17, %s19
      %p23 = scmp.eq.s32.totalorder %s9, 0
      %p24 = por %p22, %p23
      %p25 = scmp.ne.s32.totalorder %s17, %s19
      %p26 = scmp.eq.s32.totalorder %s14, 3
      %p27 = por %p25, %p26
      %p28 = scmp.ne.s32.totalorder %s19, %s20
      %p29 = scmp.eq.s32.totalorder %s14, 0
      %p30 = por %p28, %p29
      %p31 = scmp.ne.s32.totalorder %s19, %s20
      %p32 = scmp.eq.s32.totalorder %s15, 3
      %p33 = por %p31, %p32
      %p35 = scmp.ne.s32.totalorder %s20, %s34
      %p36 = scmp.eq.s32.totalorder %s15, 0
      %p37 = por %p35, %p36
      %s38 = ssub.s32 %s9, %s16
      %p39 = scmp.eq.s32.totalorder %s38, 0
      %s41 = sadd.s32 %s40, 1
      %s42 = scalar_select %p39, %s40, %s41
      %p45 = pneg %p39
      %p46 = scmp.eq.s32.totalorder %s9, 3
      %p47 = por %p45, %p46
      %p48 = scmp.ne.s32.totalorder %s40, %s43
      %p49 = scmp.eq.s32.totalorder %s9, 0
      %p50 = por %p48, %p49
      %p51 = scmp.ne.s32.totalorder %s40, %s43
      %p52 = scmp.eq.s32.totalorder %s14, 3
      %p53 = por %p51, %p52
      %p54 = scmp.ne.s32.totalorder %s43, %s44
      %p55 = scmp.eq.s32.totalorder %s14, 0
      %p56 = por %p54, %p55
      %p57 = scmp.ne.s32.totalorder %s43, %s44
      %p58 = scmp.eq.s32.totalorder %s15, 3
      %p59 = por %p57, %p58
      %p61 = scmp.ne.s32.totalorder %s44, %s60
      %p62 = scmp.eq.s32.totalorder %s15, 0
      %p63 = por %p61, %p62
      %s65 = sadd.s32 %s64, 1
      %p68 = scmp.eq.s32.totalorder %s9, 3
      %p69 = scmp.ne.s32.totalorder %s64, %s66
      %p70 = scmp.eq.s32.totalorder %s9, 0
      %p71 = por %p69, %p70
      %p72 = scmp.ne.s32.totalorder %s64, %s66
      %p73 = scmp.eq.s32.totalorder %s14, 3
      %p74 = por %p72, %p73
      %p75 = scmp.ne.s32.totalorder %s66, %s67
      %p76 = scmp.eq.s32.totalorder %s14, 0
      %p77 = por %p75, %p76
      %p78 = scmp.ne.s32.totalorder %s66, %s67
      %p79 = scmp.eq.s32.totalorder %s15, 3
      %p80 = por %p78, %p79
      %p82 = scmp.ne.s32.totalorder %s67, %s81
      %p83 = scmp.eq.s32.totalorder %s15, 0
      %p84 = por %p82, %p83
      %s85 = ssub.s32 %s9, %s16
      %p86 = scmp.eq.s32.totalorder %s85, 0
      %s88 = sadd.s32 %s87, 1
      %s89 = scalar_select %p86, %s87, %s88
      %p92 = pneg %p86
      %p93 = scmp.eq.s32.totalorder %s9, 3
      %p94 = por %p92, %p93
      %p95 = scmp.ne.s32.totalorder %s87, %s90
      %p96 = scmp.eq.s32.totalorder %s9, 0
      %p97 = por %p95, %p96
      %p98 = scmp.ne.s32.totalorder %s87, %s90
      %p99 = scmp.eq.s32.totalorder %s14, 3
      %p100 = por %p98, %p99
      %p101 = scmp.ne.s32.totalorder %s90, %s91
      %p102 = scmp.eq.s32.totalorder %s14, 0
      %p103 = por %p101, %p102
      %p104 = scmp.ne.s32.totalorder %s90, %s91
      %p105 = scmp.eq.s32.totalorder %s15, 3
      %p106 = por %p104, %p105
      %p108 = scmp.ne.s32.totalorder %s91, %s107
      %p109 = scmp.eq.s32.totalorder %s15, 0
      %p110 = por %p108, %p109
      %p111 = scmp.le.s32.totalorder 1, %s9
      %p112 = scmp.lt.s32.totalorder %s9, 5
      %p113 = pnand %p111, %p112
      %p114 = pneg %p113
      // Predicated region
      $region9: #{lpnet_forward.51} parent=5 // pred_check
        _
      $region10: #{lpnet_forward.51} parent=5 // pred_check_branch
        %116 = sbr.rel (%p113) target = $region12
      $region11: #{lpnet_forward.51} parent=5 // pred_region
        %s117 = ssub.s32 %s9, 1
        // Predicated region
        $region13: #{lpnet_forward.51} parent=11 // pred_check
          %p118 = pneg %p30
        $region14: #{lpnet_forward.51} parent=11 // pred_check_branch
          %120 = sbr.rel (%p118) target = $region16
        $region15: #{lpnet_forward.51} parent=11 // pred_region
          _
        $region16: #{lpnet_forward.51} parent=11 // pred_fallthru
          _
        // Predicated region
        $region17: #{lpnet_forward.51} parent=11 // pred_check
          %p121 = pneg %p77
        $region18: #{lpnet_forward.51} parent=11 // pred_check_branch
          %123 = sbr.rel (%p121) target = $region20
        $region19: #{lpnet_forward.51} parent=11 // pred_region
          _
        $region20: #{lpnet_forward.51} parent=11 // pred_fallthru
          _
      $region12: #{lpnet_forward.51} parent=5 // pred_fallthru
        _
      %p124 = scmp.lt.s32.totalorder %s9, 4
      // Predicated region
      $region21: #{lpnet_forward.51} parent=5 // pred_check
        %p125 = pneg %p124
      $region22: #{lpnet_forward.51} parent=5 // pred_check_branch
        %127 = sbr.rel (%p125) target = $region24
      $region23: #{lpnet_forward.51} parent=5 // pred_region
        // Predicated region
        $region25: #{lpnet_forward.51} parent=23 // pred_check
          %p128 = pneg %p50
        $region26: #{lpnet_forward.51} parent=23 // pred_check_branch
          %130 = sbr.rel (%p128) target = $region28
        $region27: #{lpnet_forward.51} parent=23 // pred_region
          %s131 = sand.u32 %s40, 1
          %s132 = sand.u32 %s40, 1
          %s133 = smul.addr %s132, 64
          %s134 = scalar_lea.vmem [#allocation2], %s133
          %s135 = smul.u32 4, %s9
          %s136 = smul.addr %s135, 4
          %s137 = scalar_lea.vmem %s1, %s136
          // Predicated region
          $region29: #{lpnet_forward.51} parent=27 // pred_check
            _
          $region30: #{lpnet_forward.51} parent=27 // pred_check_branch
            %139 = sbr.rel (0) target = $region32
          $region31: #{lpnet_forward.51} parent=27 // pred_region
            // Predicated region
            $region33: #{lpnet_forward.51} parent=31 // pred_check
              _
            $region34: #{lpnet_forward.51} parent=31 // pred_check_branch
              %141 = sbr.rel (0) target = $region36
            $region35: #{lpnet_forward.51} parent=31 // pred_region
              loop: start=0, step=1, limit=1
              $region37: #{lpnet_forward.51} parent=35 // loop_pre_header
                _
              $region38: #{lpnet_forward.51} parent=35 // loop_header
                %s143 = sphi 0, %s147
                %p144 = scmp.ge.s32.totalorder %s143, 1
                %s148 = sphi %s137, %s137
                %s149 = sphi %s134, %s134
              $region39: #{lpnet_forward.51} parent=35 // loop_header_branch
                %146 = sbr.rel (%p144) target = $region43
              $region40: #{lpnet_forward.51} parent=35 // loop_body
                %v150 = vld [vmem:[%s148] sm:$0xff]
                %151 = vst [vmem:[%s149] sm:$0xff] %v150
                %v152 = vld [vmem:[%s148 + $0x8] sm:$0xff]
                %153 = vst [vmem:[%s149 + $0x8] sm:$0xff] %v152
                %v154 = vld [vmem:[%s148 + $0x40] sm:$0xff]
                %155 = vst [vmem:[%s149 + $0x10] sm:$0xff] %v154
                %v156 = vld [vmem:[%s148 + $0x48] sm:$0xff]
                %157 = vst [vmem:[%s149 + $0x18] sm:$0xff] %v156
                %v158 = vld [vmem:[%s148 + $0x80] sm:$0xff]
                %159 = vst [vmem:[%s149 + $0x20] sm:$0xff] %v158
                %v160 = vld [vmem:[%s148 + $0x88] sm:$0xff]
                %161 = vst [vmem:[%s149 + $0x28] sm:$0xff] %v160
                %v162 = vld [vmem:[%s148 + $0xc0] sm:$0xff]
                %163 = vst [vmem:[%s149 + $0x30] sm:$0xff] %v162
                %v164 = vld [vmem:[%s148 + $0xc8] sm:$0xff]
                %165 = vst [vmem:[%s149 + $0x38] sm:$0xff] %v164
              $region41: #{lpnet_forward.51} parent=35 // loop_footer
                %s147 = sadd.s32 1, %s143
              $region42: #{lpnet_forward.51} parent=35 // loop_footer_branch
                %142 = sbr.rel target = $region38
              $region43: #{lpnet_forward.51} parent=35 // loop_exit
                _
            $region36: #{lpnet_forward.51} parent=31 // pred_fallthru
              _
            // Predicated region
            $region44: #{lpnet_forward.51} parent=31 // pred_check
              _
            $region45: #{lpnet_forward.51} parent=31 // pred_check_branch
              %167 = sbr.rel target = $region47
            $region46: #{lpnet_forward.51} parent=31 // pred_region
              _
            $region47: #{lpnet_forward.51} parent=31 // pred_fallthru
              _
          $region32: #{lpnet_forward.51} parent=27 // pred_fallthru
            _
          %168 = vnop
        $region28: #{lpnet_forward.51} parent=23 // pred_fallthru
          _
      $region24: #{lpnet_forward.51} parent=5 // pred_fallthru
        _
      %p169 = scmp.le.s32.totalorder 1, %s9
      %p170 = scmp.lt.s32.totalorder %s9, 5
      %p171 = pnand %p169, %p170
      %p172 = pneg %p171
      // Predicated region
      $region48: #{lpnet_forward.51} parent=5 // pred_check
        _
      $region49: #{lpnet_forward.51} parent=5 // pred_check_branch
        %174 = sbr.rel (%p171) target = $region51
      $region50: #{lpnet_forward.51} parent=5 // pred_region
        %s175 = ssub.s32 %s9, 1
        %s176 = sand.u32 %s43, 1
        %s177 = sand.u32 %s43, 1
        %s178 = smul.addr %s177, 64
        %s179 = scalar_lea.vmem [#allocation2], %s178
        // Predicated region
        $region52: #{lpnet_forward.51} parent=50 // pred_check
          %p180 = pneg %p56
        $region53: #{lpnet_forward.51} parent=50 // pred_check_branch
          %182 = sbr.rel (%p180) target = $region55
        $region54: #{lpnet_forward.51} parent=50 // pred_region
          _
        $region55: #{lpnet_forward.51} parent=50 // pred_fallthru
          _
        %p183 = pneg %p30
        %p184 = pneg %p27
        %s185 = sand.u32 %s43, 1
        %s186 = sand.u32 %s43, 1
        %s187 = smul.addr %s186, 64
        %s188 = scalar_lea.vmem [#allocation2], %s187
        %p189 = pneg %p56
        %p190 = pneg %p53
        %p191 = pneg %p77
        %p192 = pneg %p74
        %p193 = pneg %p103
        %p194 = pneg %p100
        %s195 = smul.u32 4, %s14
        %p196 = scmp.lt.s32.totalorder %s195, 15
        %s197 = scalar_select %p196, %s195, 15
        %s198 = smul.addr %s197, 8
        %s199 = scalar_lea.vmem %s3, %s198
        %s200 = smul.u32 4, %s14
        %s201 = smul.u32 4, %s14
        %p202 = scmp.lt.s32.totalorder %s201, 15
        %s203 = scalar_select %p202, %s201, 15
        %s204 = smul.addr %s203, 8
        %s205 = scalar_lea.vmem %s3, %s204
        %s206 = smul.u32 4, %s14
        %v208 = vld [vmem:[%s0] sm:$0xf]
        %v209 = vld [vmem:[%s179] sm:$0xff]
        %v210 = vld [vmem:[%s179 + $0x8] sm:$0xff]
        %v211 = vld [vmem:[%s179 + $0x10] sm:$0xff]
        %v212 = vld [vmem:[%s179 + $0x18] sm:$0xff]
        %v213 = vld [vmem:[%s179 + $0x20] sm:$0xff]
        %v214 = vld [vmem:[%s179 + $0x28] sm:$0xff]
        %v215 = vld [vmem:[%s179 + $0x30] sm:$0x33]
        %v216 = vld [vmem:[%s179 + $0x38] sm:$0x33]
        %v217 = vld [vmem:[%s2] sm:$0xff]
        %219 = vset.pattern.permute.xlu0 0
        %220 = vperm.xlu0 %219, %v217
        %v221 = vpop.permute.xlu0 %220
        %v231 = vunpack.c.l.b16 %v209
        %v232 = vunpack.c.h.b16 %v209
        %v233 = vunpack.c.l.b16 %v210
        %v234 = vunpack.c.h.b16 %v210
        %v235 = vunpack.c.l.b16 %v211
        %v236 = vunpack.c.h.b16 %v211
        %v237 = vunpack.c.l.b16 %v212
        %v238 = vunpack.c.h.b16 %v212
        %v239 = vunpack.c.l.b16 %v213
        %v240 = vunpack.c.h.b16 %v213
        %v241 = vunpack.c.l.b16 %v214
        %v242 = vunpack.c.h.b16 %v214
        %v243 = vunpack.c.l.b16 %v215
        %v244 = vunpack.c.h.b16 %v215
        %v245 = vunpack.c.l.b16 %v216
        %v246 = vunpack.c.h.b16 %v216
        %v247 = vpack.c.b16 %v235, %v231
        %v248 = vpack.c.b16 %v236, %v232
        %v249 = vpack.c.b16 %v237, %v233
        %v250 = vpack.c.b16 %v238, %v234
        %v251 = vpack.c.b16 %v243, %v239
        %v252 = vpack.c.b16 %v244, %v240
        %v253 = vpack.c.b16 %v245, %v241
        %v254 = vpack.c.b16 %v246, %v242
        %vm259 = vcmask 220160
        %v261 = vsel %vm259, %v208, 0
        %vm263 = vcmask 1044480
        %vm264 = vcmask 1045504
        %v265 = vsel %vm263, 4294967295, 65535
        %v266 = vsel %vm264, %v265, 0
        %v268 = vand.u32 %v251, %v266
        %v271 = vand.u32 %v252, %v266
        %v274 = vand.u32 %v253, %v266
        %v277 = vand.u32 %v254, %v266
        %279 = vmatprep.subr.bf16.mxu0 %v248
        %280 = vmatpush1.bf16.msra.mxu0 %v247
        %281 = vmatprep.subr.bf16.mxu0 %v271
        %282 = vmatpush1.bf16.msra.mxu0 %v268
        %283 = vmatprep.subr.bf16.mxu0 0
        %284 = vmatpush1.bf16.msra.mxu0 0
        %285 = vmatprep.subr.bf16.mxu0 0
        %286 = vmatpush1.bf16.msra.mxu0 0
        %287 = vmatprep.subr.bf16.mxu0 0
        %288 = vmatpush1.bf16.msra.mxu0 0
        %289 = vmatprep.subr.bf16.mxu0 0
        %290 = vmatpush1.bf16.msra.mxu0 0
        %291 = vmatprep.subr.bf16.mxu0 0
        %292 = vmatpush1.bf16.msra.mxu0 0
        %293 = vmatprep.subr.bf16.mxu0 0
        %294 = vmatpush1.bf16.msra.mxu0 0
        %295 = vmatprep.subr.bf16.mxu0 0
        %296 = vmatpush1.bf16.msra.mxu0 0
        %297 = vmatprep.subr.bf16.mxu0 0
        %298 = vmatpush1.bf16.msra.mxu0 0
        %299 = vmatprep.subr.bf16.mxu0 0
        %300 = vmatpush1.bf16.msra.mxu0 0
        %301 = vmatprep.subr.bf16.mxu0 0
        %302 = vmatpush1.bf16.msra.mxu0 0
        %303 = vmatprep.subr.bf16.mxu0 0
        %304 = vmatpush1.bf16.msra.mxu0 0
        %305 = vmatprep.subr.bf16.mxu0 0
        %306 = vmatpush1.bf16.msra.mxu0 0
        %307 = vmatprep.subr.bf16.mxu0 0
        %308 = vmatpush1.bf16.msra.mxu0 0
        %309 = vmatprep.subr.bf16.mxu0 0
        %310 = vmatpush1.bf16.msra.mxu0 0
        %311 = vmatprep.mubr.bf16.mxu0 0
        %312 = vmatmul.mubr.bf16.gmra.mrb[0].mxu0 %v261
        %v313 = vpop.f32.mrb[0].mxu0
        %v314 = vadd.f32 %v221, %v313
        %v315 = vpop.f32.mrb[0].mxu0
        %v316 = vadd.f32 %v221, %v315
        %v317 = vpop.f32.mrb[0].mxu0
        %v318 = vpop.f32.mrb[0].mxu0
        %319 = vdwg.mxu0
        %320 = vmatprep.subr.bf16.mxu0 %v250
        %321 = vmatpush1.bf16.msra.mxu0 %v249
        %322 = vmatprep.subr.bf16.mxu0 %v277
        %323 = vmatpush1.bf16.msra.mxu0 %v274
        %324 = vmatprep.subr.bf16.mxu0 0
        %325 = vmatpush1.bf16.msra.mxu0 0
        %326 = vmatprep.subr.bf16.mxu0 0
        %327 = vmatpush1.bf16.msra.mxu0 0
        %328 = vmatprep.subr.bf16.mxu0 0
        %329 = vmatpush1.bf16.msra.mxu0 0
        %330 = vmatprep.subr.bf16.mxu0 0
        %331 = vmatpush1.bf16.msra.mxu0 0
        %332 = vmatprep.subr.bf16.mxu0 0
        %333 = vmatpush1.bf16.msra.mxu0 0
        %334 = vmatprep.subr.bf16.mxu0 0
        %335 = vmatpush1.bf16.msra.mxu0 0
        %336 = vmatprep.subr.bf16.mxu0 0
        %337 = vmatpush1.bf16.msra.mxu0 0
        %338 = vmatprep.subr.bf16.mxu0 0
        %339 = vmatpush1.bf16.msra.mxu0 0
        %340 = vmatprep.subr.bf16.mxu0 0
        %341 = vmatpush1.bf16.msra.mxu0 0
        %342 = vmatprep.subr.bf16.mxu0 0
        %343 = vmatpush1.bf16.msra.mxu0 0
        %344 = vmatprep.subr.bf16.mxu0 0
        %345 = vmatpush1.bf16.msra.mxu0 0
        %346 = vmatprep.subr.bf16.mxu0 0
        %347 = vmatpush1.bf16.msra.mxu0 0
        %348 = vmatprep.subr.bf16.mxu0 0
        %349 = vmatpush1.bf16.msra.mxu0 0
        %350 = vmatprep.subr.bf16.mxu0 0
        %351 = vmatpush1.bf16.msra.mxu0 0
        %352 = vmatprep.mubr.bf16.mxu0 0
        %353 = vmatmul.mubr.bf16.gmra.mrb[0].mxu0 %v261
        %v354 = vpop.f32.mrb[0].mxu0
        %v355 = vadd.f32 %v221, %v354
        %v356 = vpop.f32.mrb[0].mxu0
        %v357 = vadd.f32 %v221, %v356
        %v358 = vpop.f32.mrb[0].mxu0
        %v359 = vpop.f32.mrb[0].mxu0
        %360 = vdwg.mxu0
        %vm361 = vcmp.ge.f32.partialorder %v314, 0.0
        %vm362 = vcmp.ge.f32.partialorder %v316, 0.0
        %vm363 = vcmp.ge.f32.partialorder %v355, 0.0
        %vm364 = vcmp.ge.f32.partialorder %v357, 0.0
        %v365 = vmul.f32 %v314, 0.2
        %v366 = vmul.f32 %v316, 0.2
        %v367 = vmul.f32 %v355, 0.2
        %v368 = vmul.f32 %v357, 0.2
        %v369 = vsel %vm361, %v314, %v365
        %v370 = vsel %vm362, %v316, %v366
        %v371 = vsel %vm363, %v355, %v367
        %v372 = vsel %vm364, %v357, %v368
        %373 = vst [vmem:[%s205] sm:$0xff] %v369
        %374 = vst [vmem:[%s205 + $0x8] sm:$0xff] %v370
        %375 = vst [vmem:[%s205 + $0x10] sm:$0xff] %v371
        %376 = vst [vmem:[%s205 + $0x18] sm:$0xff] %v372
        %s377 = smul.u32 4, %s14
        %p378 = scmp.lt.s32.totalorder %s377, 15
        %s379 = scalar_select %p378, %s377, 15
        %s380 = smul.addr %s379, 8
        %s381 = scalar_lea.vmem %s3, %s380
        // Predicated region
        $region56: #{lpnet_forward.51} parent=50 // pred_check
          %p382 = pneg %p100
        $region57: #{lpnet_forward.51} parent=50 // pred_check_branch
          %384 = sbr.rel (%p382) target = $region59
        $region58: #{lpnet_forward.51} parent=50 // pred_region
          %s385 = smul.u32 4, %s14
        $region59: #{lpnet_forward.51} parent=50 // pred_fallthru
          _
      $region51: #{lpnet_forward.51} parent=5 // pred_fallthru
        _
      %p386 = scmp.le.s32.totalorder 2, %s9
      // Predicated region
      $region60: #{lpnet_forward.51} parent=5 // pred_check
        %p387 = pneg %p386
      $region61: #{lpnet_forward.51} parent=5 // pred_check_branch
        %389 = sbr.rel (%p387) target = $region63
      $region62: #{lpnet_forward.51} parent=5 // pred_region
        %s390 = ssub.s32 %s9, 2
        // Predicated region
        $region64: #{lpnet_forward.51} parent=62 // pred_check
          %p391 = pneg %p106
        $region65: #{lpnet_forward.51} parent=62 // pred_check_branch
          %393 = sbr.rel (%p391) target = $region67
        $region66: #{lpnet_forward.51} parent=62 // pred_region
          %s394 = smul.u32 4, %s15
          %p395 = scmp.lt.s32.totalorder %s394, 15
          %s396 = scalar_select %p395, %s394, 15
          %s397 = smul.addr %s396, 8
          %s398 = scalar_lea.vmem %s3, %s397
        $region67: #{lpnet_forward.51} parent=62 // pred_fallthru
          _
      $region63: #{lpnet_forward.51} parent=5 // pred_fallthru
        _
    $region6: #{lpnet_forward.51} parent=1 // loop_footer
      %s13 = sadd.s32 1, %s9
    $region7: #{lpnet_forward.51} parent=1 // loop_footer_branch
      %8 = sbr.rel target = $region3
    $region8: #{lpnet_forward.51} parent=1 // loop_exit
      _

// kernel: lpnet_forward.52
$region0: #{lpnet_forward.52}
  #allocation0 [shape = 'u32[]', space=smem, size = 0x4, offset = 0x4, fixed_abs, tag = 'smem constant byte address 0x4 - core index']
  #allocation1 [shape = 'u32[144,128]{1,0:T(1,128)}', space=vmem, size = 0x12000, scoped, tag = 'internal scratch']
  %s0 = inlined_call_operand.vmem [shape: bf16[8,72], index: 0, kind: input, shape index: {}]
  %s1 = inlined_call_operand.vmem [shape: bf16[72,2048], index: 1, kind: input, shape index: {}]
  %s2 = inlined_call_operand.vmem [shape: f32[8,1], index: 2, kind: input, shape index: {}]
  %s3 = inlined_call_operand.vmem [shape: f32[8,2048], index: 3, kind: output, shape index: {}]
  %s4 = sld [smem:[#allocation0]]
  $region68: #{lpnet_forward.52} parent=0
    _
  %s6 = ssub.s32 1, %s4
  %s7 = scalar_select 0, %s6, %s4
  $region1: #{lpnet_forward.52} parent=0
    #allocation2 [shape = 'u8[147456]{0}', space=vmem, size = 0x24000, scoped, tag = 'input window, operand 1']
    loop: start=0, step=1, limit=6
    $region2: #{lpnet_forward.52} parent=1 // loop_pre_header
      _
    $region3: #{lpnet_forward.52} parent=1 // loop_header
      %s9 = sphi 0, %s13
      %p10 = scmp.ge.s32.totalorder %s9, 6
      %s17 = sphi 0, %s17
      %s19 = sphi 0, %s17
      %s20 = sphi 0, %s19
      %s34 = sphi 0, %s20
      %s40 = sphi 0, %s42
      %s43 = sphi 0, %s40
      %s44 = sphi 0, %s43
      %s60 = sphi 0, %s44
      %s64 = sphi 0, %s64
      %s66 = sphi 0, %s64
      %s67 = sphi 0, %s66
      %s81 = sphi 0, %s67
      %s87 = sphi 0, %s89
      %s90 = sphi 0, %s87
      %s91 = sphi 0, %s90
      %s107 = sphi 0, %s91
    $region4: #{lpnet_forward.52} parent=1 // loop_header_branch
      %12 = sbr.rel (%p10) target = $region8
    $region5: #{lpnet_forward.52} parent=1 // loop_body
      %s14 = ssub.s32 %s9, 1
      %s15 = ssub.s32 %s9, 2
      %s16 = sadd.s32 %s9, 1
      %s18 = sadd.s32 %s17, 1
      %p21 = scmp.eq.s32.totalorder %s9, 3
      %p22 = scmp.ne.s32.totalorder %s17, %s19
      %p23 = scmp.eq.s32.totalorder %s9, 0
      %p24 = por %p22, %p23
      %p25 = scmp.ne.s32.totalorder %s17, %s19
      %p26 = scmp.eq.s32.totalorder %s14, 3
      %p27 = por %p25, %p26
      %p28 = scmp.ne.s32.totalorder %s19, %s20
      %p29 = scmp.eq.s32.totalorder %s14, 0
      %p30 = por %p28, %p29
      %p31 = scmp.ne.s32.totalorder %s19, %s20
      %p32 = scmp.eq.s32.totalorder %s15, 3
      %p33 = por %p31, %p32
      %p35 = scmp.ne.s32.totalorder %s20, %s34
      %p36 = scmp.eq.s32.totalorder %s15, 0
      %p37 = por %p35, %p36
      %s38 = ssub.s32 %s9, %s16
      %p39 = scmp.eq.s32.totalorder %s38, 0
      %s41 = sadd.s32 %s40, 1
      %s42 = scalar_select %p39, %s40, %s41
      %p45 = pneg %p39
      %p46 = scmp.eq.s32.totalorder %s9, 3
      %p47 = por %p45, %p46
      %p48 = scmp.ne.s32.totalorder %s40, %s43
      %p49 = scmp.eq.s32.totalorder %s9, 0
      %p50 = por %p48, %p49
      %p51 = scmp.ne.s32.totalorder %s40, %s43
      %p52 = scmp.eq.s32.totalorder %s14, 3
      %p53 = por %p51, %p52
      %p54 = scmp.ne.s32.totalorder %s43, %s44
      %p55 = scmp.eq.s32.totalorder %s14, 0
      %p56 = por %p54, %p55
      %p57 = scmp.ne.s32.totalorder %s43, %s44
      %p58 = scmp.eq.s32.totalorder %s15, 3
      %p59 = por %p57, %p58
      %p61 = scmp.ne.s32.totalorder %s44, %s60
      %p62 = scmp.eq.s32.totalorder %s15, 0
      %p63 = por %p61, %p62
      %s65 = sadd.s32 %s64, 1
      %p68 = scmp.eq.s32.totalorder %s9, 3
      %p69 = scmp.ne.s32.totalorder %s64, %s66
      %p70 = scmp.eq.s32.totalorder %s9, 0
      %p71 = por %p69, %p70
      %p72 = scmp.ne.s32.totalorder %s64, %s66
      %p73 = scmp.eq.s32.totalorder %s14, 3
      %p74 = por %p72, %p73
      %p75 = scmp.ne.s32.totalorder %s66, %s67
      %p76 = scmp.eq.s32.totalorder %s14, 0
      %p77 = por %p75, %p76
      %p78 = scmp.ne.s32.totalorder %s66, %s67
      %p79 = scmp.eq.s32.totalorder %s15, 3
      %p80 = por %p78, %p79
      %p82 = scmp.ne.s32.totalorder %s67, %s81
      %p83 = scmp.eq.s32.totalorder %s15, 0
      %p84 = por %p82, %p83
      %s85 = ssub.s32 %s9, %s16
      %p86 = scmp.eq.s32.totalorder %s85, 0
      %s88 = sadd.s32 %s87, 1
      %s89 = scalar_select %p86, %s87, %s88
      %p92 = pneg %p86
      %p93 = scmp.eq.s32.totalorder %s9, 3
      %p94 = por %p92, %p93
      %p95 = scmp.ne.s32.totalorder %s87, %s90
      %p96 = scmp.eq.s32.totalorder %s9, 0
      %p97 = por %p95, %p96
      %p98 = scmp.ne.s32.totalorder %s87, %s90
      %p99 = scmp.eq.s32.totalorder %s14, 3
      %p100 = por %p98, %p99
      %p101 = scmp.ne.s32.totalorder %s90, %s91
      %p102 = scmp.eq.s32.totalorder %s14, 0
      %p103 = por %p101, %p102
      %p104 = scmp.ne.s32.totalorder %s90, %s91
      %p105 = scmp.eq.s32.totalorder %s15, 3
      %p106 = por %p104, %p105
      %p108 = scmp.ne.s32.totalorder %s91, %s107
      %p109 = scmp.eq.s32.totalorder %s15, 0
      %p110 = por %p108, %p109
      %p111 = scmp.le.s32.totalorder 1, %s9
      %p112 = scmp.lt.s32.totalorder %s9, 5
      %p113 = pnand %p111, %p112
      %p114 = pneg %p113
      // Predicated region
      $region9: #{lpnet_forward.52} parent=5 // pred_check
        _
      $region10: #{lpnet_forward.52} parent=5 // pred_check_branch
        %116 = sbr.rel (%p113) target = $region12
      $region11: #{lpnet_forward.52} parent=5 // pred_region
        %s117 = ssub.s32 %s9, 1
        // Predicated region
        $region13: #{lpnet_forward.52} parent=11 // pred_check
          %p118 = pneg %p30
        $region14: #{lpnet_forward.52} parent=11 // pred_check_branch
          %120 = sbr.rel (%p118) target = $region16
        $region15: #{lpnet_forward.52} parent=11 // pred_region
          _
        $region16: #{lpnet_forward.52} parent=11 // pred_fallthru
          _
        // Predicated region
        $region17: #{lpnet_forward.52} parent=11 // pred_check
          %p121 = pneg %p77
        $region18: #{lpnet_forward.52} parent=11 // pred_check_branch
          %123 = sbr.rel (%p121) target = $region20
        $region19: #{lpnet_forward.52} parent=11 // pred_region
          _
        $region20: #{lpnet_forward.52} parent=11 // pred_fallthru
          _
      $region12: #{lpnet_forward.52} parent=5 // pred_fallthru
        _
      %p124 = scmp.lt.s32.totalorder %s9, 4
      // Predicated region
      $region21: #{lpnet_forward.52} parent=5 // pred_check
        %p125 = pneg %p124
      $region22: #{lpnet_forward.52} parent=5 // pred_check_branch
        %127 = sbr.rel (%p125) target = $region24
      $region23: #{lpnet_forward.52} parent=5 // pred_region
        // Predicated region
        $region25: #{lpnet_forward.52} parent=23 // pred_check
          %p128 = pneg %p50
        $region26: #{lpnet_forward.52} parent=23 // pred_check_branch
          %130 = sbr.rel (%p128) target = $region28
        $region27: #{lpnet_forward.52} parent=23 // pred_region
          %s131 = sand.u32 %s40, 1
          %s132 = sand.u32 %s40, 1
          %s133 = smul.addr %s132, 144
          %s134 = scalar_lea.vmem [#allocation2], %s133
          %s135 = smul.u32 4, %s9
          %s136 = smul.addr %s135, 4
          %s137 = scalar_lea.vmem %s1, %s136
          // Predicated region
          $region29: #{lpnet_forward.52} parent=27 // pred_check
            _
          $region30: #{lpnet_forward.52} parent=27 // pred_check_branch
            %139 = sbr.rel (0) target = $region32
          $region31: #{lpnet_forward.52} parent=27 // pred_region
            // Predicated region
            $region33: #{lpnet_forward.52} parent=31 // pred_check
              _
            $region34: #{lpnet_forward.52} parent=31 // pred_check_branch
              %141 = sbr.rel (0) target = $region36
            $region35: #{lpnet_forward.52} parent=31 // pred_region
              loop: start=0, step=1, limit=1
              $region37: #{lpnet_forward.52} parent=35 // loop_pre_header
                _
              $region38: #{lpnet_forward.52} parent=35 // loop_header
                %s143 = sphi 0, %s147
                %p144 = scmp.ge.s32.totalorder %s143, 1
                %s148 = sphi %s137, %s137
                %s149 = sphi %s134, %s134
              $region39: #{lpnet_forward.52} parent=35 // loop_header_branch
                %146 = sbr.rel (%p144) target = $region43
              $region40: #{lpnet_forward.52} parent=35 // loop_body
                %v150 = vld [vmem:[%s148] sm:$0xff]
                %151 = vst [vmem:[%s149] sm:$0xff] %v150
                %v152 = vld [vmem:[%s148 + $0x8] sm:$0xff]
                %153 = vst [vmem:[%s149 + $0x8] sm:$0xff] %v152
                %v154 = vld [vmem:[%s148 + $0x40] sm:$0xff]
                %155 = vst [vmem:[%s149 + $0x10] sm:$0xff] %v154
                %v156 = vld [vmem:[%s148 + $0x48] sm:$0xff]
                %157 = vst [vmem:[%s149 + $0x18] sm:$0xff] %v156
                %v158 = vld [vmem:[%s148 + $0x80] sm:$0xff]
                %159 = vst [vmem:[%s149 + $0x20] sm:$0xff] %v158
                %v160 = vld [vmem:[%s148 + $0x88] sm:$0xff]
                %161 = vst [vmem:[%s149 + $0x28] sm:$0xff] %v160
                %v162 = vld [vmem:[%s148 + $0xc0] sm:$0xff]
                %163 = vst [vmem:[%s149 + $0x30] sm:$0xff] %v162
                %v164 = vld [vmem:[%s148 + $0xc8] sm:$0xff]
                %165 = vst [vmem:[%s149 + $0x38] sm:$0xff] %v164
                %v166 = vld [vmem:[%s148 + $0x100] sm:$0xff]
                %167 = vst [vmem:[%s149 + $0x40] sm:$0xff] %v166
                %v168 = vld [vmem:[%s148 + $0x108] sm:$0xff]
                %169 = vst [vmem:[%s149 + $0x48] sm:$0xff] %v168
                %v170 = vld [vmem:[%s148 + $0x140] sm:$0xff]
                %171 = vst [vmem:[%s149 + $0x50] sm:$0xff] %v170
                %v172 = vld [vmem:[%s148 + $0x148] sm:$0xff]
                %173 = vst [vmem:[%s149 + $0x58] sm:$0xff] %v172
                %v174 = vld [vmem:[%s148 + $0x180] sm:$0xff]
                %175 = vst [vmem:[%s149 + $0x60] sm:$0xff] %v174
                %v176 = vld [vmem:[%s148 + $0x188] sm:$0xff]
                %177 = vst [vmem:[%s149 + $0x68] sm:$0xff] %v176
                %v178 = vld [vmem:[%s148 + $0x1c0] sm:$0xff]
                %179 = vst [vmem:[%s149 + $0x70] sm:$0xff] %v178
                %v180 = vld [vmem:[%s148 + $0x1c8] sm:$0xff]
                %181 = vst [vmem:[%s149 + $0x78] sm:$0xff] %v180
                %v182 = vld [vmem:[%s148 + $0x200] sm:$0xff]
                %183 = vst [vmem:[%s149 + $0x80] sm:$0xff] %v182
                %v184 = vld [vmem:[%s148 + $0x208] sm:$0xff]
                %185 = vst [vmem:[%s149 + $0x88] sm:$0xff] %v184
              $region41: #{lpnet_forward.52} parent=35 // loop_footer
                %s147 = sadd.s32 1, %s143
              $region42: #{lpnet_forward.52} parent=35 // loop_footer_branch
                %142 = sbr.rel target = $region38
              $region43: #{lpnet_forward.52} parent=35 // loop_exit
                _
            $region36: #{lpnet_forward.52} parent=31 // pred_fallthru
              _
            // Predicated region
            $region44: #{lpnet_forward.52} parent=31 // pred_check
              _
            $region45: #{lpnet_forward.52} parent=31 // pred_check_branch
              %187 = sbr.rel target = $region47
            $region46: #{lpnet_forward.52} parent=31 // pred_region
              _
            $region47: #{lpnet_forward.52} parent=31 // pred_fallthru
              _
          $region32: #{lpnet_forward.52} parent=27 // pred_fallthru
            _
          %188 = vnop
        $region28: #{lpnet_forward.52} parent=23 // pred_fallthru
          _
      $region24: #{lpnet_forward.52} parent=5 // pred_fallthru
        _
      %p189 = scmp.le.s32.totalorder 1, %s9
      %p190 = scmp.lt.s32.totalorder %s9, 5
      %p191 = pnand %p189, %p190
      %p192 = pneg %p191
      // Predicated region
      $region48: #{lpnet_forward.52} parent=5 // pred_check
        _
      $region49: #{lpnet_forward.52} parent=5 // pred_check_branch
        %194 = sbr.rel (%p191) target = $region51
      $region50: #{lpnet_forward.52} parent=5 // pred_region
        %s195 = ssub.s32 %s9, 1
        %s196 = sand.u32 %s43, 1
        %s197 = sand.u32 %s43, 1
        %s198 = smul.addr %s197, 144
        %s199 = scalar_lea.vmem [#allocation2], %s198
        // Predicated region
        $region52: #{lpnet_forward.52} parent=50 // pred_check
          %p200 = pneg %p56
        $region53: #{lpnet_forward.52} parent=50 // pred_check_branch
          %202 = sbr.rel (%p200) target = $region55
        $region54: #{lpnet_forward.52} parent=50 // pred_region
          _
        $region55: #{lpnet_forward.52} parent=50 // pred_fallthru
          _
        %p203 = pneg %p30
        %p204 = pneg %p27
        %s205 = sand.u32 %s43, 1
        %s206 = sand.u32 %s43, 1
        %s207 = smul.addr %s206, 144
        %s208 = scalar_lea.vmem [#allocation2], %s207
        %p209 = pneg %p56
        %p210 = pneg %p53
        %p211 = pneg %p77
        %p212 = pneg %p74
        %p213 = pneg %p103
        %p214 = pneg %p100
        %s215 = smul.u32 4, %s14
        %p216 = scmp.lt.s32.totalorder %s215, 15
        %s217 = scalar_select %p216, %s215, 15
        %s218 = smul.addr %s217, 8
        %s219 = scalar_lea.vmem %s3, %s218
        %s220 = smul.u32 4, %s14
        %s221 = smul.u32 4, %s14
        %p222 = scmp.lt.s32.totalorder %s221, 15
        %s223 = scalar_select %p222, %s221, 15
        %s224 = smul.addr %s223, 8
        %s225 = scalar_lea.vmem %s3, %s224
        %s226 = smul.u32 4, %s14
        %v228 = vld [vmem:[%s0] sm:$0xf]
        %v229 = vld [vmem:[%s199] sm:$0xff]
        %v230 = vld [vmem:[%s199 + $0x8] sm:$0xff]
        %v231 = vld [vmem:[%s199 + $0x10] sm:$0xff]
        %v232 = vld [vmem:[%s199 + $0x18] sm:$0xff]
        %v233 = vld [vmem:[%s199 + $0x20] sm:$0xff]
        %v234 = vld [vmem:[%s199 + $0x28] sm:$0xff]
        %v235 = vld [vmem:[%s199 + $0x30] sm:$0xff]
        %v236 = vld [vmem:[%s199 + $0x38] sm:$0xff]
        %v237 = vld [vmem:[%s199 + $0x40] sm:$0xff]
        %v238 = vld [vmem:[%s199 + $0x48] sm:$0xff]
        %v239 = vld [vmem:[%s199 + $0x50] sm:$0xff]
        %v240 = vld [vmem:[%s199 + $0x58] sm:$0xff]
        %v241 = vld [vmem:[%s199 + $0x60] sm:$0xff]
        %v242 = vld [vmem:[%s199 + $0x68] sm:$0xff]
        %v243 = vld [vmem:[%s199 + $0x70] sm:$0xff]
        %v244 = vld [vmem:[%s199 + $0x78] sm:$0xff]
        %v245 = vld [vmem:[%s199 + $0x80] sm:$0xff]
        %v246 = vld [vmem:[%s199 + $0x88] sm:$0xff]
        %v247 = vld [vmem:[%s2] sm:$0xff]
        %249 = vset.pattern.permute.xlu0 0
        %250 = vperm.xlu0 %249, %v247
        %v251 = vpop.permute.xlu0 %250
        %v271 = vunpack.c.l.b16 %v229
        %v272 = vunpack.c.h.b16 %v229
        %v273 = vunpack.c.l.b16 %v230
        %v274 = vunpack.c.h.b16 %v230
        %v275 = vunpack.c.l.b16 %v231
        %v276 = vunpack.c.h.b16 %v231
        %v277 = vunpack.c.l.b16 %v232
        %v278 = vunpack.c.h.b16 %v232
        %v279 = vunpack.c.l.b16 %v233
        %v280 = vunpack.c.h.b16 %v233
        %v281 = vunpack.c.l.b16 %v234
        %v282 = vunpack.c.h.b16 %v234
        %v283 = vunpack.c.l.b16 %v235
        %v284 = vunpack.c.h.b16 %v235
        %v285 = vunpack.c.l.b16 %v236
        %v286 = vunpack.c.h.b16 %v236
        %v287 = vunpack.c.l.b16 %v237
        %v288 = vunpack.c.h.b16 %v237
        %v289 = vunpack.c.l.b16 %v238
        %v290 = vunpack.c.h.b16 %v238
        %v291 = vunpack.c.l.b16 %v239
        %v292 = vunpack.c.h.b16 %v239
        %v293 = vunpack.c.l.b16 %v240
        %v294 = vunpack.c.h.b16 %v240
        %v295 = vunpack.c.l.b16 %v241
        %v296 = vunpack.c.h.b16 %v241
        %v297 = vunpack.c.l.b16 %v242
        %v298 = vunpack.c.h.b16 %v242
        %v299 = vunpack.c.l.b16 %v243
        %v300 = vunpack.c.h.b16 %v243
        %v301 = vunpack.c.l.b16 %v244
        %v302 = vunpack.c.h.b16 %v244
        %v303 = vunpack.c.l.b16 %v245
        %v304 = vunpack.c.h.b16 %v245
        %v305 = vunpack.c.l.b16 %v246
        %v306 = vunpack.c.h.b16 %v246
        %v307 = vpack.c.b16 %v275, %v271
        %v308 = vpack.c.b16 %v276, %v272
        %v309 = vpack.c.b16 %v277, %v273
        %v310 = vpack.c.b16 %v278, %v274
        %v311 = vpack.c.b16 %v283, %v279
        %v312 = vpack.c.b16 %v284, %v280
        %v313 = vpack.c.b16 %v285, %v281
        %v314 = vpack.c.b16 %v286, %v282
        %v315 = vpack.c.b16 %v291, %v287
        %v316 = vpack.c.b16 %v292, %v288
        %v317 = vpack.c.b16 %v293, %v289
        %v318 = vpack.c.b16 %v294, %v290
        %v319 = vpack.c.b16 %v299, %v295
        %v320 = vpack.c.b16 %v300, %v296
        %v321 = vpack.c.b16 %v301, %v297
        %v322 = vpack.c.b16 %v302, %v298
        %v323 = vpack.c.b16 %v303, %v303
        %v324 = vpack.c.b16 %v304, %v304
        %v325 = vpack.c.b16 %v305, %v305
        %v326 = vpack.c.b16 %v306, %v306
        %vm343 = vcmask 588800
        %v345 = vsel %vm343, %v228, 0
        %vm347 = vcmask 1043456
        %v349 = vsel %vm347, %v323, 0
        %v352 = vsel %vm347, %v324, 0
        %v355 = vsel %vm347, %v325, 0
        %v358 = vsel %vm347, %v326, 0
        %360 = vmatprep.subr.bf16.mxu0 %v308
        %361 = vmatpush1.bf16.msra.mxu0 %v307
        %362 = vmatprep.subr.bf16.mxu0 %v312
        %363 = vmatpush1.bf16.msra.mxu0 %v311
        %364 = vmatprep.subr.bf16.mxu0 %v316
        %365 = vmatpush1.bf16.msra.mxu0 %v315
        %366 = vmatprep.subr.bf16.mxu0 %v320
        %367 = vmatpush1.bf16.msra.mxu0 %v319
        %368 = vmatprep.subr.bf16.mxu0 %v352
        %369 = vmatpush1.bf16.msra.mxu0 %v349
        %370 = vmatprep.subr.bf16.mxu0 0
        %371 = vmatpush1.bf16.msra.mxu0 0
        %372 = vmatprep.subr.bf16.mxu0 0
        %373 = vmatpush1.bf16.msra.mxu0 0
        %374 = vmatprep.subr.bf16.mxu0 0
        %375 = vmatpush1.bf16.msra.mxu0 0
        %376 = vmatprep.subr.bf16.mxu0 0
        %377 = vmatpush1.bf16.msra.mxu0 0
        %378 = vmatprep.subr.bf16.mxu0 0
        %379 = vmatpush1.bf16.msra.mxu0 0
        %380 = vmatprep.subr.bf16.mxu0 0
        %381 = vmatpush1.bf16.msra.mxu0 0
        %382 = vmatprep.subr.bf16.mxu0 0
        %383 = vmatpush1.bf16.msra.mxu0 0
        %384 = vmatprep.subr.bf16.mxu0 0
        %385 = vmatpush1.bf16.msra.mxu0 0
        %386 = vmatprep.subr.bf16.mxu0 0
        %387 = vmatpush1.bf16.msra.mxu0 0
        %388 = vmatprep.subr.bf16.mxu0 0
        %389 = vmatpush1.bf16.msra.mxu0 0
        %390 = vmatprep.subr.bf16.mxu0 0
        %391 = vmatpush1.bf16.msra.mxu0 0
        %392 = vmatprep.mubr.bf16.mxu0 0
        %393 = vmatmul.mubr.bf16.gmra.mrb[0].mxu0 %v345
        %v394 = vpop.f32.mrb[0].mxu0
        %v395 = vadd.f32 %v251, %v394
        %v396 = vpop.f32.mrb[0].mxu0
        %v397 = vadd.f32 %v251, %v396
        %v398 = vpop.f32.mrb[0].mxu0
        %v399 = vpop.f32.mrb[0].mxu0
        %400 = vdwg.mxu0
        %401 = vmatprep.subr.bf16.mxu0 %v310
        %402 = vmatpush1.bf16.msra.mxu0 %v309
        %403 = vmatprep.subr.bf16.mxu0 %v314
        %404 = vmatpush1.bf16.msra.mxu0 %v313
        %405 = vmatprep.subr.bf16.mxu0 %v318
        %406 = vmatpush1.bf16.msra.mxu0 %v317
        %407 = vmatprep.subr.bf16.mxu0 %v322
        %408 = vmatpush1.bf16.msra.mxu0 %v321
        %409 = vmatprep.subr.bf16.mxu0 %v358
        %410 = vmatpush1.bf16.msra.mxu0 %v355
        %411 = vmatprep.subr.bf16.mxu0 0
        %412 = vmatpush1.bf16.msra.mxu0 0
        %413 = vmatprep.subr.bf16.mxu0 0
        %414 = vmatpush1.bf16.msra.mxu0 0
        %415 = vmatprep.subr.bf16.mxu0 0
        %416 = vmatpush1.bf16.msra.mxu0 0
        %417 = vmatprep.subr.bf16.mxu0 0
        %418 = vmatpush1.bf16.msra.mxu0 0
        %419 = vmatprep.subr.bf16.mxu0 0
        %420 = vmatpush1.bf16.msra.mxu0 0
        %421 = vmatprep.subr.bf16.mxu0 0
        %422 = vmatpush1.bf16.msra.mxu0 0
        %423 = vmatprep.subr.bf16.mxu0 0
        %424 = vmatpush1.bf16.msra.mxu0 0
        %425 = vmatprep.subr.bf16.mxu0 0
        %426 = vmatpush1.bf16.msra.mxu0 0
        %427 = vmatprep.subr.bf16.mxu0 0
        %428 = vmatpush1.bf16.msra.mxu0 0
        %429 = vmatprep.subr.bf16.mxu0 0
        %430 = vmatpush1.bf16.msra.mxu0 0
        %431 = vmatprep.subr.bf16.mxu0 0
        %432 = vmatpush1.bf16.msra.mxu0 0
        %433 = vmatprep.mubr.bf16.mxu0 0
        %434 = vmatmul.mubr.bf16.gmra.mrb[0].mxu0 %v345
        %v435 = vpop.f32.mrb[0].mxu0
        %v436 = vadd.f32 %v251, %v435
        %v437 = vpop.f32.mrb[0].mxu0
        %v438 = vadd.f32 %v251, %v437
        %v439 = vpop.f32.mrb[0].mxu0
        %v440 = vpop.f32.mrb[0].mxu0
        %441 = vdwg.mxu0
        %vm442 = vcmp.ge.f32.partialorder %v395, 0.0
        %vm443 = vcmp.ge.f32.partialorder %v397, 0.0
        %vm444 = vcmp.ge.f32.partialorder %v436, 0.0
        %vm445 = vcmp.ge.f32.partialorder %v438, 0.0
        %v446 = vmul.f32 %v395, 0.2
        %v447 = vmul.f32 %v397, 0.2
        %v448 = vmul.f32 %v436, 0.2
        %v449 = vmul.f32 %v438, 0.2
        %v450 = vsel %vm442, %v395, %v446
        %v451 = vsel %vm443, %v397, %v447
        %v452 = vsel %vm444, %v436, %v448
        %v453 = vsel %vm445, %v438, %v449
        %454 = vst [vmem:[%s225] sm:$0xff] %v450
        %455 = vst [vmem:[%s225 + $0x8] sm:$0xff] %v451
        %456 = vst [vmem:[%s225 + $0x10] sm:$0xff] %v452
        %457 = vst [vmem:[%s225 + $0x18] sm:$0xff] %v453
        %s458 = smul.u32 4, %s14
        %p459 = scmp.lt.s32.totalorder %s458, 15
        %s460 = scalar_select %p459, %s458, 15
        %s461 = smul.addr %s460, 8
        %s462 = scalar_lea.vmem %s3, %s461
        // Predicated region
        $region56: #{lpnet_forward.52} parent=50 // pred_check
          %p463 = pneg %p100
        $region57: #{lpnet_forward.52} parent=50 // pred_check_branch
          %465 = sbr.rel (%p463) target = $region59
        $region58: #{lpnet_forward.52} parent=50 // pred_region
          %s466 = smul.u32 4, %s14
        $region59: #{lpnet_forward.52} parent=50 // pred_fallthru
          _
      $region51: #{lpnet_forward.52} parent=5 // pred_fallthru
        _
      %p467 = scmp.le.s32.totalorder 2, %s9
      // Predicated region
      $region60: #{lpnet_forward.52} parent=5 // pred_check
        %p468 = pneg %p467
      $region61: #{lpnet_forward.52} parent=5 // pred_check_branch
        %470 = sbr.rel (%p468) target = $region63
      $region62: #{lpnet_forward.52} parent=5 // pred_region
        %s471 = ssub.s32 %s9, 2
        // Predicated region
        $region64: #{lpnet_forward.52} parent=62 // pred_check
          %p472 = pneg %p106
        $region65: #{lpnet_forward.52} parent=62 // pred_check_branch
          %474 = sbr.rel (%p472) target = $region67
        $region66: #{lpnet_forward.52} parent=62 // pred_region
          %s475 = smul.u32 4, %s15
          %p476 = scmp.lt.s32.totalorder %s475, 15
          %s477 = scalar_select %p476, %s475, 15
          %s478 = smul.addr %s477, 8
          %s479 = scalar_lea.vmem %s3, %s478
        $region67: #{lpnet_forward.52} parent=62 // pred_fallthru
          _
      $region63: #{lpnet_forward.52} parent=5 // pred_fallthru
        _
    $region6: #{lpnet_forward.52} parent=1 // loop_footer
      %s13 = sadd.s32 1, %s9
    $region7: #{lpnet_forward.52} parent=1 // loop_footer_branch
      %8 = sbr.rel target = $region3
    $region8: #{lpnet_forward.52} parent=1 // loop_exit
      _

// kernel: lpnet_forward.53
$region0: #{lpnet_forward.53}
  #allocation0 [shape = 'u32[]', space=smem, size = 0x4, offset = 0x4, fixed_abs, tag = 'smem constant byte address 0x4 - core index']
  #allocation1 [shape = 'u32[144,128]{1,0:T(1,128)}', space=vmem, size = 0x12000, scoped, tag = 'internal scratch']
  %s0 = inlined_call_operand.vmem [shape: bf16[8,8], index: 0, kind: input, shape index: {}]
  %s1 = inlined_call_operand.vmem [shape: bf16[8,2048], index: 1, kind: input, shape index: {}]
  %s2 = inlined_call_operand.vmem [shape: f32[8,1], index: 2, kind: input, shape index: {}]
  %s3 = inlined_call_operand.vmem [shape: f32[8,2048], index: 3, kind: output, shape index: {}]
  %s4 = sld [smem:[#allocation0]]
  $region45: #{lpnet_forward.53} parent=0
    _
  %s6 = ssub.s32 1, %s4
  %s7 = scalar_select 0, %s6, %s4
  loop: start=0, step=1, limit=6
  $region2: #{lpnet_forward.53} parent=0 // loop_pre_header
    _
  $region3: #{lpnet_forward.53} parent=0 // loop_header
    %s9 = sphi 0, %s13
    %p10 = scmp.ge.s32.totalorder %s9, 6
    %s17 = sphi 0, %s17
    %s19 = sphi 0, %s17
    %s20 = sphi 0, %s19
    %s34 = sphi 0, %s20
    %s40 = sphi 0, %s42
    %s43 = sphi 0, %s40
    %s44 = sphi 0, %s43
    %s60 = sphi 0, %s44
    %s64 = sphi 0, %s64
    %s66 = sphi 0, %s64
    %s67 = sphi 0, %s66
    %s81 = sphi 0, %s67
    %s87 = sphi 0, %s89
    %s90 = sphi 0, %s87
    %s91 = sphi 0, %s90
    %s107 = sphi 0, %s91
  $region4: #{lpnet_forward.53} parent=0 // loop_header_branch
    %12 = sbr.rel (%p10) target = $region8
  $region5: #{lpnet_forward.53} parent=0 // loop_body
    %s14 = ssub.s32 %s9, 1
    %s15 = ssub.s32 %s9, 2
    %s16 = sadd.s32 %s9, 1
    %s18 = sadd.s32 %s17, 1
    %p21 = scmp.eq.s32.totalorder %s9, 3
    %p22 = scmp.ne.s32.totalorder %s17, %s19
    %p23 = scmp.eq.s32.totalorder %s9, 0
    %p24 = por %p22, %p23
    %p25 = scmp.ne.s32.totalorder %s17, %s19
    %p26 = scmp.eq.s32.totalorder %s14, 3
    %p27 = por %p25, %p26
    %p28 = scmp.ne.s32.totalorder %s19, %s20
    %p29 = scmp.eq.s32.totalorder %s14, 0
    %p30 = por %p28, %p29
    %p31 = scmp.ne.s32.totalorder %s19, %s20
    %p32 = scmp.eq.s32.totalorder %s15, 3
    %p33 = por %p31, %p32
    %p35 = scmp.ne.s32.totalorder %s20, %s34
    %p36 = scmp.eq.s32.totalorder %s15, 0
    %p37 = por %p35, %p36
    %s38 = ssub.s32 %s9, %s16
    %p39 = scmp.eq.s32.totalorder %s38, 0
    %s41 = sadd.s32 %s40, 1
    %s42 = scalar_select %p39, %s40, %s41
    %p45 = pneg %p39
    %p46 = scmp.eq.s32.totalorder %s9, 3
    %p47 = por %p45, %p46
    %p48 = scmp.ne.s32.totalorder %s40, %s43
    %p49 = scmp.eq.s32.totalorder %s9, 0
    %p50 = por %p48, %p49
    %p51 = scmp.ne.s32.totalorder %s40, %s43
    %p52 = scmp.eq.s32.totalorder %s14, 3
    %p53 = por %p51, %p52
    %p54 = scmp.ne.s32.totalorder %s43, %s44
    %p55 = scmp.eq.s32.totalorder %s14, 0
    %p56 = por %p54, %p55
    %p57 = scmp.ne.s32.totalorder %s43, %s44
    %p58 = scmp.eq.s32.totalorder %s15, 3
    %p59 = por %p57, %p58
    %p61 = scmp.ne.s32.totalorder %s44, %s60
    %p62 = scmp.eq.s32.totalorder %s15, 0
    %p63 = por %p61, %p62
    %s65 = sadd.s32 %s64, 1
    %p68 = scmp.eq.s32.totalorder %s9, 3
    %p69 = scmp.ne.s32.totalorder %s64, %s66
    %p70 = scmp.eq.s32.totalorder %s9, 0
    %p71 = por %p69, %p70
    %p72 = scmp.ne.s32.totalorder %s64, %s66
    %p73 = scmp.eq.s32.totalorder %s14, 3
    %p74 = por %p72, %p73
    %p75 = scmp.ne.s32.totalorder %s66, %s67
    %p76 = scmp.eq.s32.totalorder %s14, 0
    %p77 = por %p75, %p76
    %p78 = scmp.ne.s32.totalorder %s66, %s67
    %p79 = scmp.eq.s32.totalorder %s15, 3
    %p80 = por %p78, %p79
    %p82 = scmp.ne.s32.totalorder %s67, %s81
    %p83 = scmp.eq.s32.totalorder %s15, 0
    %p84 = por %p82, %p83
    %s85 = ssub.s32 %s9, %s16
    %p86 = scmp.eq.s32.totalorder %s85, 0
    %s88 = sadd.s32 %s87, 1
    %s89 = scalar_select %p86, %s87, %s88
    %p92 = pneg %p86
    %p93 = scmp.eq.s32.totalorder %s9, 3
    %p94 = por %p92, %p93
    %p95 = scmp.ne.s32.totalorder %s87, %s90
    %p96 = scmp.eq.s32.totalorder %s9, 0
    %p97 = por %p95, %p96
    %p98 = scmp.ne.s32.totalorder %s87, %s90
    %p99 = scmp.eq.s32.totalorder %s14, 3
    %p100 = por %p98, %p99
    %p101 = scmp.ne.s32.totalorder %s90, %s91
    %p102 = scmp.eq.s32.totalorder %s14, 0
    %p103 = por %p101, %p102
    %p104 = scmp.ne.s32.totalorder %s90, %s91
    %p105 = scmp.eq.s32.totalorder %s15, 3
    %p106 = por %p104, %p105
    %p108 = scmp.ne.s32.totalorder %s91, %s107
    %p109 = scmp.eq.s32.totalorder %s15, 0
    %p110 = por %p108, %p109
    %p111 = scmp.le.s32.totalorder 1, %s9
    %p112 = scmp.lt.s32.totalorder %s9, 5
    %p113 = pnand %p111, %p112
    %p114 = pneg %p113
    // Predicated region
    $region9: #{lpnet_forward.53} parent=5 // pred_check
      _
    $region10: #{lpnet_forward.53} parent=5 // pred_check_branch
      %116 = sbr.rel (%p113) target = $region12
    $region11: #{lpnet_forward.53} parent=5 // pred_region
      %s117 = ssub.s32 %s9, 1
      // Predicated region
      $region13: #{lpnet_forward.53} parent=11 // pred_check
        %p118 = pneg %p30
      $region14: #{lpnet_forward.53} parent=11 // pred_check_branch
        %120 = sbr.rel (%p118) target = $region16
      $region15: #{lpnet_forward.53} parent=11 // pred_region
        _
      $region16: #{lpnet_forward.53} parent=11 // pred_fallthru
        _
      // Predicated region
      $region17: #{lpnet_forward.53} parent=11 // pred_check
        %p121 = pneg %p77
      $region18: #{lpnet_forward.53} parent=11 // pred_check_branch
        %123 = sbr.rel (%p121) target = $region20
      $region19: #{lpnet_forward.53} parent=11 // pred_region
        _
      $region20: #{lpnet_forward.53} parent=11 // pred_fallthru
        _
    $region12: #{lpnet_forward.53} parent=5 // pred_fallthru
      _
    %p124 = scmp.lt.s32.totalorder %s9, 4
    // Predicated region
    $region21: #{lpnet_forward.53} parent=5 // pred_check
      %p125 = pneg %p124
    $region22: #{lpnet_forward.53} parent=5 // pred_check_branch
      %127 = sbr.rel (%p125) target = $region24
    $region23: #{lpnet_forward.53} parent=5 // pred_region
      // Predicated region
      $region25: #{lpnet_forward.53} parent=23 // pred_check
        %p128 = pneg %p50
      $region26: #{lpnet_forward.53} parent=23 // pred_check_branch
        %130 = sbr.rel (%p128) target = $region28
      $region27: #{lpnet_forward.53} parent=23 // pred_region
        %s131 = smul.u32 4, %s9
        %p132 = scmp.lt.s32.totalorder %s131, 15
        %s133 = scalar_select %p132, %s131, 15
        %s134 = smul.addr %s133, 4
        %s135 = scalar_lea.vmem %s1, %s134
        %s136 = smul.u32 4, %s9
      $region28: #{lpnet_forward.53} parent=23 // pred_fallthru
        _
    $region24: #{lpnet_forward.53} parent=5 // pred_fallthru
      _
    %p137 = scmp.le.s32.totalorder 1, %s9
    %p138 = scmp.lt.s32.totalorder %s9, 5
    %p139 = pnand %p137, %p138
    %p140 = pneg %p139
    // Predicated region
    $region29: #{lpnet_forward.53} parent=5 // pred_check
      _
    $region30: #{lpnet_forward.53} parent=5 // pred_check_branch
      %142 = sbr.rel (%p139) target = $region32
    $region31: #{lpnet_forward.53} parent=5 // pred_region
      %s143 = ssub.s32 %s9, 1
      %p144 = pneg %p30
      %p145 = pneg %p27
      %s146 = smul.u32 4, %s14
      %p147 = scmp.lt.s32.totalorder %s146, 15
      %s148 = scalar_select %p147, %s146, 15
      %s149 = smul.addr %s148, 4
      %s150 = scalar_lea.vmem %s1, %s149
      %p151 = pneg %p56
      %p152 = pneg %p53
      %p153 = pneg %p77
      %p154 = pneg %p74
      %p155 = pneg %p103
      %p156 = pneg %p100
      %s157 = smul.u32 4, %s14
      %p158 = scmp.lt.s32.totalorder %s157, 15
      %s159 = scalar_select %p158, %s157, 15
      %s160 = smul.addr %s159, 8
      %s161 = scalar_lea.vmem %s3, %s160
      %s162 = smul.u32 4, %s14
      %p163 = scmp.lt.s32.totalorder %s162, 15
      %s164 = scalar_select %p163, %s162, 15
      %s165 = smul.addr %s164, 4
      %s166 = scalar_lea.vmem %s1, %s165
      %s167 = smul.u32 4, %s14
      %s168 = smul.u32 4, %s14
      %p169 = scmp.lt.s32.totalorder %s168, 15
      %s170 = scalar_select %p169, %s168, 15
      %s171 = smul.addr %s170, 8
      %s172 = scalar_lea.vmem %s3, %s171
      %s173 = smul.u32 4, %s14
      %v175 = vld [vmem:[%s0] sm:$0xf]
      %v176 = vld [vmem:[%s166] sm:$0xff]
      %v177 = vld [vmem:[%s166 + $0x8] sm:$0xff]
      %v178 = vld [vmem:[%s2] sm:$0xff]
      %180 = vset.pattern.permute.xlu0 0
      %181 = vperm.xlu0 %180, %v178
      %v182 = vpop.permute.xlu0 %181
      %v186 = vunpack.c.l.b16 %v176
      %v187 = vunpack.c.h.b16 %v176
      %v188 = vunpack.c.l.b16 %v177
      %v189 = vunpack.c.h.b16 %v177
      %v190 = vpack.c.b16 %v186, %v186
      %v191 = vpack.c.b16 %v187, %v187
      %v192 = vpack.c.b16 %v188, %v188
      %v193 = vpack.c.b16 %v189, %v189
      %vm194 = vcmask 64512
      %v196 = vsel %vm194, %v175, 0
      %vm198 = vcmask 1043456
      %v200 = vsel %vm198, %v190, 0
      %v203 = vsel %vm198, %v191, 0
      %v206 = vsel %vm198, %v192, 0
      %v209 = vsel %vm198, %v193, 0
      %211 = vmatprep.subr.bf16.mxu0 %v203
      %212 = vmatpush1.bf16.msra.mxu0 %v200
      %213 = vmatprep.subr.bf16.mxu0 0
      %214 = vmatpush1.bf16.msra.mxu0 0
      %215 = vmatprep.subr.bf16.mxu0 0
      %216 = vmatpush1.bf16.msra.mxu0 0
      %217 = vmatprep.subr.bf16.mxu0 0
      %218 = vmatpush1.bf16.msra.mxu0 0
      %219 = vmatprep.subr.bf16.mxu0 0
      %220 = vmatpush1.bf16.msra.mxu0 0
      %221 = vmatprep.subr.bf16.mxu0 0
      %222 = vmatpush1.bf16.msra.mxu0 0
      %223 = vmatprep.subr.bf16.mxu0 0
      %224 = vmatpush1.bf16.msra.mxu0 0
      %225 = vmatprep.subr.bf16.mxu0 0
      %226 = vmatpush1.bf16.msra.mxu0 0
      %227 = vmatprep.subr.bf16.mxu0 0
      %228 = vmatpush1.bf16.msra.mxu0 0
      %229 = vmatprep.subr.bf16.mxu0 0
      %230 = vmatpush1.bf16.msra.mxu0 0
      %231 = vmatprep.subr.bf16.mxu0 0
      %232 = vmatpush1.bf16.msra.mxu0 0
      %233 = vmatprep.subr.bf16.mxu0 0
      %234 = vmatpush1.bf16.msra.mxu0 0
      %235 = vmatprep.subr.bf16.mxu0 0
      %236 = vmatpush1.bf16.msra.mxu0 0
      %237 = vmatprep.subr.bf16.mxu0 0
      %238 = vmatpush1.bf16.msra.mxu0 0
      %239 = vmatprep.subr.bf16.mxu0 0
      %240 = vmatpush1.bf16.msra.mxu0 0
      %241 = vmatprep.subr.bf16.mxu0 0
      %242 = vmatpush1.bf16.msra.mxu0 0
      %243 = vmatprep.mubr.bf16.mxu0 0
      %244 = vmatmul.mubr.bf16.gmra.mrb[0].mxu0 %v196
      %v245 = vpop.f32.mrb[0].mxu0
      %v246 = vadd.f32 %v182, %v245
      %v247 = vpop.f32.mrb[0].mxu0
      %v248 = vadd.f32 %v182, %v247
      %v249 = vpop.f32.mrb[0].mxu0
      %v250 = vpop.f32.mrb[0].mxu0
      %251 = vdwg.mxu0
      %252 = vmatprep.subr.bf16.mxu0 %v209
      %253 = vmatpush1.bf16.msra.mxu0 %v206
      %254 = vmatprep.subr.bf16.mxu0 0
      %255 = vmatpush1.bf16.msra.mxu0 0
      %256 = vmatprep.subr.bf16.mxu0 0
      %257 = vmatpush1.bf16.msra.mxu0 0
      %258 = vmatprep.subr.bf16.mxu0 0
      %259 = vmatpush1.bf16.msra.mxu0 0
      %260 = vmatprep.subr.bf16.mxu0 0
      %261 = vmatpush1.bf16.msra.mxu0 0
      %262 = vmatprep.subr.bf16.mxu0 0
      %263 = vmatpush1.bf16.msra.mxu0 0
      %264 = vmatprep.subr.bf16.mxu0 0
      %265 = vmatpush1.bf16.msra.mxu0 0
      %266 = vmatprep.subr.bf16.mxu0 0
      %267 = vmatpush1.bf16.msra.mxu0 0
      %268 = vmatprep.subr.bf16.mxu0 0
      %269 = vmatpush1.bf16.msra.mxu0 0
      %270 = vmatprep.subr.bf16.mxu0 0
      %271 = vmatpush1.bf16.msra.mxu0 0
      %272 = vmatprep.subr.bf16.mxu0 0
      %273 = vmatpush1.bf16.msra.mxu0 0
      %274 = vmatprep.subr.bf16.mxu0 0
      %275 = vmatpush1.bf16.msra.mxu0 0
      %276 = vmatprep.subr.bf16.mxu0 0
      %277 = vmatpush1.bf16.msra.mxu0 0
      %278 = vmatprep.subr.bf16.mxu0 0
      %279 = vmatpush1.bf16.msra.mxu0 0
      %280 = vmatprep.subr.bf16.mxu0 0
      %281 = vmatpush1.bf16.msra.mxu0 0
      %282 = vmatprep.subr.bf16.mxu0 0
      %283 = vmatpush1.bf16.msra.mxu0 0
      %284 = vmatprep.mubr.bf16.mxu0 0
      %285 = vmatmul.mubr.bf16.gmra.mrb[0].mxu0 %v196
      %v286 = vpop.f32.mrb[0].mxu0
      %v287 = vadd.f32 %v182, %v286
      %v288 = vpop.f32.mrb[0].mxu0
      %v289 = vadd.f32 %v182, %v288
      %v290 = vpop.f32.mrb[0].mxu0
      %v291 = vpop.f32.mrb[0].mxu0
      %292 = vdwg.mxu0
      %vm293 = vcmp.ge.f32.partialorder %v246, 0.0
      %vm294 = vcmp.ge.f32.partialorder %v248, 0.0
      %vm295 = vcmp.ge.f32.partialorder %v287, 0.0
      %vm296 = vcmp.ge.f32.partialorder %v289, 0.0
      %v297 = vmul.f32 %v246, 0.2
      %v298 = vmul.f32 %v248, 0.2
      %v299 = vmul.f32 %v287, 0.2
      %v300 = vmul.f32 %v289, 0.2
      %v301 = vsel %vm293, %v246, %v297
      %v302 = vsel %vm294, %v248, %v298
      %v303 = vsel %vm295, %v287, %v299
      %v304 = vsel %vm296, %v289, %v300
      %305 = vst [vmem:[%s172] sm:$0xff] %v301
      %306 = vst [vmem:[%s172 + $0x8] sm:$0xff] %v302
      %307 = vst [vmem:[%s172 + $0x10] sm:$0xff] %v303
      %308 = vst [vmem:[%s172 + $0x18] sm:$0xff] %v304
      %s309 = smul.u32 4, %s14
      %p310 = scmp.lt.s32.totalorder %s309, 15
      %s311 = scalar_select %p310, %s309, 15
      %s312 = smul.addr %s311, 8
      %s313 = scalar_lea.vmem %s3, %s312
      // Predicated region
      $region33: #{lpnet_forward.53} parent=31 // pred_check
        %p314 = pneg %p100
      $region34: #{lpnet_forward.53} parent=31 // pred_check_branch
        %316 = sbr.rel (%p314) target = $region36
      $region35: #{lpnet_forward.53} parent=31 // pred_region
        %s317 = smul.u32 4, %s14
      $region36: #{lpnet_forward.53} parent=31 // pred_fallthru
        _
    $region32: #{lpnet_forward.53} parent=5 // pred_fallthru
      _
    %p318 = scmp.le.s32.totalorder 2, %s9
    // Predicated region
    $region37: #{lpnet_forward.53} parent=5 // pred_check
      %p319 = pneg %p318
    $region38: #{lpnet_forward.53} parent=5 // pred_check_branch
      %321 = sbr.rel (%p319) target = $region40
    $region39: #{lpnet_forward.53} parent=5 // pred_region
      %s322 = ssub.s32 %s9, 2
      // Predicated region
      $region41: #{lpnet_forward.53} parent=39 // pred_check
        %p323 = pneg %p106
      $region42: #{lpnet_forward.53} parent=39 // pred_check_branch
        %325 = sbr.rel (%p323) target = $region44
      $region43: #{lpnet_forward.53} parent=39 // pred_region
        %s326 = smul.u32 4, %s15
        %p327 = scmp.lt.s32.totalorder %s326, 15
        %s328 = scalar_select %p327, %s326, 15
        %s329 = smul.addr %s328, 8
        %s330 = scalar_lea.vmem %s3, %s329
      $region44: #{lpnet_forward.53} parent=39 // pred_fallthru
        _
    $region40: #{lpnet_forward.53} parent=5 // pred_fallthru
      _
  $region6: #{lpnet_forward.53} parent=0 // loop_footer
    %s13 = sadd.s32 1, %s9
  $region7: #{lpnet_forward.53} parent=0 // loop_footer_branch
    %8 = sbr.rel target = $region3
  $region8: #{lpnet_forward.53} parent=0 // loop_exit
    _

// kernel: lpnet_forward.54
$region0: #{lpnet_forward.54}
  #allocation0 [shape = 'u32[]', space=smem, size = 0x4, offset = 0x4, fixed_abs, tag = 'smem constant byte address 0x4 - core index']
  #allocation1 [shape = 'u32[144,128]{1,0:T(1,128)}', space=vmem, size = 0x12000, scoped, tag = 'internal scratch']
  %s0 = inlined_call_operand.vmem [shape: bf16[8,72], index: 0, kind: input, shape index: {}]
  %s1 = inlined_call_operand.vmem [shape: bf16[72,2048], index: 1, kind: input, shape index: {}]
  %s2 = inlined_call_operand.vmem [shape: f32[8,1], index: 2, kind: input, shape index: {}]
  %s3 = inlined_call_operand.vmem [shape: f32[8,2048], index: 3, kind: input, shape index: {}]
  %s4 = inlined_call_operand.vmem [shape: f32[8,2048], index: 4, kind: output, shape index: {}]
  %s5 = sld [smem:[#allocation0]]
  $region72: #{lpnet_forward.54} parent=0
    _
  %s7 = ssub.s32 1, %s5
  %s8 = scalar_select 0, %s7, %s5
  $region1: #{lpnet_forward.54} parent=0
    #allocation2 [shape = 'u8[147456]{0}', space=vmem, size = 0x24000, scoped, tag = 'input window, operand 1']
    loop: start=0, step=1, limit=6
    $region2: #{lpnet_forward.54} parent=1 // loop_pre_header
      _
    $region3: #{lpnet_forward.54} parent=1 // loop_header
      %s10 = sphi 0, %s14
      %p11 = scmp.ge.s32.totalorder %s10, 6
      %s18 = sphi 0, %s18
      %s20 = sphi 0, %s18
      %s21 = sphi 0, %s20
      %s35 = sphi 0, %s21
      %s41 = sphi 0, %s43
      %s44 = sphi 0, %s41
      %s45 = sphi 0, %s44
      %s61 = sphi 0, %s45
      %s65 = sphi 0, %s65
      %s67 = sphi 0, %s65
      %s68 = sphi 0, %s67
      %s82 = sphi 0, %s68
      %s88 = sphi 0, %s90
      %s91 = sphi 0, %s88
      %s92 = sphi 0, %s91
      %s108 = sphi 0, %s92
      %s114 = sphi 0, %s116
      %s117 = sphi 0, %s114
      %s118 = sphi 0, %s117
      %s134 = sphi 0, %s118
    $region4: #{lpnet_forward.54} parent=1 // loop_header_branch
      %13 = sbr.rel (%p11) target = $region8
    $region5: #{lpnet_forward.54} parent=1 // loop_body
      %s15 = ssub.s32 %s10, 1
      %s16 = ssub.s32 %s10, 2
      %s17 = sadd.s32 %s10, 1
      %s19 = sadd.s32 %s18, 1
      %p22 = scmp.eq.s32.totalorder %s10, 3
      %p23 = scmp.ne.s32.totalorder %s18, %s20
      %p24 = scmp.eq.s32.totalorder %s10, 0
      %p25 = por %p23, %p24
      %p26 = scmp.ne.s32.totalorder %s18, %s20
      %p27 = scmp.eq.s32.totalorder %s15, 3
      %p28 = por %p26, %p27
      %p29 = scmp.ne.s32.totalorder %s20, %s21
      %p30 = scmp.eq.s32.totalorder %s15, 0
      %p31 = por %p29, %p30
      %p32 = scmp.ne.s32.totalorder %s20, %s21
      %p33 = scmp.eq.s32.totalorder %s16, 3
      %p34 = por %p32, %p33
      %p36 = scmp.ne.s32.totalorder %s21, %s35
      %p37 = scmp.eq.s32.totalorder %s16, 0
      %p38 = por %p36, %p37
      %s39 = ssub.s32 %s10, %s17
      %p40 = scmp.eq.s32.totalorder %s39, 0
      %s42 = sadd.s32 %s41, 1
      %s43 = scalar_select %p40, %s41, %s42
      %p46 = pneg %p40
      %p47 = scmp.eq.s32.totalorder %s10, 3
      %p48 = por %p46, %p47
      %p49 = scmp.ne.s32.totalorder %s41, %s44
      %p50 = scmp.eq.s32.totalorder %s10, 0
      %p51 = por %p49, %p50
      %p52 = scmp.ne.s32.totalorder %s41, %s44
      %p53 = scmp.eq.s32.totalorder %s15, 3
      %p54 = por %p52, %p53
      %p55 = scmp.ne.s32.totalorder %s44, %s45
      %p56 = scmp.eq.s32.totalorder %s15, 0
      %p57 = por %p55, %p56
      %p58 = scmp.ne.s32.totalorder %s44, %s45
      %p59 = scmp.eq.s32.totalorder %s16, 3
      %p60 = por %p58, %p59
      %p62 = scmp.ne.s32.totalorder %s45, %s61
      %p63 = scmp.eq.s32.totalorder %s16, 0
      %p64 = por %p62, %p63
      %s66 = sadd.s32 %s65, 1
      %p69 = scmp.eq.s32.totalorder %s10, 3
      %p70 = scmp.ne.s32.totalorder %s65, %s67
      %p71 = scmp.eq.s32.totalorder %s10, 0
      %p72 = por %p70, %p71
      %p73 = scmp.ne.s32.totalorder %s65, %s67
      %p74 = scmp.eq.s32.totalorder %s15, 3
      %p75 = por %p73, %p74
      %p76 = scmp.ne.s32.totalorder %s67, %s68
      %p77 = scmp.eq.s32.totalorder %s15, 0
      %p78 = por %p76, %p77
      %p79 = scmp.ne.s32.totalorder %s67, %s68
      %p80 = scmp.eq.s32.totalorder %s16, 3
      %p81 = por %p79, %p80
      %p83 = scmp.ne.s32.totalorder %s68, %s82
      %p84 = scmp.eq.s32.totalorder %s16, 0
      %p85 = por %p83, %p84
      %s86 = ssub.s32 %s10, %s17
      %p87 = scmp.eq.s32.totalorder %s86, 0
      %s89 = sadd.s32 %s88, 1
      %s90 = scalar_select %p87, %s88, %s89
      %p93 = pneg %p87
      %p94 = scmp.eq.s32.totalorder %s10, 3
      %p95 = por %p93, %p94
      %p96 = scmp.ne.s32.totalorder %s88, %s91
      %p97 = scmp.eq.s32.totalorder %s10, 0
      %p98 = por %p96, %p97
      %p99 = scmp.ne.s32.totalorder %s88, %s91
      %p100 = scmp.eq.s32.totalorder %s15, 3
      %p101 = por %p99, %p100
      %p102 = scmp.ne.s32.totalorder %s91, %s92
      %p103 = scmp.eq.s32.totalorder %s15, 0
      %p104 = por %p102, %p103
      %p105 = scmp.ne.s32.totalorder %s91, %s92
      %p106 = scmp.eq.s32.totalorder %s16, 3
      %p107 = por %p105, %p106
      %p109 = scmp.ne.s32.totalorder %s92, %s108
      %p110 = scmp.eq.s32.totalorder %s16, 0
      %p111 = por %p109, %p110
      %s112 = ssub.s32 %s10, %s17
      %p113 = scmp.eq.s32.totalorder %s112, 0
      %s115 = sadd.s32 %s114, 1
      %s116 = scalar_select %p113, %s114, %s115
      %p119 = pneg %p113
      %p120 = scmp.eq.s32.totalorder %s10, 3
      %p121 = por %p119, %p120
      %p122 = scmp.ne.s32.totalorder %s114, %s117
      %p123 = scmp.eq.s32.totalorder %s10, 0
      %p124 = por %p122, %p123
      %p125 = scmp.ne.s32.totalorder %s114, %s117
      %p126 = scmp.eq.s32.totalorder %s15, 3
      %p127 = por %p125, %p126
      %p128 = scmp.ne.s32.totalorder %s117, %s118
      %p129 = scmp.eq.s32.totalorder %s15, 0
      %p130 = por %p128, %p129
      %p131 = scmp.ne.s32.totalorder %s117, %s118
      %p132 = scmp.eq.s32.totalorder %s16, 3
      %p133 = por %p131, %p132
      %p135 = scmp.ne.s32.totalorder %s118, %s134
      %p136 = scmp.eq.s32.totalorder %s16, 0
      %p137 = por %p135, %p136
      %p138 = scmp.le.s32.totalorder 1, %s10
      %p139 = scmp.lt.s32.totalorder %s10, 5
      %p140 = pnand %p138, %p139
      %p141 = pneg %p140
      // Predicated region
      $region9: #{lpnet_forward.54} parent=5 // pred_check
        _
      $region10: #{lpnet_forward.54} parent=5 // pred_check_branch
        %143 = sbr.rel (%p140) target = $region12
      $region11: #{lpnet_forward.54} parent=5 // pred_region
        %s144 = ssub.s32 %s10, 1
        // Predicated region
        $region13: #{lpnet_forward.54} parent=11 // pred_check
          %p145 = pneg %p31
        $region14: #{lpnet_forward.54} parent=11 // pred_check_branch
          %147 = sbr.rel (%p145) target = $region16
        $region15: #{lpnet_forward.54} parent=11 // pred_region
          _
        $region16: #{lpnet_forward.54} parent=11 // pred_fallthru
          _
        // Predicated region
        $region17: #{lpnet_forward.54} parent=11 // pred_check
          %p148 = pneg %p78
        $region18: #{lpnet_forward.54} parent=11 // pred_check_branch
          %150 = sbr.rel (%p148) target = $region20
        $region19: #{lpnet_forward.54} parent=11 // pred_region
          _
        $region20: #{lpnet_forward.54} parent=11 // pred_fallthru
          _
      $region12: #{lpnet_forward.54} parent=5 // pred_fallthru
        _
      %p151 = scmp.lt.s32.totalorder %s10, 4
      // Predicated region
      $region21: #{lpnet_forward.54} parent=5 // pred_check
        %p152 = pneg %p151
      $region22: #{lpnet_forward.54} parent=5 // pred_check_branch
        %154 = sbr.rel (%p152) target = $region24
      $region23: #{lpnet_forward.54} parent=5 // pred_region
        // Predicated region
        $region25: #{lpnet_forward.54} parent=23 // pred_check
          %p155 = pneg %p51
        $region26: #{lpnet_forward.54} parent=23 // pred_check_branch
          %157 = sbr.rel (%p155) target = $region28
        $region27: #{lpnet_forward.54} parent=23 // pred_region
          %s158 = sand.u32 %s41, 1
          %s159 = sand.u32 %s41, 1
          %s160 = smul.addr %s159, 144
          %s161 = scalar_lea.vmem [#allocation2], %s160
          %s162 = smul.u32 4, %s10
          %s163 = smul.addr %s162, 4
          %s164 = scalar_lea.vmem %s1, %s163
          // Predicated region
          $region29: #{lpnet_forward.54} parent=27 // pred_check
            _
          $region30: #{lpnet_forward.54} parent=27 // pred_check_branch
            %166 = sbr.rel (0) target = $region32
          $region31: #{lpnet_forward.54} parent=27 // pred_region
            // Predicated region
            $region33: #{lpnet_forward.54} parent=31 // pred_check
              _
            $region34: #{lpnet_forward.54} parent=31 // pred_check_branch
              %168 = sbr.rel (0) target = $region36
            $region35: #{lpnet_forward.54} parent=31 // pred_region
              loop: start=0, step=1, limit=1
              $region37: #{lpnet_forward.54} parent=35 // loop_pre_header
                _
              $region38: #{lpnet_forward.54} parent=35 // loop_header
                %s170 = sphi 0, %s174
                %p171 = scmp.ge.s32.totalorder %s170, 1
                %s175 = sphi %s164, %s164
                %s176 = sphi %s161, %s161
              $region39: #{lpnet_forward.54} parent=35 // loop_header_branch
                %173 = sbr.rel (%p171) target = $region43
              $region40: #{lpnet_forward.54} parent=35 // loop_body
                %v177 = vld [vmem:[%s175] sm:$0xff]
                %178 = vst [vmem:[%s176] sm:$0xff] %v177
                %v179 = vld [vmem:[%s175 + $0x8] sm:$0xff]
                %180 = vst [vmem:[%s176 + $0x8] sm:$0xff] %v179
                %v181 = vld [vmem:[%s175 + $0x40] sm:$0xff]
                %182 = vst [vmem:[%s176 + $0x10] sm:$0xff] %v181
                %v183 = vld [vmem:[%s175 + $0x48] sm:$0xff]
                %184 = vst [vmem:[%s176 + $0x18] sm:$0xff] %v183
                %v185 = vld [vmem:[%s175 + $0x80] sm:$0xff]
                %186 = vst [vmem:[%s176 + $0x20] sm:$0xff] %v185
                %v187 = vld [vmem:[%s175 + $0x88] sm:$0xff]
                %188 = vst [vmem:[%s176 + $0x28] sm:$0xff] %v187
                %v189 = vld [vmem:[%s175 + $0xc0] sm:$0xff]
                %190 = vst [vmem:[%s176 + $0x30] sm:$0xff] %v189
                %v191 = vld [vmem:[%s175 + $0xc8] sm:$0xff]
                %192 = vst [vmem:[%s176 + $0x38] sm:$0xff] %v191
                %v193 = vld [vmem:[%s175 + $0x100] sm:$0xff]
                %194 = vst [vmem:[%s176 + $0x40] sm:$0xff] %v193
                %v195 = vld [vmem:[%s175 + $0x108] sm:$0xff]
                %196 = vst [vmem:[%s176 + $0x48] sm:$0xff] %v195
                %v197 = vld [vmem:[%s175 + $0x140] sm:$0xff]
                %198 = vst [vmem:[%s176 + $0x50] sm:$0xff] %v197
                %v199 = vld [vmem:[%s175 + $0x148] sm:$0xff]
                %200 = vst [vmem:[%s176 + $0x58] sm:$0xff] %v199
                %v201 = vld [vmem:[%s175 + $0x180] sm:$0xff]
                %202 = vst [vmem:[%s176 + $0x60] sm:$0xff] %v201
                %v203 = vld [vmem:[%s175 + $0x188] sm:$0xff]
                %204 = vst [vmem:[%s176 + $0x68] sm:$0xff] %v203
                %v205 = vld [vmem:[%s175 + $0x1c0] sm:$0xff]
                %206 = vst [vmem:[%s176 + $0x70] sm:$0xff] %v205
                %v207 = vld [vmem:[%s175 + $0x1c8] sm:$0xff]
                %208 = vst [vmem:[%s176 + $0x78] sm:$0xff] %v207
                %v209 = vld [vmem:[%s175 + $0x200] sm:$0xff]
                %210 = vst [vmem:[%s176 + $0x80] sm:$0xff] %v209
                %v211 = vld [vmem:[%s175 + $0x208] sm:$0xff]
                %212 = vst [vmem:[%s176 + $0x88] sm:$0xff] %v211
              $region41: #{lpnet_forward.54} parent=35 // loop_footer
                %s174 = sadd.s32 1, %s170
              $region42: #{lpnet_forward.54} parent=35 // loop_footer_branch
                %169 = sbr.rel target = $region38
              $region43: #{lpnet_forward.54} parent=35 // loop_exit
                _
            $region36: #{lpnet_forward.54} parent=31 // pred_fallthru
              _
            // Predicated region
            $region44: #{lpnet_forward.54} parent=31 // pred_check
              _
            $region45: #{lpnet_forward.54} parent=31 // pred_check_branch
              %214 = sbr.rel target = $region47
            $region46: #{lpnet_forward.54} parent=31 // pred_region
              _
            $region47: #{lpnet_forward.54} parent=31 // pred_fallthru
              _
          $region32: #{lpnet_forward.54} parent=27 // pred_fallthru
            _
          %215 = vnop
        $region28: #{lpnet_forward.54} parent=23 // pred_fallthru
          _
        // Predicated region
        $region48: #{lpnet_forward.54} parent=23 // pred_check
          %p216 = pneg %p98
        $region49: #{lpnet_forward.54} parent=23 // pred_check_branch
          %218 = sbr.rel (%p216) target = $region51
        $region50: #{lpnet_forward.54} parent=23 // pred_region
          %s219 = smul.u32 4, %s10
          %p220 = scmp.lt.s32.totalorder %s219, 15
          %s221 = scalar_select %p220, %s219, 15
          %s222 = smul.addr %s221, 8
          %s223 = scalar_lea.vmem %s3, %s222
          %s224 = smul.u32 4, %s10
        $region51: #{lpnet_forward.54} parent=23 // pred_fallthru
          _
      $region24: #{lpnet_forward.54} parent=5 // pred_fallthru
        _
      %p225 = scmp.le.s32.totalorder 1, %s10
      %p226 = scmp.lt.s32.totalorder %s10, 5
      %p227 = pnand %p225, %p226
      %p228 = pneg %p227
      // Predicated region
      $region52: #{lpnet_forward.54} parent=5 // pred_check
        _
      $region53: #{lpnet_forward.54} parent=5 // pred_check_branch
        %230 = sbr.rel (%p227) target = $region55
      $region54: #{lpnet_forward.54} parent=5 // pred_region
        %s231 = ssub.s32 %s10, 1
        %s232 = sand.u32 %s44, 1
        %s233 = sand.u32 %s44, 1
        %s234 = smul.addr %s233, 144
        %s235 = scalar_lea.vmem [#allocation2], %s234
        // Predicated region
        $region56: #{lpnet_forward.54} parent=54 // pred_check
          %p236 = pneg %p57
        $region57: #{lpnet_forward.54} parent=54 // pred_check_branch
          %238 = sbr.rel (%p236) target = $region59
        $region58: #{lpnet_forward.54} parent=54 // pred_region
          _
        $region59: #{lpnet_forward.54} parent=54 // pred_fallthru
          _
        %p239 = pneg %p31
        %p240 = pneg %p28
        %s241 = sand.u32 %s44, 1
        %s242 = sand.u32 %s44, 1
        %s243 = smul.addr %s242, 144
        %s244 = scalar_lea.vmem [#allocation2], %s243
        %p245 = pneg %p57
        %p246 = pneg %p54
        %p247 = pneg %p78
        %p248 = pneg %p75
        %s249 = smul.u32 4, %s15
        %p250 = scmp.lt.s32.totalorder %s249, 15
        %s251 = scalar_select %p250, %s249, 15
        %s252 = smul.addr %s251, 8
        %s253 = scalar_lea.vmem %s3, %s252
        %p254 = pneg %p104
        %p255 = pneg %p101
        %p256 = pneg %p130
        %p257 = pneg %p127
        %s258 = smul.u32 4, %s15
        %p259 = scmp.lt.s32.totalorder %s258, 15
        %s260 = scalar_select %p259, %s258, 15
        %s261 = smul.addr %s260, 8
        %s262 = scalar_lea.vmem %s4, %s261
        %s263 = smul.u32 4, %s15
        %s264 = smul.u32 4, %s15
        %p265 = scmp.lt.s32.totalorder %s264, 15
        %s266 = scalar_select %p265, %s264, 15
        %s267 = smul.addr %s266, 8
        %s268 = scalar_lea.vmem %s3, %s267
        %s269 = smul.u32 4, %s15
        %s270 = smul.u32 4, %s15
        %p271 = scmp.lt.s32.totalorder %s270, 15
        %s272 = scalar_select %p271, %s270, 15
        %s273 = smul.addr %s272, 8
        %s274 = scalar_lea.vmem %s4, %s273
        %s275 = smul.u32 4, %s15
        %v277 = vld [vmem:[%s0] sm:$0xf]
        %v278 = vld [vmem:[%s235] sm:$0xff]
        %v279 = vld [vmem:[%s235 + $0x8] sm:$0xff]
        %v280 = vld [vmem:[%s235 + $0x10] sm:$0xff]
        %v281 = vld [vmem:[%s235 + $0x18] sm:$0xff]
        %v282 = vld [vmem:[%s235 + $0x20] sm:$0xff]
        %v283 = vld [vmem:[%s235 + $0x28] sm:$0xff]
        %v284 = vld [vmem:[%s235 + $0x30] sm:$0xff]
        %v285 = vld [vmem:[%s235 + $0x38] sm:$0xff]
        %v286 = vld [vmem:[%s235 + $0x40] sm:$0xff]
        %v287 = vld [vmem:[%s235 + $0x48] sm:$0xff]
        %v288 = vld [vmem:[%s235 + $0x50] sm:$0xff]
        %v289 = vld [vmem:[%s235 + $0x58] sm:$0xff]
        %v290 = vld [vmem:[%s235 + $0x60] sm:$0xff]
        %v291 = vld [vmem:[%s235 + $0x68] sm:$0xff]
        %v292 = vld [vmem:[%s235 + $0x70] sm:$0xff]
        %v293 = vld [vmem:[%s235 + $0x78] sm:$0xff]
        %v294 = vld [vmem:[%s235 + $0x80] sm:$0xff]
        %v295 = vld [vmem:[%s235 + $0x88] sm:$0xff]
        %v296 = vld [vmem:[%s2] sm:$0xff]
        %298 = vset.pattern.permute.xlu0 0
        %299 = vperm.xlu0 %298, %v296
        %v300 = vpop.permute.xlu0 %299
        %v320 = vunpack.c.l.b16 %v278
        %v321 = vunpack.c.h.b16 %v278
        %v322 = vunpack.c.l.b16 %v279
        %v323 = vunpack.c.h.b16 %v279
        %v324 = vunpack.c.l.b16 %v280
        %v325 = vunpack.c.h.b16 %v280
        %v326 = vunpack.c.l.b16 %v281
        %v327 = vunpack.c.h.b16 %v281
        %v328 = vunpack.c.l.b16 %v282
        %v329 = vunpack.c.h.b16 %v282
        %v330 = vunpack.c.l.b16 %v283
        %v331 = vunpack.c.h.b16 %v283
        %v332 = vunpack.c.l.b16 %v284
        %v333 = vunpack.c.h.b16 %v284
        %v334 = vunpack.c.l.b16 %v285
        %v335 = vunpack.c.h.b16 %v285
        %v336 = vunpack.c.l.b16 %v286
        %v337 = vunpack.c.h.b16 %v286
        %v338 = vunpack.c.l.b16 %v287
        %v339 = vunpack.c.h.b16 %v287
        %v340 = vunpack.c.l.b16 %v288
        %v341 = vunpack.c.h.b16 %v288
        %v342 = vunpack.c.l.b16 %v289
        %v343 = vunpack.c.h.b16 %v289
        %v344 = vunpack.c.l.b16 %v290
        %v345 = vunpack.c.h.b16 %v290
        %v346 = vunpack.c.l.b16 %v291
        %v347 = vunpack.c.h.b16 %v291
        %v348 = vunpack.c.l.b16 %v292
        %v349 = vunpack.c.h.b16 %v292
        %v350 = vunpack.c.l.b16 %v293
        %v351 = vunpack.c.h.b16 %v293
        %v352 = vunpack.c.l.b16 %v294
        %v353 = vunpack.c.h.b16 %v294
        %v354 = vunpack.c.l.b16 %v295
        %v355 = vunpack.c.h.b16 %v295
        %v356 = vpack.c.b16 %v324, %v320
        %v357 = vpack.c.b16 %v325, %v321
        %v358 = vpack.c.b16 %v326, %v322
        %v359 = vpack.c.b16 %v327, %v323
        %v360 = vpack.c.b16 %v332, %v328
        %v361 = vpack.c.b16 %v333, %v329
        %v362 = vpack.c.b16 %v334, %v330
        %v363 = vpack.c.b16 %v335, %v331
        %v364 = vpack.c.b16 %v340, %v336
        %v365 = vpack.c.b16 %v341, %v337
        %v366 = vpack.c.b16 %v342, %v338
        %v367 = vpack.c.b16 %v343, %v339
        %v368 = vpack.c.b16 %v348, %v344
        %v369 = vpack.c.b16 %v349, %v345
        %v370 = vpack.c.b16 %v350, %v346
        %v371 = vpack.c.b16 %v351, %v347
        %v372 = vpack.c.b16 %v352, %v352
        %v373 = vpack.c.b16 %v353, %v353
        %v374 = vpack.c.b16 %v354, %v354
        %v375 = vpack.c.b16 %v355, %v355
        %vm392 = vcmask 588800
        %v394 = vsel %vm392, %v277, 0
        %vm396 = vcmask 1043456
        %v398 = vsel %vm396, %v372, 0
        %v401 = vsel %vm396, %v373, 0
        %v404 = vsel %vm396, %v374, 0
        %v407 = vsel %vm396, %v375, 0
        %409 = vmatprep.subr.bf16.mxu0 %v357
        %410 = vmatpush1.bf16.msra.mxu0 %v356
        %411 = vmatprep.subr.bf16.mxu0 %v361
        %412 = vmatpush1.bf16.msra.mxu0 %v360
        %413 = vmatprep.subr.bf16.mxu0 %v365
        %414 = vmatpush1.bf16.msra.mxu0 %v364
        %415 = vmatprep.subr.bf16.mxu0 %v369
        %416 = vmatpush1.bf16.msra.mxu0 %v368
        %417 = vmatprep.subr.bf16.mxu0 %v401
        %418 = vmatpush1.bf16.msra.mxu0 %v398
        %419 = vmatprep.subr.bf16.mxu0 0
        %420 = vmatpush1.bf16.msra.mxu0 0
        %421 = vmatprep.subr.bf16.mxu0 0
        %422 = vmatpush1.bf16.msra.mxu0 0
        %423 = vmatprep.subr.bf16.mxu0 0
        %424 = vmatpush1.bf16.msra.mxu0 0
        %425 = vmatprep.subr.bf16.mxu0 0
        %426 = vmatpush1.bf16.msra.mxu0 0
        %427 = vmatprep.subr.bf16.mxu0 0
        %428 = vmatpush1.bf16.msra.mxu0 0
        %429 = vmatprep.subr.bf16.mxu0 0
        %430 = vmatpush1.bf16.msra.mxu0 0
        %431 = vmatprep.subr.bf16.mxu0 0
        %432 = vmatpush1.bf16.msra.mxu0 0
        %433 = vmatprep.subr.bf16.mxu0 0
        %434 = vmatpush1.bf16.msra.mxu0 0
        %435 = vmatprep.subr.bf16.mxu0 0
        %436 = vmatpush1.bf16.msra.mxu0 0
        %437 = vmatprep.subr.bf16.mxu0 0
        %438 = vmatpush1.bf16.msra.mxu0 0
        %439 = vmatprep.subr.bf16.mxu0 0
        %440 = vmatpush1.bf16.msra.mxu0 0
        %441 = vmatprep.mubr.bf16.mxu0 0
        %442 = vmatmul.mubr.bf16.gmra.mrb[0].mxu0 %v394
        %v443 = vpop.f32.mrb[0].mxu0
        %v444 = vadd.f32 %v300, %v443
        %v445 = vpop.f32.mrb[0].mxu0
        %v446 = vadd.f32 %v300, %v445
        %v447 = vpop.f32.mrb[0].mxu0
        %v448 = vpop.f32.mrb[0].mxu0
        %449 = vdwg.mxu0
        %450 = vmatprep.subr.bf16.mxu0 %v359
        %451 = vmatpush1.bf16.msra.mxu0 %v358
        %452 = vmatprep.subr.bf16.mxu0 %v363
        %453 = vmatpush1.bf16.msra.mxu0 %v362
        %454 = vmatprep.subr.bf16.mxu0 %v367
        %455 = vmatpush1.bf16.msra.mxu0 %v366
        %456 = vmatprep.subr.bf16.mxu0 %v371
        %457 = vmatpush1.bf16.msra.mxu0 %v370
        %458 = vmatprep.subr.bf16.mxu0 %v407
        %459 = vmatpush1.bf16.msra.mxu0 %v404
        %460 = vmatprep.subr.bf16.mxu0 0
        %461 = vmatpush1.bf16.msra.mxu0 0
        %462 = vmatprep.subr.bf16.mxu0 0
        %463 = vmatpush1.bf16.msra.mxu0 0
        %464 = vmatprep.subr.bf16.mxu0 0
        %465 = vmatpush1.bf16.msra.mxu0 0
        %466 = vmatprep.subr.bf16.mxu0 0
        %467 = vmatpush1.bf16.msra.mxu0 0
        %468 = vmatprep.subr.bf16.mxu0 0
        %469 = vmatpush1.bf16.msra.mxu0 0
        %470 = vmatprep.subr.bf16.mxu0 0
        %471 = vmatpush1.bf16.msra.mxu0 0
        %472 = vmatprep.subr.bf16.mxu0 0
        %473 = vmatpush1.bf16.msra.mxu0 0
        %474 = vmatprep.subr.bf16.mxu0 0
        %475 = vmatpush1.bf16.msra.mxu0 0
        %476 = vmatprep.subr.bf16.mxu0 0
        %477 = vmatpush1.bf16.msra.mxu0 0
        %478 = vmatprep.subr.bf16.mxu0 0
        %479 = vmatpush1.bf16.msra.mxu0 0
        %480 = vmatprep.subr.bf16.mxu0 0
        %481 = vmatpush1.bf16.msra.mxu0 0
        %482 = vmatprep.mubr.bf16.mxu0 0
        %483 = vmatmul.mubr.bf16.gmra.mrb[0].mxu0 %v394
        %v484 = vpop.f32.mrb[0].mxu0
        %v485 = vadd.f32 %v300, %v484
        %v486 = vpop.f32.mrb[0].mxu0
        %v487 = vadd.f32 %v300, %v486
        %v488 = vpop.f32.mrb[0].mxu0
        %v489 = vpop.f32.mrb[0].mxu0
        %490 = vdwg.mxu0
        %vm491 = vcmp.ge.f32.partialorder %v444, 0.0
        %vm492 = vcmp.ge.f32.partialorder %v446, 0.0
        %vm493 = vcmp.ge.f32.partialorder %v485, 0.0
        %vm494 = vcmp.ge.f32.partialorder %v487, 0.0
        %v495 = vmul.f32 %v444, 0.2
        %v496 = vmul.f32 %v446, 0.2
        %v497 = vmul.f32 %v485, 0.2
        %v498 = vmul.f32 %v487, 0.2
        %v499 = vsel %vm491, %v444, %v495
        %v500 = vsel %vm492, %v446, %v496
        %v501 = vsel %vm493, %v485, %v497
        %v502 = vsel %vm494, %v487, %v498
        %v503 = vld [vmem:[%s268] sm:$0xff]
        %v504 = vld [vmem:[%s268 + $0x8] sm:$0xff]
        %v505 = vld [vmem:[%s268 + $0x10] sm:$0xff]
        %v506 = vld [vmem:[%s268 + $0x18] sm:$0xff]
        %v507 = vadd.f32 %v499, %v503
        %v508 = vadd.f32 %v500, %v504
        %v509 = vadd.f32 %v501, %v505
        %v510 = vadd.f32 %v502, %v506
        %511 = vst [vmem:[%s274] sm:$0xff] %v507
        %512 = vst [vmem:[%s274 + $0x8] sm:$0xff] %v508
        %513 = vst [vmem:[%s274 + $0x10] sm:$0xff] %v509
        %514 = vst [vmem:[%s274 + $0x18] sm:$0xff] %v510
        %s515 = smul.u32 4, %s15
        %p516 = scmp.lt.s32.totalorder %s515, 15
        %s517 = scalar_select %p516, %s515, 15
        %s518 = smul.addr %s517, 8
        %s519 = scalar_lea.vmem %s4, %s518
        // Predicated region
        $region60: #{lpnet_forward.54} parent=54 // pred_check
          %p520 = pneg %p127
        $region61: #{lpnet_forward.54} parent=54 // pred_check_branch
          %522 = sbr.rel (%p520) target = $region63
        $region62: #{lpnet_forward.54} parent=54 // pred_region
          %s523 = smul.u32 4, %s15
        $region63: #{lpnet_forward.54} parent=54 // pred_fallthru
          _
      $region55: #{lpnet_forward.54} parent=5 // pred_fallthru
        _
      %p524 = scmp.le.s32.totalorder 2, %s10
      // Predicated region
      $region64: #{lpnet_forward.54} parent=5 // pred_check
        %p525 = pneg %p524
      $region65: #{lpnet_forward.54} parent=5 // pred_check_branch
        %527 = sbr.rel (%p525) target = $region67
      $region66: #{lpnet_forward.54} parent=5 // pred_region
        %s528 = ssub.s32 %s10, 2
        // Predicated region
        $region68: #{lpnet_forward.54} parent=66 // pred_check
          %p529 = pneg %p133
        $region69: #{lpnet_forward.54} parent=66 // pred_check_branch
          %531 = sbr.rel (%p529) target = $region71
        $region70: #{lpnet_forward.54} parent=66 // pred_region
          %s532 = smul.u32 4, %s16
          %p533 = scmp.lt.s32.totalorder %s532, 15
          %s534 = scalar_select %p533, %s532, 15
          %s535 = smul.addr %s534, 8
          %s536 = scalar_lea.vmem %s4, %s535
        $region71: #{lpnet_forward.54} parent=66 // pred_fallthru
          _
      $region67: #{lpnet_forward.54} parent=5 // pred_fallthru
        _
    $region6: #{lpnet_forward.54} parent=1 // loop_footer
      %s14 = sadd.s32 1, %s10
    $region7: #{lpnet_forward.54} parent=1 // loop_footer_branch
      %9 = sbr.rel target = $region3
    $region8: #{lpnet_forward.54} parent=1 // loop_exit
      _

// kernel: lpnet_forward.58
$region0: #{lpnet_forward.58}
  #allocation0 [shape = 'u32[]', space=smem, size = 0x4, offset = 0x4, fixed_abs, tag = 'smem constant byte address 0x4 - core index']
  #allocation1 [shape = 'u32[144,128]{1,0:T(1,128)}', space=vmem, size = 0x12000, scoped, tag = 'internal scratch']
  %s0 = inlined_call_operand.vmem [shape: bf16[3,8], index: 0, kind: input, shape index: {}]
  %s1 = inlined_call_operand.vmem [shape: bf16[8,2048], index: 1, kind: input, shape index: {}]
  %s2 = inlined_call_operand.vmem [shape: f32[3,1], index: 2, kind: input, shape index: {}]
  %s3 = inlined_call_operand.vmem [shape: f32[3,2048], index: 3, kind: input, shape index: {}]
  %s4 = inlined_call_operand.vmem [shape: f32[3,2048], index: 4, kind: output, shape index: {}]
  %s5 = sld [smem:[#allocation0]]
  $region49: #{lpnet_forward.58} parent=0
    _
  %s7 = ssub.s32 1, %s5
  %s8 = scalar_select 0, %s7, %s5
  loop: start=0, step=1, limit=6
  $region2: #{lpnet_forward.58} parent=0 // loop_pre_header
    _
  $region3: #{lpnet_forward.58} parent=0 // loop_header
    %s10 = sphi 0, %s14
    %p11 = scmp.ge.s32.totalorder %s10, 6
    %s18 = sphi 0, %s18
    %s20 = sphi 0, %s18
    %s21 = sphi 0, %s20
    %s35 = sphi 0, %s21
    %s41 = sphi 0, %s43
    %s44 = sphi 0, %s41
    %s45 = sphi 0, %s44
    %s61 = sphi 0, %s45
    %s65 = sphi 0, %s65
    %s67 = sphi 0, %s65
    %s68 = sphi 0, %s67
    %s82 = sphi 0, %s68
    %s88 = sphi 0, %s90
    %s91 = sphi 0, %s88
    %s92 = sphi 0, %s91
    %s108 = sphi 0, %s92
    %s114 = sphi 0, %s116
    %s117 = sphi 0, %s114
    %s118 = sphi 0, %s117
    %s134 = sphi 0, %s118
  $region4: #{lpnet_forward.58} parent=0 // loop_header_branch
    %13 = sbr.rel (%p11) target = $region8
  $region5: #{lpnet_forward.58} parent=0 // loop_body
    %s15 = ssub.s32 %s10, 1
    %s16 = ssub.s32 %s10, 2
    %s17 = sadd.s32 %s10, 1
    %s19 = sadd.s32 %s18, 1
    %p22 = scmp.eq.s32.totalorder %s10, 3
    %p23 = scmp.ne.s32.totalorder %s18, %s20
    %p24 = scmp.eq.s32.totalorder %s10, 0
    %p25 = por %p23, %p24
    %p26 = scmp.ne.s32.totalorder %s18, %s20
    %p27 = scmp.eq.s32.totalorder %s15, 3
    %p28 = por %p26, %p27
    %p29 = scmp.ne.s32.totalorder %s20, %s21
    %p30 = scmp.eq.s32.totalorder %s15, 0
    %p31 = por %p29, %p30
    %p32 = scmp.ne.s32.totalorder %s20, %s21
    %p33 = scmp.eq.s32.totalorder %s16, 3
    %p34 = por %p32, %p33
    %p36 = scmp.ne.s32.totalorder %s21, %s35
    %p37 = scmp.eq.s32.totalorder %s16, 0
    %p38 = por %p36, %p37
    %s39 = ssub.s32 %s10, %s17
    %p40 = scmp.eq.s32.totalorder %s39, 0
    %s42 = sadd.s32 %s41, 1
    %s43 = scalar_select %p40, %s41, %s42
    %p46 = pneg %p40
    %p47 = scmp.eq.s32.totalorder %s10, 3
    %p48 = por %p46, %p47
    %p49 = scmp.ne.s32.totalorder %s41, %s44
    %p50 = scmp.eq.s32.totalorder %s10, 0
    %p51 = por %p49, %p50
    %p52 = scmp.ne.s32.totalorder %s41, %s44
    %p53 = scmp.eq.s32.totalorder %s15, 3
    %p54 = por %p52, %p53
    %p55 = scmp.ne.s32.totalorder %s44, %s45
    %p56 = scmp.eq.s32.totalorder %s15, 0
    %p57 = por %p55, %p56
    %p58 = scmp.ne.s32.totalorder %s44, %s45
    %p59 = scmp.eq.s32.totalorder %s16, 3
    %p60 = por %p58, %p59
    %p62 = scmp.ne.s32.totalorder %s45, %s61
    %p63 = scmp.eq.s32.totalorder %s16, 0
    %p64 = por %p62, %p63
    %s66 = sadd.s32 %s65, 1
    %p69 = scmp.eq.s32.totalorder %s10, 3
    %p70 = scmp.ne.s32.totalorder %s65, %s67
    %p71 = scmp.eq.s32.totalorder %s10, 0
    %p72 = por %p70, %p71
    %p73 = scmp.ne.s32.totalorder %s65, %s67
    %p74 = scmp.eq.s32.totalorder %s15, 3
    %p75 = por %p73, %p74
    %p76 = scmp.ne.s32.totalorder %s67, %s68
    %p77 = scmp.eq.s32.totalorder %s15, 0
    %p78 = por %p76, %p77
    %p79 = scmp.ne.s32.totalorder %s67, %s68
    %p80 = scmp.eq.s32.totalorder %s16, 3
    %p81 = por %p79, %p80
    %p83 = scmp.ne.s32.totalorder %s68, %s82
    %p84 = scmp.eq.s32.totalorder %s16, 0
    %p85 = por %p83, %p84
    %s86 = ssub.s32 %s10, %s17
    %p87 = scmp.eq.s32.totalorder %s86, 0
    %s89 = sadd.s32 %s88, 1
    %s90 = scalar_select %p87, %s88, %s89
    %p93 = pneg %p87
    %p94 = scmp.eq.s32.totalorder %s10, 3
    %p95 = por %p93, %p94
    %p96 = scmp.ne.s32.totalorder %s88, %s91
    %p97 = scmp.eq.s32.totalorder %s10, 0
    %p98 = por %p96, %p97
    %p99 = scmp.ne.s32.totalorder %s88, %s91
    %p100 = scmp.eq.s32.totalorder %s15, 3
    %p101 = por %p99, %p100
    %p102 = scmp.ne.s32.totalorder %s91, %s92
    %p103 = scmp.eq.s32.totalorder %s15, 0
    %p104 = por %p102, %p103
    %p105 = scmp.ne.s32.totalorder %s91, %s92
    %p106 = scmp.eq.s32.totalorder %s16, 3
    %p107 = por %p105, %p106
    %p109 = scmp.ne.s32.totalorder %s92, %s108
    %p110 = scmp.eq.s32.totalorder %s16, 0
    %p111 = por %p109, %p110
    %s112 = ssub.s32 %s10, %s17
    %p113 = scmp.eq.s32.totalorder %s112, 0
    %s115 = sadd.s32 %s114, 1
    %s116 = scalar_select %p113, %s114, %s115
    %p119 = pneg %p113
    %p120 = scmp.eq.s32.totalorder %s10, 3
    %p121 = por %p119, %p120
    %p122 = scmp.ne.s32.totalorder %s114, %s117
    %p123 = scmp.eq.s32.totalorder %s10, 0
    %p124 = por %p122, %p123
    %p125 = scmp.ne.s32.totalorder %s114, %s117
    %p126 = scmp.eq.s32.totalorder %s15, 3
    %p127 = por %p125, %p126
    %p128 = scmp.ne.s32.totalorder %s117, %s118
    %p129 = scmp.eq.s32.totalorder %s15, 0
    %p130 = por %p128, %p129
    %p131 = scmp.ne.s32.totalorder %s117, %s118
    %p132 = scmp.eq.s32.totalorder %s16, 3
    %p133 = por %p131, %p132
    %p135 = scmp.ne.s32.totalorder %s118, %s134
    %p136 = scmp.eq.s32.totalorder %s16, 0
    %p137 = por %p135, %p136
    %p138 = scmp.le.s32.totalorder 1, %s10
    %p139 = scmp.lt.s32.totalorder %s10, 5
    %p140 = pnand %p138, %p139
    %p141 = pneg %p140
    // Predicated region
    $region9: #{lpnet_forward.58} parent=5 // pred_check
      _
    $region10: #{lpnet_forward.58} parent=5 // pred_check_branch
      %143 = sbr.rel (%p140) target = $region12
    $region11: #{lpnet_forward.58} parent=5 // pred_region
      %s144 = ssub.s32 %s10, 1
      // Predicated region
      $region13: #{lpnet_forward.58} parent=11 // pred_check
        %p145 = pneg %p31
      $region14: #{lpnet_forward.58} parent=11 // pred_check_branch
        %147 = sbr.rel (%p145) target = $region16
      $region15: #{lpnet_forward.58} parent=11 // pred_region
        _
      $region16: #{lpnet_forward.58} parent=11 // pred_fallthru
        _
      // Predicated region
      $region17: #{lpnet_forward.58} parent=11 // pred_check
        %p148 = pneg %p78
      $region18: #{lpnet_forward.58} parent=11 // pred_check_branch
        %150 = sbr.rel (%p148) target = $region20
      $region19: #{lpnet_forward.58} parent=11 // pred_region
        _
      $region20: #{lpnet_forward.58} parent=11 // pred_fallthru
        _
    $region12: #{lpnet_forward.58} parent=5 // pred_fallthru
      _
    %p151 = scmp.lt.s32.totalorder %s10, 4
    // Predicated region
    $region21: #{lpnet_forward.58} parent=5 // pred_check
      %p152 = pneg %p151
    $region22: #{lpnet_forward.58} parent=5 // pred_check_branch
      %154 = sbr.rel (%p152) target = $region24
    $region23: #{lpnet_forward.58} parent=5 // pred_region
      // Predicated region
      $region25: #{lpnet_forward.58} parent=23 // pred_check
        %p155 = pneg %p51
      $region26: #{lpnet_forward.58} parent=23 // pred_check_branch
        %157 = sbr.rel (%p155) target = $region28
      $region27: #{lpnet_forward.58} parent=23 // pred_region
        %s158 = smul.u32 4, %s10
        %p159 = scmp.lt.s32.totalorder %s158, 15
        %s160 = scalar_select %p159, %s158, 15
        %s161 = smul.addr %s160, 4
        %s162 = scalar_lea.vmem %s1, %s161
        %s163 = smul.u32 4, %s10
      $region28: #{lpnet_forward.58} parent=23 // pred_fallthru
        _
      // Predicated region
      $region29: #{lpnet_forward.58} parent=23 // pred_check
        %p164 = pneg %p98
      $region30: #{lpnet_forward.58} parent=23 // pred_check_branch
        %166 = sbr.rel (%p164) target = $region32
      $region31: #{lpnet_forward.58} parent=23 // pred_region
        %s167 = smul.u32 4, %s10
        %p168 = scmp.lt.s32.totalorder %s167, 15
        %s169 = scalar_select %p168, %s167, 15
        %s170 = smul.addr %s169, 4
        %s171 = scalar_lea.vmem %s3, %s170
        %s172 = smul.u32 4, %s10
      $region32: #{lpnet_forward.58} parent=23 // pred_fallthru
        _
    $region24: #{lpnet_forward.58} parent=5 // pred_fallthru
      _
    %p173 = scmp.le.s32.totalorder 1, %s10
    %p174 = scmp.lt.s32.totalorder %s10, 5
    %p175 = pnand %p173, %p174
    %p176 = pneg %p175
    // Predicated region
    $region33: #{lpnet_forward.58} parent=5 // pred_check
      _
    $region34: #{lpnet_forward.58} parent=5 // pred_check_branch
      %178 = sbr.rel (%p175) target = $region36
    $region35: #{lpnet_forward.58} parent=5 // pred_region
      %s179 = ssub.s32 %s10, 1
      %p180 = pneg %p31
      %p181 = pneg %p28
      %s182 = smul.u32 4, %s15
      %p183 = scmp.lt.s32.totalorder %s182, 15
      %s184 = scalar_select %p183, %s182, 15
      %s185 = smul.addr %s184, 4
      %s186 = scalar_lea.vmem %s1, %s185
      %p187 = pneg %p57
      %p188 = pneg %p54
      %p189 = pneg %p78
      %p190 = pneg %p75
      %s191 = smul.u32 4, %s15
      %p192 = scmp.lt.s32.totalorder %s191, 15
      %s193 = scalar_select %p192, %s191, 15
      %s194 = smul.addr %s193, 4
      %s195 = scalar_lea.vmem %s3, %s194
      %p196 = pneg %p104
      %p197 = pneg %p101
      %p198 = pneg %p130
      %p199 = pneg %p127
      %s200 = smul.u32 4, %s15
      %p201 = scmp.lt.s32.totalorder %s200, 15
      %s202 = scalar_select %p201, %s200, 15
      %s203 = smul.addr %s202, 4
      %s204 = scalar_lea.vmem %s4, %s203
      %s205 = smul.u32 4, %s15
      %p206 = scmp.lt.s32.totalorder %s205, 15
      %s207 = scalar_select %p206, %s205, 15
      %s208 = smul.addr %s207, 4
      %s209 = scalar_lea.vmem %s1, %s208
      %s210 = smul.u32 4, %s15
      %s211 = smul.u32 4, %s15
      %p212 = scmp.lt.s32.totalorder %s211, 15
      %s213 = scalar_select %p212, %s211, 15
      %s214 = smul.addr %s213, 4
      %s215 = scalar_lea.vmem %s3, %s214
      %s216 = smul.u32 4, %s15
      %s217 = smul.u32 4, %s15
      %p218 = scmp.lt.s32.totalorder %s217, 15
      %s219 = scalar_select %p218, %s217, 15
      %s220 = smul.addr %s219, 4
      %s221 = scalar_lea.vmem %s4, %s220
      %s222 = smul.u32 4, %s15
      %v224 = vld [vmem:[%s0] sm:$0x3]
      %v225 = vld [vmem:[%s209] sm:$0xff]
      %v226 = vld [vmem:[%s209 + $0x8] sm:$0xff]
      %v227 = vld [vmem:[%s2] sm:$0x7]
      %229 = vset.pattern.permute.xlu0 0
      %230 = vperm.xlu0 %229, %v227
      %v231 = vpop.permute.xlu0 %230
      %v235 = vunpack.c.l.b16 %v225
      %v236 = vunpack.c.h.b16 %v225
      %v237 = vunpack.c.l.b16 %v226
      %v238 = vunpack.c.h.b16 %v226
      %v239 = vpack.c.b16 %v235, %v235
      %v240 = vpack.c.b16 %v236, %v236
      %v241 = vpack.c.b16 %v237, %v237
      %v242 = vpack.c.b16 %v238, %v238
      %vm243 = vcmask 64512
      %v245 = vsel %vm243, %v224, 0
      %vm247 = vcmask 1043456
      %v249 = vsel %vm247, %v239, 0
      %v252 = vsel %vm247, %v240, 0
      %v255 = vsel %vm247, %v241, 0
      %v258 = vsel %vm247, %v242, 0
      %260 = vmatprep.subr.bf16.mxu0 %v252
      %261 = vmatpush1.bf16.msra.mxu0 %v249
      %262 = vmatprep.subr.bf16.mxu0 0
      %263 = vmatpush1.bf16.msra.mxu0 0
      %264 = vmatprep.subr.bf16.mxu0 0
      %265 = vmatpush1.bf16.msra.mxu0 0
      %266 = vmatprep.subr.bf16.mxu0 0
      %267 = vmatpush1.bf16.msra.mxu0 0
      %268 = vmatprep.subr.bf16.mxu0 0
      %269 = vmatpush1.bf16.msra.mxu0 0
      %270 = vmatprep.subr.bf16.mxu0 0
      %271 = vmatpush1.bf16.msra.mxu0 0
      %272 = vmatprep.subr.bf16.mxu0 0
      %273 = vmatpush1.bf16.msra.mxu0 0
      %274 = vmatprep.subr.bf16.mxu0 0
      %275 = vmatpush1.bf16.msra.mxu0 0
      %276 = vmatprep.subr.bf16.mxu0 0
      %277 = vmatpush1.bf16.msra.mxu0 0
      %278 = vmatprep.subr.bf16.mxu0 0
      %279 = vmatpush1.bf16.msra.mxu0 0
      %280 = vmatprep.subr.bf16.mxu0 0
      %281 = vmatpush1.bf16.msra.mxu0 0
      %282 = vmatprep.subr.bf16.mxu0 0
      %283 = vmatpush1.bf16.msra.mxu0 0
      %284 = vmatprep.subr.bf16.mxu0 0
      %285 = vmatpush1.bf16.msra.mxu0 0
      %286 = vmatprep.subr.bf16.mxu0 0
      %287 = vmatpush1.bf16.msra.mxu0 0
      %288 = vmatprep.subr.bf16.mxu0 0
      %289 = vmatpush1.bf16.msra.mxu0 0
      %290 = vmatprep.subr.bf16.mxu0 0
      %291 = vmatpush1.bf16.msra.mxu0 0
      %292 = vmatprep.mubr.bf16.mxu0 0
      %293 = vmatmul.mubr.bf16.gmra.mrb[0].mxu0 %v245
      %v294 = vpop.f32.mrb[0].mxu0
      %v295 = vadd.f32 %v231, %v294
      %v296 = vpop.f32.mrb[0].mxu0
      %v297 = vadd.f32 %v231, %v296
      %v298 = vpop.f32.mrb[0].mxu0
      %v299 = vpop.f32.mrb[0].mxu0
      %300 = vdwg.mxu0
      %301 = vmatprep.subr.bf16.mxu0 %v258
      %302 = vmatpush1.bf16.msra.mxu0 %v255
      %303 = vmatprep.subr.bf16.mxu0 0
      %304 = vmatpush1.bf16.msra.mxu0 0
      %305 = vmatprep.subr.bf16.mxu0 0
      %306 = vmatpush1.bf16.msra.mxu0 0
      %307 = vmatprep.subr.bf16.mxu0 0
      %308 = vmatpush1.bf16.msra.mxu0 0
      %309 = vmatprep.subr.bf16.mxu0 0
      %310 = vmatpush1.bf16.msra.mxu0 0
      %311 = vmatprep.subr.bf16.mxu0 0
      %312 = vmatpush1.bf16.msra.mxu0 0
      %313 = vmatprep.subr.bf16.mxu0 0
      %314 = vmatpush1.bf16.msra.mxu0 0
      %315 = vmatprep.subr.bf16.mxu0 0
      %316 = vmatpush1.bf16.msra.mxu0 0
      %317 = vmatprep.subr.bf16.mxu0 0
      %318 = vmatpush1.bf16.msra.mxu0 0
      %319 = vmatprep.subr.bf16.mxu0 0
      %320 = vmatpush1.bf16.msra.mxu0 0
      %321 = vmatprep.subr.bf16.mxu0 0
      %322 = vmatpush1.bf16.msra.mxu0 0
      %323 = vmatprep.subr.bf16.mxu0 0
      %324 = vmatpush1.bf16.msra.mxu0 0
      %325 = vmatprep.subr.bf16.mxu0 0
      %326 = vmatpush1.bf16.msra.mxu0 0
      %327 = vmatprep.subr.bf16.mxu0 0
      %328 = vmatpush1.bf16.msra.mxu0 0
      %329 = vmatprep.subr.bf16.mxu0 0
      %330 = vmatpush1.bf16.msra.mxu0 0
      %331 = vmatprep.subr.bf16.mxu0 0
      %332 = vmatpush1.bf16.msra.mxu0 0
      %333 = vmatprep.mubr.bf16.mxu0 0
      %334 = vmatmul.mubr.bf16.gmra.mrb[0].mxu0 %v245
      %v335 = vpop.f32.mrb[0].mxu0
      %v336 = vadd.f32 %v231, %v335
      %v337 = vpop.f32.mrb[0].mxu0
      %v338 = vadd.f32 %v231, %v337
      %v339 = vpop.f32.mrb[0].mxu0
      %v340 = vpop.f32.mrb[0].mxu0
      %341 = vdwg.mxu0
      %v342 = vld [vmem:[%s215] sm:$0x77]
      %v343 = vld [vmem:[%s215 + $0x8] sm:$0x77]
      %v346 = vcombine.high %v342, %v342
      %v347 = vcombine.high %v343, %v343
      %v350 = vadd.f32 %v295, %v342
      %v351 = vadd.f32 %v297, %v346
      %v352 = vadd.f32 %v336, %v343
      %v353 = vadd.f32 %v338, %v347
      %v358 = vcombine.low %v350, %v351
      %v359 = vcombine.low %v352, %v353
      %362 = vst [vmem:[%s221] sm:$0x77] %v358
      %363 = vst [vmem:[%s221 + $0x8] sm:$0x77] %v359
      %s364 = smul.u32 4, %s15
      %p365 = scmp.lt.s32.totalorder %s364, 15
      %s366 = scalar_select %p365, %s364, 15
      %s367 = smul.addr %s366, 4
      %s368 = scalar_lea.vmem %s4, %s367
      // Predicated region
      $region37: #{lpnet_forward.58} parent=35 // pred_check
        %p369 = pneg %p127
      $region38: #{lpnet_forward.58} parent=35 // pred_check_branch
        %371 = sbr.rel (%p369) target = $region40
      $region39: #{lpnet_forward.58} parent=35 // pred_region
        %s372 = smul.u32 4, %s15
      $region40: #{lpnet_forward.58} parent=35 // pred_fallthru
        _
    $region36: #{lpnet_forward.58} parent=5 // pred_fallthru
      _
    %p373 = scmp.le.s32.totalorder 2, %s10
    // Predicated region
    $region41: #{lpnet_forward.58} parent=5 // pred_check
      %p374 = pneg %p373
    $region42: #{lpnet_forward.58} parent=5 // pred_check_branch
      %376 = sbr.rel (%p374) target = $region44
    $region43: #{lpnet_forward.58} parent=5 // pred_region
      %s377 = ssub.s32 %s10, 2
      // Predicated region
      $region45: #{lpnet_forward.58} parent=43 // pred_check
        %p378 = pneg %p133
      $region46: #{lpnet_forward.58} parent=43 // pred_check_branch
        %380 = sbr.rel (%p378) target = $region48
      $region47: #{lpnet_forward.58} parent=43 // pred_region
        %s381 = smul.u32 4, %s16
        %p382 = scmp.lt.s32.totalorder %s381, 15
        %s383 = scalar_select %p382, %s381, 15
        %s384 = smul.addr %s383, 4
        %s385 = scalar_lea.vmem %s4, %s384
      $region48: #{lpnet_forward.58} parent=43 // pred_fallthru
        _
    $region44: #{lpnet_forward.58} parent=5 // pred_fallthru
      _
  $region6: #{lpnet_forward.58} parent=0 // loop_footer
    %s14 = sadd.s32 1, %s10
  $region7: #{lpnet_forward.58} parent=0 // loop_footer_branch
    %9 = sbr.rel target = $region3
  $region8: #{lpnet_forward.58} parent=0 // loop_exit
    _

// kernel: lpnet_forward.32
$region0: #{lpnet_forward.32}
  #allocation0 [shape = 'u32[]', space=smem, size = 0x4, offset = 0x4, fixed_abs, tag = 'smem constant byte address 0x4 - core index']
  #allocation1 [shape = 'u32[144,128]{1,0:T(1,128)}', space=vmem, size = 0x12000, scoped, tag = 'internal scratch']
  %s0 = inlined_call_operand.vmem [shape: f32[6,20,20], index: 0, kind: input, shape index: {}]
  %s1 = inlined_call_operand.vmem [shape: f32[6,16,16], index: 1, kind: output, shape index: {}]
  %s2 = sld [smem:[#allocation0]]
  $region37: #{lpnet_forward.32} parent=0
    _
  %s4 = ssub.s32 1, %s2
  %s5 = scalar_select 0, %s4, %s2
  loop: start=0, step=1, limit=8
  $region2: #{lpnet_forward.32} parent=0 // loop_pre_header
    _
  $region3: #{lpnet_forward.32} parent=0 // loop_header
    %s7 = sphi 0, %s11
    %p8 = scmp.ge.s32.totalorder %s7, 8
    %s17 = sphi 0, %s19
    %s20 = sphi 0, %s17
    %s21 = sphi 0, %s20
    %s37 = sphi 0, %s21
    %s43 = sphi 0, %s45
    %s46 = sphi 0, %s43
    %s47 = sphi 0, %s46
    %s63 = sphi 0, %s47
  $region4: #{lpnet_forward.32} parent=0 // loop_header_branch
    %10 = sbr.rel (%p8) target = $region8
  $region5: #{lpnet_forward.32} parent=0 // loop_body
    %s12 = ssub.s32 %s7, 1
    %s13 = ssub.s32 %s7, 2
    %s14 = sadd.s32 %s7, 1
    %s15 = ssub.s32 %s7, %s14
    %p16 = scmp.eq.s32.totalorder %s15, 0
    %s18 = sadd.s32 %s17, 1
    %s19 = scalar_select %p16, %s17, %s18
    %p22 = pneg %p16
    %p23 = scmp.eq.s32.totalorder %s7, 5
    %p24 = por %p22, %p23
    %p25 = scmp.ne.s32.totalorder %s17, %s20
    %p26 = scmp.eq.s32.totalorder %s7, 0
    %p27 = por %p25, %p26
    %p28 = scmp.ne.s32.totalorder %s17, %s20
    %p29 = scmp.eq.s32.totalorder %s12, 5
    %p30 = por %p28, %p29
    %p31 = scmp.ne.s32.totalorder %s20, %s21
    %p32 = scmp.eq.s32.totalorder %s12, 0
    %p33 = por %p31, %p32
    %p34 = scmp.ne.s32.totalorder %s20, %s21
    %p35 = scmp.eq.s32.totalorder %s13, 5
    %p36 = por %p34, %p35
    %p38 = scmp.ne.s32.totalorder %s21, %s37
    %p39 = scmp.eq.s32.totalorder %s13, 0
    %p40 = por %p38, %p39
    %s41 = ssub.s32 %s7, %s14
    %p42 = scmp.eq.s32.totalorder %s41, 0
    %s44 = sadd.s32 %s43, 1
    %s45 = scalar_select %p42, %s43, %s44
    %p48 = pneg %p42
    %p49 = scmp.eq.s32.totalorder %s7, 5
    %p50 = por %p48, %p49
    %p51 = scmp.ne.s32.totalorder %s43, %s46
    %p52 = scmp.eq.s32.totalorder %s7, 0
    %p53 = por %p51, %p52
    %p54 = scmp.ne.s32.totalorder %s43, %s46
    %p55 = scmp.eq.s32.totalorder %s12, 5
    %p56 = por %p54, %p55
    %p57 = scmp.ne.s32.totalorder %s46, %s47
    %p58 = scmp.eq.s32.totalorder %s12, 0
    %p59 = por %p57, %p58
    %p60 = scmp.ne.s32.totalorder %s46, %s47
    %p61 = scmp.eq.s32.totalorder %s13, 5
    %p62 = por %p60, %p61
    %p64 = scmp.ne.s32.totalorder %s47, %s63
    %p65 = scmp.eq.s32.totalorder %s13, 0
    %p66 = por %p64, %p65
    %p67 = scmp.le.s32.totalorder 1, %s7
    %p68 = scmp.lt.s32.totalorder %s7, 7
    %p69 = pnand %p67, %p68
    %p70 = pneg %p69
    // Predicated region
    $region9: #{lpnet_forward.32} parent=5 // pred_check
      _
    $region10: #{lpnet_forward.32} parent=5 // pred_check_branch
      %72 = sbr.rel (%p69) target = $region12
    $region11: #{lpnet_forward.32} parent=5 // pred_region
      %s73 = ssub.s32 %s7, 1
    $region12: #{lpnet_forward.32} parent=5 // pred_fallthru
      _
    %p74 = scmp.lt.s32.totalorder %s7, 6
    // Predicated region
    $region13: #{lpnet_forward.32} parent=5 // pred_check
      %p75 = pneg %p74
    $region14: #{lpnet_forward.32} parent=5 // pred_check_branch
      %77 = sbr.rel (%p75) target = $region16
    $region15: #{lpnet_forward.32} parent=5 // pred_region
      // Predicated region
      $region17: #{lpnet_forward.32} parent=15 // pred_check
        %p78 = pneg %p27
      $region18: #{lpnet_forward.32} parent=15 // pred_check_branch
        %80 = sbr.rel (%p78) target = $region20
      $region19: #{lpnet_forward.32} parent=15 // pred_region
        %p81 = scmp.lt.s32.totalorder %s7, 5
        %s82 = scalar_select %p81, %s7, 5
        %s83 = smul.addr %s82, 3
        %s84 = smul.addr %s83, 8
        %s85 = scalar_lea.vmem %s0, %s84
      $region20: #{lpnet_forward.32} parent=15 // pred_fallthru
        _
    $region16: #{lpnet_forward.32} parent=5 // pred_fallthru
      _
    %p86 = scmp.le.s32.totalorder 1, %s7
    %p87 = scmp.lt.s32.totalorder %s7, 7
    %p88 = pnand %p86, %p87
    %p89 = pneg %p88
    // Predicated region
    $region21: #{lpnet_forward.32} parent=5 // pred_check
      _
    $region22: #{lpnet_forward.32} parent=5 // pred_check_branch
      %91 = sbr.rel (%p88) target = $region24
    $region23: #{lpnet_forward.32} parent=5 // pred_region
      %s92 = ssub.s32 %s7, 1
      %p93 = scmp.lt.s32.totalorder %s12, 5
      %s94 = scalar_select %p93, %s12, 5
      %s95 = smul.addr %s94, 3
      %s96 = smul.addr %s95, 8
      %s97 = scalar_lea.vmem %s0, %s96
      %p98 = pneg %p33
      %p99 = pneg %p30
      %p100 = pneg %p59
      %p101 = pneg %p56
      %p102 = scmp.lt.s32.totalorder %s12, 5
      %s103 = scalar_select %p102, %s12, 5
      %s104 = smul.addr %s103, 2
      %s105 = smul.addr %s104, 8
      %s106 = scalar_lea.vmem %s1, %s105
      %p107 = scmp.lt.s32.totalorder %s12, 5
      %s108 = scalar_select %p107, %s12, 5
      %s109 = smul.addr %s108, 3
      %s110 = smul.addr %s109, 8
      %s111 = scalar_lea.vmem %s0, %s110
      %p112 = scmp.lt.s32.totalorder %s12, 5
      %s113 = scalar_select %p112, %s12, 5
      %s114 = smul.addr %s113, 2
      %s115 = smul.addr %s114, 8
      %s116 = scalar_lea.vmem %s1, %s115
      %v117 = vld [vmem:[%s111] sm:$0xff]
      %v118 = vld [vmem:[%s111 + $0x8] sm:$0xff]
      %v119 = vld [vmem:[%s111 + $0x10] sm:$0xf]
      %v120 = vmul.f32 %v117, 0.0625
      %v121 = vmul.f32 %v118, 0.0625
      %v122 = vmul.f32 %v117, 0.25
      %v123 = vmul.f32 %v118, 0.25
      %v124 = vmul.f32 %v119, 0.25
      %vm128 = vcmask 1046528
      %v129 = vrot.slane %v122, 1
      %v130 = vrot.slane %v123, 1
      %v131 = vsel %vm128, %v129, %v130
      %v132 = vrot.slane %v124, 1
      %v133 = vsel %vm128, %v130, %v132
      %v136 = vadd.f32 %v120, %v131
      %v137 = vadd.f32 %v121, %v133
      %v138 = vmul.f32 %v117, 0.375
      %v139 = vmul.f32 %v118, 0.375
      %v140 = vmul.f32 %v119, 0.375
      %vm144 = vcmask 1045504
      %v145 = vrot.slane %v138, 2
      %v146 = vrot.slane %v139, 2
      %v147 = vsel %vm144, %v145, %v146
      %v148 = vrot.slane %v140, 2
      %v149 = vsel %vm144, %v146, %v148
      %v152 = vadd.f32 %v136, %v147
      %v153 = vadd.f32 %v137, %v149
      %vm154 = vcmask 1044480
      %v155 = vrot.slane %v122, 3
      %v156 = vrot.slane %v123, 3
      %v157 = vsel %vm154, %v155, %v156
      %v158 = vrot.slane %v124, 3
      %v159 = vsel %vm154, %v156, %v158
      %v162 = vadd.f32 %v152, %v157
      %v163 = vadd.f32 %v153, %v159
      %v164 = vmul.f32 %v119, 0.0625
      %vm168 = vcmask 1043456
      %v169 = vrot.slane %v120, 4
      %v170 = vrot.slane %v121, 4
      %v171 = vsel %vm168, %v169, %v170
      %v172 = vrot.slane %v164, 4
      %v173 = vsel %vm168, %v170, %v172
      %v176 = vadd.f32 %v162, %v171
      %v177 = vadd.f32 %v163, %v173
      %v178 = vmul.f32 %v176, 0.0625
      %v179 = vmul.f32 %v177, 0.0625
      %v180 = vmul.f32 %v176, 0.25
      %v181 = vmul.f32 %v177, 0.25
      %184 = vrot.lane.b32.xlu0 %v180, 127
      %v185 = vpop.permute.xlu0 %184
      %186 = vrot.lane.b32.xlu0 %v181, 127
      %v187 = vpop.permute.xlu0 %186
      %v190 = vadd.f32 %v178, %v185
      %v191 = vadd.f32 %v179, %v187
      %v192 = vmul.f32 %v176, 0.375
      %v193 = vmul.f32 %v177, 0.375
      %196 = vrot.lane.b32.xlu0 %v192, 126
      %v197 = vpop.permute.xlu0 %196
      %198 = vrot.lane.b32.xlu0 %v193, 126
      %v199 = vpop.permute.xlu0 %198
      %v202 = vadd.f32 %v190, %v197
      %v203 = vadd.f32 %v191, %v199
      %204 = vrot.lane.b32.xlu0 %v180, 125
      %v205 = vpop.permute.xlu0 %204
      %206 = vrot.lane.b32.xlu0 %v181, 125
      %v207 = vpop.permute.xlu0 %206
      %v210 = vadd.f32 %v202, %v205
      %v211 = vadd.f32 %v203, %v207
      %214 = vrot.lane.b32.xlu0 %v178, 124
      %v215 = vpop.permute.xlu0 %214
      %216 = vrot.lane.b32.xlu0 %v179, 124
      %v217 = vpop.permute.xlu0 %216
      %v220 = vadd.f32 %v210, %v215
      %v221 = vadd.f32 %v211, %v217
      %vm222 = vcmask 130048
      %223 = vst.msk [vmem:[%s116] sm:$0xff] %vm222, %v220
      %224 = vst.msk [vmem:[%s116 + $0x8] sm:$0xff] %vm222, %v221
      %p225 = scmp.lt.s32.totalorder %s12, 5
      %s226 = scalar_select %p225, %s12, 5
      %s227 = smul.addr %s226, 2
      %s228 = smul.addr %s227, 8
      %s229 = scalar_lea.vmem %s1, %s228
      // Predicated region
      $region25: #{lpnet_forward.32} parent=23 // pred_check
        %p230 = pneg %p56
      $region26: #{lpnet_forward.32} parent=23 // pred_check_branch
        %232 = sbr.rel (%p230) target = $region28
      $region27: #{lpnet_forward.32} parent=23 // pred_region
        _
      $region28: #{lpnet_forward.32} parent=23 // pred_fallthru
        _
    $region24: #{lpnet_forward.32} parent=5 // pred_fallthru
      _
    %p233 = scmp.le.s32.totalorder 2, %s7
    // Predicated region
    $region29: #{lpnet_forward.32} parent=5 // pred_check
      %p234 = pneg %p233
    $region30: #{lpnet_forward.32} parent=5 // pred_check_branch
      %236 = sbr.rel (%p234) target = $region32
    $region31: #{lpnet_forward.32} parent=5 // pred_region
      %s237 = ssub.s32 %s7, 2
      // Predicated region
      $region33: #{lpnet_forward.32} parent=31 // pred_check
        %p238 = pneg %p62
      $region34: #{lpnet_forward.32} parent=31 // pred_check_branch
        %240 = sbr.rel (%p238) target = $region36
      $region35: #{lpnet_forward.32} parent=31 // pred_region
        %p241 = scmp.lt.s32.totalorder %s13, 5
        %s242 = scalar_select %p241, %s13, 5
        %s243 = smul.addr %s242, 2
        %s244 = smul.addr %s243, 8
        %s245 = scalar_lea.vmem %s1, %s244
      $region36: #{lpnet_forward.32} parent=31 // pred_fallthru
        _
    $region32: #{lpnet_forward.32} parent=5 // pred_fallthru
      _
  $region6: #{lpnet_forward.32} parent=0 // loop_footer
    %s11 = sadd.s32 1, %s7
  $region7: #{lpnet_forward.32} parent=0 // loop_footer_branch
    %6 = sbr.rel target = $region3
  $region8: #{lpnet_forward.32} parent=0 // loop_exit
    _

// kernel: lpnet_forward.33
$region0: #{lpnet_forward.33}
  #allocation0 [shape = 'u32[]', space=smem, size = 0x4, offset = 0x4, fixed_abs, tag = 'smem constant byte address 0x4 - core index']
  #allocation1 [shape = 'u32[144,128]{1,0:T(1,128)}', space=vmem, size = 0x12000, scoped, tag = 'internal scratch']
  %s0 = inlined_call_operand.vmem [shape: f32[6,20,20], index: 0, kind: input, shape index: {}]
  %s1 = inlined_call_operand.vmem [shape: f32[6,16,16], index: 1, kind: input, shape index: {}]
  %s2 = inlined_call_operand.vmem [shape: f32[6,16,16], index: 2, kind: output, shape index: {}]
  %s3 = sld [smem:[#allocation0]]
  $region41: #{lpnet_forward.33} parent=0
    _
  %s5 = ssub.s32 1, %s3
  %s6 = scalar_select 0, %s5, %s3
  loop: start=0, step=1, limit=8
  $region2: #{lpnet_forward.33} parent=0 // loop_pre_header
    _
  $region3: #{lpnet_forward.33} parent=0 // loop_header
    %s8 = sphi 0, %s12
    %p9 = scmp.ge.s32.totalorder %s8, 8
    %s18 = sphi 0, %s20
    %s21 = sphi 0, %s18
    %s22 = sphi 0, %s21
    %s38 = sphi 0, %s22
    %s44 = sphi 0, %s46
    %s47 = sphi 0, %s44
    %s48 = sphi 0, %s47
    %s64 = sphi 0, %s48
    %s70 = sphi 0, %s72
    %s73 = sphi 0, %s70
    %s74 = sphi 0, %s73
    %s90 = sphi 0, %s74
  $region4: #{lpnet_forward.33} parent=0 // loop_header_branch
    %11 = sbr.rel (%p9) target = $region8
  $region5: #{lpnet_forward.33} parent=0 // loop_body
    %s13 = ssub.s32 %s8, 1
    %s14 = ssub.s32 %s8, 2
    %s15 = sadd.s32 %s8, 1
    %s16 = ssub.s32 %s8, %s15
    %p17 = scmp.eq.s32.totalorder %s16, 0
    %s19 = sadd.s32 %s18, 1
    %s20 = scalar_select %p17, %s18, %s19
    %p23 = pneg %p17
    %p24 = scmp.eq.s32.totalorder %s8, 5
    %p25 = por %p23, %p24
    %p26 = scmp.ne.s32.totalorder %s18, %s21
    %p27 = scmp.eq.s32.totalorder %s8, 0
    %p28 = por %p26, %p27
    %p29 = scmp.ne.s32.totalorder %s18, %s21
    %p30 = scmp.eq.s32.totalorder %s13, 5
    %p31 = por %p29, %p30
    %p32 = scmp.ne.s32.totalorder %s21, %s22
    %p33 = scmp.eq.s32.totalorder %s13, 0
    %p34 = por %p32, %p33
    %p35 = scmp.ne.s32.totalorder %s21, %s22
    %p36 = scmp.eq.s32.totalorder %s14, 5
    %p37 = por %p35, %p36
    %p39 = scmp.ne.s32.totalorder %s22, %s38
    %p40 = scmp.eq.s32.totalorder %s14, 0
    %p41 = por %p39, %p40
    %s42 = ssub.s32 %s8, %s15
    %p43 = scmp.eq.s32.totalorder %s42, 0
    %s45 = sadd.s32 %s44, 1
    %s46 = scalar_select %p43, %s44, %s45
    %p49 = pneg %p43
    %p50 = scmp.eq.s32.totalorder %s8, 5
    %p51 = por %p49, %p50
    %p52 = scmp.ne.s32.totalorder %s44, %s47
    %p53 = scmp.eq.s32.totalorder %s8, 0
    %p54 = por %p52, %p53
    %p55 = scmp.ne.s32.totalorder %s44, %s47
    %p56 = scmp.eq.s32.totalorder %s13, 5
    %p57 = por %p55, %p56
    %p58 = scmp.ne.s32.totalorder %s47, %s48
    %p59 = scmp.eq.s32.totalorder %s13, 0
    %p60 = por %p58, %p59
    %p61 = scmp.ne.s32.totalorder %s47, %s48
    %p62 = scmp.eq.s32.totalorder %s14, 5
    %p63 = por %p61, %p62
    %p65 = scmp.ne.s32.totalorder %s48, %s64
    %p66 = scmp.eq.s32.totalorder %s14, 0
    %p67 = por %p65, %p66
    %s68 = ssub.s32 %s8, %s15
    %p69 = scmp.eq.s32.totalorder %s68, 0
    %s71 = sadd.s32 %s70, 1
    %s72 = scalar_select %p69, %s70, %s71
    %p75 = pneg %p69
    %p76 = scmp.eq.s32.totalorder %s8, 5
    %p77 = por %p75, %p76
    %p78 = scmp.ne.s32.totalorder %s70, %s73
    %p79 = scmp.eq.s32.totalorder %s8, 0
    %p80 = por %p78, %p79
    %p81 = scmp.ne.s32.totalorder %s70, %s73
    %p82 = scmp.eq.s32.totalorder %s13, 5
    %p83 = por %p81, %p82
    %p84 = scmp.ne.s32.totalorder %s73, %s74
    %p85 = scmp.eq.s32.totalorder %s13, 0
    %p86 = por %p84, %p85
    %p87 = scmp.ne.s32.totalorder %s73, %s74
    %p88 = scmp.eq.s32.totalorder %s14, 5
    %p89 = por %p87, %p88
    %p91 = scmp.ne.s32.totalorder %s74, %s90
    %p92 = scmp.eq.s32.totalorder %s14, 0
    %p93 = por %p91, %p92
    %p94 = scmp.le.s32.totalorder 1, %s8
    %p95 = scmp.lt.s32.totalorder %s8, 7
    %p96 = pnand %p94, %p95
    %p97 = pneg %p96
    // Predicated region
    $region9: #{lpnet_forward.33} parent=5 // pred_check
      _
    $region10: #{lpnet_forward.33} parent=5 // pred_check_branch
      %99 = sbr.rel (%p96) target = $region12
    $region11: #{lpnet_forward.33} parent=5 // pred_region
      %s100 = ssub.s32 %s8, 1
    $region12: #{lpnet_forward.33} parent=5 // pred_fallthru
      _
    %p101 = scmp.lt.s32.totalorder %s8, 6
    // Predicated region
    $region13: #{lpnet_forward.33} parent=5 // pred_check
      %p102 = pneg %p101
    $region14: #{lpnet_forward.33} parent=5 // pred_check_branch
      %104 = sbr.rel (%p102) target = $region16
    $region15: #{lpnet_forward.33} parent=5 // pred_region
      // Predicated region
      $region17: #{lpnet_forward.33} parent=15 // pred_check
        %p105 = pneg %p28
      $region18: #{lpnet_forward.33} parent=15 // pred_check_branch
        %107 = sbr.rel (%p105) target = $region20
      $region19: #{lpnet_forward.33} parent=15 // pred_region
        %p108 = scmp.lt.s32.totalorder %s8, 5
        %s109 = scalar_select %p108, %s8, 5
        %s110 = smul.addr %s109, 3
        %s111 = smul.addr %s110, 8
        %s112 = scalar_lea.vmem %s0, %s111
      $region20: #{lpnet_forward.33} parent=15 // pred_fallthru
        _
      // Predicated region
      $region21: #{lpnet_forward.33} parent=15 // pred_check
        %p113 = pneg %p54
      $region22: #{lpnet_forward.33} parent=15 // pred_check_branch
        %115 = sbr.rel (%p113) target = $region24
      $region23: #{lpnet_forward.33} parent=15 // pred_region
        %p116 = scmp.lt.s32.totalorder %s8, 5
        %s117 = scalar_select %p116, %s8, 5
        %s118 = smul.addr %s117, 2
        %s119 = smul.addr %s118, 8
        %s120 = scalar_lea.vmem %s1, %s119
      $region24: #{lpnet_forward.33} parent=15 // pred_fallthru
        _
    $region16: #{lpnet_forward.33} parent=5 // pred_fallthru
      _
    %p121 = scmp.le.s32.totalorder 1, %s8
    %p122 = scmp.lt.s32.totalorder %s8, 7
    %p123 = pnand %p121, %p122
    %p124 = pneg %p123
    // Predicated region
    $region25: #{lpnet_forward.33} parent=5 // pred_check
      _
    $region26: #{lpnet_forward.33} parent=5 // pred_check_branch
      %126 = sbr.rel (%p123) target = $region28
    $region27: #{lpnet_forward.33} parent=5 // pred_region
      %s127 = ssub.s32 %s8, 1
      %p128 = scmp.lt.s32.totalorder %s13, 5
      %s129 = scalar_select %p128, %s13, 5
      %s130 = smul.addr %s129, 3
      %s131 = smul.addr %s130, 8
      %s132 = scalar_lea.vmem %s0, %s131
      %p133 = pneg %p34
      %p134 = pneg %p31
      %p135 = scmp.lt.s32.totalorder %s13, 5
      %s136 = scalar_select %p135, %s13, 5
      %s137 = smul.addr %s136, 2
      %s138 = smul.addr %s137, 8
      %s139 = scalar_lea.vmem %s1, %s138
      %p140 = pneg %p60
      %p141 = pneg %p57
      %p142 = pneg %p86
      %p143 = pneg %p83
      %p144 = scmp.lt.s32.totalorder %s13, 5
      %s145 = scalar_select %p144, %s13, 5
      %s146 = smul.addr %s145, 2
      %s147 = smul.addr %s146, 8
      %s148 = scalar_lea.vmem %s2, %s147
      %p149 = scmp.lt.s32.totalorder %s13, 5
      %s150 = scalar_select %p149, %s13, 5
      %s151 = smul.addr %s150, 3
      %s152 = smul.addr %s151, 8
      %s153 = scalar_lea.vmem %s0, %s152
      %p154 = scmp.lt.s32.totalorder %s13, 5
      %s155 = scalar_select %p154, %s13, 5
      %s156 = smul.addr %s155, 2
      %s157 = smul.addr %s156, 8
      %s158 = scalar_lea.vmem %s1, %s157
      %p159 = scmp.lt.s32.totalorder %s13, 5
      %s160 = scalar_select %p159, %s13, 5
      %s161 = smul.addr %s160, 2
      %s162 = smul.addr %s161, 8
      %s163 = scalar_lea.vmem %s2, %s162
      %v164 = vld [vmem:[%s153] sm:$0xff]
      %v165 = vld [vmem:[%s153 + $0x8] sm:$0xff]
      %v166 = vld [vmem:[%s153 + $0x10] sm:$0xf]
      %v167 = vmul.f32 %v164, 0.125
      %v168 = vmul.f32 %v165, 0.125
      %v169 = vmul.f32 %v164, 0.5
      %v170 = vmul.f32 %v165, 0.5
      %v171 = vmul.f32 %v166, 0.5
      %vm175 = vcmask 1046528
      %v176 = vrot.slane %v169, 1
      %v177 = vrot.slane %v170, 1
      %v178 = vsel %vm175, %v176, %v177
      %v179 = vrot.slane %v171, 1
      %v180 = vsel %vm175, %v177, %v179
      %v183 = vadd.f32 %v167, %v178
      %v184 = vadd.f32 %v168, %v180
      %v185 = vmul.f32 %v164, 0.75
      %v186 = vmul.f32 %v165, 0.75
      %v187 = vmul.f32 %v166, 0.75
      %vm191 = vcmask 1045504
      %v192 = vrot.slane %v185, 2
      %v193 = vrot.slane %v186, 2
      %v194 = vsel %vm191, %v192, %v193
      %v195 = vrot.slane %v187, 2
      %v196 = vsel %vm191, %v193, %v195
      %v199 = vadd.f32 %v183, %v194
      %v200 = vadd.f32 %v184, %v196
      %vm201 = vcmask 1044480
      %v202 = vrot.slane %v169, 3
      %v203 = vrot.slane %v170, 3
      %v204 = vsel %vm201, %v202, %v203
      %v205 = vrot.slane %v171, 3
      %v206 = vsel %vm201, %v203, %v205
      %v209 = vadd.f32 %v199, %v204
      %v210 = vadd.f32 %v200, %v206
      %v211 = vmul.f32 %v166, 0.125
      %vm215 = vcmask 1043456
      %v216 = vrot.slane %v167, 4
      %v217 = vrot.slane %v168, 4
      %v218 = vsel %vm215, %v216, %v217
      %v219 = vrot.slane %v211, 4
      %v220 = vsel %vm215, %v217, %v219
      %v223 = vadd.f32 %v209, %v218
      %v224 = vadd.f32 %v210, %v220
      %v225 = vmul.f32 %v223, 0.125
      %v226 = vmul.f32 %v224, 0.125
      %v227 = vmul.f32 %v223, 0.5
      %v228 = vmul.f32 %v224, 0.5
      %231 = vrot.lane.b32.xlu0 %v227, 127
      %v232 = vpop.permute.xlu0 %231
      %233 = vrot.lane.b32.xlu0 %v228, 127
      %v234 = vpop.permute.xlu0 %233
      %v237 = vadd.f32 %v225, %v232
      %v238 = vadd.f32 %v226, %v234
      %v239 = vmul.f32 %v223, 0.75
      %v240 = vmul.f32 %v224, 0.75
      %243 = vrot.lane.b32.xlu0 %v239, 126
      %v244 = vpop.permute.xlu0 %243
      %245 = vrot.lane.b32.xlu0 %v240, 126
      %v246 = vpop.permute.xlu0 %245
      %v249 = vadd.f32 %v237, %v244
      %v250 = vadd.f32 %v238, %v246
      %251 = vrot.lane.b32.xlu0 %v227, 125
      %v252 = vpop.permute.xlu0 %251
      %253 = vrot.lane.b32.xlu0 %v228, 125
      %v254 = vpop.permute.xlu0 %253
      %v257 = vadd.f32 %v249, %v252
      %v258 = vadd.f32 %v250, %v254
      %261 = vrot.lane.b32.xlu0 %v225, 124
      %v262 = vpop.permute.xlu0 %261
      %263 = vrot.lane.b32.xlu0 %v226, 124
      %v264 = vpop.permute.xlu0 %263
      %v267 = vadd.f32 %v257, %v262
      %v268 = vadd.f32 %v258, %v264
      %v269 = vmul.f32 %v267, -1.0
      %v270 = vmul.f32 %v268, -1.0
      %v271 = vld [vmem:[%s158] sm:$0xff]
      %v272 = vld [vmem:[%s158 + $0x8] sm:$0xff]
      %v273 = vadd.f32 %v269, %v271
      %v274 = vadd.f32 %v270, %v272
      %vm275 = vcmask 130048
      %276 = vst.msk [vmem:[%s163] sm:$0xff] %vm275, %v273
      %277 = vst.msk [vmem:[%s163 + $0x8] sm:$0xff] %vm275, %v274
      %p278 = scmp.lt.s32.totalorder %s13, 5
      %s279 = scalar_select %p278, %s13, 5
      %s280 = smul.addr %s279, 2
      %s281 = smul.addr %s280, 8
      %s282 = scalar_lea.vmem %s2, %s281
      // Predicated region
      $region29: #{lpnet_forward.33} parent=27 // pred_check
        %p283 = pneg %p83
      $region30: #{lpnet_forward.33} parent=27 // pred_check_branch
        %285 = sbr.rel (%p283) target = $region32
      $region31: #{lpnet_forward.33} parent=27 // pred_region
        _
      $region32: #{lpnet_forward.33} parent=27 // pred_fallthru
        _
    $region28: #{lpnet_forward.33} parent=5 // pred_fallthru
      _
    %p286 = scmp.le.s32.totalorder 2, %s8
    // Predicated region
    $region33: #{lpnet_forward.33} parent=5 // pred_check
      %p287 = pneg %p286
    $region34: #{lpnet_forward.33} parent=5 // pred_check_branch
      %289 = sbr.rel (%p287) target = $region36
    $region35: #{lpnet_forward.33} parent=5 // pred_region
      %s290 = ssub.s32 %s8, 2
      // Predicated region
      $region37: #{lpnet_forward.33} parent=35 // pred_check
        %p291 = pneg %p89
      $region38: #{lpnet_forward.33} parent=35 // pred_check_branch
        %293 = sbr.rel (%p291) target = $region40
      $region39: #{lpnet_forward.33} parent=35 // pred_region
        %p294 = scmp.lt.s32.totalorder %s14, 5
        %s295 = scalar_select %p294, %s14, 5
        %s296 = smul.addr %s295, 2
        %s297 = smul.addr %s296, 8
        %s298 = scalar_lea.vmem %s2, %s297
      $region40: #{lpnet_forward.33} parent=35 // pred_fallthru
        _
    $region36: #{lpnet_forward.33} parent=5 // pred_fallthru
      _
  $region6: #{lpnet_forward.33} parent=0 // loop_footer
    %s12 = sadd.s32 1, %s8
  $region7: #{lpnet_forward.33} parent=0 // loop_footer_branch
    %7 = sbr.rel target = $region3
  $region8: #{lpnet_forward.33} parent=0 // loop_exit
    _

// kernel: lpnet_forward.42
$region0: #{lpnet_forward.42}
  #allocation0 [shape = 'u32[]', space=smem, size = 0x4, offset = 0x4, fixed_abs, tag = 'smem constant byte address 0x4 - core index']
  #allocation1 [shape = 'u32[144,128]{1,0:T(1,128)}', space=vmem, size = 0x12000, scoped, tag = 'internal scratch']
  %s0 = inlined_call_operand.vmem [shape: bf16[4,27], index: 0, kind: input, shape index: {}]
  %s1 = inlined_call_operand.vmem [shape: bf16[27,512], index: 1, kind: input, shape index: {}]
  %s2 = inlined_call_operand.vmem [shape: f32[4,1], index: 2, kind: input, shape index: {}]
  %s3 = inlined_call_operand.vmem [shape: f32[4,512], index: 3, kind: output, shape index: {}]
  %s4 = sld [smem:[#allocation0]]
  $region22: #{lpnet_forward.42} parent=0
    _
  %s6 = ssub.s32 1, %s4
  %s7 = scalar_select 0, %s6, %s4
  // Predicated region
  $region2: #{lpnet_forward.42} parent=0 // pred_check
    _
  $region3: #{lpnet_forward.42} parent=0 // pred_check_branch
    %9 = sbr.rel (0) target = $region5
  $region4: #{lpnet_forward.42} parent=0 // pred_region
    _
  $region5: #{lpnet_forward.42} parent=0 // pred_fallthru
    _
  // Predicated region
  $region6: #{lpnet_forward.42} parent=0 // pred_check
    _
  $region7: #{lpnet_forward.42} parent=0 // pred_check_branch
    %11 = sbr.rel (0) target = $region9
  $region8: #{lpnet_forward.42} parent=0 // pred_region
    _
  $region9: #{lpnet_forward.42} parent=0 // pred_fallthru
    _
  // Predicated region
  $region10: #{lpnet_forward.42} parent=0 // pred_check
    _
  $region11: #{lpnet_forward.42} parent=0 // pred_check_branch
    %13 = sbr.rel (0) target = $region13
  $region12: #{lpnet_forward.42} parent=0 // pred_region
    _
  $region13: #{lpnet_forward.42} parent=0 // pred_fallthru
    _
  %v15 = vld [vmem:[%s0] sm:$0x3]
  %v16 = vld [vmem:[%s1] sm:$0xff]
  %v17 = vld [vmem:[%s1 + $0x8] sm:$0xff]
  %v18 = vld [vmem:[%s1 + $0x10] sm:$0xff]
  %v19 = vld [vmem:[%s1 + $0x18] sm:$0xff]
  %v20 = vld [vmem:[%s1 + $0x20] sm:$0xff]
  %v21 = vld [vmem:[%s1 + $0x28] sm:$0xff]
  %v22 = vld [vmem:[%s1 + $0x30] sm:$0x33]
  %v23 = vld [vmem:[%s1 + $0x38] sm:$0x33]
  %v24 = vld [vmem:[%s2] sm:$0xf]
  %26 = vset.pattern.permute.xlu0 0
  %27 = vperm.xlu0 %26, %v24
  %v28 = vpop.permute.xlu0 %27
  %v38 = vunpack.c.l.b16 %v16
  %v39 = vunpack.c.h.b16 %v16
  %v40 = vunpack.c.l.b16 %v17
  %v41 = vunpack.c.h.b16 %v17
  %v42 = vunpack.c.l.b16 %v18
  %v43 = vunpack.c.h.b16 %v18
  %v44 = vunpack.c.l.b16 %v19
  %v45 = vunpack.c.h.b16 %v19
  %v46 = vunpack.c.l.b16 %v20
  %v47 = vunpack.c.h.b16 %v20
  %v48 = vunpack.c.l.b16 %v21
  %v49 = vunpack.c.h.b16 %v21
  %v50 = vunpack.c.l.b16 %v22
  %v51 = vunpack.c.h.b16 %v22
  %v52 = vunpack.c.l.b16 %v23
  %v53 = vunpack.c.h.b16 %v23
  %v54 = vpack.c.b16 %v42, %v38
  %v55 = vpack.c.b16 %v43, %v39
  %v56 = vpack.c.b16 %v44, %v40
  %v57 = vpack.c.b16 %v45, %v41
  %v58 = vpack.c.b16 %v50, %v46
  %v59 = vpack.c.b16 %v51, %v47
  %v60 = vpack.c.b16 %v52, %v48
  %v61 = vpack.c.b16 %v53, %v49
  %vm66 = vcmask 220160
  %v68 = vsel %vm66, %v15, 0
  %vm70 = vcmask 1044480
  %vm71 = vcmask 1045504
  %v72 = vsel %vm70, 4294967295, 65535
  %v73 = vsel %vm71, %v72, 0
  %v75 = vand.u32 %v58, %v73
  %v78 = vand.u32 %v59, %v73
  %v81 = vand.u32 %v60, %v73
  %v84 = vand.u32 %v61, %v73
  %86 = vmatprep.subr.bf16.mxu0 %v55
  %87 = vmatpush1.bf16.msra.mxu0 %v54
  %88 = vmatprep.subr.bf16.mxu0 %v78
  %89 = vmatpush1.bf16.msra.mxu0 %v75
  %90 = vmatprep.subr.bf16.mxu0 0
  %91 = vmatpush1.bf16.msra.mxu0 0
  %92 = vmatprep.subr.bf16.mxu0 0
  %93 = vmatpush1.bf16.msra.mxu0 0
  %94 = vmatprep.subr.bf16.mxu0 0
  %95 = vmatpush1.bf16.msra.mxu0 0
  %96 = vmatprep.subr.bf16.mxu0 0
  %97 = vmatpush1.bf16.msra.mxu0 0
  %98 = vmatprep.subr.bf16.mxu0 0
  %99 = vmatpush1.bf16.msra.mxu0 0
  %100 = vmatprep.subr.bf16.mxu0 0
  %101 = vmatpush1.bf16.msra.mxu0 0
  %102 = vmatprep.subr.bf16.mxu0 0
  %103 = vmatpush1.bf16.msra.mxu0 0
  %104 = vmatprep.subr.bf16.mxu0 0
  %105 = vmatpush1.bf16.msra.mxu0 0
  %106 = vmatprep.subr.bf16.mxu0 0
  %107 = vmatpush1.bf16.msra.mxu0 0
  %108 = vmatprep.subr.bf16.mxu0 0
  %109 = vmatpush1.bf16.msra.mxu0 0
  %110 = vmatprep.subr.bf16.mxu0 0
  %111 = vmatpush1.bf16.msra.mxu0 0
  %112 = vmatprep.subr.bf16.mxu0 0
  %113 = vmatpush1.bf16.msra.mxu0 0
  %114 = vmatprep.subr.bf16.mxu0 0
  %115 = vmatpush1.bf16.msra.mxu0 0
  %116 = vmatprep.subr.bf16.mxu0 0
  %117 = vmatpush1.bf16.msra.mxu0 0
  %118 = vmatprep.mubr.bf16.mxu0 0
  %119 = vmatmul.mubr.bf16.gmra.mrb[0].mxu0 %v68
  %v120 = vpop.f32.mrb[0].mxu0
  %v121 = vadd.f32 %v28, %v120
  %v122 = vpop.f32.mrb[0].mxu0
  %v123 = vadd.f32 %v28, %v122
  %v124 = vpop.f32.mrb[0].mxu0
  %v125 = vpop.f32.mrb[0].mxu0
  %126 = vdwg.mxu0
  %127 = vmatprep.subr.bf16.mxu0 %v57
  %128 = vmatpush1.bf16.msra.mxu0 %v56
  %129 = vmatprep.subr.bf16.mxu0 %v84
  %130 = vmatpush1.bf16.msra.mxu0 %v81
  %131 = vmatprep.subr.bf16.mxu0 0
  %132 = vmatpush1.bf16.msra.mxu0 0
  %133 = vmatprep.subr.bf16.mxu0 0
  %134 = vmatpush1.bf16.msra.mxu0 0
  %135 = vmatprep.subr.bf16.mxu0 0
  %136 = vmatpush1.bf16.msra.mxu0 0
  %137 = vmatprep.subr.bf16.mxu0 0
  %138 = vmatpush1.bf16.msra.mxu0 0
  %139 = vmatprep.subr.bf16.mxu0 0
  %140 = vmatpush1.bf16.msra.mxu0 0
  %141 = vmatprep.subr.bf16.mxu0 0
  %142 = vmatpush1.bf16.msra.mxu0 0
  %143 = vmatprep.subr.bf16.mxu0 0
  %144 = vmatpush1.bf16.msra.mxu0 0
  %145 = vmatprep.subr.bf16.mxu0 0
  %146 = vmatpush1.bf16.msra.mxu0 0
  %147 = vmatprep.subr.bf16.mxu0 0
  %148 = vmatpush1.bf16.msra.mxu0 0
  %149 = vmatprep.subr.bf16.mxu0 0
  %150 = vmatpush1.bf16.msra.mxu0 0
  %151 = vmatprep.subr.bf16.mxu0 0
  %152 = vmatpush1.bf16.msra.mxu0 0
  %153 = vmatprep.subr.bf16.mxu0 0
  %154 = vmatpush1.bf16.msra.mxu0 0
  %155 = vmatprep.subr.bf16.mxu0 0
  %156 = vmatpush1.bf16.msra.mxu0 0
  %157 = vmatprep.subr.bf16.mxu0 0
  %158 = vmatpush1.bf16.msra.mxu0 0
  %159 = vmatprep.mubr.bf16.mxu0 0
  %160 = vmatmul.mubr.bf16.gmra.mrb[0].mxu0 %v68
  %v161 = vpop.f32.mrb[0].mxu0
  %v162 = vadd.f32 %v28, %v161
  %v163 = vpop.f32.mrb[0].mxu0
  %v164 = vadd.f32 %v28, %v163
  %v165 = vpop.f32.mrb[0].mxu0
  %v166 = vpop.f32.mrb[0].mxu0
  %167 = vdwg.mxu0
  %vm168 = vcmp.ge.f32.partialorder %v121, 0.0
  %vm169 = vcmp.ge.f32.partialorder %v123, 0.0
  %vm170 = vcmp.ge.f32.partialorder %v162, 0.0
  %vm171 = vcmp.ge.f32.partialorder %v164, 0.0
  %v172 = vmul.f32 %v121, 0.2
  %v173 = vmul.f32 %v123, 0.2
  %v174 = vmul.f32 %v162, 0.2
  %v175 = vmul.f32 %v164, 0.2
  %v176 = vsel %vm168, %v121, %v172
  %v177 = vsel %vm169, %v123, %v173
  %v178 = vsel %vm170, %v162, %v174
  %v179 = vsel %vm171, %v164, %v175
  %v184 = vcombine.low %v176, %v177
  %v185 = vcombine.low %v178, %v179
  %188 = vst [vmem:[%s3] sm:$0xff] %v184
  %189 = vst [vmem:[%s3 + $0x8] sm:$0xff] %v185
  // Predicated region
  $region14: #{lpnet_forward.42} parent=0 // pred_check
    _
  $region15: #{lpnet_forward.42} parent=0 // pred_check_branch
    %191 = sbr.rel (0) target = $region17
  $region16: #{lpnet_forward.42} parent=0 // pred_region
    _
  $region17: #{lpnet_forward.42} parent=0 // pred_fallthru
    _
  // Predicated region
  $region18: #{lpnet_forward.42} parent=0 // pred_check
    _
  $region19: #{lpnet_forward.42} parent=0 // pred_check_branch
    %193 = sbr.rel (0) target = $region21
  $region20: #{lpnet_forward.42} parent=0 // pred_region
    _
  $region21: #{lpnet_forward.42} parent=0 // pred_fallthru
    _

// kernel: lpnet_forward.43
$region0: #{lpnet_forward.43}
  #allocation0 [shape = 'u32[]', space=smem, size = 0x4, offset = 0x4, fixed_abs, tag = 'smem constant byte address 0x4 - core index']
  #allocation1 [shape = 'u32[144,128]{1,0:T(1,128)}', space=vmem, size = 0x12000, scoped, tag = 'internal scratch']
  %s0 = inlined_call_operand.vmem [shape: bf16[4,36], index: 0, kind: input, shape index: {}]
  %s1 = inlined_call_operand.vmem [shape: bf16[36,512], index: 1, kind: input, shape index: {}]
  %s2 = inlined_call_operand.vmem [shape: f32[4,1], index: 2, kind: input, shape index: {}]
  %s3 = inlined_call_operand.vmem [shape: f32[4,512], index: 3, kind: output, shape index: {}]
  %s4 = sld [smem:[#allocation0]]
  $region22: #{lpnet_forward.43} parent=0
    _
  %s6 = ssub.s32 1, %s4
  %s7 = scalar_select 0, %s6, %s4
  // Predicated region
  $region2: #{lpnet_forward.43} parent=0 // pred_check
    _
  $region3: #{lpnet_forward.43} parent=0 // pred_check_branch
    %9 = sbr.rel (0) target = $region5
  $region4: #{lpnet_forward.43} parent=0 // pred_region
    _
  $region5: #{lpnet_forward.43} parent=0 // pred_fallthru
    _
  // Predicated region
  $region6: #{lpnet_forward.43} parent=0 // pred_check
    _
  $region7: #{lpnet_forward.43} parent=0 // pred_check_branch
    %11 = sbr.rel (0) target = $region9
  $region8: #{lpnet_forward.43} parent=0 // pred_region
    _
  $region9: #{lpnet_forward.43} parent=0 // pred_fallthru
    _
  // Predicated region
  $region10: #{lpnet_forward.43} parent=0 // pred_check
    _
  $region11: #{lpnet_forward.43} parent=0 // pred_check_branch
    %13 = sbr.rel (0) target = $region13
  $region12: #{lpnet_forward.43} parent=0 // pred_region
    _
  $region13: #{lpnet_forward.43} parent=0 // pred_fallthru
    _
  %v15 = vld [vmem:[%s0] sm:$0x3]
  %v16 = vld [vmem:[%s1] sm:$0xff]
  %v17 = vld [vmem:[%s1 + $0x8] sm:$0xff]
  %v18 = vld [vmem:[%s1 + $0x10] sm:$0xff]
  %v19 = vld [vmem:[%s1 + $0x18] sm:$0xff]
  %v20 = vld [vmem:[%s1 + $0x20] sm:$0xff]
  %v21 = vld [vmem:[%s1 + $0x28] sm:$0xff]
  %v22 = vld [vmem:[%s1 + $0x30] sm:$0xff]
  %v23 = vld [vmem:[%s1 + $0x38] sm:$0xff]
  %v24 = vld [vmem:[%s1 + $0x40] sm:$0x33]
  %v25 = vld [vmem:[%s1 + $0x48] sm:$0x33]
  %v26 = vld [vmem:[%s2] sm:$0xf]
  %28 = vset.pattern.permute.xlu0 0
  %29 = vperm.xlu0 %28, %v26
  %v30 = vpop.permute.xlu0 %29
  %v42 = vunpack.c.l.b16 %v16
  %v43 = vunpack.c.h.b16 %v16
  %v44 = vunpack.c.l.b16 %v17
  %v45 = vunpack.c.h.b16 %v17
  %v46 = vunpack.c.l.b16 %v18
  %v47 = vunpack.c.h.b16 %v18
  %v48 = vunpack.c.l.b16 %v19
  %v49 = vunpack.c.h.b16 %v19
  %v50 = vunpack.c.l.b16 %v20
  %v51 = vunpack.c.h.b16 %v20
  %v52 = vunpack.c.l.b16 %v21
  %v53 = vunpack.c.h.b16 %v21
  %v54 = vunpack.c.l.b16 %v22
  %v55 = vunpack.c.h.b16 %v22
  %v56 = vunpack.c.l.b16 %v23
  %v57 = vunpack.c.h.b16 %v23
  %v58 = vunpack.c.l.b16 %v24
  %v59 = vunpack.c.h.b16 %v24
  %v60 = vunpack.c.l.b16 %v25
  %v61 = vunpack.c.h.b16 %v25
  %v62 = vpack.c.b16 %v46, %v42
  %v63 = vpack.c.b16 %v47, %v43
  %v64 = vpack.c.b16 %v48, %v44
  %v65 = vpack.c.b16 %v49, %v45
  %v66 = vpack.c.b16 %v54, %v50
  %v67 = vpack.c.b16 %v55, %v51
  %v68 = vpack.c.b16 %v56, %v52
  %v69 = vpack.c.b16 %v57, %v53
  %v70 = vpack.c.b16 %v58, %v58
  %v71 = vpack.c.b16 %v59, %v59
  %v72 = vpack.c.b16 %v60, %v60
  %v73 = vpack.c.b16 %v61, %v61
  %vm82 = vcmask 293888
  %v84 = vsel %vm82, %v15, 0
  %vm86 = vcmask 1041408
  %v88 = vsel %vm86, %v70, 0
  %v91 = vsel %vm86, %v71, 0
  %v94 = vsel %vm86, %v72, 0
  %v97 = vsel %vm86, %v73, 0
  %99 = vmatprep.subr.bf16.mxu0 %v63
  %100 = vmatpush1.bf16.msra.mxu0 %v62
  %101 = vmatprep.subr.bf16.mxu0 %v67
  %102 = vmatpush1.bf16.msra.mxu0 %v66
  %103 = vmatprep.subr.bf16.mxu0 %v91
  %104 = vmatpush1.bf16.msra.mxu0 %v88
  %105 = vmatprep.subr.bf16.mxu0 0
  %106 = vmatpush1.bf16.msra.mxu0 0
  %107 = vmatprep.subr.bf16.mxu0 0
  %108 = vmatpush1.bf16.msra.mxu0 0
  %109 = vmatprep.subr.bf16.mxu0 0
  %110 = vmatpush1.bf16.msra.mxu0 0
  %111 = vmatprep.subr.bf16.mxu0 0
  %112 = vmatpush1.bf16.msra.mxu0 0
  %113 = vmatprep.subr.bf16.mxu0 0
  %114 = vmatpush1.bf16.msra.mxu0 0
  %115 = vmatprep.subr.bf16.mxu0 0
  %116 = vmatpush1.bf16.msra.mxu0 0
  %117 = vmatprep.subr.bf16.mxu0 0
  %118 = vmatpush1.bf16.msra.mxu0 0
  %119 = vmatprep.subr.bf16.mxu0 0
  %120 = vmatpush1.bf16.msra.mxu0 0
  %121 = vmatprep.subr.bf16.mxu0 0
  %122 = vmatpush1.bf16.msra.mxu0 0
  %123 = vmatprep.subr.bf16.mxu0 0
  %124 = vmatpush1.bf16.msra.mxu0 0
  %125 = vmatprep.subr.bf16.mxu0 0
  %126 = vmatpush1.bf16.msra.mxu0 0
  %127 = vmatprep.subr.bf16.mxu0 0
  %128 = vmatpush1.bf16.msra.mxu0 0
  %129 = vmatprep.subr.bf16.mxu0 0
  %130 = vmatpush1.bf16.msra.mxu0 0
  %131 = vmatprep.mubr.bf16.mxu0 0
  %132 = vmatmul.mubr.bf16.gmra.mrb[0].mxu0 %v84
  %v133 = vpop.f32.mrb[0].mxu0
  %v134 = vadd.f32 %v30, %v133
  %v135 = vpop.f32.mrb[0].mxu0
  %v136 = vadd.f32 %v30, %v135
  %v137 = vpop.f32.mrb[0].mxu0
  %v138 = vpop.f32.mrb[0].mxu0
  %139 = vdwg.mxu0
  %140 = vmatprep.subr.bf16.mxu0 %v65
  %141 = vmatpush1.bf16.msra.mxu0 %v64
  %142 = vmatprep.subr.bf16.mxu0 %v69
  %143 = vmatpush1.bf16.msra.mxu0 %v68
  %144 = vmatprep.subr.bf16.mxu0 %v97
  %145 = vmatpush1.bf16.msra.mxu0 %v94
  %146 = vmatprep.subr.bf16.mxu0 0
  %147 = vmatpush1.bf16.msra.mxu0 0
  %148 = vmatprep.subr.bf16.mxu0 0
  %149 = vmatpush1.bf16.msra.mxu0 0
  %150 = vmatprep.subr.bf16.mxu0 0
  %151 = vmatpush1.bf16.msra.mxu0 0
  %152 = vmatprep.subr.bf16.mxu0 0
  %153 = vmatpush1.bf16.msra.mxu0 0
  %154 = vmatprep.subr.bf16.mxu0 0
  %155 = vmatpush1.bf16.msra.mxu0 0
  %156 = vmatprep.subr.bf16.mxu0 0
  %157 = vmatpush1.bf16.msra.mxu0 0
  %158 = vmatprep.subr.bf16.mxu0 0
  %159 = vmatpush1.bf16.msra.mxu0 0
  %160 = vmatprep.subr.bf16.mxu0 0
  %161 = vmatpush1.bf16.msra.mxu0 0
  %162 = vmatprep.subr.bf16.mxu0 0
  %163 = vmatpush1.bf16.msra.mxu0 0
  %164 = vmatprep.subr.bf16.mxu0 0
  %165 = vmatpush1.bf16.msra.mxu0 0
  %166 = vmatprep.subr.bf16.mxu0 0
  %167 = vmatpush1.bf16.msra.mxu0 0
  %168 = vmatprep.subr.bf16.mxu0 0
  %169 = vmatpush1.bf16.msra.mxu0 0
  %170 = vmatprep.subr.bf16.mxu0 0
  %171 = vmatpush1.bf16.msra.mxu0 0
  %172 = vmatprep.mubr.bf16.mxu0 0
  %173 = vmatmul.mubr.bf16.gmra.mrb[0].mxu0 %v84
  %v174 = vpop.f32.mrb[0].mxu0
  %v175 = vadd.f32 %v30, %v174
  %v176 = vpop.f32.mrb[0].mxu0
  %v177 = vadd.f32 %v30, %v176
  %v178 = vpop.f32.mrb[0].mxu0
  %v179 = vpop.f32.mrb[0].mxu0
  %180 = vdwg.mxu0
  %vm181 = vcmp.ge.f32.partialorder %v134, 0.0
  %vm182 = vcmp.ge.f32.partialorder %v136, 0.0
  %vm183 = vcmp.ge.f32.partialorder %v175, 0.0
  %vm184 = vcmp.ge.f32.partialorder %v177, 0.0
  %v185 = vmul.f32 %v134, 0.2
  %v186 = vmul.f32 %v136, 0.2
  %v187 = vmul.f32 %v175, 0.2
  %v188 = vmul.f32 %v177, 0.2
  %v189 = vsel %vm181, %v134, %v185
  %v190 = vsel %vm182, %v136, %v186
  %v191 = vsel %vm183, %v175, %v187
  %v192 = vsel %vm184, %v177, %v188
  %v197 = vcombine.low %v189, %v190
  %v198 = vcombine.low %v191, %v192
  %201 = vst [vmem:[%s3] sm:$0xff] %v197
  %202 = vst [vmem:[%s3 + $0x8] sm:$0xff] %v198
  // Predicated region
  $region14: #{lpnet_forward.43} parent=0 // pred_check
    _
  $region15: #{lpnet_forward.43} parent=0 // pred_check_branch
    %204 = sbr.rel (0) target = $region17
  $region16: #{lpnet_forward.43} parent=0 // pred_region
    _
  $region17: #{lpnet_forward.43} parent=0 // pred_fallthru
    _
  // Predicated region
  $region18: #{lpnet_forward.43} parent=0 // pred_check
    _
  $region19: #{lpnet_forward.43} parent=0 // pred_check_branch
    %206 = sbr.rel (0) target = $region21
  $region20: #{lpnet_forward.43} parent=0 // pred_region
    _
  $region21: #{lpnet_forward.43} parent=0 // pred_fallthru
    _

// kernel: lpnet_forward.44
$region0: #{lpnet_forward.44}
  #allocation0 [shape = 'u32[]', space=smem, size = 0x4, offset = 0x4, fixed_abs, tag = 'smem constant byte address 0x4 - core index']
  #allocation1 [shape = 'u32[144,128]{1,0:T(1,128)}', space=vmem, size = 0x12000, scoped, tag = 'internal scratch']
  %s0 = inlined_call_operand.vmem [shape: bf16[4,4], index: 0, kind: input, shape index: {}]
  %s1 = inlined_call_operand.vmem [shape: bf16[4,512], index: 1, kind: input, shape index: {}]
  %s2 = inlined_call_operand.vmem [shape: f32[4,1], index: 2, kind: input, shape index: {}]
  %s3 = inlined_call_operand.vmem [shape: f32[4,512], index: 3, kind: output, shape index: {}]
  %s4 = sld [smem:[#allocation0]]
  $region22: #{lpnet_forward.44} parent=0
    _
  %s6 = ssub.s32 1, %s4
  %s7 = scalar_select 0, %s6, %s4
  // Predicated region
  $region2: #{lpnet_forward.44} parent=0 // pred_check
    _
  $region3: #{lpnet_forward.44} parent=0 // pred_check_branch
    %9 = sbr.rel (0) target = $region5
  $region4: #{lpnet_forward.44} parent=0 // pred_region
    _
  $region5: #{lpnet_forward.44} parent=0 // pred_fallthru
    _
  // Predicated region
  $region6: #{lpnet_forward.44} parent=0 // pred_check
    _
  $region7: #{lpnet_forward.44} parent=0 // pred_check_branch
    %11 = sbr.rel (0) target = $region9
  $region8: #{lpnet_forward.44} parent=0 // pred_region
    _
  $region9: #{lpnet_forward.44} parent=0 // pred_fallthru
    _
  // Predicated region
  $region10: #{lpnet_forward.44} parent=0 // pred_check
    _
  $region11: #{lpnet_forward.44} parent=0 // pred_check_branch
    %13 = sbr.rel (0) target = $region13
  $region12: #{lpnet_forward.44} parent=0 // pred_region
    _
  $region13: #{lpnet_forward.44} parent=0 // pred_fallthru
    _
  %v15 = vld [vmem:[%s0] sm:$0x3]
  %v16 = vld [vmem:[%s1] sm:$0xff]
  %v17 = vld [vmem:[%s2] sm:$0xf]
  %19 = vset.pattern.permute.xlu0 0
  %20 = vperm.xlu0 %19, %v17
  %v21 = vpop.permute.xlu0 %20
  %v24 = vcombine.high %v16, %v16
  %v26 = vunpack.c.l.s4 1983009808
  %v27 = vunpack.c.0.s8 %v26
  %v28 = vlaneseq
  %v29 = vshrl.u32 %v28, 7
  %v30 = vsub.s32 %v27, %v29
  %v31 = vrot.slane %v16, %v30
  %v33 = vunpack.c.l.s4 1983009808
  %v34 = vunpack.c.0.s8 %v33
  %v35 = vlaneseq
  %v36 = vshrl.u32 %v35, 7
  %v37 = vsub.s32 %v34, %v36
  %v38 = vrot.slane %v24, %v37
  %v39 = vcombine.high %v31, %v31
  %v40 = vcombine.high %v38, %v38
  %vm41 = vcmask 31744
  %v43 = vsel %vm41, %v15, 0
  %vm45 = vcmask 1041408
  %v47 = vsel %vm45, %v31, 0
  %v50 = vsel %vm45, %v39, 0
  %v53 = vsel %vm45, %v38, 0
  %v56 = vsel %vm45, %v40, 0
  %58 = vmatprep.subr.bf16.mxu0 %v50
  %59 = vmatpush1.bf16.msra.mxu0 %v47
  %60 = vmatprep.subr.bf16.mxu0 0
  %61 = vmatpush1.bf16.msra.mxu0 0
  %62 = vmatprep.subr.bf16.mxu0 0
  %63 = vmatpush1.bf16.msra.mxu0 0
  %64 = vmatprep.subr.bf16.mxu0 0
  %65 = vmatpush1.bf16.msra.mxu0 0
  %66 = vmatprep.subr.bf16.mxu0 0
  %67 = vmatpush1.bf16.msra.mxu0 0
  %68 = vmatprep.subr.bf16.mxu0 0
  %69 = vmatpush1.bf16.msra.mxu0 0
  %70 = vmatprep.subr.bf16.mxu0 0
  %71 = vmatpush1.bf16.msra.mxu0 0
  %72 = vmatprep.subr.bf16.mxu0 0
  %73 = vmatpush1.bf16.msra.mxu0 0
  %74 = vmatprep.subr.bf16.mxu0 0
  %75 = vmatpush1.bf16.msra.mxu0 0
  %76 = vmatprep.subr.bf16.mxu0 0
  %77 = vmatpush1.bf16.msra.mxu0 0
  %78 = vmatprep.subr.bf16.mxu0 0
  %79 = vmatpush1.bf16.msra.mxu0 0
  %80 = vmatprep.subr.bf16.mxu0 0
  %81 = vmatpush1.bf16.msra.mxu0 0
  %82 = vmatprep.subr.bf16.mxu0 0
  %83 = vmatpush1.bf16.msra.mxu0 0
  %84 = vmatprep.subr.bf16.mxu0 0
  %85 = vmatpush1.bf16.msra.mxu0 0
  %86 = vmatprep.subr.bf16.mxu0 0
  %87 = vmatpush1.bf16.msra.mxu0 0
  %88 = vmatprep.subr.bf16.mxu0 0
  %89 = vmatpush1.bf16.msra.mxu0 0
  %90 = vmatprep.mubr.bf16.mxu0 0
  %91 = vmatmul.mubr.bf16.gmra.mrb[0].mxu0 %v43
  %v92 = vpop.f32.mrb[0].mxu0
  %v93 = vadd.f32 %v21, %v92
  %v94 = vpop.f32.mrb[0].mxu0
  %v95 = vadd.f32 %v21, %v94
  %v96 = vpop.f32.mrb[0].mxu0
  %v97 = vpop.f32.mrb[0].mxu0
  %98 = vdwg.mxu0
  %99 = vmatprep.subr.bf16.mxu0 %v56
  %100 = vmatpush1.bf16.msra.mxu0 %v53
  %101 = vmatprep.subr.bf16.mxu0 0
  %102 = vmatpush1.bf16.msra.mxu0 0
  %103 = vmatprep.subr.bf16.mxu0 0
  %104 = vmatpush1.bf16.msra.mxu0 0
  %105 = vmatprep.subr.bf16.mxu0 0
  %106 = vmatpush1.bf16.msra.mxu0 0
  %107 = vmatprep.subr.bf16.mxu0 0
  %108 = vmatpush1.bf16.msra.mxu0 0
  %109 = vmatprep.subr.bf16.mxu0 0
  %110 = vmatpush1.bf16.msra.mxu0 0
  %111 = vmatprep.subr.bf16.mxu0 0
  %112 = vmatpush1.bf16.msra.mxu0 0
  %113 = vmatprep.subr.bf16.mxu0 0
  %114 = vmatpush1.bf16.msra.mxu0 0
  %115 = vmatprep.subr.bf16.mxu0 0
  %116 = vmatpush1.bf16.msra.mxu0 0
  %117 = vmatprep.subr.bf16.mxu0 0
  %118 = vmatpush1.bf16.msra.mxu0 0
  %119 = vmatprep.subr.bf16.mxu0 0
  %120 = vmatpush1.bf16.msra.mxu0 0
  %121 = vmatprep.subr.bf16.mxu0 0
  %122 = vmatpush1.bf16.msra.mxu0 0
  %123 = vmatprep.subr.bf16.mxu0 0
  %124 = vmatpush1.bf16.msra.mxu0 0
  %125 = vmatprep.subr.bf16.mxu0 0
  %126 = vmatpush1.bf16.msra.mxu0 0
  %127 = vmatprep.subr.bf16.mxu0 0
  %128 = vmatpush1.bf16.msra.mxu0 0
  %129 = vmatprep.subr.bf16.mxu0 0
  %130 = vmatpush1.bf16.msra.mxu0 0
  %131 = vmatprep.mubr.bf16.mxu0 0
  %132 = vmatmul.mubr.bf16.gmra.mrb[0].mxu0 %v43
  %v133 = vpop.f32.mrb[0].mxu0
  %v134 = vadd.f32 %v21, %v133
  %v135 = vpop.f32.mrb[0].mxu0
  %v136 = vadd.f32 %v21, %v135
  %v137 = vpop.f32.mrb[0].mxu0
  %v138 = vpop.f32.mrb[0].mxu0
  %139 = vdwg.mxu0
  %vm140 = vcmp.ge.f32.partialorder %v93, 0.0
  %vm141 = vcmp.ge.f32.partialorder %v95, 0.0
  %vm142 = vcmp.ge.f32.partialorder %v134, 0.0
  %vm143 = vcmp.ge.f32.partialorder %v136, 0.0
  %v144 = vmul.f32 %v93, 0.2
  %v145 = vmul.f32 %v95, 0.2
  %v146 = vmul.f32 %v134, 0.2
  %v147 = vmul.f32 %v136, 0.2
  %v148 = vsel %vm140, %v93, %v144
  %v149 = vsel %vm141, %v95, %v145
  %v150 = vsel %vm142, %v134, %v146
  %v151 = vsel %vm143, %v136, %v147
  %v156 = vcombine.low %v148, %v149
  %v157 = vcombine.low %v150, %v151
  %160 = vst [vmem:[%s3] sm:$0xff] %v156
  %161 = vst [vmem:[%s3 + $0x8] sm:$0xff] %v157
  // Predicated region
  $region14: #{lpnet_forward.44} parent=0 // pred_check
    _
  $region15: #{lpnet_forward.44} parent=0 // pred_check_branch
    %163 = sbr.rel (0) target = $region17
  $region16: #{lpnet_forward.44} parent=0 // pred_region
    _
  $region17: #{lpnet_forward.44} parent=0 // pred_fallthru
    _
  // Predicated region
  $region18: #{lpnet_forward.44} parent=0 // pred_check
    _
  $region19: #{lpnet_forward.44} parent=0 // pred_check_branch
    %165 = sbr.rel (0) target = $region21
  $region20: #{lpnet_forward.44} parent=0 // pred_region
    _
  $region21: #{lpnet_forward.44} parent=0 // pred_fallthru
    _

// kernel: lpnet_forward.45
$region0: #{lpnet_forward.45}
  #allocation0 [shape = 'u32[]', space=smem, size = 0x4, offset = 0x4, fixed_abs, tag = 'smem constant byte address 0x4 - core index']
  #allocation1 [shape = 'u32[144,128]{1,0:T(1,128)}', space=vmem, size = 0x12000, scoped, tag = 'internal scratch']
  %s0 = inlined_call_operand.vmem [shape: bf16[4,36], index: 0, kind: input, shape index: {}]
  %s1 = inlined_call_operand.vmem [shape: bf16[36,512], index: 1, kind: input, shape index: {}]
  %s2 = inlined_call_operand.vmem [shape: f32[4,1], index: 2, kind: input, shape index: {}]
  %s3 = inlined_call_operand.vmem [shape: f32[4,512], index: 3, kind: input, shape index: {}]
  %s4 = inlined_call_operand.vmem [shape: f32[4,512], index: 4, kind: output, shape index: {}]
  %s5 = sld [smem:[#allocation0]]
  $region26: #{lpnet_forward.45} parent=0
    _
  %s7 = ssub.s32 1, %s5
  %s8 = scalar_select 0, %s7, %s5
  // Predicated region
  $region2: #{lpnet_forward.45} parent=0 // pred_check
    _
  $region3: #{lpnet_forward.45} parent=0 // pred_check_branch
    %10 = sbr.rel (0) target = $region5
  $region4: #{lpnet_forward.45} parent=0 // pred_region
    _
  $region5: #{lpnet_forward.45} parent=0 // pred_fallthru
    _
  // Predicated region
  $region6: #{lpnet_forward.45} parent=0 // pred_check
    _
  $region7: #{lpnet_forward.45} parent=0 // pred_check_branch
    %12 = sbr.rel (0) target = $region9
  $region8: #{lpnet_forward.45} parent=0 // pred_region
    _
  $region9: #{lpnet_forward.45} parent=0 // pred_fallthru
    _
  // Predicated region
  $region10: #{lpnet_forward.45} parent=0 // pred_check
    _
  $region11: #{lpnet_forward.45} parent=0 // pred_check_branch
    %14 = sbr.rel (0) target = $region13
  $region12: #{lpnet_forward.45} parent=0 // pred_region
    _
  $region13: #{lpnet_forward.45} parent=0 // pred_fallthru
    _
  // Predicated region
  $region14: #{lpnet_forward.45} parent=0 // pred_check
    _
  $region15: #{lpnet_forward.45} parent=0 // pred_check_branch
    %16 = sbr.rel (0) target = $region17
  $region16: #{lpnet_forward.45} parent=0 // pred_region
    _
  $region17: #{lpnet_forward.45} parent=0 // pred_fallthru
    _
  %v18 = vld [vmem:[%s0] sm:$0x3]
  %v19 = vld [vmem:[%s1] sm:$0xff]
  %v20 = vld [vmem:[%s1 + $0x8] sm:$0xff]
  %v21 = vld [vmem:[%s1 + $0x10] sm:$0xff]
  %v22 = vld [vmem:[%s1 + $0x18] sm:$0xff]
  %v23 = vld [vmem:[%s1 + $0x20] sm:$0xff]
  %v24 = vld [vmem:[%s1 + $0x28] sm:$0xff]
  %v25 = vld [vmem:[%s1 + $0x30] sm:$0xff]
  %v26 = vld [vmem:[%s1 + $0x38] sm:$0xff]
  %v27 = vld [vmem:[%s1 + $0x40] sm:$0x33]
  %v28 = vld [vmem:[%s1 + $0x48] sm:$0x33]
  %v29 = vld [vmem:[%s2] sm:$0xf]
  %31 = vset.pattern.permute.xlu0 0
  %32 = vperm.xlu0 %31, %v29
  %v33 = vpop.permute.xlu0 %32
  %v45 = vunpack.c.l.b16 %v19
  %v46 = vunpack.c.h.b16 %v19
  %v47 = vunpack.c.l.b16 %v20
  %v48 = vunpack.c.h.b16 %v20
  %v49 = vunpack.c.l.b16 %v21
  %v50 = vunpack.c.h.b16 %v21
  %v51 = vunpack.c.l.b16 %v22
  %v52 = vunpack.c.h.b16 %v22
  %v53 = vunpack.c.l.b16 %v23
  %v54 = vunpack.c.h.b16 %v23
  %v55 = vunpack.c.l.b16 %v24
  %v56 = vunpack.c.h.b16 %v24
  %v57 = vunpack.c.l.b16 %v25
  %v58 = vunpack.c.h.b16 %v25
  %v59 = vunpack.c.l.b16 %v26
  %v60 = vunpack.c.h.b16 %v26
  %v61 = vunpack.c.l.b16 %v27
  %v62 = vunpack.c.h.b16 %v27
  %v63 = vunpack.c.l.b16 %v28
  %v64 = vunpack.c.h.b16 %v28
  %v65 = vpack.c.b16 %v49, %v45
  %v66 = vpack.c.b16 %v50, %v46
  %v67 = vpack.c.b16 %v51, %v47
  %v68 = vpack.c.b16 %v52, %v48
  %v69 = vpack.c.b16 %v57, %v53
  %v70 = vpack.c.b16 %v58, %v54
  %v71 = vpack.c.b16 %v59, %v55
  %v72 = vpack.c.b16 %v60, %v56
  %v73 = vpack.c.b16 %v61, %v61
  %v74 = vpack.c.b16 %v62, %v62
  %v75 = vpack.c.b16 %v63, %v63
  %v76 = vpack.c.b16 %v64, %v64
  %vm85 = vcmask 293888
  %v87 = vsel %vm85, %v18, 0
  %vm89 = vcmask 1041408
  %v91 = vsel %vm89, %v73, 0
  %v94 = vsel %vm89, %v74, 0
  %v97 = vsel %vm89, %v75, 0
  %v100 = vsel %vm89, %v76, 0
  %102 = vmatprep.subr.bf16.mxu0 %v66
  %103 = vmatpush1.bf16.msra.mxu0 %v65
  %104 = vmatprep.subr.bf16.mxu0 %v70
  %105 = vmatpush1.bf16.msra.mxu0 %v69
  %106 = vmatprep.subr.bf16.mxu0 %v94
  %107 = vmatpush1.bf16.msra.mxu0 %v91
  %108 = vmatprep.subr.bf16.mxu0 0
  %109 = vmatpush1.bf16.msra.mxu0 0
  %110 = vmatprep.subr.bf16.mxu0 0
  %111 = vmatpush1.bf16.msra.mxu0 0
  %112 = vmatprep.subr.bf16.mxu0 0
  %113 = vmatpush1.bf16.msra.mxu0 0
  %114 = vmatprep.subr.bf16.mxu0 0
  %115 = vmatpush1.bf16.msra.mxu0 0
  %116 = vmatprep.subr.bf16.mxu0 0
  %117 = vmatpush1.bf16.msra.mxu0 0
  %118 = vmatprep.subr.bf16.mxu0 0
  %119 = vmatpush1.bf16.msra.mxu0 0
  %120 = vmatprep.subr.bf16.mxu0 0
  %121 = vmatpush1.bf16.msra.mxu0 0
  %122 = vmatprep.subr.bf16.mxu0 0
  %123 = vmatpush1.bf16.msra.mxu0 0
  %124 = vmatprep.subr.bf16.mxu0 0
  %125 = vmatpush1.bf16.msra.mxu0 0
  %126 = vmatprep.subr.bf16.mxu0 0
  %127 = vmatpush1.bf16.msra.mxu0 0
  %128 = vmatprep.subr.bf16.mxu0 0
  %129 = vmatpush1.bf16.msra.mxu0 0
  %130 = vmatprep.subr.bf16.mxu0 0
  %131 = vmatpush1.bf16.msra.mxu0 0
  %132 = vmatprep.subr.bf16.mxu0 0
  %133 = vmatpush1.bf16.msra.mxu0 0
  %134 = vmatprep.mubr.bf16.mxu0 0
  %135 = vmatmul.mubr.bf16.gmra.mrb[0].mxu0 %v87
  %v136 = vpop.f32.mrb[0].mxu0
  %v137 = vadd.f32 %v33, %v136
  %v138 = vpop.f32.mrb[0].mxu0
  %v139 = vadd.f32 %v33, %v138
  %v140 = vpop.f32.mrb[0].mxu0
  %v141 = vpop.f32.mrb[0].mxu0
  %142 = vdwg.mxu0
  %143 = vmatprep.subr.bf16.mxu0 %v68
  %144 = vmatpush1.bf16.msra.mxu0 %v67
  %145 = vmatprep.subr.bf16.mxu0 %v72
  %146 = vmatpush1.bf16.msra.mxu0 %v71
  %147 = vmatprep.subr.bf16.mxu0 %v100
  %148 = vmatpush1.bf16.msra.mxu0 %v97
  %149 = vmatprep.subr.bf16.mxu0 0
  %150 = vmatpush1.bf16.msra.mxu0 0
  %151 = vmatprep.subr.bf16.mxu0 0
  %152 = vmatpush1.bf16.msra.mxu0 0
  %153 = vmatprep.subr.bf16.mxu0 0
  %154 = vmatpush1.bf16.msra.mxu0 0
  %155 = vmatprep.subr.bf16.mxu0 0
  %156 = vmatpush1.bf16.msra.mxu0 0
  %157 = vmatprep.subr.bf16.mxu0 0
  %158 = vmatpush1.bf16.msra.mxu0 0
  %159 = vmatprep.subr.bf16.mxu0 0
  %160 = vmatpush1.bf16.msra.mxu0 0
  %161 = vmatprep.subr.bf16.mxu0 0
  %162 = vmatpush1.bf16.msra.mxu0 0
  %163 = vmatprep.subr.bf16.mxu0 0
  %164 = vmatpush1.bf16.msra.mxu0 0
  %165 = vmatprep.subr.bf16.mxu0 0
  %166 = vmatpush1.bf16.msra.mxu0 0
  %167 = vmatprep.subr.bf16.mxu0 0
  %168 = vmatpush1.bf16.msra.mxu0 0
  %169 = vmatprep.subr.bf16.mxu0 0
  %170 = vmatpush1.bf16.msra.mxu0 0
  %171 = vmatprep.subr.bf16.mxu0 0
  %172 = vmatpush1.bf16.msra.mxu0 0
  %173 = vmatprep.subr.bf16.mxu0 0
  %174 = vmatpush1.bf16.msra.mxu0 0
  %175 = vmatprep.mubr.bf16.mxu0 0
  %176 = vmatmul.mubr.bf16.gmra.mrb[0].mxu0 %v87
  %v177 = vpop.f32.mrb[0].mxu0
  %v178 = vadd.f32 %v33, %v177
  %v179 = vpop.f32.mrb[0].mxu0
  %v180 = vadd.f32 %v33, %v179
  %v181 = vpop.f32.mrb[0].mxu0
  %v182 = vpop.f32.mrb[0].mxu0
  %183 = vdwg.mxu0
  %vm184 = vcmp.ge.f32.partialorder %v137, 0.0
  %vm185 = vcmp.ge.f32.partialorder %v139, 0.0
  %vm186 = vcmp.ge.f32.partialorder %v178, 0.0
  %vm187 = vcmp.ge.f32.partialorder %v180, 0.0
  %v188 = vmul.f32 %v137, 0.2
  %v189 = vmul.f32 %v139, 0.2
  %v190 = vmul.f32 %v178, 0.2
  %v191 = vmul.f32 %v180, 0.2
  %v192 = vsel %vm184, %v137, %v188
  %v193 = vsel %vm185, %v139, %v189
  %v194 = vsel %vm186, %v178, %v190
  %v195 = vsel %vm187, %v180, %v191
  %v196 = vld [vmem:[%s3] sm:$0xff]
  %v197 = vld [vmem:[%s3 + $0x8] sm:$0xff]
  %v200 = vcombine.high %v196, %v196
  %v201 = vcombine.high %v197, %v197
  %v204 = vadd.f32 %v192, %v196
  %v205 = vadd.f32 %v193, %v200
  %v206 = vadd.f32 %v194, %v197
  %v207 = vadd.f32 %v195, %v201
  %v212 = vcombine.low %v204, %v205
  %v213 = vcombine.low %v206, %v207
  %216 = vst [vmem:[%s4] sm:$0xff] %v212
  %217 = vst [vmem:[%s4 + $0x8] sm:$0xff] %v213
  // Predicated region
  $region18: #{lpnet_forward.45} parent=0 // pred_check
    _
  $region19: #{lpnet_forward.45} parent=0 // pred_check_branch
    %219 = sbr.rel (0) target = $region21
  $region20: #{lpnet_forward.45} parent=0 // pred_region
    _
  $region21: #{lpnet_forward.45} parent=0 // pred_fallthru
    _
  // Predicated region
  $region22: #{lpnet_forward.45} parent=0 // pred_check
    _
  $region23: #{lpnet_forward.45} parent=0 // pred_check_branch
    %221 = sbr.rel (0) target = $region25
  $region24: #{lpnet_forward.45} parent=0 // pred_region
    _
  $region25: #{lpnet_forward.45} parent=0 // pred_fallthru
    _

// kernel: lpnet_forward.49
$region0: #{lpnet_forward.49}
  #allocation0 [shape = 'u32[]', space=smem, size = 0x4, offset = 0x4, fixed_abs, tag = 'smem constant byte address 0x4 - core index']
  #allocation1 [shape = 'u32[144,128]{1,0:T(1,128)}', space=vmem, size = 0x12000, scoped, tag = 'internal scratch']
  %s0 = inlined_call_operand.vmem [shape: bf16[3,4], index: 0, kind: input, shape index: {}]
  %s1 = inlined_call_operand.vmem [shape: bf16[4,512], index: 1, kind: input, shape index: {}]
  %s2 = inlined_call_operand.vmem [shape: f32[3,1], index: 2, kind: input, shape index: {}]
  %s3 = inlined_call_operand.vmem [shape: f32[3,512], index: 3, kind: input, shape index: {}]
  %s4 = inlined_call_operand.vmem [shape: f32[3,512], index: 4, kind: output, shape index: {}]
  %s5 = sld [smem:[#allocation0]]
  $region26: #{lpnet_forward.49} parent=0
    _
  %s7 = ssub.s32 1, %s5
  %s8 = scalar_select 0, %s7, %s5
  // Predicated region
  $region2: #{lpnet_forward.49} parent=0 // pred_check
    _
  $region3: #{lpnet_forward.49} parent=0 // pred_check_branch
    %10 = sbr.rel (0) target = $region5
  $region4: #{lpnet_forward.49} parent=0 // pred_region
    _
  $region5: #{lpnet_forward.49} parent=0 // pred_fallthru
    _
  // Predicated region
  $region6: #{lpnet_forward.49} parent=0 // pred_check
    _
  $region7: #{lpnet_forward.49} parent=0 // pred_check_branch
    %12 = sbr.rel (0) target = $region9
  $region8: #{lpnet_forward.49} parent=0 // pred_region
    _
  $region9: #{lpnet_forward.49} parent=0 // pred_fallthru
    _
  // Predicated region
  $region10: #{lpnet_forward.49} parent=0 // pred_check
    _
  $region11: #{lpnet_forward.49} parent=0 // pred_check_branch
    %14 = sbr.rel (0) target = $region13
  $region12: #{lpnet_forward.49} parent=0 // pred_region
    _
  $region13: #{lpnet_forward.49} parent=0 // pred_fallthru
    _
  // Predicated region
  $region14: #{lpnet_forward.49} parent=0 // pred_check
    _
  $region15: #{lpnet_forward.49} parent=0 // pred_check_branch
    %16 = sbr.rel (0) target = $region17
  $region16: #{lpnet_forward.49} parent=0 // pred_region
    _
  $region17: #{lpnet_forward.49} parent=0 // pred_fallthru
    _
  %v18 = vld [vmem:[%s0] sm:$0x3]
  %v19 = vld [vmem:[%s1] sm:$0xff]
  %v20 = vld [vmem:[%s2] sm:$0x7]
  %22 = vset.pattern.permute.xlu0 0
  %23 = vperm.xlu0 %22, %v20
  %v24 = vpop.permute.xlu0 %23
  %v27 = vcombine.high %v19, %v19
  %v29 = vunpack.c.l.s4 1983009808
  %v30 = vunpack.c.0.s8 %v29
  %v31 = vlaneseq
  %v32 = vshrl.u32 %v31, 7
  %v33 = vsub.s32 %v30, %v32
  %v34 = vrot.slane %v19, %v33
  %v36 = vunpack.c.l.s4 1983009808
  %v37 = vunpack.c.0.s8 %v36
  %v38 = vlaneseq
  %v39 = vshrl.u32 %v38, 7
  %v40 = vsub.s32 %v37, %v39
  %v41 = vrot.slane %v27, %v40
  %v42 = vcombine.high %v34, %v34
  %v43 = vcombine.high %v41, %v41
  %vm44 = vcmask 31744
  %v46 = vsel %vm44, %v18, 0
  %vm48 = vcmask 1041408
  %v50 = vsel %vm48, %v34, 0
  %v53 = vsel %vm48, %v42, 0
  %v56 = vsel %vm48, %v41, 0
  %v59 = vsel %vm48, %v43, 0
  %61 = vmatprep.subr.bf16.mxu0 %v53
  %62 = vmatpush1.bf16.msra.mxu0 %v50
  %63 = vmatprep.subr.bf16.mxu0 0
  %64 = vmatpush1.bf16.msra.mxu0 0
  %65 = vmatprep.subr.bf16.mxu0 0
  %66 = vmatpush1.bf16.msra.mxu0 0
  %67 = vmatprep.subr.bf16.mxu0 0
  %68 = vmatpush1.bf16.msra.mxu0 0
  %69 = vmatprep.subr.bf16.mxu0 0
  %70 = vmatpush1.bf16.msra.mxu0 0
  %71 = vmatprep.subr.bf16.mxu0 0
  %72 = vmatpush1.bf16.msra.mxu0 0
  %73 = vmatprep.subr.bf16.mxu0 0
  %74 = vmatpush1.bf16.msra.mxu0 0
  %75 = vmatprep.subr.bf16.mxu0 0
  %76 = vmatpush1.bf16.msra.mxu0 0
  %77 = vmatprep.subr.bf16.mxu0 0
  %78 = vmatpush1.bf16.msra.mxu0 0
  %79 = vmatprep.subr.bf16.mxu0 0
  %80 = vmatpush1.bf16.msra.mxu0 0
  %81 = vmatprep.subr.bf16.mxu0 0
  %82 = vmatpush1.bf16.msra.mxu0 0
  %83 = vmatprep.subr.bf16.mxu0 0
  %84 = vmatpush1.bf16.msra.mxu0 0
  %85 = vmatprep.subr.bf16.mxu0 0
  %86 = vmatpush1.bf16.msra.mxu0 0
  %87 = vmatprep.subr.bf16.mxu0 0
  %88 = vmatpush1.bf16.msra.mxu0 0
  %89 = vmatprep.subr.bf16.mxu0 0
  %90 = vmatpush1.bf16.msra.mxu0 0
  %91 = vmatprep.subr.bf16.mxu0 0
  %92 = vmatpush1.bf16.msra.mxu0 0
  %93 = vmatprep.mubr.bf16.mxu0 0
  %94 = vmatmul.mubr.bf16.gmra.mrb[0].mxu0 %v46
  %v95 = vpop.f32.mrb[0].mxu0
  %v96 = vadd.f32 %v24, %v95
  %v97 = vpop.f32.mrb[0].mxu0
  %v98 = vadd.f32 %v24, %v97
  %v99 = vpop.f32.mrb[0].mxu0
  %v100 = vpop.f32.mrb[0].mxu0
  %101 = vdwg.mxu0
  %102 = vmatprep.subr.bf16.mxu0 %v59
  %103 = vmatpush1.bf16.msra.mxu0 %v56
  %104 = vmatprep.subr.bf16.mxu0 0
  %105 = vmatpush1.bf16.msra.mxu0 0
  %106 = vmatprep.subr.bf16.mxu0 0
  %107 = vmatpush1.bf16.msra.mxu0 0
  %108 = vmatprep.subr.bf16.mxu0 0
  %109 = vmatpush1.bf16.msra.mxu0 0
  %110 = vmatprep.subr.bf16.mxu0 0
  %111 = vmatpush1.bf16.msra.mxu0 0
  %112 = vmatprep.subr.bf16.mxu0 0
  %113 = vmatpush1.bf16.msra.mxu0 0
  %114 = vmatprep.subr.bf16.mxu0 0
  %115 = vmatpush1.bf16.msra.mxu0 0
  %116 = vmatprep.subr.bf16.mxu0 0
  %117 = vmatpush1.bf16.msra.mxu0 0
  %118 = vmatprep.subr.bf16.mxu0 0
  %119 = vmatpush1.bf16.msra.mxu0 0
  %120 = vmatprep.subr.bf16.mxu0 0
  %121 = vmatpush1.bf16.msra.mxu0 0
  %122 = vmatprep.subr.bf16.mxu0 0
  %123 = vmatpush1.bf16.msra.mxu0 0
  %124 = vmatprep.subr.bf16.mxu0 0
  %125 = vmatpush1.bf16.msra.mxu0 0
  %126 = vmatprep.subr.bf16.mxu0 0
  %127 = vmatpush1.bf16.msra.mxu0 0
  %128 = vmatprep.subr.bf16.mxu0 0
  %129 = vmatpush1.bf16.msra.mxu0 0
  %130 = vmatprep.subr.bf16.mxu0 0
  %131 = vmatpush1.bf16.msra.mxu0 0
  %132 = vmatprep.subr.bf16.mxu0 0
  %133 = vmatpush1.bf16.msra.mxu0 0
  %134 = vmatprep.mubr.bf16.mxu0 0
  %135 = vmatmul.mubr.bf16.gmra.mrb[0].mxu0 %v46
  %v136 = vpop.f32.mrb[0].mxu0
  %v137 = vadd.f32 %v24, %v136
  %v138 = vpop.f32.mrb[0].mxu0
  %v139 = vadd.f32 %v24, %v138
  %v140 = vpop.f32.mrb[0].mxu0
  %v141 = vpop.f32.mrb[0].mxu0
  %142 = vdwg.mxu0
  %v143 = vld [vmem:[%s3] sm:$0x77]
  %v144 = vld [vmem:[%s3 + $0x8] sm:$0x77]
  %v147 = vcombine.high %v143, %v143
  %v148 = vcombine.high %v144, %v144
  %v151 = vadd.f32 %v96, %v143
  %v152 = vadd.f32 %v98, %v147
  %v153 = vadd.f32 %v137, %v144
  %v154 = vadd.f32 %v139, %v148
  %v159 = vcombine.low %v151, %v152
  %v160 = vcombine.low %v153, %v154
  %163 = vst [vmem:[%s4] sm:$0x77] %v159
  %164 = vst [vmem:[%s4 + $0x8] sm:$0x77] %v160
  // Predicated region
  $region18: #{lpnet_forward.49} parent=0 // pred_check
    _
  $region19: #{lpnet_forward.49} parent=0 // pred_check_branch
    %166 = sbr.rel (0) target = $region21
  $region20: #{lpnet_forward.49} parent=0 // pred_region
    _
  $region21: #{lpnet_forward.49} parent=0 // pred_fallthru
    _
  // Predicated region
  $region22: #{lpnet_forward.49} parent=0 // pred_check
    _
  $region23: #{lpnet_forward.49} parent=0 // pred_check_branch
    %168 = sbr.rel (0) target = $region25
  $region24: #{lpnet_forward.49} parent=0 // pred_region
    _
  $region25: #{lpnet_forward.49} parent=0 // pred_fallthru
    _

// kernel: lpnet_forward.34
$region0: #{lpnet_forward.34}
  #allocation0 [shape = 'u32[]', space=smem, size = 0x4, offset = 0x4, fixed_abs, tag = 'smem constant byte address 0x4 - core index']
  #allocation1 [shape = 'u32[144,128]{1,0:T(1,128)}', space=vmem, size = 0x12000, scoped, tag = 'internal scratch']
  %s0 = inlined_call_operand.vmem [shape: bf16[2,27], index: 0, kind: input, shape index: {}]
  %s1 = inlined_call_operand.vmem [shape: bf16[27,128], index: 1, kind: input, shape index: {}]
  %s2 = inlined_call_operand.vmem [shape: f32[2,1], index: 2, kind: input, shape index: {}]
  %s3 = inlined_call_operand.vmem [shape: f32[2,128], index: 3, kind: output, shape index: {}]
  %s4 = sld [smem:[#allocation0]]
  $region22: #{lpnet_forward.34} parent=0
    _
  %s6 = ssub.s32 1, %s4
  %s7 = scalar_select 0, %s6, %s4
  // Predicated region
  $region2: #{lpnet_forward.34} parent=0 // pred_check
    _
  $region3: #{lpnet_forward.34} parent=0 // pred_check_branch
    %9 = sbr.rel (0) target = $region5
  $region4: #{lpnet_forward.34} parent=0 // pred_region
    _
  $region5: #{lpnet_forward.34} parent=0 // pred_fallthru
    _
  // Predicated region
  $region6: #{lpnet_forward.34} parent=0 // pred_check
    _
  $region7: #{lpnet_forward.34} parent=0 // pred_check_branch
    %11 = sbr.rel (0) target = $region9
  $region8: #{lpnet_forward.34} parent=0 // pred_region
    _
  $region9: #{lpnet_forward.34} parent=0 // pred_fallthru
    _
  // Predicated region
  $region10: #{lpnet_forward.34} parent=0 // pred_check
    _
  $region11: #{lpnet_forward.34} parent=0 // pred_check_branch
    %13 = sbr.rel (0) target = $region13
  $region12: #{lpnet_forward.34} parent=0 // pred_region
    _
  $region13: #{lpnet_forward.34} parent=0 // pred_fallthru
    _
  %v15 = vld [vmem:[%s0] sm:$0x1]
  %v16 = vld [vmem:[%s1] sm:$0xf]
  %v17 = vld [vmem:[%s1 + $0x4] sm:$0xf]
  %v18 = vld [vmem:[%s1 + $0x8] sm:$0xf]
  %v19 = vld [vmem:[%s1 + $0xc] sm:$0x3]
  %v20 = vld [vmem:[%s2] sm:$0x3]
  %22 = vset.pattern.permute.xlu0 0
  %23 = vperm.xlu0 %22, %v20
  %v24 = vpop.permute.xlu0 %23
  %v30 = vunpack.c.l.b16 %v16
  %v31 = vunpack.c.l.b16 %v17
  %v32 = vunpack.c.l.b16 %v18
  %v33 = vunpack.c.l.b16 %v19
  %v34 = vpack.c.b16 %v31, %v30
  %v35 = vpack.c.b16 %v33, %v32
  %vm37 = vcmask 220160
  %v39 = vsel %vm37, %v15, 0
  %vm41 = vcmask 1044480
  %vm42 = vcmask 1045504
  %v43 = vsel %vm41, 4294967295, 65535
  %v44 = vsel %vm42, %v43, 0
  %v46 = vand.u32 %v35, %v44
  %48 = vmatprep.subr.bf16.mxu0 0
  %49 = vmatpush1.bf16.msra.mxu0 %v34
  %50 = vmatprep.subr.bf16.mxu0 0
  %51 = vmatpush1.bf16.msra.mxu0 %v46
  %52 = vmatprep.subr.bf16.mxu0 0
  %53 = vmatpush1.bf16.msra.mxu0 0
  %54 = vmatprep.subr.bf16.mxu0 0
  %55 = vmatpush1.bf16.msra.mxu0 0
  %56 = vmatprep.subr.bf16.mxu0 0
  %57 = vmatpush1.bf16.msra.mxu0 0
  %58 = vmatprep.subr.bf16.mxu0 0
  %59 = vmatpush1.bf16.msra.mxu0 0
  %60 = vmatprep.subr.bf16.mxu0 0
  %61 = vmatpush1.bf16.msra.mxu0 0
  %62 = vmatprep.subr.bf16.mxu0 0
  %63 = vmatpush1.bf16.msra.mxu0 0
  %64 = vmatprep.subr.bf16.mxu0 0
  %65 = vmatpush1.bf16.msra.mxu0 0
  %66 = vmatprep.subr.bf16.mxu0 0
  %67 = vmatpush1.bf16.msra.mxu0 0
  %68 = vmatprep.subr.bf16.mxu0 0
  %69 = vmatpush1.bf16.msra.mxu0 0
  %70 = vmatprep.subr.bf16.mxu0 0
  %71 = vmatpush1.bf16.msra.mxu0 0
  %72 = vmatprep.subr.bf16.mxu0 0
  %73 = vmatpush1.bf16.msra.mxu0 0
  %74 = vmatprep.subr.bf16.mxu0 0
  %75 = vmatpush1.bf16.msra.mxu0 0
  %76 = vmatprep.subr.bf16.mxu0 0
  %77 = vmatpush1.bf16.msra.mxu0 0
  %78 = vmatprep.subr.bf16.mxu0 0
  %79 = vmatpush1.bf16.msra.mxu0 0
  %80 = vmatprep.mubr.bf16.mxu0 0
  %81 = vmatmul.mubr.bf16.gmra.mrb[0].mxu0 %v39
  %v82 = vpop.f32.mrb[0].mxu0
  %v83 = vadd.f32 %v24, %v82
  %v84 = vpop.f32.mrb[0].mxu0
  %v85 = vpop.f32.mrb[0].mxu0
  %v86 = vpop.f32.mrb[0].mxu0
  %87 = vdwg.mxu0
  %vm88 = vcmp.ge.f32.partialorder %v83, 0.0
  %v89 = vmul.f32 %v83, 0.2
  %v90 = vsel %vm88, %v83, %v89
  %91 = vst [vmem:[%s3] sm:$0x3] %v90
  // Predicated region
  $region14: #{lpnet_forward.34} parent=0 // pred_check
    _
  $region15: #{lpnet_forward.34} parent=0 // pred_check_branch
    %93 = sbr.rel (0) target = $region17
  $region16: #{lpnet_forward.34} parent=0 // pred_region
    _
  $region17: #{lpnet_forward.34} parent=0 // pred_fallthru
    _
  // Predicated region
  $region18: #{lpnet_forward.34} parent=0 // pred_check
    _
  $region19: #{lpnet_forward.34} parent=0 // pred_check_branch
    %95 = sbr.rel (0) target = $region21
  $region20: #{lpnet_forward.34} parent=0 // pred_region
    _
  $region21: #{lpnet_forward.34} parent=0 // pred_fallthru
    _

// kernel: lpnet_forward.35
$region0: #{lpnet_forward.35}
  #allocation0 [shape = 'u32[]', space=smem, size = 0x4, offset = 0x4, fixed_abs, tag = 'smem constant byte address 0x4 - core index']
  #allocation1 [shape = 'u32[144,128]{1,0:T(1,128)}', space=vmem, size = 0x12000, scoped, tag = 'internal scratch']
  %s0 = inlined_call_operand.vmem [shape: bf16[2,18], index: 0, kind: input, shape index: {}]
  %s1 = inlined_call_operand.vmem [shape: bf16[18,128], index: 1, kind: input, shape index: {}]
  %s2 = inlined_call_operand.vmem [shape: f32[2,1], index: 2, kind: input, shape index: {}]
  %s3 = inlined_call_operand.vmem [shape: f32[2,128], index: 3, kind: output, shape index: {}]
  %s4 = sld [smem:[#allocation0]]
  $region22: #{lpnet_forward.35} parent=0
    _
  %s6 = ssub.s32 1, %s4
  %s7 = scalar_select 0, %s6, %s4
  // Predicated region
  $region2: #{lpnet_forward.35} parent=0 // pred_check
    _
  $region3: #{lpnet_forward.35} parent=0 // pred_check_branch
    %9 = sbr.rel (0) target = $region5
  $region4: #{lpnet_forward.35} parent=0 // pred_region
    _
  $region5: #{lpnet_forward.35} parent=0 // pred_fallthru
    _
  // Predicated region
  $region6: #{lpnet_forward.35} parent=0 // pred_check
    _
  $region7: #{lpnet_forward.35} parent=0 // pred_check_branch
    %11 = sbr.rel (0) target = $region9
  $region8: #{lpnet_forward.35} parent=0 // pred_region
    _
  $region9: #{lpnet_forward.35} parent=0 // pred_fallthru
    _
  // Predicated region
  $region10: #{lpnet_forward.35} parent=0 // pred_check
    _
  $region11: #{lpnet_forward.35} parent=0 // pred_check_branch
    %13 = sbr.rel (0) target = $region13
  $region12: #{lpnet_forward.35} parent=0 // pred_region
    _
  $region13: #{lpnet_forward.35} parent=0 // pred_fallthru
    _
  %v15 = vld [vmem:[%s0] sm:$0x1]
  %v16 = vld [vmem:[%s1] sm:$0xf]
  %v17 = vld [vmem:[%s1 + $0x4] sm:$0xf]
  %v18 = vld [vmem:[%s1 + $0x8] sm:$0x1]
  %v19 = vld [vmem:[%s2] sm:$0x3]
  %21 = vset.pattern.permute.xlu0 0
  %22 = vperm.xlu0 %21, %v19
  %v23 = vpop.permute.xlu0 %22
  %v28 = vunpack.c.l.b16 %v16
  %v29 = vunpack.c.l.b16 %v17
  %v30 = vunpack.c.l.b16 %v18
  %v31 = vpack.c.b16 %v29, %v28
  %v32 = vpack.c.b16 %v30, %v30
  %vm34 = vcmask 146432
  %v36 = vsel %vm34, %v15, 0
  %vm38 = vcmask 1040384
  %v40 = vsel %vm38, %v32, 0
  %42 = vmatprep.subr.bf16.mxu0 0
  %43 = vmatpush1.bf16.msra.mxu0 %v31
  %44 = vmatprep.subr.bf16.mxu0 0
  %45 = vmatpush1.bf16.msra.mxu0 %v40
  %46 = vmatprep.subr.bf16.mxu0 0
  %47 = vmatpush1.bf16.msra.mxu0 0
  %48 = vmatprep.subr.bf16.mxu0 0
  %49 = vmatpush1.bf16.msra.mxu0 0
  %50 = vmatprep.subr.bf16.mxu0 0
  %51 = vmatpush1.bf16.msra.mxu0 0
  %52 = vmatprep.subr.bf16.mxu0 0
  %53 = vmatpush1.bf16.msra.mxu0 0
  %54 = vmatprep.subr.bf16.mxu0 0
  %55 = vmatpush1.bf16.msra.mxu0 0
  %56 = vmatprep.subr.bf16.mxu0 0
  %57 = vmatpush1.bf16.msra.mxu0 0
  %58 = vmatprep.subr.bf16.mxu0 0
  %59 = vmatpush1.bf16.msra.mxu0 0
  %60 = vmatprep.subr.bf16.mxu0 0
  %61 = vmatpush1.bf16.msra.mxu0 0
  %62 = vmatprep.subr.bf16.mxu0 0
  %63 = vmatpush1.bf16.msra.mxu0 0
  %64 = vmatprep.subr.bf16.mxu0 0
  %65 = vmatpush1.bf16.msra.mxu0 0
  %66 = vmatprep.subr.bf16.mxu0 0
  %67 = vmatpush1.bf16.msra.mxu0 0
  %68 = vmatprep.subr.bf16.mxu0 0
  %69 = vmatpush1.bf16.msra.mxu0 0
  %70 = vmatprep.subr.bf16.mxu0 0
  %71 = vmatpush1.bf16.msra.mxu0 0
  %72 = vmatprep.subr.bf16.mxu0 0
  %73 = vmatpush1.bf16.msra.mxu0 0
  %74 = vmatprep.mubr.bf16.mxu0 0
  %75 = vmatmul.mubr.bf16.gmra.mrb[0].mxu0 %v36
  %v76 = vpop.f32.mrb[0].mxu0
  %v77 = vadd.f32 %v23, %v76
  %v78 = vpop.f32.mrb[0].mxu0
  %v79 = vpop.f32.mrb[0].mxu0
  %v80 = vpop.f32.mrb[0].mxu0
  %81 = vdwg.mxu0
  %vm82 = vcmp.ge.f32.partialorder %v77, 0.0
  %v83 = vmul.f32 %v77, 0.2
  %v84 = vsel %vm82, %v77, %v83
  %85 = vst [vmem:[%s3] sm:$0x3] %v84
  // Predicated region
  $region14: #{lpnet_forward.35} parent=0 // pred_check
    _
  $region15: #{lpnet_forward.35} parent=0 // pred_check_branch
    %87 = sbr.rel (0) target = $region17
  $region16: #{lpnet_forward.35} parent=0 // pred_region
    _
  $region17: #{lpnet_forward.35} parent=0 // pred_fallthru
    _
  // Predicated region
  $region18: #{lpnet_forward.35} parent=0 // pred_check
    _
  $region19: #{lpnet_forward.35} parent=0 // pred_check_branch
    %89 = sbr.rel (0) target = $region21
  $region20: #{lpnet_forward.35} parent=0 // pred_region
    _
  $region21: #{lpnet_forward.35} parent=0 // pred_fallthru
    _

// kernel: lpnet_forward.36
$region0: #{lpnet_forward.36}
  #allocation0 [shape = 'u32[]', space=smem, size = 0x4, offset = 0x4, fixed_abs, tag = 'smem constant byte address 0x4 - core index']
  #allocation1 [shape = 'u32[144,128]{1,0:T(1,128)}', space=vmem, size = 0x12000, scoped, tag = 'internal scratch']
  %s0 = inlined_call_operand.vmem [shape: bf16[2,2], index: 0, kind: input, shape index: {}]
  %s1 = inlined_call_operand.vmem [shape: bf16[2,128], index: 1, kind: input, shape index: {}]
  %s2 = inlined_call_operand.vmem [shape: f32[2,1], index: 2, kind: input, shape index: {}]
  %s3 = inlined_call_operand.vmem [shape: f32[2,128], index: 3, kind: output, shape index: {}]
  %s4 = sld [smem:[#allocation0]]
  $region22: #{lpnet_forward.36} parent=0
    _
  %s6 = ssub.s32 1, %s4
  %s7 = scalar_select 0, %s6, %s4
  // Predicated region
  $region2: #{lpnet_forward.36} parent=0 // pred_check
    _
  $region3: #{lpnet_forward.36} parent=0 // pred_check_branch
    %9 = sbr.rel (0) target = $region5
  $region4: #{lpnet_forward.36} parent=0 // pred_region
    _
  $region5: #{lpnet_forward.36} parent=0 // pred_fallthru
    _
  // Predicated region
  $region6: #{lpnet_forward.36} parent=0 // pred_check
    _
  $region7: #{lpnet_forward.36} parent=0 // pred_check_branch
    %11 = sbr.rel (0) target = $region9
  $region8: #{lpnet_forward.36} parent=0 // pred_region
    _
  $region9: #{lpnet_forward.36} parent=0 // pred_fallthru
    _
  // Predicated region
  $region10: #{lpnet_forward.36} parent=0 // pred_check
    _
  $region11: #{lpnet_forward.36} parent=0 // pred_check_branch
    %13 = sbr.rel (0) target = $region13
  $region12: #{lpnet_forward.36} parent=0 // pred_region
    _
  $region13: #{lpnet_forward.36} parent=0 // pred_fallthru
    _
  %v15 = vld [vmem:[%s0] sm:$0x1]
  %v16 = vld [vmem:[%s1] sm:$0x1]
  %v17 = vld [vmem:[%s2] sm:$0x3]
  %19 = vset.pattern.permute.xlu0 0
  %20 = vperm.xlu0 %19, %v17
  %v21 = vpop.permute.xlu0 %20
  %vm23 = vcmask 15360
  %v25 = vsel %vm23, %v15, 0
  %vm27 = vcmask 1040384
  %v29 = vsel %vm27, %v16, 0
  %31 = vmatprep.subr.bf16.mxu0 0
  %32 = vmatpush1.bf16.msra.mxu0 %v29
  %33 = vmatprep.subr.bf16.mxu0 0
  %34 = vmatpush1.bf16.msra.mxu0 0
  %35 = vmatprep.subr.bf16.mxu0 0
  %36 = vmatpush1.bf16.msra.mxu0 0
  %37 = vmatprep.subr.bf16.mxu0 0
  %38 = vmatpush1.bf16.msra.mxu0 0
  %39 = vmatprep.subr.bf16.mxu0 0
  %40 = vmatpush1.bf16.msra.mxu0 0
  %41 = vmatprep.subr.bf16.mxu0 0
  %42 = vmatpush1.bf16.msra.mxu0 0
  %43 = vmatprep.subr.bf16.mxu0 0
  %44 = vmatpush1.bf16.msra.mxu0 0
  %45 = vmatprep.subr.bf16.mxu0 0
  %46 = vmatpush1.bf16.msra.mxu0 0
  %47 = vmatprep.subr.bf16.mxu0 0
  %48 = vmatpush1.bf16.msra.mxu0 0
  %49 = vmatprep.subr.bf16.mxu0 0
  %50 = vmatpush1.bf16.msra.mxu0 0
  %51 = vmatprep.subr.bf16.mxu0 0
  %52 = vmatpush1.bf16.msra.mxu0 0
  %53 = vmatprep.subr.bf16.mxu0 0
  %54 = vmatpush1.bf16.msra.mxu0 0
  %55 = vmatprep.subr.bf16.mxu0 0
  %56 = vmatpush1.bf16.msra.mxu0 0
  %57 = vmatprep.subr.bf16.mxu0 0
  %58 = vmatpush1.bf16.msra.mxu0 0
  %59 = vmatprep.subr.bf16.mxu0 0
  %60 = vmatpush1.bf16.msra.mxu0 0
  %61 = vmatprep.subr.bf16.mxu0 0
  %62 = vmatpush1.bf16.msra.mxu0 0
  %63 = vmatprep.mubr.bf16.mxu0 0
  %64 = vmatmul.mubr.bf16.gmra.mrb[0].mxu0 %v25
  %v65 = vpop.f32.mrb[0].mxu0
  %v66 = vadd.f32 %v21, %v65
  %v67 = vpop.f32.mrb[0].mxu0
  %v68 = vpop.f32.mrb[0].mxu0
  %v69 = vpop.f32.mrb[0].mxu0
  %70 = vdwg.mxu0
  %vm71 = vcmp.ge.f32.partialorder %v66, 0.0
  %v72 = vmul.f32 %v66, 0.2
  %v73 = vsel %vm71, %v66, %v72
  %74 = vst [vmem:[%s3] sm:$0x3] %v73
  // Predicated region
  $region14: #{lpnet_forward.36} parent=0 // pred_check
    _
  $region15: #{lpnet_forward.36} parent=0 // pred_check_branch
    %76 = sbr.rel (0) target = $region17
  $region16: #{lpnet_forward.36} parent=0 // pred_region
    _
  $region17: #{lpnet_forward.36} parent=0 // pred_fallthru
    _
  // Predicated region
  $region18: #{lpnet_forward.36} parent=0 // pred_check
    _
  $region19: #{lpnet_forward.36} parent=0 // pred_check_branch
    %78 = sbr.rel (0) target = $region21
  $region20: #{lpnet_forward.36} parent=0 // pred_region
    _
  $region21: #{lpnet_forward.36} parent=0 // pred_fallthru
    _

// kernel: lpnet_forward.37
$region0: #{lpnet_forward.37}
  #allocation0 [shape = 'u32[]', space=smem, size = 0x4, offset = 0x4, fixed_abs, tag = 'smem constant byte address 0x4 - core index']
  #allocation1 [shape = 'u32[144,128]{1,0:T(1,128)}', space=vmem, size = 0x12000, scoped, tag = 'internal scratch']
  %s0 = inlined_call_operand.vmem [shape: bf16[2,18], index: 0, kind: input, shape index: {}]
  %s1 = inlined_call_operand.vmem [shape: bf16[18,128], index: 1, kind: input, shape index: {}]
  %s2 = inlined_call_operand.vmem [shape: f32[2,1], index: 2, kind: input, shape index: {}]
  %s3 = inlined_call_operand.vmem [shape: f32[2,128], index: 3, kind: input, shape index: {}]
  %s4 = inlined_call_operand.vmem [shape: f32[2,128], index: 4, kind: output, shape index: {}]
  %s5 = sld [smem:[#allocation0]]
  $region26: #{lpnet_forward.37} parent=0
    _
  %s7 = ssub.s32 1, %s5
  %s8 = scalar_select 0, %s7, %s5
  // Predicated region
  $region2: #{lpnet_forward.37} parent=0 // pred_check
    _
  $region3: #{lpnet_forward.37} parent=0 // pred_check_branch
    %10 = sbr.rel (0) target = $region5
  $region4: #{lpnet_forward.37} parent=0 // pred_region
    _
  $region5: #{lpnet_forward.37} parent=0 // pred_fallthru
    _
  // Predicated region
  $region6: #{lpnet_forward.37} parent=0 // pred_check
    _
  $region7: #{lpnet_forward.37} parent=0 // pred_check_branch
    %12 = sbr.rel (0) target = $region9
  $region8: #{lpnet_forward.37} parent=0 // pred_region
    _
  $region9: #{lpnet_forward.37} parent=0 // pred_fallthru
    _
  // Predicated region
  $region10: #{lpnet_forward.37} parent=0 // pred_check
    _
  $region11: #{lpnet_forward.37} parent=0 // pred_check_branch
    %14 = sbr.rel (0) target = $region13
  $region12: #{lpnet_forward.37} parent=0 // pred_region
    _
  $region13: #{lpnet_forward.37} parent=0 // pred_fallthru
    _
  // Predicated region
  $region14: #{lpnet_forward.37} parent=0 // pred_check
    _
  $region15: #{lpnet_forward.37} parent=0 // pred_check_branch
    %16 = sbr.rel (0) target = $region17
  $region16: #{lpnet_forward.37} parent=0 // pred_region
    _
  $region17: #{lpnet_forward.37} parent=0 // pred_fallthru
    _
  %v18 = vld [vmem:[%s0] sm:$0x1]
  %v19 = vld [vmem:[%s1] sm:$0xf]
  %v20 = vld [vmem:[%s1 + $0x4] sm:$0xf]
  %v21 = vld [vmem:[%s1 + $0x8] sm:$0x1]
  %v22 = vld [vmem:[%s2] sm:$0x3]
  %24 = vset.pattern.permute.xlu0 0
  %25 = vperm.xlu0 %24, %v22
  %v26 = vpop.permute.xlu0 %25
  %v31 = vunpack.c.l.b16 %v19
  %v32 = vunpack.c.l.b16 %v20
  %v33 = vunpack.c.l.b16 %v21
  %v34 = vpack.c.b16 %v32, %v31
  %v35 = vpack.c.b16 %v33, %v33
  %vm37 = vcmask 146432
  %v39 = vsel %vm37, %v18, 0
  %vm41 = vcmask 1040384
  %v43 = vsel %vm41, %v35, 0
  %45 = vmatprep.subr.bf16.mxu0 0
  %46 = vmatpush1.bf16.msra.mxu0 %v34
  %47 = vmatprep.subr.bf16.mxu0 0
  %48 = vmatpush1.bf16.msra.mxu0 %v43
  %49 = vmatprep.subr.bf16.mxu0 0
  %50 = vmatpush1.bf16.msra.mxu0 0
  %51 = vmatprep.subr.bf16.mxu0 0
  %52 = vmatpush1.bf16.msra.mxu0 0
  %53 = vmatprep.subr.bf16.mxu0 0
  %54 = vmatpush1.bf16.msra.mxu0 0
  %55 = vmatprep.subr.bf16.mxu0 0
  %56 = vmatpush1.bf16.msra.mxu0 0
  %57 = vmatprep.subr.bf16.mxu0 0
  %58 = vmatpush1.bf16.msra.mxu0 0
  %59 = vmatprep.subr.bf16.mxu0 0
  %60 = vmatpush1.bf16.msra.mxu0 0
  %61 = vmatprep.subr.bf16.mxu0 0
  %62 = vmatpush1.bf16.msra.mxu0 0
  %63 = vmatprep.subr.bf16.mxu0 0
  %64 = vmatpush1.bf16.msra.mxu0 0
  %65 = vmatprep.subr.bf16.mxu0 0
  %66 = vmatpush1.bf16.msra.mxu0 0
  %67 = vmatprep.subr.bf16.mxu0 0
  %68 = vmatpush1.bf16.msra.mxu0 0
  %69 = vmatprep.subr.bf16.mxu0 0
  %70 = vmatpush1.bf16.msra.mxu0 0
  %71 = vmatprep.subr.bf16.mxu0 0
  %72 = vmatpush1.bf16.msra.mxu0 0
  %73 = vmatprep.subr.bf16.mxu0 0
  %74 = vmatpush1.bf16.msra.mxu0 0
  %75 = vmatprep.subr.bf16.mxu0 0
  %76 = vmatpush1.bf16.msra.mxu0 0
  %77 = vmatprep.mubr.bf16.mxu0 0
  %78 = vmatmul.mubr.bf16.gmra.mrb[0].mxu0 %v39
  %v79 = vpop.f32.mrb[0].mxu0
  %v80 = vadd.f32 %v26, %v79
  %v81 = vpop.f32.mrb[0].mxu0
  %v82 = vpop.f32.mrb[0].mxu0
  %v83 = vpop.f32.mrb[0].mxu0
  %84 = vdwg.mxu0
  %vm85 = vcmp.ge.f32.partialorder %v80, 0.0
  %v86 = vmul.f32 %v80, 0.2
  %v87 = vsel %vm85, %v80, %v86
  %v88 = vld [vmem:[%s3] sm:$0x3]
  %v89 = vadd.f32 %v87, %v88
  %90 = vst [vmem:[%s4] sm:$0x3] %v89
  // Predicated region
  $region18: #{lpnet_forward.37} parent=0 // pred_check
    _
  $region19: #{lpnet_forward.37} parent=0 // pred_check_branch
    %92 = sbr.rel (0) target = $region21
  $region20: #{lpnet_forward.37} parent=0 // pred_region
    _
  $region21: #{lpnet_forward.37} parent=0 // pred_fallthru
    _
  // Predicated region
  $region22: #{lpnet_forward.37} parent=0 // pred_check
    _
  $region23: #{lpnet_forward.37} parent=0 // pred_check_branch
    %94 = sbr.rel (0) target = $region25
  $region24: #{lpnet_forward.37} parent=0 // pred_region
    _
  $region25: #{lpnet_forward.37} parent=0 // pred_fallthru
    _

// kernel: lpnet_forward.41
$region0: #{lpnet_forward.41}
  #allocation0 [shape = 'u32[]', space=smem, size = 0x4, offset = 0x4, fixed_abs, tag = 'smem constant byte address 0x4 - core index']
  #allocation1 [shape = 'u32[144,128]{1,0:T(1,128)}', space=vmem, size = 0x12000, scoped, tag = 'internal scratch']
  %s0 = inlined_call_operand.vmem [shape: bf16[3,2], index: 0, kind: input, shape index: {}]
  %s1 = inlined_call_operand.vmem [shape: bf16[2,128], index: 1, kind: input, shape index: {}]
  %s2 = inlined_call_operand.vmem [shape: f32[3,1], index: 2, kind: input, shape index: {}]
  %s3 = inlined_call_operand.vmem [shape: f32[3,128], index: 3, kind: input, shape index: {}]
  %s4 = inlined_call_operand.vmem [shape: f32[3,128], index: 4, kind: output, shape index: {}]
  %s5 = sld [smem:[#allocation0]]
  $region26: #{lpnet_forward.41} parent=0
    _
  %s7 = ssub.s32 1, %s5
  %s8 = scalar_select 0, %s7, %s5
  // Predicated region
  $region2: #{lpnet_forward.41} parent=0 // pred_check
    _
  $region3: #{lpnet_forward.41} parent=0 // pred_check_branch
    %10 = sbr.rel (0) target = $region5
  $region4: #{lpnet_forward.41} parent=0 // pred_region
    _
  $region5: #{lpnet_forward.41} parent=0 // pred_fallthru
    _
  // Predicated region
  $region6: #{lpnet_forward.41} parent=0 // pred_check
    _
  $region7: #{lpnet_forward.41} parent=0 // pred_check_branch
    %12 = sbr.rel (0) target = $region9
  $region8: #{lpnet_forward.41} parent=0 // pred_region
    _
  $region9: #{lpnet_forward.41} parent=0 // pred_fallthru
    _
  // Predicated region
  $region10: #{lpnet_forward.41} parent=0 // pred_check
    _
  $region11: #{lpnet_forward.41} parent=0 // pred_check_branch
    %14 = sbr.rel (0) target = $region13
  $region12: #{lpnet_forward.41} parent=0 // pred_region
    _
  $region13: #{lpnet_forward.41} parent=0 // pred_fallthru
    _
  // Predicated region
  $region14: #{lpnet_forward.41} parent=0 // pred_check
    _
  $region15: #{lpnet_forward.41} parent=0 // pred_check_branch
    %16 = sbr.rel (0) target = $region17
  $region16: #{lpnet_forward.41} parent=0 // pred_region
    _
  $region17: #{lpnet_forward.41} parent=0 // pred_fallthru
    _
  %v18 = vld [vmem:[%s0] sm:$0x3]
  %v19 = vld [vmem:[%s1] sm:$0x1]
  %v20 = vld [vmem:[%s2] sm:$0x7]
  %22 = vset.pattern.permute.xlu0 0
  %23 = vperm.xlu0 %22, %v20
  %v24 = vpop.permute.xlu0 %23
  %vm26 = vcmask 15360
  %v28 = vsel %vm26, %v18, 0
  %vm30 = vcmask 1040384
  %v32 = vsel %vm30, %v19, 0
  %34 = vmatprep.subr.bf16.mxu0 0
  %35 = vmatpush1.bf16.msra.mxu0 %v32
  %36 = vmatprep.subr.bf16.mxu0 0
  %37 = vmatpush1.bf16.msra.mxu0 0
  %38 = vmatprep.subr.bf16.mxu0 0
  %39 = vmatpush1.bf16.msra.mxu0 0
  %40 = vmatprep.subr.bf16.mxu0 0
  %41 = vmatpush1.bf16.msra.mxu0 0
  %42 = vmatprep.subr.bf16.mxu0 0
  %43 = vmatpush1.bf16.msra.mxu0 0
  %44 = vmatprep.subr.bf16.mxu0 0
  %45 = vmatpush1.bf16.msra.mxu0 0
  %46 = vmatprep.subr.bf16.mxu0 0
  %47 = vmatpush1.bf16.msra.mxu0 0
  %48 = vmatprep.subr.bf16.mxu0 0
  %49 = vmatpush1.bf16.msra.mxu0 0
  %50 = vmatprep.subr.bf16.mxu0 0
  %51 = vmatpush1.bf16.msra.mxu0 0
  %52 = vmatprep.subr.bf16.mxu0 0
  %53 = vmatpush1.bf16.msra.mxu0 0
  %54 = vmatprep.subr.bf16.mxu0 0
  %55 = vmatpush1.bf16.msra.mxu0 0
  %56 = vmatprep.subr.bf16.mxu0 0
  %57 = vmatpush1.bf16.msra.mxu0 0
  %58 = vmatprep.subr.bf16.mxu0 0
  %59 = vmatpush1.bf16.msra.mxu0 0
  %60 = vmatprep.subr.bf16.mxu0 0
  %61 = vmatpush1.bf16.msra.mxu0 0
  %62 = vmatprep.subr.bf16.mxu0 0
  %63 = vmatpush1.bf16.msra.mxu0 0
  %64 = vmatprep.subr.bf16.mxu0 0
  %65 = vmatpush1.bf16.msra.mxu0 0
  %66 = vmatprep.mubr.bf16.mxu0 0
  %67 = vmatmul.mubr.bf16.gmra.mrb[0].mxu0 %v28
  %v68 = vpop.f32.mrb[0].mxu0
  %v69 = vadd.f32 %v24, %v68
  %v70 = vpop.f32.mrb[0].mxu0
  %v71 = vpop.f32.mrb[0].mxu0
  %v72 = vpop.f32.mrb[0].mxu0
  %73 = vdwg.mxu0
  %v74 = vld [vmem:[%s3] sm:$0x7]
  %v75 = vadd.f32 %v69, %v74
  %v76 = vmax.f32 %v75, 0.0
  %77 = vst [vmem:[%s4] sm:$0x7] %v76
  // Predicated region
  $region18: #{lpnet_forward.41} parent=0 // pred_check
    _
  $region19: #{lpnet_forward.41} parent=0 // pred_check_branch
    %79 = sbr.rel (0) target = $region21
  $region20: #{lpnet_forward.41} parent=0 // pred_region
    _
  $region21: #{lpnet_forward.41} parent=0 // pred_fallthru
    _
  // Predicated region
  $region22: #{lpnet_forward.41} parent=0 // pred_check
    _
  $region23: #{lpnet_forward.41} parent=0 // pred_check_branch
    %81 = sbr.rel (0) target = $region25
  $region24: #{lpnet_forward.41} parent=0 // pred_region
    _
  $region25: #{lpnet_forward.41} parent=0 // pred_fallthru
    _

// kernel: lpnet_forward.50
$region0: #{lpnet_forward.50}
  #allocation0 [shape = 'u32[]', space=smem, size = 0x4, offset = 0x4, fixed_abs, tag = 'smem constant byte address 0x4 - core index']
  #allocation1 [shape = 'u32[144,128]{1,0:T(1,128)}', space=vmem, size = 0x12000, scoped, tag = 'internal scratch']
  %s0 = inlined_call_operand.vmem [shape: f32[6,20,20], index: 0, kind: input, shape index: {}]
  %s1 = inlined_call_operand.vmem [shape: f32[6,16,16], index: 1, kind: input, shape index: {}]
  %s2 = inlined_call_operand.vmem [shape: f32[6,16,16], index: 2, kind: output, shape index: {}]
  %s3 = sld [smem:[#allocation0]]
  $region41: #{lpnet_forward.50} parent=0
    _
  %s5 = ssub.s32 1, %s3
  %s6 = scalar_select 0, %s5, %s3
  loop: start=0, step=1, limit=8
  $region2: #{lpnet_forward.50} parent=0 // loop_pre_header
    _
  $region3: #{lpnet_forward.50} parent=0 // loop_header
    %s8 = sphi 0, %s12
    %p9 = scmp.ge.s32.totalorder %s8, 8
    %s18 = sphi 0, %s20
    %s21 = sphi 0, %s18
    %s22 = sphi 0, %s21
    %s38 = sphi 0, %s22
    %s44 = sphi 0, %s46
    %s47 = sphi 0, %s44
    %s48 = sphi 0, %s47
    %s64 = sphi 0, %s48
    %s70 = sphi 0, %s72
    %s73 = sphi 0, %s70
    %s74 = sphi 0, %s73
    %s90 = sphi 0, %s74
  $region4: #{lpnet_forward.50} parent=0 // loop_header_branch
    %11 = sbr.rel (%p9) target = $region8
  $region5: #{lpnet_forward.50} parent=0 // loop_body
    %s13 = ssub.s32 %s8, 1
    %s14 = ssub.s32 %s8, 2
    %s15 = sadd.s32 %s8, 1
    %s16 = ssub.s32 %s8, %s15
    %p17 = scmp.eq.s32.totalorder %s16, 0
    %s19 = sadd.s32 %s18, 1
    %s20 = scalar_select %p17, %s18, %s19
    %p23 = pneg %p17
    %p24 = scmp.eq.s32.totalorder %s8, 5
    %p25 = por %p23, %p24
    %p26 = scmp.ne.s32.totalorder %s18, %s21
    %p27 = scmp.eq.s32.totalorder %s8, 0
    %p28 = por %p26, %p27
    %p29 = scmp.ne.s32.totalorder %s18, %s21
    %p30 = scmp.eq.s32.totalorder %s13, 5
    %p31 = por %p29, %p30
    %p32 = scmp.ne.s32.totalorder %s21, %s22
    %p33 = scmp.eq.s32.totalorder %s13, 0
    %p34 = por %p32, %p33
    %p35 = scmp.ne.s32.totalorder %s21, %s22
    %p36 = scmp.eq.s32.totalorder %s14, 5
    %p37 = por %p35, %p36
    %p39 = scmp.ne.s32.totalorder %s22, %s38
    %p40 = scmp.eq.s32.totalorder %s14, 0
    %p41 = por %p39, %p40
    %s42 = ssub.s32 %s8, %s15
    %p43 = scmp.eq.s32.totalorder %s42, 0
    %s45 = sadd.s32 %s44, 1
    %s46 = scalar_select %p43, %s44, %s45
    %p49 = pneg %p43
    %p50 = scmp.eq.s32.totalorder %s8, 5
    %p51 = por %p49, %p50
    %p52 = scmp.ne.s32.totalorder %s44, %s47
    %p53 = scmp.eq.s32.totalorder %s8, 0
    %p54 = por %p52, %p53
    %p55 = scmp.ne.s32.totalorder %s44, %s47
    %p56 = scmp.eq.s32.totalorder %s13, 5
    %p57 = por %p55, %p56
    %p58 = scmp.ne.s32.totalorder %s47, %s48
    %p59 = scmp.eq.s32.totalorder %s13, 0
    %p60 = por %p58, %p59
    %p61 = scmp.ne.s32.totalorder %s47, %s48
    %p62 = scmp.eq.s32.totalorder %s14, 5
    %p63 = por %p61, %p62
    %p65 = scmp.ne.s32.totalorder %s48, %s64
    %p66 = scmp.eq.s32.totalorder %s14, 0
    %p67 = por %p65, %p66
    %s68 = ssub.s32 %s8, %s15
    %p69 = scmp.eq.s32.totalorder %s68, 0
    %s71 = sadd.s32 %s70, 1
    %s72 = scalar_select %p69, %s70, %s71
    %p75 = pneg %p69
    %p76 = scmp.eq.s32.totalorder %s8, 5
    %p77 = por %p75, %p76
    %p78 = scmp.ne.s32.totalorder %s70, %s73
    %p79 = scmp.eq.s32.totalorder %s8, 0
    %p80 = por %p78, %p79
    %p81 = scmp.ne.s32.totalorder %s70, %s73
    %p82 = scmp.eq.s32.totalorder %s13, 5
    %p83 = por %p81, %p82
    %p84 = scmp.ne.s32.totalorder %s73, %s74
    %p85 = scmp.eq.s32.totalorder %s13, 0
    %p86 = por %p84, %p85
    %p87 = scmp.ne.s32.totalorder %s73, %s74
    %p88 = scmp.eq.s32.totalorder %s14, 5
    %p89 = por %p87, %p88
    %p91 = scmp.ne.s32.totalorder %s74, %s90
    %p92 = scmp.eq.s32.totalorder %s14, 0
    %p93 = por %p91, %p92
    %p94 = scmp.le.s32.totalorder 1, %s8
    %p95 = scmp.lt.s32.totalorder %s8, 7
    %p96 = pnand %p94, %p95
    %p97 = pneg %p96
    // Predicated region
    $region9: #{lpnet_forward.50} parent=5 // pred_check
      _
    $region10: #{lpnet_forward.50} parent=5 // pred_check_branch
      %99 = sbr.rel (%p96) target = $region12
    $region11: #{lpnet_forward.50} parent=5 // pred_region
      %s100 = ssub.s32 %s8, 1
    $region12: #{lpnet_forward.50} parent=5 // pred_fallthru
      _
    %p101 = scmp.lt.s32.totalorder %s8, 6
    // Predicated region
    $region13: #{lpnet_forward.50} parent=5 // pred_check
      %p102 = pneg %p101
    $region14: #{lpnet_forward.50} parent=5 // pred_check_branch
      %104 = sbr.rel (%p102) target = $region16
    $region15: #{lpnet_forward.50} parent=5 // pred_region
      // Predicated region
      $region17: #{lpnet_forward.50} parent=15 // pred_check
        %p105 = pneg %p28
      $region18: #{lpnet_forward.50} parent=15 // pred_check_branch
        %107 = sbr.rel (%p105) target = $region20
      $region19: #{lpnet_forward.50} parent=15 // pred_region
        %p108 = scmp.lt.s32.totalorder %s8, 5
        %s109 = scalar_select %p108, %s8, 5
        %s110 = smul.addr %s109, 3
        %s111 = smul.addr %s110, 8
        %s112 = scalar_lea.vmem %s0, %s111
      $region20: #{lpnet_forward.50} parent=15 // pred_fallthru
        _
      // Predicated region
      $region21: #{lpnet_forward.50} parent=15 // pred_check
        %p113 = pneg %p54
      $region22: #{lpnet_forward.50} parent=15 // pred_check_branch
        %115 = sbr.rel (%p113) target = $region24
      $region23: #{lpnet_forward.50} parent=15 // pred_region
        %p116 = scmp.lt.s32.totalorder %s8, 5
        %s117 = scalar_select %p116, %s8, 5
        %s118 = smul.addr %s117, 2
        %s119 = smul.addr %s118, 8
        %s120 = scalar_lea.vmem %s1, %s119
      $region24: #{lpnet_forward.50} parent=15 // pred_fallthru
        _
    $region16: #{lpnet_forward.50} parent=5 // pred_fallthru
      _
    %p121 = scmp.le.s32.totalorder 1, %s8
    %p122 = scmp.lt.s32.totalorder %s8, 7
    %p123 = pnand %p121, %p122
    %p124 = pneg %p123
    // Predicated region
    $region25: #{lpnet_forward.50} parent=5 // pred_check
      _
    $region26: #{lpnet_forward.50} parent=5 // pred_check_branch
      %126 = sbr.rel (%p123) target = $region28
    $region27: #{lpnet_forward.50} parent=5 // pred_region
      %s127 = ssub.s32 %s8, 1
      %p128 = scmp.lt.s32.totalorder %s13, 5
      %s129 = scalar_select %p128, %s13, 5
      %s130 = smul.addr %s129, 3
      %s131 = smul.addr %s130, 8
      %s132 = scalar_lea.vmem %s0, %s131
      %p133 = pneg %p34
      %p134 = pneg %p31
      %p135 = scmp.lt.s32.totalorder %s13, 5
      %s136 = scalar_select %p135, %s13, 5
      %s137 = smul.addr %s136, 2
      %s138 = smul.addr %s137, 8
      %s139 = scalar_lea.vmem %s1, %s138
      %p140 = pneg %p60
      %p141 = pneg %p57
      %p142 = pneg %p86
      %p143 = pneg %p83
      %p144 = scmp.lt.s32.totalorder %s13, 5
      %s145 = scalar_select %p144, %s13, 5
      %s146 = smul.addr %s145, 2
      %s147 = smul.addr %s146, 8
      %s148 = scalar_lea.vmem %s2, %s147
      %p149 = scmp.lt.s32.totalorder %s13, 5
      %s150 = scalar_select %p149, %s13, 5
      %s151 = smul.addr %s150, 3
      %s152 = smul.addr %s151, 8
      %s153 = scalar_lea.vmem %s0, %s152
      %p154 = scmp.lt.s32.totalorder %s13, 5
      %s155 = scalar_select %p154, %s13, 5
      %s156 = smul.addr %s155, 2
      %s157 = smul.addr %s156, 8
      %s158 = scalar_lea.vmem %s1, %s157
      %p159 = scmp.lt.s32.totalorder %s13, 5
      %s160 = scalar_select %p159, %s13, 5
      %s161 = smul.addr %s160, 2
      %s162 = smul.addr %s161, 8
      %s163 = scalar_lea.vmem %s2, %s162
      %v164 = vld [vmem:[%s153] sm:$0xff]
      %v165 = vld [vmem:[%s153 + $0x8] sm:$0xff]
      %v166 = vld [vmem:[%s153 + $0x10] sm:$0xf]
      %v167 = vmul.f32 %v164, 0.125
      %v168 = vmul.f32 %v165, 0.125
      %v169 = vmul.f32 %v164, 0.5
      %v170 = vmul.f32 %v165, 0.5
      %v171 = vmul.f32 %v166, 0.5
      %vm175 = vcmask 1046528
      %v176 = vrot.slane %v169, 1
      %v177 = vrot.slane %v170, 1
      %v178 = vsel %vm175, %v176, %v177
      %v179 = vrot.slane %v171, 1
      %v180 = vsel %vm175, %v177, %v179
      %v183 = vadd.f32 %v167, %v178
      %v184 = vadd.f32 %v168, %v180
      %v185 = vmul.f32 %v164, 0.75
      %v186 = vmul.f32 %v165, 0.75
      %v187 = vmul.f32 %v166, 0.75
      %vm191 = vcmask 1045504
      %v192 = vrot.slane %v185, 2
      %v193 = vrot.slane %v186, 2
      %v194 = vsel %vm191, %v192, %v193
      %v195 = vrot.slane %v187, 2
      %v196 = vsel %vm191, %v193, %v195
      %v199 = vadd.f32 %v183, %v194
      %v200 = vadd.f32 %v184, %v196
      %vm201 = vcmask 1044480
      %v202 = vrot.slane %v169, 3
      %v203 = vrot.slane %v170, 3
      %v204 = vsel %vm201, %v202, %v203
      %v205 = vrot.slane %v171, 3
      %v206 = vsel %vm201, %v203, %v205
      %v209 = vadd.f32 %v199, %v204
      %v210 = vadd.f32 %v200, %v206
      %v211 = vmul.f32 %v166, 0.125
      %vm215 = vcmask 1043456
      %v216 = vrot.slane %v167, 4
      %v217 = vrot.slane %v168, 4
      %v218 = vsel %vm215, %v216, %v217
      %v219 = vrot.slane %v211, 4
      %v220 = vsel %vm215, %v217, %v219
      %v223 = vadd.f32 %v209, %v218
      %v224 = vadd.f32 %v210, %v220
      %v225 = vmul.f32 %v223, 0.125
      %v226 = vmul.f32 %v224, 0.125
      %v227 = vmul.f32 %v223, 0.5
      %v228 = vmul.f32 %v224, 0.5
      %231 = vrot.lane.b32.xlu0 %v227, 127
      %v232 = vpop.permute.xlu0 %231
      %233 = vrot.lane.b32.xlu0 %v228, 127
      %v234 = vpop.permute.xlu0 %233
      %v237 = vadd.f32 %v225, %v232
      %v238 = vadd.f32 %v226, %v234
      %v239 = vmul.f32 %v223, 0.75
      %v240 = vmul.f32 %v224, 0.75
      %243 = vrot.lane.b32.xlu0 %v239, 126
      %v244 = vpop.permute.xlu0 %243
      %245 = vrot.lane.b32.xlu0 %v240, 126
      %v246 = vpop.permute.xlu0 %245
      %v249 = vadd.f32 %v237, %v244
      %v250 = vadd.f32 %v238, %v246
      %251 = vrot.lane.b32.xlu0 %v227, 125
      %v252 = vpop.permute.xlu0 %251
      %253 = vrot.lane.b32.xlu0 %v228, 125
      %v254 = vpop.permute.xlu0 %253
      %v257 = vadd.f32 %v249, %v252
      %v258 = vadd.f32 %v250, %v254
      %261 = vrot.lane.b32.xlu0 %v225, 124
      %v262 = vpop.permute.xlu0 %261
      %263 = vrot.lane.b32.xlu0 %v226, 124
      %v264 = vpop.permute.xlu0 %263
      %v267 = vadd.f32 %v257, %v262
      %v268 = vadd.f32 %v258, %v264
      %v269 = vld [vmem:[%s158] sm:$0xff]
      %v270 = vld [vmem:[%s158 + $0x8] sm:$0xff]
      %v271 = vadd.f32 %v267, %v269
      %v272 = vadd.f32 %v268, %v270
      %v273 = vmax.f32 %v271, 0.0
      %v274 = vmax.f32 %v272, 0.0
      %vm275 = vcmask 130048
      %276 = vst.msk [vmem:[%s163] sm:$0xff] %vm275, %v273
      %277 = vst.msk [vmem:[%s163 + $0x8] sm:$0xff] %vm275, %v274
      %p278 = scmp.lt.s32.totalorder %s13, 5
      %s279 = scalar_select %p278, %s13, 5
      %s280 = smul.addr %s279, 2
      %s281 = smul.addr %s280, 8
      %s282 = scalar_lea.vmem %s2, %s281
      // Predicated region
      $region29: #{lpnet_forward.50} parent=27 // pred_check
        %p283 = pneg %p83
      $region30: #{lpnet_forward.50} parent=27 // pred_check_branch
        %285 = sbr.rel (%p283) target = $region32
      $region31: #{lpnet_forward.50} parent=27 // pred_region
        _
      $region32: #{lpnet_forward.50} parent=27 // pred_fallthru
        _
    $region28: #{lpnet_forward.50} parent=5 // pred_fallthru
      _
    %p286 = scmp.le.s32.totalorder 2, %s8
    // Predicated region
    $region33: #{lpnet_forward.50} parent=5 // pred_check
      %p287 = pneg %p286
    $region34: #{lpnet_forward.50} parent=5 // pred_check_branch
      %289 = sbr.rel (%p287) target = $region36
    $region35: #{lpnet_forward.50} parent=5 // pred_region
      %s290 = ssub.s32 %s8, 2
      // Predicated region
      $region37: #{lpnet_forward.50} parent=35 // pred_check
        %p291 = pneg %p89
      $region38: #{lpnet_forward.50} parent=35 // pred_check_branch
        %293 = sbr.rel (%p291) target = $region40
      $region39: #{lpnet_forward.50} parent=35 // pred_region
        %p294 = scmp.lt.s32.totalorder %s14, 5
        %s295 = scalar_select %p294, %s14, 5
        %s296 = smul.addr %s295, 2
        %s297 = smul.addr %s296, 8
        %s298 = scalar_lea.vmem %s2, %s297
      $region40: #{lpnet_forward.50} parent=35 // pred_fallthru
        _
    $region36: #{lpnet_forward.50} parent=5 // pred_fallthru
      _
  $region6: #{lpnet_forward.50} parent=0 // loop_footer
    %s12 = sadd.s32 1, %s8
  $region7: #{lpnet_forward.50} parent=0 // loop_footer_branch
    %7 = sbr.rel target = $region3
  $region8: #{lpnet_forward.50} parent=0 // loop_exit
    _

// kernel: lpnet_forward.59
$region0: #{lpnet_forward.59}
  #allocation0 [shape = 'u32[]', space=smem, size = 0x4, offset = 0x4, fixed_abs, tag = 'smem constant byte address 0x4 - core index']
  #allocation1 [shape = 'u32[144,128]{1,0:T(1,128)}', space=vmem, size = 0x12000, scoped, tag = 'internal scratch']
  %s0 = inlined_call_operand.vmem [shape: f32[6,36,36], index: 0, kind: input, shape index: {}]
  %s1 = inlined_call_operand.vmem [shape: f32[6,32,32], index: 1, kind: input, shape index: {}]
  %s2 = inlined_call_operand.vmem [shape: f32[6,32,32], index: 2, kind: output, shape index: {}]
  %s3 = sld [smem:[#allocation0]]
  $region41: #{lpnet_forward.59} parent=0
    _
  %s5 = ssub.s32 1, %s3
  %s6 = scalar_select 0, %s5, %s3
  loop: start=0, step=1, limit=8
  $region2: #{lpnet_forward.59} parent=0 // loop_pre_header
    _
  $region3: #{lpnet_forward.59} parent=0 // loop_header
    %s8 = sphi 0, %s12
    %p9 = scmp.ge.s32.totalorder %s8, 8
    %s18 = sphi 0, %s20
    %s21 = sphi 0, %s18
    %s22 = sphi 0, %s21
    %s38 = sphi 0, %s22
    %s44 = sphi 0, %s46
    %s47 = sphi 0, %s44
    %s48 = sphi 0, %s47
    %s64 = sphi 0, %s48
    %s70 = sphi 0, %s72
    %s73 = sphi 0, %s70
    %s74 = sphi 0, %s73
    %s90 = sphi 0, %s74
  $region4: #{lpnet_forward.59} parent=0 // loop_header_branch
    %11 = sbr.rel (%p9) target = $region8
  $region5: #{lpnet_forward.59} parent=0 // loop_body
    %s13 = ssub.s32 %s8, 1
    %s14 = ssub.s32 %s8, 2
    %s15 = sadd.s32 %s8, 1
    %s16 = ssub.s32 %s8, %s15
    %p17 = scmp.eq.s32.totalorder %s16, 0
    %s19 = sadd.s32 %s18, 1
    %s20 = scalar_select %p17, %s18, %s19
    %p23 = pneg %p17
    %p24 = scmp.eq.s32.totalorder %s8, 5
    %p25 = por %p23, %p24
    %p26 = scmp.ne.s32.totalorder %s18, %s21
    %p27 = scmp.eq.s32.totalorder %s8, 0
    %p28 = por %p26, %p27
    %p29 = scmp.ne.s32.totalorder %s18, %s21
    %p30 = scmp.eq.s32.totalorder %s13, 5
    %p31 = por %p29, %p30
    %p32 = scmp.ne.s32.totalorder %s21, %s22
    %p33 = scmp.eq.s32.totalorder %s13, 0
    %p34 = por %p32, %p33
    %p35 = scmp.ne.s32.totalorder %s21, %s22
    %p36 = scmp.eq.s32.totalorder %s14, 5
    %p37 = por %p35, %p36
    %p39 = scmp.ne.s32.totalorder %s22, %s38
    %p40 = scmp.eq.s32.totalorder %s14, 0
    %p41 = por %p39, %p40
    %s42 = ssub.s32 %s8, %s15
    %p43 = scmp.eq.s32.totalorder %s42, 0
    %s45 = sadd.s32 %s44, 1
    %s46 = scalar_select %p43, %s44, %s45
    %p49 = pneg %p43
    %p50 = scmp.eq.s32.totalorder %s8, 5
    %p51 = por %p49, %p50
    %p52 = scmp.ne.s32.totalorder %s44, %s47
    %p53 = scmp.eq.s32.totalorder %s8, 0
    %p54 = por %p52, %p53
    %p55 = scmp.ne.s32.totalorder %s44, %s47
    %p56 = scmp.eq.s32.totalorder %s13, 5
    %p57 = por %p55, %p56
    %p58 = scmp.ne.s32.totalorder %s47, %s48
    %p59 = scmp.eq.s32.totalorder %s13, 0
    %p60 = por %p58, %p59
    %p61 = scmp.ne.s32.totalorder %s47, %s48
    %p62 = scmp.eq.s32.totalorder %s14, 5
    %p63 = por %p61, %p62
    %p65 = scmp.ne.s32.totalorder %s48, %s64
    %p66 = scmp.eq.s32.totalorder %s14, 0
    %p67 = por %p65, %p66
    %s68 = ssub.s32 %s8, %s15
    %p69 = scmp.eq.s32.totalorder %s68, 0
    %s71 = sadd.s32 %s70, 1
    %s72 = scalar_select %p69, %s70, %s71
    %p75 = pneg %p69
    %p76 = scmp.eq.s32.totalorder %s8, 5
    %p77 = por %p75, %p76
    %p78 = scmp.ne.s32.totalorder %s70, %s73
    %p79 = scmp.eq.s32.totalorder %s8, 0
    %p80 = por %p78, %p79
    %p81 = scmp.ne.s32.totalorder %s70, %s73
    %p82 = scmp.eq.s32.totalorder %s13, 5
    %p83 = por %p81, %p82
    %p84 = scmp.ne.s32.totalorder %s73, %s74
    %p85 = scmp.eq.s32.totalorder %s13, 0
    %p86 = por %p84, %p85
    %p87 = scmp.ne.s32.totalorder %s73, %s74
    %p88 = scmp.eq.s32.totalorder %s14, 5
    %p89 = por %p87, %p88
    %p91 = scmp.ne.s32.totalorder %s74, %s90
    %p92 = scmp.eq.s32.totalorder %s14, 0
    %p93 = por %p91, %p92
    %p94 = scmp.le.s32.totalorder 1, %s8
    %p95 = scmp.lt.s32.totalorder %s8, 7
    %p96 = pnand %p94, %p95
    %p97 = pneg %p96
    // Predicated region
    $region9: #{lpnet_forward.59} parent=5 // pred_check
      _
    $region10: #{lpnet_forward.59} parent=5 // pred_check_branch
      %99 = sbr.rel (%p96) target = $region12
    $region11: #{lpnet_forward.59} parent=5 // pred_region
      %s100 = ssub.s32 %s8, 1
    $region12: #{lpnet_forward.59} parent=5 // pred_fallthru
      _
    %p101 = scmp.lt.s32.totalorder %s8, 6
    // Predicated region
    $region13: #{lpnet_forward.59} parent=5 // pred_check
      %p102 = pneg %p101
    $region14: #{lpnet_forward.59} parent=5 // pred_check_branch
      %104 = sbr.rel (%p102) target = $region16
    $region15: #{lpnet_forward.59} parent=5 // pred_region
      // Predicated region
      $region17: #{lpnet_forward.59} parent=15 // pred_check
        %p105 = pneg %p28
      $region18: #{lpnet_forward.59} parent=15 // pred_check_branch
        %107 = sbr.rel (%p105) target = $region20
      $region19: #{lpnet_forward.59} parent=15 // pred_region
        %p108 = scmp.lt.s32.totalorder %s8, 5
        %s109 = scalar_select %p108, %s8, 5
        %s110 = smul.addr %s109, 5
        %s111 = smul.addr %s110, 8
        %s112 = scalar_lea.vmem %s0, %s111
      $region20: #{lpnet_forward.59} parent=15 // pred_fallthru
        _
      // Predicated region
      $region21: #{lpnet_forward.59} parent=15 // pred_check
        %p113 = pneg %p54
      $region22: #{lpnet_forward.59} parent=15 // pred_check_branch
        %115 = sbr.rel (%p113) target = $region24
      $region23: #{lpnet_forward.59} parent=15 // pred_region
        %p116 = scmp.lt.s32.totalorder %s8, 5
        %s117 = scalar_select %p116, %s8, 5
        %s118 = smul.addr %s117, 4
        %s119 = smul.addr %s118, 8
        %s120 = scalar_lea.vmem %s1, %s119
      $region24: #{lpnet_forward.59} parent=15 // pred_fallthru
        _
    $region16: #{lpnet_forward.59} parent=5 // pred_fallthru
      _
    %p121 = scmp.le.s32.totalorder 1, %s8
    %p122 = scmp.lt.s32.totalorder %s8, 7
    %p123 = pnand %p121, %p122
    %p124 = pneg %p123
    // Predicated region
    $region25: #{lpnet_forward.59} parent=5 // pred_check
      _
    $region26: #{lpnet_forward.59} parent=5 // pred_check_branch
      %126 = sbr.rel (%p123) target = $region28
    $region27: #{lpnet_forward.59} parent=5 // pred_region
      %s127 = ssub.s32 %s8, 1
      %p128 = scmp.lt.s32.totalorder %s13, 5
      %s129 = scalar_select %p128, %s13, 5
      %s130 = smul.addr %s129, 5
      %s131 = smul.addr %s130, 8
      %s132 = scalar_lea.vmem %s0, %s131
      %p133 = pneg %p34
      %p134 = pneg %p31
      %p135 = scmp.lt.s32.totalorder %s13, 5
      %s136 = scalar_select %p135, %s13, 5
      %s137 = smul.addr %s136, 4
      %s138 = smul.addr %s137, 8
      %s139 = scalar_lea.vmem %s1, %s138
      %p140 = pneg %p60
      %p141 = pneg %p57
      %p142 = pneg %p86
      %p143 = pneg %p83
      %p144 = scmp.lt.s32.totalorder %s13, 5
      %s145 = scalar_select %p144, %s13, 5
      %s146 = smul.addr %s145, 4
      %s147 = smul.addr %s146, 8
      %s148 = scalar_lea.vmem %s2, %s147
      %p149 = scmp.lt.s32.totalorder %s13, 5
      %s150 = scalar_select %p149, %s13, 5
      %s151 = smul.addr %s150, 5
      %s152 = smul.addr %s151, 8
      %s153 = scalar_lea.vmem %s0, %s152
      %p154 = scmp.lt.s32.totalorder %s13, 5
      %s155 = scalar_select %p154, %s13, 5
      %s156 = smul.addr %s155, 4
      %s157 = smul.addr %s156, 8
      %s158 = scalar_lea.vmem %s1, %s157
      %p159 = scmp.lt.s32.totalorder %s13, 5
      %s160 = scalar_select %p159, %s13, 5
      %s161 = smul.addr %s160, 4
      %s162 = smul.addr %s161, 8
      %s163 = scalar_lea.vmem %s2, %s162
      %v164 = vld [vmem:[%s153] sm:$0xff]
      %v165 = vld [vmem:[%s153 + $0x8] sm:$0xff]
      %v166 = vld [vmem:[%s153 + $0x10] sm:$0xff]
      %v167 = vld [vmem:[%s153 + $0x18] sm:$0xff]
      %v168 = vld [vmem:[%s153 + $0x20] sm:$0xf]
      %v169 = vmul.f32 %v164, 0.125
      %v170 = vmul.f32 %v165, 0.125
      %v171 = vmul.f32 %v166, 0.125
      %v172 = vmul.f32 %v167, 0.125
      %v173 = vmul.f32 %v164, 0.5
      %v174 = vmul.f32 %v165, 0.5
      %v175 = vmul.f32 %v166, 0.5
      %v176 = vmul.f32 %v167, 0.5
      %v177 = vmul.f32 %v168, 0.5
      %vm183 = vcmask 1046528
      %v184 = vrot.slane %v173, 1
      %v185 = vrot.slane %v174, 1
      %v186 = vsel %vm183, %v184, %v185
      %v187 = vrot.slane %v175, 1
      %v188 = vsel %vm183, %v185, %v187
      %v189 = vrot.slane %v176, 1
      %v190 = vsel %vm183, %v187, %v189
      %v191 = vrot.slane %v177, 1
      %v192 = vsel %vm183, %v189, %v191
      %v197 = vadd.f32 %v169, %v186
      %v198 = vadd.f32 %v170, %v188
      %v199 = vadd.f32 %v171, %v190
      %v200 = vadd.f32 %v172, %v192
      %v201 = vmul.f32 %v164, 0.75
      %v202 = vmul.f32 %v165, 0.75
      %v203 = vmul.f32 %v166, 0.75
      %v204 = vmul.f32 %v167, 0.75
      %v205 = vmul.f32 %v168, 0.75
      %vm211 = vcmask 1045504
      %v212 = vrot.slane %v201, 2
      %v213 = vrot.slane %v202, 2
      %v214 = vsel %vm211, %v212, %v213
      %v215 = vrot.slane %v203, 2
      %v216 = vsel %vm211, %v213, %v215
      %v217 = vrot.slane %v204, 2
      %v218 = vsel %vm211, %v215, %v217
      %v219 = vrot.slane %v205, 2
      %v220 = vsel %vm211, %v217, %v219
      %v225 = vadd.f32 %v197, %v214
      %v226 = vadd.f32 %v198, %v216
      %v227 = vadd.f32 %v199, %v218
      %v228 = vadd.f32 %v200, %v220
      %vm229 = vcmask 1044480
      %v230 = vrot.slane %v173, 3
      %v231 = vrot.slane %v174, 3
      %v232 = vsel %vm229, %v230, %v231
      %v233 = vrot.slane %v175, 3
      %v234 = vsel %vm229, %v231, %v233
      %v235 = vrot.slane %v176, 3
      %v236 = vsel %vm229, %v233, %v235
      %v237 = vrot.slane %v177, 3
      %v238 = vsel %vm229, %v235, %v237
      %v243 = vadd.f32 %v225, %v232
      %v244 = vadd.f32 %v226, %v234
      %v245 = vadd.f32 %v227, %v236
      %v246 = vadd.f32 %v228, %v238
      %v247 = vmul.f32 %v168, 0.125
      %vm253 = vcmask 1043456
      %v254 = vrot.slane %v169, 4
      %v255 = vrot.slane %v170, 4
      %v256 = vsel %vm253, %v254, %v255
      %v257 = vrot.slane %v171, 4
      %v258 = vsel %vm253, %v255, %v257
      %v259 = vrot.slane %v172, 4
      %v260 = vsel %vm253, %v257, %v259
      %v261 = vrot.slane %v247, 4
      %v262 = vsel %vm253, %v259, %v261
      %v267 = vadd.f32 %v243, %v256
      %v268 = vadd.f32 %v244, %v258
      %v269 = vadd.f32 %v245, %v260
      %v270 = vadd.f32 %v246, %v262
      %v271 = vmul.f32 %v267, 0.125
      %v272 = vmul.f32 %v268, 0.125
      %v273 = vmul.f32 %v269, 0.125
      %v274 = vmul.f32 %v270, 0.125
      %v275 = vmul.f32 %v267, 0.5
      %v276 = vmul.f32 %v268, 0.5
      %v277 = vmul.f32 %v269, 0.5
      %v278 = vmul.f32 %v270, 0.5
      %283 = vrot.lane.b32.xlu0 %v275, 127
      %v284 = vpop.permute.xlu0 %283
      %285 = vrot.lane.b32.xlu0 %v276, 127
      %v286 = vpop.permute.xlu0 %285
      %287 = vrot.lane.b32.xlu0 %v277, 127
      %v288 = vpop.permute.xlu0 %287
      %289 = vrot.lane.b32.xlu0 %v278, 127
      %v290 = vpop.permute.xlu0 %289
      %v295 = vadd.f32 %v271, %v284
      %v296 = vadd.f32 %v272, %v286
      %v297 = vadd.f32 %v273, %v288
      %v298 = vadd.f32 %v274, %v290
      %v299 = vmul.f32 %v267, 0.75
      %v300 = vmul.f32 %v268, 0.75
      %v301 = vmul.f32 %v269, 0.75
      %v302 = vmul.f32 %v270, 0.75
      %307 = vrot.lane.b32.xlu0 %v299, 126
      %v308 = vpop.permute.xlu0 %307
      %309 = vrot.lane.b32.xlu0 %v300, 126
      %v310 = vpop.permute.xlu0 %309
      %311 = vrot.lane.b32.xlu0 %v301, 126
      %v312 = vpop.permute.xlu0 %311
      %313 = vrot.lane.b32.xlu0 %v302, 126
      %v314 = vpop.permute.xlu0 %313
      %v319 = vadd.f32 %v295, %v308
      %v320 = vadd.f32 %v296, %v310
      %v321 = vadd.f32 %v297, %v312
      %v322 = vadd.f32 %v298, %v314
      %323 = vrot.lane.b32.xlu0 %v275, 125
      %v324 = vpop.permute.xlu0 %323
      %325 = vrot.lane.b32.xlu0 %v276, 125
      %v326 = vpop.permute.xlu0 %325
      %327 = vrot.lane.b32.xlu0 %v277, 125
      %v328 = vpop.permute.xlu0 %327
      %329 = vrot.lane.b32.xlu0 %v278, 125
      %v330 = vpop.permute.xlu0 %329
      %v335 = vadd.f32 %v319, %v324
      %v336 = vadd.f32 %v320, %v326
      %v337 = vadd.f32 %v321, %v328
      %v338 = vadd.f32 %v322, %v330
      %343 = vrot.lane.b32.xlu0 %v271, 124
      %v344 = vpop.permute.xlu0 %343
      %345 = vrot.lane.b32.xlu0 %v272, 124
      %v346 = vpop.permute.xlu0 %345
      %347 = vrot.lane.b32.xlu0 %v273, 124
      %v348 = vpop.permute.xlu0 %347
      %349 = vrot.lane.b32.xlu0 %v274, 124
      %v350 = vpop.permute.xlu0 %349
      %v355 = vadd.f32 %v335, %v344
      %v356 = vadd.f32 %v336, %v346
      %v357 = vadd.f32 %v337, %v348
      %v358 = vadd.f32 %v338, %v350
      %v359 = vld [vmem:[%s158] sm:$0xff]
      %v360 = vld [vmem:[%s158 + $0x8] sm:$0xff]
      %v361 = vld [vmem:[%s158 + $0x10] sm:$0xff]
      %v362 = vld [vmem:[%s158 + $0x18] sm:$0xff]
      %v363 = vadd.f32 %v355, %v359
      %v364 = vadd.f32 %v356, %v360
      %v365 = vadd.f32 %v357, %v361
      %v366 = vadd.f32 %v358, %v362
      %v367 = vmax.f32 %v363, 0.0
      %v368 = vmax.f32 %v364, 0.0
      %v369 = vmax.f32 %v365, 0.0
      %v370 = vmax.f32 %v366, 0.0
      %vm371 = vcmask 261120
      %372 = vst.msk [vmem:[%s163] sm:$0xff] %vm371, %v367
      %373 = vst.msk [vmem:[%s163 + $0x8] sm:$0xff] %vm371, %v368
      %374 = vst.msk [vmem:[%s163 + $0x10] sm:$0xff] %vm371, %v369
      %375 = vst.msk [vmem:[%s163 + $0x18] sm:$0xff] %vm371, %v370
      %p376 = scmp.lt.s32.totalorder %s13, 5
      %s377 = scalar_select %p376, %s13, 5
      %s378 = smul.addr %s377, 4
      %s379 = smul.addr %s378, 8
      %s380 = scalar_lea.vmem %s2, %s379
      // Predicated region
      $region29: #{lpnet_forward.59} parent=27 // pred_check
        %p381 = pneg %p83
      $region30: #{lpnet_forward.59} parent=27 // pred_check_branch
        %383 = sbr.rel (%p381) target = $region32
      $region31: #{lpnet_forward.59} parent=27 // pred_region
        _
      $region32: #{lpnet_forward.59} parent=27 // pred_fallthru
        _
    $region28: #{lpnet_forward.59} parent=5 // pred_fallthru
      _
    %p384 = scmp.le.s32.totalorder 2, %s8
    // Predicated region
    $region33: #{lpnet_forward.59} parent=5 // pred_check
      %p385 = pneg %p384
    $region34: #{lpnet_forward.59} parent=5 // pred_check_branch
      %387 = sbr.rel (%p385) target = $region36
    $region35: #{lpnet_forward.59} parent=5 // pred_region
      %s388 = ssub.s32 %s8, 2
      // Predicated region
      $region37: #{lpnet_forward.59} parent=35 // pred_check
        %p389 = pneg %p89
      $region38: #{lpnet_forward.59} parent=35 // pred_check_branch
        %391 = sbr.rel (%p389) target = $region40
      $region39: #{lpnet_forward.59} parent=35 // pred_region
        %p392 = scmp.lt.s32.totalorder %s14, 5
        %s393 = scalar_select %p392, %s14, 5
        %s394 = smul.addr %s393, 4
        %s395 = smul.addr %s394, 8
        %s396 = scalar_lea.vmem %s2, %s395
      $region40: #{lpnet_forward.59} parent=35 // pred_fallthru
        _
    $region36: #{lpnet_forward.59} parent=5 // pred_fallthru
      _
  $region6: #{lpnet_forward.59} parent=0 // loop_footer
    %s12 = sadd.s32 1, %s8
  $region7: #{lpnet_forward.59} parent=0 // loop_footer_branch
    %7 = sbr.rel target = $region3
  $region8: #{lpnet_forward.59} parent=0 // loop_exit
    _

</llo_original>
